<compile_context>
chip_gen: v7x
topology: tpu7x:2x2x1
jax: 0.10.0
libtpu: 0.0.40
codegen_flags: <defaults>
</compile_context>

<pallas_src>
import numpy as np
import jax
import jax.numpy as jnp
from jax import lax
from jax.experimental import pallas as pl
from jax.experimental.pallas import tpu as pltpu

H = 100          # hidden_states in the PyTorch module
HP = 128         # hidden padded to the 128-lane vreg width
G4 = 4 * HP      # padded, concatenated gates [i|f|o|g]
TC = 32          # timesteps per grid step (amortizes grid-step overhead)
SUB = 8          # rows flushed per store: one full (8, 128) f32 vreg tile


def make_lstm_kernel(tc, rem):
    """Kernel factory; `rem` = number of valid timesteps in the last chunk."""
    assert tc % SUB == 0 and 1 <= rem <= tc

    def kernel(pre_ref, w_hh_ref, h0_ref, c0_ref, h_out_ref, hn_ref, cn_ref):
        # pre_ref : VMEM (tc, G4) -- x_t*W_ih^T + (b_ih+b_hh), gate order [i|f|o|g]
        # w_hh_ref: VMEM (HP, G4) -- W_hh^T zero-padded; same block every grid step
        # h0/c0   : VMEM (1, HP)  -- initial LSTM state (padded)
        # h_out   : VMEM (tc, HP) -- hidden state h_t per timestep (lane-dense)
        # hn/cn   : VMEM (1, HP)  -- resident accumulator blocks = recurrent carry
        @pl.when(pl.program_id(0) == 0)
        def _():
            hn_ref[...] = h0_ref[...]
            cn_ref[...] = c0_ref[...]

        h = hn_ref[...]
        c = cn_ref[...]
        is_tail = pl.program_id(0) == pl.num_programs(0) - 1

        for j in range(tc // SUB):
            hs = []
            for s in range(SUB):              # unrolled: h/c stay in vregs
                t = j * SUB + s
                gates = pre_ref[pl.ds(t, 1), :] + jnp.dot(
                    h, w_hh_ref[...], preferred_element_type=jnp.float32)  # (1, G4)
                sig = jax.nn.sigmoid(gates[:, 0:3 * HP])   # [i|f|o] one EUP slab
                i_g = sig[:, 0 * HP:1 * HP]
                f_g = sig[:, 1 * HP:2 * HP]
                o_g = sig[:, 2 * HP:3 * HP]
                g_g = jnp.tanh(gates[:, 3 * HP:4 * HP])
                c_new = f_g * c + i_g * g_g   # padded lanes stay exactly 0
                h_new = o_g * jnp.tanh(c_new)
                if t >= rem:
                    # Only the padded tail chunk skips the state update here.
                    c = jnp.where(is_tail, c, c_new)
                    h = jnp.where(is_tail, h, h_new)
                else:
                    c, h = c_new, h_new
                hs.append(h)
            # One unmasked full-vreg (SUB, HP) store per sub-block.
            h_out_ref[pl.ds(j * SUB, SUB), :] = jnp.concatenate(hs, axis=0)

        hn_ref[...] = h
        cn_ref[...] = c

    return kernel


def _reorder_pad_gates(a):
    """Torch gate order [i|f|g|o] -> kernel order [i|f|o|g], each padded H -> HP."""
    i, f, g, o = jnp.split(a, 4, axis=-1)
    pad = [(0, 0)] * (a.ndim - 1) + [(0, HP - H)]
    return jnp.concatenate([jnp.pad(p_, pad) for p_ in (i, f, o, g)], axis=-1)


def make_params(key):
    """Deterministic init matching PyTorch LSTM/Linear shapes (uniform +-1/sqrt(H))."""
    ks = jax.random.split(key, 6)
    bound = 1.0 / np.sqrt(H)
    u = lambda k, s: jax.random.uniform(k, s, jnp.float32, -bound, bound)
    return dict(
        w_ih=u(ks[0], (4 * H, 1)),   # lstm.weight_ih_l0
        w_hh=u(ks[1], (4 * H, H)),   # lstm.weight_hh_l0
        b_ih=u(ks[2], (4 * H,)),     # lstm.bias_ih_l0
        b_hh=u(ks[3], (4 * H,)),     # lstm.bias_hh_l0
        w_c=u(ks[4], (1, H)),        # C.weight
        b_c=u(ks[5], (1,)),          # C.bias
    )


def pack_params(p):
    w_ih_p = _reorder_pad_gates(p["w_ih"].T)                                  # (1, G4)
    w_hh_p = _reorder_pad_gates(jnp.pad(p["w_hh"].T, ((0, HP - H), (0, 0))))  # (HP, G4)
    b_p = _reorder_pad_gates((p["b_ih"] + p["b_hh"])[None, :])                # (1, G4)
    w_c_p = jnp.pad(p["w_c"], ((0, 0), (0, HP - H)))                          # (1, HP)
    return w_ih_p, w_hh_p, b_p, w_c_p, p["b_c"].astype(jnp.float32)


def _pad_state(s):
    return jnp.pad(jnp.asarray(s, jnp.float32).reshape(1, H), ((0, 0), (0, HP - H)))


def linear_filter_forward(x, params, hs=None):
    """x: (S, 1, 1) f32 -> (y (S,1,1), (h_n, c_n) each (1,1,H)).

    Mirrors the torch module: `hs` is the carried LSTM state (zeros by default),
    and the returned (h_n, c_n) plays the role of the detached `self.hs`.
    """
    S = x.shape[0]
    w_ih_p, w_hh_p, b_p, w_c_p, b_c = pack_params(params)

    if hs is None:
        h0 = jnp.zeros((1, HP), jnp.float32)
        c0 = jnp.zeros((1, HP), jnp.float32)
    else:
        h0, c0 = _pad_state(hs[0]), _pad_state(hs[1])

    n_chunks = (S + TC - 1) // TC
    s_pad = TC * n_chunks
    rem = S - TC * (n_chunks - 1)          # valid timesteps in the last chunk
    x_flat = jnp.pad(x.reshape(S).astype(jnp.float32), (0, s_pad - S))

    # Input-side gate contribution, off the serial recurrence (vectorized, XLA):
    pre = x_flat[:, None] * w_ih_p + b_p                        # (s_pad, G4)

    h_all, h_n, c_n = pl.pallas_call(
        make_lstm_kernel(TC, rem),
        out_shape=(jax.ShapeDtypeStruct((s_pad, HP), jnp.float32),
                   jax.ShapeDtypeStruct((1, HP), jnp.float32),
                   jax.ShapeDtypeStruct((1, HP), jnp.float32)),
        grid_spec=pltpu.PrefetchScalarGridSpec(
            num_scalar_prefetch=0,
            grid=(n_chunks,),
            in_specs=[pl.BlockSpec((TC, G4), lambda i: (i, 0)),   # precomputed gates
                      pl.BlockSpec((HP, G4), lambda i: (0, 0)),   # W_hh^T (resident)
                      pl.BlockSpec((1, HP), lambda i: (0, 0)),    # h0
                      pl.BlockSpec((1, HP), lambda i: (0, 0))],   # c0
            out_specs=[pl.BlockSpec((TC, HP), lambda i: (i, 0)),  # h_t stream
                       pl.BlockSpec((1, HP), lambda i: (0, 0)),   # h_n (resident carry)
                       pl.BlockSpec((1, HP), lambda i: (0, 0))]), # c_n (resident carry)
        compiler_params=pltpu.CompilerParams(
            dimension_semantics=("arbitrary",)),                  # sequential recurrence
    )(pre, w_hh_p, h0, c0)

    # Deferred final Linear(100 -> 1): one (S,128)x(128,1) matmul in XLA.
    y = h_all[:S] @ w_c_p.T + b_c                                 # (S, 1)
    hs_out = (h_n[:, :H].reshape(1, 1, H), c_n[:, :H].reshape(1, 1, H))
    return y.reshape(S, 1, 1), hs_out


def ref_forward(x, p, hs=None):
    """Pure-JAX reference reproducing torch LSTM + Linear semantics."""
    def step(carry, x_t):
        h, c = carry
        gates = x_t @ p["w_ih"].T + h @ p["w_hh"].T + p["b_ih"] + p["b_hh"]
        i, f, g, o = jnp.split(gates, 4, axis=-1)
        i, f, o = jax.nn.sigmoid(i), jax.nn.sigmoid(f), jax.nn.sigmoid(o)
        g = jnp.tanh(g)
        c = f * c + i * g
        h = o * jnp.tanh(c)
        y = h @ p["w_c"].T + p["b_c"]
        return (h, c), y

    if hs is None:
        h0 = jnp.zeros((1, H), jnp.float32)
        c0 = jnp.zeros((1, H), jnp.float32)
    else:
        h0 = jnp.asarray(hs[0], jnp.float32).reshape(1, H)
        c0 = jnp.asarray(hs[1], jnp.float32).reshape(1, H)
    (h_n, c_n), ys = lax.scan(step, (h0, c0), x)
    return ys, (h_n.reshape(1, 1, H), c_n.reshape(1, 1, H))


if __name__ == "__main__":
    key = jax.random.PRNGKey(0)
    k_param, k_x1, k_x2 = jax.random.split(key, 3)
    params = make_params(k_param)

    S = 70   # 3 chunks of TC=32: two full chunks + a padded tail (6 valid steps)
    x1 = jax.random.normal(k_x1, (S, 1, 1), dtype=jnp.float32)
    x2 = jax.random.normal(k_x2, (S, 1, 1), dtype=jnp.float32)

    # First call: zero initial state (like the freshly-constructed torch module).
    y1, hs1 = linear_filter_forward(x1, params)
    # Second call: carries the detached state, like torch's self.hs.
    y2, hs2 = linear_filter_forward(x2, params, hs=hs1)
    jax.block_until_ready((y1, y2, hs2))

    y1_ref, hs1_ref = ref_forward(x1, params)
    y2_ref, hs2_ref = ref_forward(x2, params, hs1_ref)
    jax.block_until_ready((y1_ref, y2_ref, hs2_ref))

    assert y1.shape == (S, 1, 1) and y1.dtype == jnp.float32
    np.testing.assert_allclose(np.asarray(y1), np.asarray(y1_ref), rtol=1e-5, atol=1e-5)
    np.testing.assert_allclose(np.asarray(hs1[0]), np.asarray(hs1_ref[0]), rtol=1e-5, atol=1e-5)
    np.testing.assert_allclose(np.asarray(hs1[1]), np.asarray(hs1_ref[1]), rtol=1e-5, atol=1e-5)
    np.testing.assert_allclose(np.asarray(y2), np.asarray(y2_ref), rtol=1e-5, atol=1e-5)
    np.testing.assert_allclose(np.asarray(hs2[0]), np.asarray(hs2_ref[0]), rtol=1e-5, atol=1e-5)
    np.testing.assert_allclose(np.asarray(hs2[1]), np.asarray(hs2_ref[1]), rtol=1e-5, atol=1e-5)
    print("KERNEL_OK")
</pallas_src>

<mosaic_0001>
module attributes {stable_mosaic.version = 11 : i64} {
  func.func @kernel(%arg0: i32, %arg1: memref<32x512xf32, #tpu.memory_space<vmem>>, %arg2: memref<128x512xf32, #tpu.memory_space<vmem>>, %arg3: memref<1x128xf32, #tpu.memory_space<vmem>>, %arg4: memref<1x128xf32, #tpu.memory_space<vmem>>, %arg5: memref<32x128xf32, #tpu.memory_space<vmem>>, %arg6: memref<1x128xf32, #tpu.memory_space<vmem>>, %arg7: memref<1x128xf32, #tpu.memory_space<vmem>>) attributes {dimension_semantics = [#tpu.dimension_semantics<arbitrary>], iteration_bounds = array<i64: 3>, scalar_prefetch = 0 : i64, scratch_operands = 0 : i64, tpu.core_type = #tpu.core_type<tc>, window_params = [{transform_indices = @transform_0, window_bounds = array<i64: 32, 512>}, {pipeline_mode = #tpu.pipeline_mode<synchronous>, transform_indices = @transform_1, window_bounds = array<i64: 128, 512>}, {pipeline_mode = #tpu.pipeline_mode<synchronous>, transform_indices = @transform_2, window_bounds = array<i64: 1, 128>}, {pipeline_mode = #tpu.pipeline_mode<synchronous>, transform_indices = @transform_3, window_bounds = array<i64: 1, 128>}, {transform_indices = @transform_4, window_bounds = array<i64: 32, 128>}, {pipeline_mode = #tpu.pipeline_mode<synchronous>, transform_indices = @transform_5, window_bounds = array<i64: 1, 128>}, {pipeline_mode = #tpu.pipeline_mode<synchronous>, transform_indices = @transform_6, window_bounds = array<i64: 1, 128>}]} {
    %c0_i32 = arith.constant 0 : i32
    %0 = arith.cmpi eq, %arg0, %c0_i32 : i32
    %1 = arith.extui %0 : i1 to i32
    %c0_i32_0 = arith.constant 0 : i32
    %2 = arith.cmpi ne, %1, %c0_i32_0 : i32
    scf.if %2 {
      %c0_176 = arith.constant 0 : index
      %c0_177 = arith.constant 0 : index
      %708 = vector.load %arg3[%c0_176, %c0_177] : memref<1x128xf32, #tpu.memory_space<vmem>>, vector<1x128xf32>
      %c0_178 = arith.constant 0 : index
      %c0_179 = arith.constant 0 : index
      %709 = vector.load %arg6[%c0_178, %c0_179] : memref<1x128xf32, #tpu.memory_space<vmem>>, vector<1x128xf32>
      tpu.vector_store %arg6[%c0_178, %c0_179], %708 {strides = array<i32>} : memref<1x128xf32, #tpu.memory_space<vmem>>, vector<1x128xf32>,
      %c0_180 = arith.constant 0 : index
      %c0_181 = arith.constant 0 : index
      %710 = vector.load %arg4[%c0_180, %c0_181] : memref<1x128xf32, #tpu.memory_space<vmem>>, vector<1x128xf32>
      %c0_182 = arith.constant 0 : index
      %c0_183 = arith.constant 0 : index
      %711 = vector.load %arg7[%c0_182, %c0_183] : memref<1x128xf32, #tpu.memory_space<vmem>>, vector<1x128xf32>
      tpu.vector_store %arg7[%c0_182, %c0_183], %710 {strides = array<i32>} : memref<1x128xf32, #tpu.memory_space<vmem>>, vector<1x128xf32>,
    } else {
    }
    %c0 = arith.constant 0 : index
    %c0_1 = arith.constant 0 : index
    %3 = vector.load %arg6[%c0, %c0_1] : memref<1x128xf32, #tpu.memory_space<vmem>>, vector<1x128xf32>
    %c0_2 = arith.constant 0 : index
    %c0_3 = arith.constant 0 : index
    %4 = vector.load %arg7[%c0_2, %c0_3] : memref<1x128xf32, #tpu.memory_space<vmem>>, vector<1x128xf32>
    %c2_i32 = arith.constant 2 : i32
    %5 = arith.cmpi eq, %arg0, %c2_i32 : i32
    %c0_4 = arith.constant 0 : index
    %c0_5 = arith.constant 0 : index
    %6 = vector.load %arg1[%c0_4, %c0_5] : memref<32x512xf32, #tpu.memory_space<vmem>>, vector<1x512xf32>
    %c0_6 = arith.constant 0 : index
    %c0_7 = arith.constant 0 : index
    %7 = vector.load %arg2[%c0_6, %c0_7] : memref<128x512xf32, #tpu.memory_space<vmem>>, vector<128x512xf32>
    %cst = arith.constant dense<0.000000e+00> : vector<1x512xf32>
    %8 = tpu.matmul %3, %7, %cst {dimension_numbers = #tpu.dot_dimension_numbers<[1], [0], [0], [1], [0, 0, 1, 1], [], []>} : vector<1x128xf32>, vector<128x512xf32>, vector<1x512xf32> -> vector<1x512xf32>
    %9 = arith.addf %6, %8 : vector<1x512xf32>
    %10 = vector.extract_strided_slice %9 {offsets = [0, 0], sizes = [1, 384], strides = [1, 1]} : vector<1x512xf32> to vector<1x384xf32>
    %11 = arith.negf %10 : vector<1x384xf32>
    %12 = math.exp %11 : vector<1x384xf32>
    %cst_8 = arith.constant 1.000000e+00 : f32
    %13 = vector.broadcast %cst_8 : f32 to vector<1x384xf32>
    %14 = arith.addf %13, %12 : vector<1x384xf32>
    %15 = arith.divf %13, %14 : vector<1x384xf32>
    %16 = vector.extract_strided_slice %15 {offsets = [0, 0], sizes = [1, 128], strides = [1, 1]} : vector<1x384xf32> to vector<1x128xf32>
    %17 = vector.extract_strided_slice %15 {offsets = [0, 128], sizes = [1, 128], strides = [1, 1]} : vector<1x384xf32> to vector<1x128xf32>
    %18 = vector.extract_strided_slice %15 {offsets = [0, 256], sizes = [1, 128], strides = [1, 1]} : vector<1x384xf32> to vector<1x128xf32>
    %19 = vector.extract_strided_slice %9 {offsets = [0, 384], sizes = [1, 128], strides = [1, 1]} : vector<1x512xf32> to vector<1x128xf32>
    %20 = math.tanh %19 : vector<1x128xf32>
    %21 = arith.mulf %17, %4 : vector<1x128xf32>
    %22 = arith.mulf %16, %20 : vector<1x128xf32>
    %23 = arith.addf %21, %22 : vector<1x128xf32>
    %24 = math.tanh %23 : vector<1x128xf32>
    %25 = arith.mulf %18, %24 : vector<1x128xf32>
    %c1 = arith.constant 1 : index
    %c0_9 = arith.constant 0 : index
    %26 = vector.load %arg1[%c1, %c0_9] : memref<32x512xf32, #tpu.memory_space<vmem>>, vector<1x512xf32>
    %c0_10 = arith.constant 0 : index
    %c0_11 = arith.constant 0 : index
    %27 = vector.load %arg2[%c0_10, %c0_11] : memref<128x512xf32, #tpu.memory_space<vmem>>, vector<128x512xf32>
    %cst_12 = arith.constant dense<0.000000e+00> : vector<1x512xf32>
    %28 = tpu.matmul %25, %27, %cst_12 {dimension_numbers = #tpu.dot_dimension_numbers<[1], [0], [0], [1], [0, 0, 1, 1], [], []>} : vector<1x128xf32>, vector<128x512xf32>, vector<1x512xf32> -> vector<1x512xf32>
    %29 = arith.addf %26, %28 : vector<1x512xf32>
    %30 = vector.extract_strided_slice %29 {offsets = [0, 0], sizes = [1, 384], strides = [1, 1]} : vector<1x512xf32> to vector<1x384xf32>
    %31 = arith.negf %30 : vector<1x384xf32>
    %32 = math.exp %31 : vector<1x384xf32>
    %cst_13 = arith.constant 1.000000e+00 : f32
    %33 = vector.broadcast %cst_13 : f32 to vector<1x384xf32>
    %34 = arith.addf %33, %32 : vector<1x384xf32>
    %35 = arith.divf %33, %34 : vector<1x384xf32>
    %36 = vector.extract_strided_slice %35 {offsets = [0, 0], sizes = [1, 128], strides = [1, 1]} : vector<1x384xf32> to vector<1x128xf32>
    %37 = vector.extract_strided_slice %35 {offsets = [0, 128], sizes = [1, 128], strides = [1, 1]} : vector<1x384xf32> to vector<1x128xf32>
    %38 = vector.extract_strided_slice %35 {offsets = [0, 256], sizes = [1, 128], strides = [1, 1]} : vector<1x384xf32> to vector<1x128xf32>
    %39 = vector.extract_strided_slice %29 {offsets = [0, 384], sizes = [1, 128], strides = [1, 1]} : vector<1x512xf32> to vector<1x128xf32>
    %40 = math.tanh %39 : vector<1x128xf32>
    %41 = arith.mulf %37, %23 : vector<1x128xf32>
    %42 = arith.mulf %36, %40 : vector<1x128xf32>
    %43 = arith.addf %41, %42 : vector<1x128xf32>
    %44 = math.tanh %43 : vector<1x128xf32>
    %45 = arith.mulf %38, %44 : vector<1x128xf32>
    %c2 = arith.constant 2 : index
    %c0_14 = arith.constant 0 : index
    %46 = vector.load %arg1[%c2, %c0_14] : memref<32x512xf32, #tpu.memory_space<vmem>>, vector<1x512xf32>
    %c0_15 = arith.constant 0 : index
    %c0_16 = arith.constant 0 : index
    %47 = vector.load %arg2[%c0_15, %c0_16] : memref<128x512xf32, #tpu.memory_space<vmem>>, vector<128x512xf32>
    %cst_17 = arith.constant dense<0.000000e+00> : vector<1x512xf32>
    %48 = tpu.matmul %45, %47, %cst_17 {dimension_numbers = #tpu.dot_dimension_numbers<[1], [0], [0], [1], [0, 0, 1, 1], [], []>} : vector<1x128xf32>, vector<128x512xf32>, vector<1x512xf32> -> vector<1x512xf32>
    %49 = arith.addf %46, %48 : vector<1x512xf32>
    %50 = vector.extract_strided_slice %49 {offsets = [0, 0], sizes = [1, 384], strides = [1, 1]} : vector<1x512xf32> to vector<1x384xf32>
    %51 = arith.negf %50 : vector<1x384xf32>
    %52 = math.exp %51 : vector<1x384xf32>
    %cst_18 = arith.constant 1.000000e+00 : f32
    %53 = vector.broadcast %cst_18 : f32 to vector<1x384xf32>
    %54 = arith.addf %53, %52 : vector<1x384xf32>
    %55 = arith.divf %53, %54 : vector<1x384xf32>
    %56 = vector.extract_strided_slice %55 {offsets = [0, 0], sizes = [1, 128], strides = [1, 1]} : vector<1x384xf32> to vector<1x128xf32>
    %57 = vector.extract_strided_slice %55 {offsets = [0, 128], sizes = [1, 128], strides = [1, 1]} : vector<1x384xf32> to vector<1x128xf32>
    %58 = vector.extract_strided_slice %55 {offsets = [0, 256], sizes = [1, 128], strides = [1, 1]} : vector<1x384xf32> to vector<1x128xf32>
    %59 = vector.extract_strided_slice %49 {offsets = [0, 384], sizes = [1, 128], strides = [1, 1]} : vector<1x512xf32> to vector<1x128xf32>
    %60 = math.tanh %59 : vector<1x128xf32>
    %61 = arith.mulf %57, %43 : vector<1x128xf32>
    %62 = arith.mulf %56, %60 : vector<1x128xf32>
    %63 = arith.addf %61, %62 : vector<1x128xf32>
    %64 = math.tanh %63 : vector<1x128xf32>
    %65 = arith.mulf %58, %64 : vector<1x128xf32>
    %c3 = arith.constant 3 : index
    %c0_19 = arith.constant 0 : index
    %66 = vector.load %arg1[%c3, %c0_19] : memref<32x512xf32, #tpu.memory_space<vmem>>, vector<1x512xf32>
    %c0_20 = arith.constant 0 : index
    %c0_21 = arith.constant 0 : index
    %67 = vector.load %arg2[%c0_20, %c0_21] : memref<128x512xf32, #tpu.memory_space<vmem>>, vector<128x512xf32>
    %cst_22 = arith.constant dense<0.000000e+00> : vector<1x512xf32>
    %68 = tpu.matmul %65, %67, %cst_22 {dimension_numbers = #tpu.dot_dimension_numbers<[1], [0], [0], [1], [0, 0, 1, 1], [], []>} : vector<1x128xf32>, vector<128x512xf32>, vector<1x512xf32> -> vector<1x512xf32>
    %69 = arith.addf %66, %68 : vector<1x512xf32>
    %70 = vector.extract_strided_slice %69 {offsets = [0, 0], sizes = [1, 384], strides = [1, 1]} : vector<1x512xf32> to vector<1x384xf32>
    %71 = arith.negf %70 : vector<1x384xf32>
    %72 = math.exp %71 : vector<1x384xf32>
    %cst_23 = arith.constant 1.000000e+00 : f32
    %73 = vector.broadcast %cst_23 : f32 to vector<1x384xf32>
    %74 = arith.addf %73, %72 : vector<1x384xf32>
    %75 = arith.divf %73, %74 : vector<1x384xf32>
    %76 = vector.extract_strided_slice %75 {offsets = [0, 0], sizes = [1, 128], strides = [1, 1]} : vector<1x384xf32> to vector<1x128xf32>
    %77 = vector.extract_strided_slice %75 {offsets = [0, 128], sizes = [1, 128], strides = [1, 1]} : vector<1x384xf32> to vector<1x128xf32>
    %78 = vector.extract_strided_slice %75 {offsets = [0, 256], sizes = [1, 128], strides = [1, 1]} : vector<1x384xf32> to vector<1x128xf32>
    %79 = vector.extract_strided_slice %69 {offsets = [0, 384], sizes = [1, 128], strides = [1, 1]} : vector<1x512xf32> to vector<1x128xf32>
    %80 = math.tanh %79 : vector<1x128xf32>
    %81 = arith.mulf %77, %63 : vector<1x128xf32>
    %82 = arith.mulf %76, %80 : vector<1x128xf32>
    %83 = arith.addf %81, %82 : vector<1x128xf32>
    %84 = math.tanh %83 : vector<1x128xf32>
    %85 = arith.mulf %78, %84 : vector<1x128xf32>
    %c4 = arith.constant 4 : index
    %c0_24 = arith.constant 0 : index
    %86 = vector.load %arg1[%c4, %c0_24] : memref<32x512xf32, #tpu.memory_space<vmem>>, vector<1x512xf32>
    %c0_25 = arith.constant 0 : index
    %c0_26 = arith.constant 0 : index
    %87 = vector.load %arg2[%c0_25, %c0_26] : memref<128x512xf32, #tpu.memory_space<vmem>>, vector<128x512xf32>
    %cst_27 = arith.constant dense<0.000000e+00> : vector<1x512xf32>
    %88 = tpu.matmul %85, %87, %cst_27 {dimension_numbers = #tpu.dot_dimension_numbers<[1], [0], [0], [1], [0, 0, 1, 1], [], []>} : vector<1x128xf32>, vector<128x512xf32>, vector<1x512xf32> -> vector<1x512xf32>
    %89 = arith.addf %86, %88 : vector<1x512xf32>
    %90 = vector.extract_strided_slice %89 {offsets = [0, 0], sizes = [1, 384], strides = [1, 1]} : vector<1x512xf32> to vector<1x384xf32>
    %91 = arith.negf %90 : vector<1x384xf32>
    %92 = math.exp %91 : vector<1x384xf32>
    %cst_28 = arith.constant 1.000000e+00 : f32
    %93 = vector.broadcast %cst_28 : f32 to vector<1x384xf32>
    %94 = arith.addf %93, %92 : vector<1x384xf32>
    %95 = arith.divf %93, %94 : vector<1x384xf32>
    %96 = vector.extract_strided_slice %95 {offsets = [0, 0], sizes = [1, 128], strides = [1, 1]} : vector<1x384xf32> to vector<1x128xf32>
    %97 = vector.extract_strided_slice %95 {offsets = [0, 128], sizes = [1, 128], strides = [1, 1]} : vector<1x384xf32> to vector<1x128xf32>
    %98 = vector.extract_strided_slice %95 {offsets = [0, 256], sizes = [1, 128], strides = [1, 1]} : vector<1x384xf32> to vector<1x128xf32>
    %99 = vector.extract_strided_slice %89 {offsets = [0, 384], sizes = [1, 128], strides = [1, 1]} : vector<1x512xf32> to vector<1x128xf32>
    %100 = math.tanh %99 : vector<1x128xf32>
    %101 = arith.mulf %97, %83 : vector<1x128xf32>
    %102 = arith.mulf %96, %100 : vector<1x128xf32>
    %103 = arith.addf %101, %102 : vector<1x128xf32>
    %104 = math.tanh %103 : vector<1x128xf32>
    %105 = arith.mulf %98, %104 : vector<1x128xf32>
    %c5 = arith.constant 5 : index
    %c0_29 = arith.constant 0 : index
    %106 = vector.load %arg1[%c5, %c0_29] : memref<32x512xf32, #tpu.memory_space<vmem>>, vector<1x512xf32>
    %c0_30 = arith.constant 0 : index
    %c0_31 = arith.constant 0 : index
    %107 = vector.load %arg2[%c0_30, %c0_31] : memref<128x512xf32, #tpu.memory_space<vmem>>, vector<128x512xf32>
    %cst_32 = arith.constant dense<0.000000e+00> : vector<1x512xf32>
    %108 = tpu.matmul %105, %107, %cst_32 {dimension_numbers = #tpu.dot_dimension_numbers<[1], [0], [0], [1], [0, 0, 1, 1], [], []>} : vector<1x128xf32>, vector<128x512xf32>, vector<1x512xf32> -> vector<1x512xf32>
    %109 = arith.addf %106, %108 : vector<1x512xf32>
    %110 = vector.extract_strided_slice %109 {offsets = [0, 0], sizes = [1, 384], strides = [1, 1]} : vector<1x512xf32> to vector<1x384xf32>
    %111 = arith.negf %110 : vector<1x384xf32>
    %112 = math.exp %111 : vector<1x384xf32>
    %cst_33 = arith.constant 1.000000e+00 : f32
    %113 = vector.broadcast %cst_33 : f32 to vector<1x384xf32>
    %114 = arith.addf %113, %112 : vector<1x384xf32>
    %115 = arith.divf %113, %114 : vector<1x384xf32>
    %116 = vector.extract_strided_slice %115 {offsets = [0, 0], sizes = [1, 128], strides = [1, 1]} : vector<1x384xf32> to vector<1x128xf32>
    %117 = vector.extract_strided_slice %115 {offsets = [0, 128], sizes = [1, 128], strides = [1, 1]} : vector<1x384xf32> to vector<1x128xf32>
    %118 = vector.extract_strided_slice %115 {offsets = [0, 256], sizes = [1, 128], strides = [1, 1]} : vector<1x384xf32> to vector<1x128xf32>
    %119 = vector.extract_strided_slice %109 {offsets = [0, 384], sizes = [1, 128], strides = [1, 1]} : vector<1x512xf32> to vector<1x128xf32>
    %120 = math.tanh %119 : vector<1x128xf32>
    %121 = arith.mulf %117, %103 : vector<1x128xf32>
    %122 = arith.mulf %116, %120 : vector<1x128xf32>
    %123 = arith.addf %121, %122 : vector<1x128xf32>
    %124 = math.tanh %123 : vector<1x128xf32>
    %125 = arith.mulf %118, %124 : vector<1x128xf32>
    %c6 = arith.constant 6 : index
    %c0_34 = arith.constant 0 : index
    %126 = vector.load %arg1[%c6, %c0_34] : memref<32x512xf32, #tpu.memory_space<vmem>>, vector<1x512xf32>
    %c0_35 = arith.constant 0 : index
    %c0_36 = arith.constant 0 : index
    %127 = vector.load %arg2[%c0_35, %c0_36] : memref<128x512xf32, #tpu.memory_space<vmem>>, vector<128x512xf32>
    %cst_37 = arith.constant dense<0.000000e+00> : vector<1x512xf32>
    %128 = tpu.matmul %125, %127, %cst_37 {dimension_numbers = #tpu.dot_dimension_numbers<[1], [0], [0], [1], [0, 0, 1, 1], [], []>} : vector<1x128xf32>, vector<128x512xf32>, vector<1x512xf32> -> vector<1x512xf32>
    %129 = arith.addf %126, %128 : vector<1x512xf32>
    %130 = vector.extract_strided_slice %129 {offsets = [0, 0], sizes = [1, 384], strides = [1, 1]} : vector<1x512xf32> to vector<1x384xf32>
    %131 = arith.negf %130 : vector<1x384xf32>
    %132 = math.exp %131 : vector<1x384xf32>
    %cst_38 = arith.constant 1.000000e+00 : f32
    %133 = vector.broadcast %cst_38 : f32 to vector<1x384xf32>
    %134 = arith.addf %133, %132 : vector<1x384xf32>
    %135 = arith.divf %133, %134 : vector<1x384xf32>
    %136 = vector.extract_strided_slice %135 {offsets = [0, 0], sizes = [1, 128], strides = [1, 1]} : vector<1x384xf32> to vector<1x128xf32>
    %137 = vector.extract_strided_slice %135 {offsets = [0, 128], sizes = [1, 128], strides = [1, 1]} : vector<1x384xf32> to vector<1x128xf32>
    %138 = vector.extract_strided_slice %135 {offsets = [0, 256], sizes = [1, 128], strides = [1, 1]} : vector<1x384xf32> to vector<1x128xf32>
    %139 = vector.extract_strided_slice %129 {offsets = [0, 384], sizes = [1, 128], strides = [1, 1]} : vector<1x512xf32> to vector<1x128xf32>
    %140 = math.tanh %139 : vector<1x128xf32>
    %141 = arith.mulf %137, %123 : vector<1x128xf32>
    %142 = arith.mulf %136, %140 : vector<1x128xf32>
    %143 = arith.addf %141, %142 : vector<1x128xf32>
    %144 = math.tanh %143 : vector<1x128xf32>
    %145 = arith.mulf %138, %144 : vector<1x128xf32>
    %146 = arith.select %5, %123, %143 : vector<1x128xf32>
    %147 = arith.select %5, %125, %145 : vector<1x128xf32>
    %c7 = arith.constant 7 : index
    %c0_39 = arith.constant 0 : index
    %148 = vector.load %arg1[%c7, %c0_39] : memref<32x512xf32, #tpu.memory_space<vmem>>, vector<1x512xf32>
    %c0_40 = arith.constant 0 : index
    %c0_41 = arith.constant 0 : index
    %149 = vector.load %arg2[%c0_40, %c0_41] : memref<128x512xf32, #tpu.memory_space<vmem>>, vector<128x512xf32>
    %cst_42 = arith.constant dense<0.000000e+00> : vector<1x512xf32>
    %150 = tpu.matmul %147, %149, %cst_42 {dimension_numbers = #tpu.dot_dimension_numbers<[1], [0], [0], [1], [0, 0, 1, 1], [], []>} : vector<1x128xf32>, vector<128x512xf32>, vector<1x512xf32> -> vector<1x512xf32>
    %151 = arith.addf %148, %150 : vector<1x512xf32>
    %152 = vector.extract_strided_slice %151 {offsets = [0, 0], sizes = [1, 384], strides = [1, 1]} : vector<1x512xf32> to vector<1x384xf32>
    %153 = arith.negf %152 : vector<1x384xf32>
    %154 = math.exp %153 : vector<1x384xf32>
    %cst_43 = arith.constant 1.000000e+00 : f32
    %155 = vector.broadcast %cst_43 : f32 to vector<1x384xf32>
    %156 = arith.addf %155, %154 : vector<1x384xf32>
    %157 = arith.divf %155, %156 : vector<1x384xf32>
    %158 = vector.extract_strided_slice %157 {offsets = [0, 0], sizes = [1, 128], strides = [1, 1]} : vector<1x384xf32> to vector<1x128xf32>
    %159 = vector.extract_strided_slice %157 {offsets = [0, 128], sizes = [1, 128], strides = [1, 1]} : vector<1x384xf32> to vector<1x128xf32>
    %160 = vector.extract_strided_slice %157 {offsets = [0, 256], sizes = [1, 128], strides = [1, 1]} : vector<1x384xf32> to vector<1x128xf32>
    %161 = vector.extract_strided_slice %151 {offsets = [0, 384], sizes = [1, 128], strides = [1, 1]} : vector<1x512xf32> to vector<1x128xf32>
    %162 = math.tanh %161 : vector<1x128xf32>
    %163 = arith.mulf %159, %146 : vector<1x128xf32>
    %164 = arith.mulf %158, %162 : vector<1x128xf32>
    %165 = arith.addf %163, %164 : vector<1x128xf32>
    %166 = math.tanh %165 : vector<1x128xf32>
    %167 = arith.mulf %160, %166 : vector<1x128xf32>
    %168 = arith.select %5, %146, %165 : vector<1x128xf32>
    %169 = arith.select %5, %147, %167 : vector<1x128xf32>
    %170 = tpu.concatenate %25, %45, %65, %85, %105, %125, %147, %169 in 0 : vector<1x128xf32>, vector<1x128xf32>, vector<1x128xf32>, vector<1x128xf32>, vector<1x128xf32>, vector<1x128xf32>, vector<1x128xf32>, vector<1x128xf32> -> vector<8x128xf32>
    %c0_44 = arith.constant 0 : index
    %c0_45 = arith.constant 0 : index
    %171 = vector.load %arg5[%c0_44, %c0_45] : memref<32x128xf32, #tpu.memory_space<vmem>>, vector<8x128xf32>
    tpu.vector_store %arg5[%c0_44, %c0_45], %170 {strides = array<i32>} : memref<32x128xf32, #tpu.memory_space<vmem>>, vector<8x128xf32>,
    %c8 = arith.constant 8 : index
    %c0_46 = arith.constant 0 : index
    %172 = vector.load %arg1[%c8, %c0_46] : memref<32x512xf32, #tpu.memory_space<vmem>>, vector<1x512xf32>
    %c0_47 = arith.constant 0 : index
    %c0_48 = arith.constant 0 : index
    %173 = vector.load %arg2[%c0_47, %c0_48] : memref<128x512xf32, #tpu.memory_space<vmem>>, vector<128x512xf32>
    %cst_49 = arith.constant dense<0.000000e+00> : vector<1x512xf32>
    %174 = tpu.matmul %169, %173, %cst_49 {dimension_numbers = #tpu.dot_dimension_numbers<[1], [0], [0], [1], [0, 0, 1, 1], [], []>} : vector<1x128xf32>, vector<128x512xf32>, vector<1x512xf32> -> vector<1x512xf32>
    %175 = arith.addf %172, %174 : vector<1x512xf32>
    %176 = vector.extract_strided_slice %175 {offsets = [0, 0], sizes = [1, 384], strides = [1, 1]} : vector<1x512xf32> to vector<1x384xf32>
    %177 = arith.negf %176 : vector<1x384xf32>
    %178 = math.exp %177 : vector<1x384xf32>
    %cst_50 = arith.constant 1.000000e+00 : f32
    %179 = vector.broadcast %cst_50 : f32 to vector<1x384xf32>
    %180 = arith.addf %179, %178 : vector<1x384xf32>
    %181 = arith.divf %179, %180 : vector<1x384xf32>
    %182 = vector.extract_strided_slice %181 {offsets = [0, 0], sizes = [1, 128], strides = [1, 1]} : vector<1x384xf32> to vector<1x128xf32>
    %183 = vector.extract_strided_slice %181 {offsets = [0, 128], sizes = [1, 128], strides = [1, 1]} : vector<1x384xf32> to vector<1x128xf32>
    %184 = vector.extract_strided_slice %181 {offsets = [0, 256], sizes = [1, 128], strides = [1, 1]} : vector<1x384xf32> to vector<1x128xf32>
    %185 = vector.extract_strided_slice %175 {offsets = [0, 384], sizes = [1, 128], strides = [1, 1]} : vector<1x512xf32> to vector<1x128xf32>
    %186 = math.tanh %185 : vector<1x128xf32>
    %187 = arith.mulf %183, %168 : vector<1x128xf32>
    %188 = arith.mulf %182, %186 : vector<1x128xf32>
    %189 = arith.addf %187, %188 : vector<1x128xf32>
    %190 = math.tanh %189 : vector<1x128xf32>
    %191 = arith.mulf %184, %190 : vector<1x128xf32>
    %192 = arith.select %5, %168, %189 : vector<1x128xf32>
    %193 = arith.select %5, %169, %191 : vector<1x128xf32>
    %c9 = arith.constant 9 : index
    %c0_51 = arith.constant 0 : index
    %194 = vector.load %arg1[%c9, %c0_51] : memref<32x512xf32, #tpu.memory_space<vmem>>, vector<1x512xf32>
    %c0_52 = arith.constant 0 : index
    %c0_53 = arith.constant 0 : index
    %195 = vector.load %arg2[%c0_52, %c0_53] : memref<128x512xf32, #tpu.memory_space<vmem>>, vector<128x512xf32>
    %cst_54 = arith.constant dense<0.000000e+00> : vector<1x512xf32>
    %196 = tpu.matmul %193, %195, %cst_54 {dimension_numbers = #tpu.dot_dimension_numbers<[1], [0], [0], [1], [0, 0, 1, 1], [], []>} : vector<1x128xf32>, vector<128x512xf32>, vector<1x512xf32> -> vector<1x512xf32>
    %197 = arith.addf %194, %196 : vector<1x512xf32>
    %198 = vector.extract_strided_slice %197 {offsets = [0, 0], sizes = [1, 384], strides = [1, 1]} : vector<1x512xf32> to vector<1x384xf32>
    %199 = arith.negf %198 : vector<1x384xf32>
    %200 = math.exp %199 : vector<1x384xf32>
    %cst_55 = arith.constant 1.000000e+00 : f32
    %201 = vector.broadcast %cst_55 : f32 to vector<1x384xf32>
    %202 = arith.addf %201, %200 : vector<1x384xf32>
    %203 = arith.divf %201, %202 : vector<1x384xf32>
    %204 = vector.extract_strided_slice %203 {offsets = [0, 0], sizes = [1, 128], strides = [1, 1]} : vector<1x384xf32> to vector<1x128xf32>
    %205 = vector.extract_strided_slice %203 {offsets = [0, 128], sizes = [1, 128], strides = [1, 1]} : vector<1x384xf32> to vector<1x128xf32>
    %206 = vector.extract_strided_slice %203 {offsets = [0, 256], sizes = [1, 128], strides = [1, 1]} : vector<1x384xf32> to vector<1x128xf32>
    %207 = vector.extract_strided_slice %197 {offsets = [0, 384], sizes = [1, 128], strides = [1, 1]} : vector<1x512xf32> to vector<1x128xf32>
    %208 = math.tanh %207 : vector<1x128xf32>
    %209 = arith.mulf %205, %192 : vector<1x128xf32>
    %210 = arith.mulf %204, %208 : vector<1x128xf32>
    %211 = arith.addf %209, %210 : vector<1x128xf32>
    %212 = math.tanh %211 : vector<1x128xf32>
    %213 = arith.mulf %206, %212 : vector<1x128xf32>
    %214 = arith.select %5, %192, %211 : vector<1x128xf32>
    %215 = arith.select %5, %193, %213 : vector<1x128xf32>
    %c10 = arith.constant 10 : index
    %c0_56 = arith.constant 0 : index
    %216 = vector.load %arg1[%c10, %c0_56] : memref<32x512xf32, #tpu.memory_space<vmem>>, vector<1x512xf32>
    %c0_57 = arith.constant 0 : index
    %c0_58 = arith.constant 0 : index
    %217 = vector.load %arg2[%c0_57, %c0_58] : memref<128x512xf32, #tpu.memory_space<vmem>>, vector<128x512xf32>
    %cst_59 = arith.constant dense<0.000000e+00> : vector<1x512xf32>
    %218 = tpu.matmul %215, %217, %cst_59 {dimension_numbers = #tpu.dot_dimension_numbers<[1], [0], [0], [1], [0, 0, 1, 1], [], []>} : vector<1x128xf32>, vector<128x512xf32>, vector<1x512xf32> -> vector<1x512xf32>
    %219 = arith.addf %216, %218 : vector<1x512xf32>
    %220 = vector.extract_strided_slice %219 {offsets = [0, 0], sizes = [1, 384], strides = [1, 1]} : vector<1x512xf32> to vector<1x384xf32>
    %221 = arith.negf %220 : vector<1x384xf32>
    %222 = math.exp %221 : vector<1x384xf32>
    %cst_60 = arith.constant 1.000000e+00 : f32
    %223 = vector.broadcast %cst_60 : f32 to vector<1x384xf32>
    %224 = arith.addf %223, %222 : vector<1x384xf32>
    %225 = arith.divf %223, %224 : vector<1x384xf32>
    %226 = vector.extract_strided_slice %225 {offsets = [0, 0], sizes = [1, 128], strides = [1, 1]} : vector<1x384xf32> to vector<1x128xf32>
    %227 = vector.extract_strided_slice %225 {offsets = [0, 128], sizes = [1, 128], strides = [1, 1]} : vector<1x384xf32> to vector<1x128xf32>
    %228 = vector.extract_strided_slice %225 {offsets = [0, 256], sizes = [1, 128], strides = [1, 1]} : vector<1x384xf32> to vector<1x128xf32>
    %229 = vector.extract_strided_slice %219 {offsets = [0, 384], sizes = [1, 128], strides = [1, 1]} : vector<1x512xf32> to vector<1x128xf32>
    %230 = math.tanh %229 : vector<1x128xf32>
    %231 = arith.mulf %227, %214 : vector<1x128xf32>
    %232 = arith.mulf %226, %230 : vector<1x128xf32>
    %233 = arith.addf %231, %232 : vector<1x128xf32>
    %234 = math.tanh %233 : vector<1x128xf32>
    %235 = arith.mulf %228, %234 : vector<1x128xf32>
    %236 = arith.select %5, %214, %233 : vector<1x128xf32>
    %237 = arith.select %5, %215, %235 : vector<1x128xf32>
    %c11 = arith.constant 11 : index
    %c0_61 = arith.constant 0 : index
    %238 = vector.load %arg1[%c11, %c0_61] : memref<32x512xf32, #tpu.memory_space<vmem>>, vector<1x512xf32>
    %c0_62 = arith.constant 0 : index
    %c0_63 = arith.constant 0 : index
    %239 = vector.load %arg2[%c0_62, %c0_63] : memref<128x512xf32, #tpu.memory_space<vmem>>, vector<128x512xf32>
    %cst_64 = arith.constant dense<0.000000e+00> : vector<1x512xf32>
    %240 = tpu.matmul %237, %239, %cst_64 {dimension_numbers = #tpu.dot_dimension_numbers<[1], [0], [0], [1], [0, 0, 1, 1], [], []>} : vector<1x128xf32>, vector<128x512xf32>, vector<1x512xf32> -> vector<1x512xf32>
    %241 = arith.addf %238, %240 : vector<1x512xf32>
    %242 = vector.extract_strided_slice %241 {offsets = [0, 0], sizes = [1, 384], strides = [1, 1]} : vector<1x512xf32> to vector<1x384xf32>
    %243 = arith.negf %242 : vector<1x384xf32>
    %244 = math.exp %243 : vector<1x384xf32>
    %cst_65 = arith.constant 1.000000e+00 : f32
    %245 = vector.broadcast %cst_65 : f32 to vector<1x384xf32>
    %246 = arith.addf %245, %244 : vector<1x384xf32>
    %247 = arith.divf %245, %246 : vector<1x384xf32>
    %248 = vector.extract_strided_slice %247 {offsets = [0, 0], sizes = [1, 128], strides = [1, 1]} : vector<1x384xf32> to vector<1x128xf32>
    %249 = vector.extract_strided_slice %247 {offsets = [0, 128], sizes = [1, 128], strides = [1, 1]} : vector<1x384xf32> to vector<1x128xf32>
    %250 = vector.extract_strided_slice %247 {offsets = [0, 256], sizes = [1, 128], strides = [1, 1]} : vector<1x384xf32> to vector<1x128xf32>
    %251 = vector.extract_strided_slice %241 {offsets = [0, 384], sizes = [1, 128], strides = [1, 1]} : vector<1x512xf32> to vector<1x128xf32>
    %252 = math.tanh %251 : vector<1x128xf32>
    %253 = arith.mulf %249, %236 : vector<1x128xf32>
    %254 = arith.mulf %248, %252 : vector<1x128xf32>
    %255 = arith.addf %253, %254 : vector<1x128xf32>
    %256 = math.tanh %255 : vector<1x128xf32>
    %257 = arith.mulf %250, %256 : vector<1x128xf32>
    %258 = arith.select %5, %236, %255 : vector<1x128xf32>
    %259 = arith.select %5, %237, %257 : vector<1x128xf32>
    %c12 = arith.constant 12 : index
    %c0_66 = arith.constant 0 : index
    %260 = vector.load %arg1[%c12, %c0_66] : memref<32x512xf32, #tpu.memory_space<vmem>>, vector<1x512xf32>
    %c0_67 = arith.constant 0 : index
    %c0_68 = arith.constant 0 : index
    %261 = vector.load %arg2[%c0_67, %c0_68] : memref<128x512xf32, #tpu.memory_space<vmem>>, vector<128x512xf32>
    %cst_69 = arith.constant dense<0.000000e+00> : vector<1x512xf32>
    %262 = tpu.matmul %259, %261, %cst_69 {dimension_numbers = #tpu.dot_dimension_numbers<[1], [0], [0], [1], [0, 0, 1, 1], [], []>} : vector<1x128xf32>, vector<128x512xf32>, vector<1x512xf32> -> vector<1x512xf32>
    %263 = arith.addf %260, %262 : vector<1x512xf32>
    %264 = vector.extract_strided_slice %263 {offsets = [0, 0], sizes = [1, 384], strides = [1, 1]} : vector<1x512xf32> to vector<1x384xf32>
    %265 = arith.negf %264 : vector<1x384xf32>
    %266 = math.exp %265 : vector<1x384xf32>
    %cst_70 = arith.constant 1.000000e+00 : f32
    %267 = vector.broadcast %cst_70 : f32 to vector<1x384xf32>
    %268 = arith.addf %267, %266 : vector<1x384xf32>
    %269 = arith.divf %267, %268 : vector<1x384xf32>
    %270 = vector.extract_strided_slice %269 {offsets = [0, 0], sizes = [1, 128], strides = [1, 1]} : vector<1x384xf32> to vector<1x128xf32>
    %271 = vector.extract_strided_slice %269 {offsets = [0, 128], sizes = [1, 128], strides = [1, 1]} : vector<1x384xf32> to vector<1x128xf32>
    %272 = vector.extract_strided_slice %269 {offsets = [0, 256], sizes = [1, 128], strides = [1, 1]} : vector<1x384xf32> to vector<1x128xf32>
    %273 = vector.extract_strided_slice %263 {offsets = [0, 384], sizes = [1, 128], strides = [1, 1]} : vector<1x512xf32> to vector<1x128xf32>
    %274 = math.tanh %273 : vector<1x128xf32>
    %275 = arith.mulf %271, %258 : vector<1x128xf32>
    %276 = arith.mulf %270, %274 : vector<1x128xf32>
    %277 = arith.addf %275, %276 : vector<1x128xf32>
    %278 = math.tanh %277 : vector<1x128xf32>
    %279 = arith.mulf %272, %278 : vector<1x128xf32>
    %280 = arith.select %5, %258, %277 : vector<1x128xf32>
    %281 = arith.select %5, %259, %279 : vector<1x128xf32>
    %c13 = arith.constant 13 : index
    %c0_71 = arith.constant 0 : index
    %282 = vector.load %arg1[%c13, %c0_71] : memref<32x512xf32, #tpu.memory_space<vmem>>, vector<1x512xf32>
    %c0_72 = arith.constant 0 : index
    %c0_73 = arith.constant 0 : index
    %283 = vector.load %arg2[%c0_72, %c0_73] : memref<128x512xf32, #tpu.memory_space<vmem>>, vector<128x512xf32>
    %cst_74 = arith.constant dense<0.000000e+00> : vector<1x512xf32>
    %284 = tpu.matmul %281, %283, %cst_74 {dimension_numbers = #tpu.dot_dimension_numbers<[1], [0], [0], [1], [0, 0, 1, 1], [], []>} : vector<1x128xf32>, vector<128x512xf32>, vector<1x512xf32> -> vector<1x512xf32>
    %285 = arith.addf %282, %284 : vector<1x512xf32>
    %286 = vector.extract_strided_slice %285 {offsets = [0, 0], sizes = [1, 384], strides = [1, 1]} : vector<1x512xf32> to vector<1x384xf32>
    %287 = arith.negf %286 : vector<1x384xf32>
    %288 = math.exp %287 : vector<1x384xf32>
    %cst_75 = arith.constant 1.000000e+00 : f32
    %289 = vector.broadcast %cst_75 : f32 to vector<1x384xf32>
    %290 = arith.addf %289, %288 : vector<1x384xf32>
    %291 = arith.divf %289, %290 : vector<1x384xf32>
    %292 = vector.extract_strided_slice %291 {offsets = [0, 0], sizes = [1, 128], strides = [1, 1]} : vector<1x384xf32> to vector<1x128xf32>
    %293 = vector.extract_strided_slice %291 {offsets = [0, 128], sizes = [1, 128], strides = [1, 1]} : vector<1x384xf32> to vector<1x128xf32>
    %294 = vector.extract_strided_slice %291 {offsets = [0, 256], sizes = [1, 128], strides = [1, 1]} : vector<1x384xf32> to vector<1x128xf32>
    %295 = vector.extract_strided_slice %285 {offsets = [0, 384], sizes = [1, 128], strides = [1, 1]} : vector<1x512xf32> to vector<1x128xf32>
    %296 = math.tanh %295 : vector<1x128xf32>
    %297 = arith.mulf %293, %280 : vector<1x128xf32>
    %298 = arith.mulf %292, %296 : vector<1x128xf32>
    %299 = arith.addf %297, %298 : vector<1x128xf32>
    %300 = math.tanh %299 : vector<1x128xf32>
    %301 = arith.mulf %294, %300 : vector<1x128xf32>
    %302 = arith.select %5, %280, %299 : vector<1x128xf32>
    %303 = arith.select %5, %281, %301 : vector<1x128xf32>
    %c14 = arith.constant 14 : index
    %c0_76 = arith.constant 0 : index
    %304 = vector.load %arg1[%c14, %c0_76] : memref<32x512xf32, #tpu.memory_space<vmem>>, vector<1x512xf32>
    %c0_77 = arith.constant 0 : index
    %c0_78 = arith.constant 0 : index
    %305 = vector.load %arg2[%c0_77, %c0_78] : memref<128x512xf32, #tpu.memory_space<vmem>>, vector<128x512xf32>
    %cst_79 = arith.constant dense<0.000000e+00> : vector<1x512xf32>
    %306 = tpu.matmul %303, %305, %cst_79 {dimension_numbers = #tpu.dot_dimension_numbers<[1], [0], [0], [1], [0, 0, 1, 1], [], []>} : vector<1x128xf32>, vector<128x512xf32>, vector<1x512xf32> -> vector<1x512xf32>
    %307 = arith.addf %304, %306 : vector<1x512xf32>
    %308 = vector.extract_strided_slice %307 {offsets = [0, 0], sizes = [1, 384], strides = [1, 1]} : vector<1x512xf32> to vector<1x384xf32>
    %309 = arith.negf %308 : vector<1x384xf32>
    %310 = math.exp %309 : vector<1x384xf32>
    %cst_80 = arith.constant 1.000000e+00 : f32
    %311 = vector.broadcast %cst_80 : f32 to vector<1x384xf32>
    %312 = arith.addf %311, %310 : vector<1x384xf32>
    %313 = arith.divf %311, %312 : vector<1x384xf32>
    %314 = vector.extract_strided_slice %313 {offsets = [0, 0], sizes = [1, 128], strides = [1, 1]} : vector<1x384xf32> to vector<1x128xf32>
    %315 = vector.extract_strided_slice %313 {offsets = [0, 128], sizes = [1, 128], strides = [1, 1]} : vector<1x384xf32> to vector<1x128xf32>
    %316 = vector.extract_strided_slice %313 {offsets = [0, 256], sizes = [1, 128], strides = [1, 1]} : vector<1x384xf32> to vector<1x128xf32>
    %317 = vector.extract_strided_slice %307 {offsets = [0, 384], sizes = [1, 128], strides = [1, 1]} : vector<1x512xf32> to vector<1x128xf32>
    %318 = math.tanh %317 : vector<1x128xf32>
    %319 = arith.mulf %315, %302 : vector<1x128xf32>
    %320 = arith.mulf %314, %318 : vector<1x128xf32>
    %321 = arith.addf %319, %320 : vector<1x128xf32>
    %322 = math.tanh %321 : vector<1x128xf32>
    %323 = arith.mulf %316, %322 : vector<1x128xf32>
    %324 = arith.select %5, %302, %321 : vector<1x128xf32>
    %325 = arith.select %5, %303, %323 : vector<1x128xf32>
    %c15 = arith.constant 15 : index
    %c0_81 = arith.constant 0 : index
    %326 = vector.load %arg1[%c15, %c0_81] : memref<32x512xf32, #tpu.memory_space<vmem>>, vector<1x512xf32>
    %c0_82 = arith.constant 0 : index
    %c0_83 = arith.constant 0 : index
    %327 = vector.load %arg2[%c0_82, %c0_83] : memref<128x512xf32, #tpu.memory_space<vmem>>, vector<128x512xf32>
    %cst_84 = arith.constant dense<0.000000e+00> : vector<1x512xf32>
    %328 = tpu.matmul %325, %327, %cst_84 {dimension_numbers = #tpu.dot_dimension_numbers<[1], [0], [0], [1], [0, 0, 1, 1], [], []>} : vector<1x128xf32>, vector<128x512xf32>, vector<1x512xf32> -> vector<1x512xf32>
    %329 = arith.addf %326, %328 : vector<1x512xf32>
    %330 = vector.extract_strided_slice %329 {offsets = [0, 0], sizes = [1, 384], strides = [1, 1]} : vector<1x512xf32> to vector<1x384xf32>
    %331 = arith.negf %330 : vector<1x384xf32>
    %332 = math.exp %331 : vector<1x384xf32>
    %cst_85 = arith.constant 1.000000e+00 : f32
    %333 = vector.broadcast %cst_85 : f32 to vector<1x384xf32>
    %334 = arith.addf %333, %332 : vector<1x384xf32>
    %335 = arith.divf %333, %334 : vector<1x384xf32>
    %336 = vector.extract_strided_slice %335 {offsets = [0, 0], sizes = [1, 128], strides = [1, 1]} : vector<1x384xf32> to vector<1x128xf32>
    %337 = vector.extract_strided_slice %335 {offsets = [0, 128], sizes = [1, 128], strides = [1, 1]} : vector<1x384xf32> to vector<1x128xf32>
    %338 = vector.extract_strided_slice %335 {offsets = [0, 256], sizes = [1, 128], strides = [1, 1]} : vector<1x384xf32> to vector<1x128xf32>
    %339 = vector.extract_strided_slice %329 {offsets = [0, 384], sizes = [1, 128], strides = [1, 1]} : vector<1x512xf32> to vector<1x128xf32>
    %340 = math.tanh %339 : vector<1x128xf32>
    %341 = arith.mulf %337, %324 : vector<1x128xf32>
    %342 = arith.mulf %336, %340 : vector<1x128xf32>
    %343 = arith.addf %341, %342 : vector<1x128xf32>
    %344 = math.tanh %343 : vector<1x128xf32>
    %345 = arith.mulf %338, %344 : vector<1x128xf32>
    %346 = arith.select %5, %324, %343 : vector<1x128xf32>
    %347 = arith.select %5, %325, %345 : vector<1x128xf32>
    %348 = tpu.concatenate %193, %215, %237, %259, %281, %303, %325, %347 in 0 : vector<1x128xf32>, vector<1x128xf32>, vector<1x128xf32>, vector<1x128xf32>, vector<1x128xf32>, vector<1x128xf32>, vector<1x128xf32>, vector<1x128xf32> -> vector<8x128xf32>
    %c8_86 = arith.constant 8 : index
    %c0_87 = arith.constant 0 : index
    %349 = vector.load %arg5[%c8_86, %c0_87] : memref<32x128xf32, #tpu.memory_space<vmem>>, vector<8x128xf32>
    tpu.vector_store %arg5[%c8_86, %c0_87], %348 {strides = array<i32>} : memref<32x128xf32, #tpu.memory_space<vmem>>, vector<8x128xf32>,
    %c16 = arith.constant 16 : index
    %c0_88 = arith.constant 0 : index
    %350 = vector.load %arg1[%c16, %c0_88] : memref<32x512xf32, #tpu.memory_space<vmem>>, vector<1x512xf32>
    %c0_89 = arith.constant 0 : index
    %c0_90 = arith.constant 0 : index
    %351 = vector.load %arg2[%c0_89, %c0_90] : memref<128x512xf32, #tpu.memory_space<vmem>>, vector<128x512xf32>
    %cst_91 = arith.constant dense<0.000000e+00> : vector<1x512xf32>
    %352 = tpu.matmul %347, %351, %cst_91 {dimension_numbers = #tpu.dot_dimension_numbers<[1], [0], [0], [1], [0, 0, 1, 1], [], []>} : vector<1x128xf32>, vector<128x512xf32>, vector<1x512xf32> -> vector<1x512xf32>
    %353 = arith.addf %350, %352 : vector<1x512xf32>
    %354 = vector.extract_strided_slice %353 {offsets = [0, 0], sizes = [1, 384], strides = [1, 1]} : vector<1x512xf32> to vector<1x384xf32>
    %355 = arith.negf %354 : vector<1x384xf32>
    %356 = math.exp %355 : vector<1x384xf32>
    %cst_92 = arith.constant 1.000000e+00 : f32
    %357 = vector.broadcast %cst_92 : f32 to vector<1x384xf32>
    %358 = arith.addf %357, %356 : vector<1x384xf32>
    %359 = arith.divf %357, %358 : vector<1x384xf32>
    %360 = vector.extract_strided_slice %359 {offsets = [0, 0], sizes = [1, 128], strides = [1, 1]} : vector<1x384xf32> to vector<1x128xf32>
    %361 = vector.extract_strided_slice %359 {offsets = [0, 128], sizes = [1, 128], strides = [1, 1]} : vector<1x384xf32> to vector<1x128xf32>
    %362 = vector.extract_strided_slice %359 {offsets = [0, 256], sizes = [1, 128], strides = [1, 1]} : vector<1x384xf32> to vector<1x128xf32>
    %363 = vector.extract_strided_slice %353 {offsets = [0, 384], sizes = [1, 128], strides = [1, 1]} : vector<1x512xf32> to vector<1x128xf32>
    %364 = math.tanh %363 : vector<1x128xf32>
    %365 = arith.mulf %361, %346 : vector<1x128xf32>
    %366 = arith.mulf %360, %364 : vector<1x128xf32>
    %367 = arith.addf %365, %366 : vector<1x128xf32>
    %368 = math.tanh %367 : vector<1x128xf32>
    %369 = arith.mulf %362, %368 : vector<1x128xf32>
    %370 = arith.select %5, %346, %367 : vector<1x128xf32>
    %371 = arith.select %5, %347, %369 : vector<1x128xf32>
    %c17 = arith.constant 17 : index
    %c0_93 = arith.constant 0 : index
    %372 = vector.load %arg1[%c17, %c0_93] : memref<32x512xf32, #tpu.memory_space<vmem>>, vector<1x512xf32>
    %c0_94 = arith.constant 0 : index
    %c0_95 = arith.constant 0 : index
    %373 = vector.load %arg2[%c0_94, %c0_95] : memref<128x512xf32, #tpu.memory_space<vmem>>, vector<128x512xf32>
    %cst_96 = arith.constant dense<0.000000e+00> : vector<1x512xf32>
    %374 = tpu.matmul %371, %373, %cst_96 {dimension_numbers = #tpu.dot_dimension_numbers<[1], [0], [0], [1], [0, 0, 1, 1], [], []>} : vector<1x128xf32>, vector<128x512xf32>, vector<1x512xf32> -> vector<1x512xf32>
    %375 = arith.addf %372, %374 : vector<1x512xf32>
    %376 = vector.extract_strided_slice %375 {offsets = [0, 0], sizes = [1, 384], strides = [1, 1]} : vector<1x512xf32> to vector<1x384xf32>
    %377 = arith.negf %376 : vector<1x384xf32>
    %378 = math.exp %377 : vector<1x384xf32>
    %cst_97 = arith.constant 1.000000e+00 : f32
    %379 = vector.broadcast %cst_97 : f32 to vector<1x384xf32>
    %380 = arith.addf %379, %378 : vector<1x384xf32>
    %381 = arith.divf %379, %380 : vector<1x384xf32>
    %382 = vector.extract_strided_slice %381 {offsets = [0, 0], sizes = [1, 128], strides = [1, 1]} : vector<1x384xf32> to vector<1x128xf32>
    %383 = vector.extract_strided_slice %381 {offsets = [0, 128], sizes = [1, 128], strides = [1, 1]} : vector<1x384xf32> to vector<1x128xf32>
    %384 = vector.extract_strided_slice %381 {offsets = [0, 256], sizes = [1, 128], strides = [1, 1]} : vector<1x384xf32> to vector<1x128xf32>
    %385 = vector.extract_strided_slice %375 {offsets = [0, 384], sizes = [1, 128], strides = [1, 1]} : vector<1x512xf32> to vector<1x128xf32>
    %386 = math.tanh %385 : vector<1x128xf32>
    %387 = arith.mulf %383, %370 : vector<1x128xf32>
    %388 = arith.mulf %382, %386 : vector<1x128xf32>
    %389 = arith.addf %387, %388 : vector<1x128xf32>
    %390 = math.tanh %389 : vector<1x128xf32>
    %391 = arith.mulf %384, %390 : vector<1x128xf32>
    %392 = arith.select %5, %370, %389 : vector<1x128xf32>
    %393 = arith.select %5, %371, %391 : vector<1x128xf32>
    %c18 = arith.constant 18 : index
    %c0_98 = arith.constant 0 : index
    %394 = vector.load %arg1[%c18, %c0_98] : memref<32x512xf32, #tpu.memory_space<vmem>>, vector<1x512xf32>
    %c0_99 = arith.constant 0 : index
    %c0_100 = arith.constant 0 : index
    %395 = vector.load %arg2[%c0_99, %c0_100] : memref<128x512xf32, #tpu.memory_space<vmem>>, vector<128x512xf32>
    %cst_101 = arith.constant dense<0.000000e+00> : vector<1x512xf32>
    %396 = tpu.matmul %393, %395, %cst_101 {dimension_numbers = #tpu.dot_dimension_numbers<[1], [0], [0], [1], [0, 0, 1, 1], [], []>} : vector<1x128xf32>, vector<128x512xf32>, vector<1x512xf32> -> vector<1x512xf32>
    %397 = arith.addf %394, %396 : vector<1x512xf32>
    %398 = vector.extract_strided_slice %397 {offsets = [0, 0], sizes = [1, 384], strides = [1, 1]} : vector<1x512xf32> to vector<1x384xf32>
    %399 = arith.negf %398 : vector<1x384xf32>
    %400 = math.exp %399 : vector<1x384xf32>
    %cst_102 = arith.constant 1.000000e+00 : f32
    %401 = vector.broadcast %cst_102 : f32 to vector<1x384xf32>
    %402 = arith.addf %401, %400 : vector<1x384xf32>
    %403 = arith.divf %401, %402 : vector<1x384xf32>
    %404 = vector.extract_strided_slice %403 {offsets = [0, 0], sizes = [1, 128], strides = [1, 1]} : vector<1x384xf32> to vector<1x128xf32>
    %405 = vector.extract_strided_slice %403 {offsets = [0, 128], sizes = [1, 128], strides = [1, 1]} : vector<1x384xf32> to vector<1x128xf32>
    %406 = vector.extract_strided_slice %403 {offsets = [0, 256], sizes = [1, 128], strides = [1, 1]} : vector<1x384xf32> to vector<1x128xf32>
    %407 = vector.extract_strided_slice %397 {offsets = [0, 384], sizes = [1, 128], strides = [1, 1]} : vector<1x512xf32> to vector<1x128xf32>
    %408 = math.tanh %407 : vector<1x128xf32>
    %409 = arith.mulf %405, %392 : vector<1x128xf32>
    %410 = arith.mulf %404, %408 : vector<1x128xf32>
    %411 = arith.addf %409, %410 : vector<1x128xf32>
    %412 = math.tanh %411 : vector<1x128xf32>
    %413 = arith.mulf %406, %412 : vector<1x128xf32>
    %414 = arith.select %5, %392, %411 : vector<1x128xf32>
    %415 = arith.select %5, %393, %413 : vector<1x128xf32>
    %c19 = arith.constant 19 : index
    %c0_103 = arith.constant 0 : index
    %416 = vector.load %arg1[%c19, %c0_103] : memref<32x512xf32, #tpu.memory_space<vmem>>, vector<1x512xf32>
    %c0_104 = arith.constant 0 : index
    %c0_105 = arith.constant 0 : index
    %417 = vector.load %arg2[%c0_104, %c0_105] : memref<128x512xf32, #tpu.memory_space<vmem>>, vector<128x512xf32>
    %cst_106 = arith.constant dense<0.000000e+00> : vector<1x512xf32>
    %418 = tpu.matmul %415, %417, %cst_106 {dimension_numbers = #tpu.dot_dimension_numbers<[1], [0], [0], [1], [0, 0, 1, 1], [], []>} : vector<1x128xf32>, vector<128x512xf32>, vector<1x512xf32> -> vector<1x512xf32>
    %419 = arith.addf %416, %418 : vector<1x512xf32>
    %420 = vector.extract_strided_slice %419 {offsets = [0, 0], sizes = [1, 384], strides = [1, 1]} : vector<1x512xf32> to vector<1x384xf32>
    %421 = arith.negf %420 : vector<1x384xf32>
    %422 = math.exp %421 : vector<1x384xf32>
    %cst_107 = arith.constant 1.000000e+00 : f32
    %423 = vector.broadcast %cst_107 : f32 to vector<1x384xf32>
    %424 = arith.addf %423, %422 : vector<1x384xf32>
    %425 = arith.divf %423, %424 : vector<1x384xf32>
    %426 = vector.extract_strided_slice %425 {offsets = [0, 0], sizes = [1, 128], strides = [1, 1]} : vector<1x384xf32> to vector<1x128xf32>
    %427 = vector.extract_strided_slice %425 {offsets = [0, 128], sizes = [1, 128], strides = [1, 1]} : vector<1x384xf32> to vector<1x128xf32>
    %428 = vector.extract_strided_slice %425 {offsets = [0, 256], sizes = [1, 128], strides = [1, 1]} : vector<1x384xf32> to vector<1x128xf32>
    %429 = vector.extract_strided_slice %419 {offsets = [0, 384], sizes = [1, 128], strides = [1, 1]} : vector<1x512xf32> to vector<1x128xf32>
    %430 = math.tanh %429 : vector<1x128xf32>
    %431 = arith.mulf %427, %414 : vector<1x128xf32>
    %432 = arith.mulf %426, %430 : vector<1x128xf32>
    %433 = arith.addf %431, %432 : vector<1x128xf32>
    %434 = math.tanh %433 : vector<1x128xf32>
    %435 = arith.mulf %428, %434 : vector<1x128xf32>
    %436 = arith.select %5, %414, %433 : vector<1x128xf32>
    %437 = arith.select %5, %415, %435 : vector<1x128xf32>
    %c20 = arith.constant 20 : index
    %c0_108 = arith.constant 0 : index
    %438 = vector.load %arg1[%c20, %c0_108] : memref<32x512xf32, #tpu.memory_space<vmem>>, vector<1x512xf32>
    %c0_109 = arith.constant 0 : index
    %c0_110 = arith.constant 0 : index
    %439 = vector.load %arg2[%c0_109, %c0_110] : memref<128x512xf32, #tpu.memory_space<vmem>>, vector<128x512xf32>
    %cst_111 = arith.constant dense<0.000000e+00> : vector<1x512xf32>
    %440 = tpu.matmul %437, %439, %cst_111 {dimension_numbers = #tpu.dot_dimension_numbers<[1], [0], [0], [1], [0, 0, 1, 1], [], []>} : vector<1x128xf32>, vector<128x512xf32>, vector<1x512xf32> -> vector<1x512xf32>
    %441 = arith.addf %438, %440 : vector<1x512xf32>
    %442 = vector.extract_strided_slice %441 {offsets = [0, 0], sizes = [1, 384], strides = [1, 1]} : vector<1x512xf32> to vector<1x384xf32>
    %443 = arith.negf %442 : vector<1x384xf32>
    %444 = math.exp %443 : vector<1x384xf32>
    %cst_112 = arith.constant 1.000000e+00 : f32
    %445 = vector.broadcast %cst_112 : f32 to vector<1x384xf32>
    %446 = arith.addf %445, %444 : vector<1x384xf32>
    %447 = arith.divf %445, %446 : vector<1x384xf32>
    %448 = vector.extract_strided_slice %447 {offsets = [0, 0], sizes = [1, 128], strides = [1, 1]} : vector<1x384xf32> to vector<1x128xf32>
    %449 = vector.extract_strided_slice %447 {offsets = [0, 128], sizes = [1, 128], strides = [1, 1]} : vector<1x384xf32> to vector<1x128xf32>
    %450 = vector.extract_strided_slice %447 {offsets = [0, 256], sizes = [1, 128], strides = [1, 1]} : vector<1x384xf32> to vector<1x128xf32>
    %451 = vector.extract_strided_slice %441 {offsets = [0, 384], sizes = [1, 128], strides = [1, 1]} : vector<1x512xf32> to vector<1x128xf32>
    %452 = math.tanh %451 : vector<1x128xf32>
    %453 = arith.mulf %449, %436 : vector<1x128xf32>
    %454 = arith.mulf %448, %452 : vector<1x128xf32>
    %455 = arith.addf %453, %454 : vector<1x128xf32>
    %456 = math.tanh %455 : vector<1x128xf32>
    %457 = arith.mulf %450, %456 : vector<1x128xf32>
    %458 = arith.select %5, %436, %455 : vector<1x128xf32>
    %459 = arith.select %5, %437, %457 : vector<1x128xf32>
    %c21 = arith.constant 21 : index
    %c0_113 = arith.constant 0 : index
    %460 = vector.load %arg1[%c21, %c0_113] : memref<32x512xf32, #tpu.memory_space<vmem>>, vector<1x512xf32>
    %c0_114 = arith.constant 0 : index
    %c0_115 = arith.constant 0 : index
    %461 = vector.load %arg2[%c0_114, %c0_115] : memref<128x512xf32, #tpu.memory_space<vmem>>, vector<128x512xf32>
    %cst_116 = arith.constant dense<0.000000e+00> : vector<1x512xf32>
    %462 = tpu.matmul %459, %461, %cst_116 {dimension_numbers = #tpu.dot_dimension_numbers<[1], [0], [0], [1], [0, 0, 1, 1], [], []>} : vector<1x128xf32>, vector<128x512xf32>, vector<1x512xf32> -> vector<1x512xf32>
    %463 = arith.addf %460, %462 : vector<1x512xf32>
    %464 = vector.extract_strided_slice %463 {offsets = [0, 0], sizes = [1, 384], strides = [1, 1]} : vector<1x512xf32> to vector<1x384xf32>
    %465 = arith.negf %464 : vector<1x384xf32>
    %466 = math.exp %465 : vector<1x384xf32>
    %cst_117 = arith.constant 1.000000e+00 : f32
    %467 = vector.broadcast %cst_117 : f32 to vector<1x384xf32>
    %468 = arith.addf %467, %466 : vector<1x384xf32>
    %469 = arith.divf %467, %468 : vector<1x384xf32>
    %470 = vector.extract_strided_slice %469 {offsets = [0, 0], sizes = [1, 128], strides = [1, 1]} : vector<1x384xf32> to vector<1x128xf32>
    %471 = vector.extract_strided_slice %469 {offsets = [0, 128], sizes = [1, 128], strides = [1, 1]} : vector<1x384xf32> to vector<1x128xf32>
    %472 = vector.extract_strided_slice %469 {offsets = [0, 256], sizes = [1, 128], strides = [1, 1]} : vector<1x384xf32> to vector<1x128xf32>
    %473 = vector.extract_strided_slice %463 {offsets = [0, 384], sizes = [1, 128], strides = [1, 1]} : vector<1x512xf32> to vector<1x128xf32>
    %474 = math.tanh %473 : vector<1x128xf32>
    %475 = arith.mulf %471, %458 : vector<1x128xf32>
    %476 = arith.mulf %470, %474 : vector<1x128xf32>
    %477 = arith.addf %475, %476 : vector<1x128xf32>
    %478 = math.tanh %477 : vector<1x128xf32>
    %479 = arith.mulf %472, %478 : vector<1x128xf32>
    %480 = arith.select %5, %458, %477 : vector<1x128xf32>
    %481 = arith.select %5, %459, %479 : vector<1x128xf32>
    %c22 = arith.constant 22 : index
    %c0_118 = arith.constant 0 : index
    %482 = vector.load %arg1[%c22, %c0_118] : memref<32x512xf32, #tpu.memory_space<vmem>>, vector<1x512xf32>
    %c0_119 = arith.constant 0 : index
    %c0_120 = arith.constant 0 : index
    %483 = vector.load %arg2[%c0_119, %c0_120] : memref<128x512xf32, #tpu.memory_space<vmem>>, vector<128x512xf32>
    %cst_121 = arith.constant dense<0.000000e+00> : vector<1x512xf32>
    %484 = tpu.matmul %481, %483, %cst_121 {dimension_numbers = #tpu.dot_dimension_numbers<[1], [0], [0], [1], [0, 0, 1, 1], [], []>} : vector<1x128xf32>, vector<128x512xf32>, vector<1x512xf32> -> vector<1x512xf32>
    %485 = arith.addf %482, %484 : vector<1x512xf32>
    %486 = vector.extract_strided_slice %485 {offsets = [0, 0], sizes = [1, 384], strides = [1, 1]} : vector<1x512xf32> to vector<1x384xf32>
    %487 = arith.negf %486 : vector<1x384xf32>
    %488 = math.exp %487 : vector<1x384xf32>
    %cst_122 = arith.constant 1.000000e+00 : f32
    %489 = vector.broadcast %cst_122 : f32 to vector<1x384xf32>
    %490 = arith.addf %489, %488 : vector<1x384xf32>
    %491 = arith.divf %489, %490 : vector<1x384xf32>
    %492 = vector.extract_strided_slice %491 {offsets = [0, 0], sizes = [1, 128], strides = [1, 1]} : vector<1x384xf32> to vector<1x128xf32>
    %493 = vector.extract_strided_slice %491 {offsets = [0, 128], sizes = [1, 128], strides = [1, 1]} : vector<1x384xf32> to vector<1x128xf32>
    %494 = vector.extract_strided_slice %491 {offsets = [0, 256], sizes = [1, 128], strides = [1, 1]} : vector<1x384xf32> to vector<1x128xf32>
    %495 = vector.extract_strided_slice %485 {offsets = [0, 384], sizes = [1, 128], strides = [1, 1]} : vector<1x512xf32> to vector<1x128xf32>
    %496 = math.tanh %495 : vector<1x128xf32>
    %497 = arith.mulf %493, %480 : vector<1x128xf32>
    %498 = arith.mulf %492, %496 : vector<1x128xf32>
    %499 = arith.addf %497, %498 : vector<1x128xf32>
    %500 = math.tanh %499 : vector<1x128xf32>
    %501 = arith.mulf %494, %500 : vector<1x128xf32>
    %502 = arith.select %5, %480, %499 : vector<1x128xf32>
    %503 = arith.select %5, %481, %501 : vector<1x128xf32>
    %c23 = arith.constant 23 : index
    %c0_123 = arith.constant 0 : index
    %504 = vector.load %arg1[%c23, %c0_123] : memref<32x512xf32, #tpu.memory_space<vmem>>, vector<1x512xf32>
    %c0_124 = arith.constant 0 : index
    %c0_125 = arith.constant 0 : index
    %505 = vector.load %arg2[%c0_124, %c0_125] : memref<128x512xf32, #tpu.memory_space<vmem>>, vector<128x512xf32>
    %cst_126 = arith.constant dense<0.000000e+00> : vector<1x512xf32>
    %506 = tpu.matmul %503, %505, %cst_126 {dimension_numbers = #tpu.dot_dimension_numbers<[1], [0], [0], [1], [0, 0, 1, 1], [], []>} : vector<1x128xf32>, vector<128x512xf32>, vector<1x512xf32> -> vector<1x512xf32>
    %507 = arith.addf %504, %506 : vector<1x512xf32>
    %508 = vector.extract_strided_slice %507 {offsets = [0, 0], sizes = [1, 384], strides = [1, 1]} : vector<1x512xf32> to vector<1x384xf32>
    %509 = arith.negf %508 : vector<1x384xf32>
    %510 = math.exp %509 : vector<1x384xf32>
    %cst_127 = arith.constant 1.000000e+00 : f32
    %511 = vector.broadcast %cst_127 : f32 to vector<1x384xf32>
    %512 = arith.addf %511, %510 : vector<1x384xf32>
    %513 = arith.divf %511, %512 : vector<1x384xf32>
    %514 = vector.extract_strided_slice %513 {offsets = [0, 0], sizes = [1, 128], strides = [1, 1]} : vector<1x384xf32> to vector<1x128xf32>
    %515 = vector.extract_strided_slice %513 {offsets = [0, 128], sizes = [1, 128], strides = [1, 1]} : vector<1x384xf32> to vector<1x128xf32>
    %516 = vector.extract_strided_slice %513 {offsets = [0, 256], sizes = [1, 128], strides = [1, 1]} : vector<1x384xf32> to vector<1x128xf32>
    %517 = vector.extract_strided_slice %507 {offsets = [0, 384], sizes = [1, 128], strides = [1, 1]} : vector<1x512xf32> to vector<1x128xf32>
    %518 = math.tanh %517 : vector<1x128xf32>
    %519 = arith.mulf %515, %502 : vector<1x128xf32>
    %520 = arith.mulf %514, %518 : vector<1x128xf32>
    %521 = arith.addf %519, %520 : vector<1x128xf32>
    %522 = math.tanh %521 : vector<1x128xf32>
    %523 = arith.mulf %516, %522 : vector<1x128xf32>
    %524 = arith.select %5, %502, %521 : vector<1x128xf32>
    %525 = arith.select %5, %503, %523 : vector<1x128xf32>
    %526 = tpu.concatenate %371, %393, %415, %437, %459, %481, %503, %525 in 0 : vector<1x128xf32>, vector<1x128xf32>, vector<1x128xf32>, vector<1x128xf32>, vector<1x128xf32>, vector<1x128xf32>, vector<1x128xf32>, vector<1x128xf32> -> vector<8x128xf32>
    %c16_128 = arith.constant 16 : index
    %c0_129 = arith.constant 0 : index
    %527 = vector.load %arg5[%c16_128, %c0_129] : memref<32x128xf32, #tpu.memory_space<vmem>>, vector<8x128xf32>
    tpu.vector_store %arg5[%c16_128, %c0_129], %526 {strides = array<i32>} : memref<32x128xf32, #tpu.memory_space<vmem>>, vector<8x128xf32>,
    %c24 = arith.constant 24 : index
    %c0_130 = arith.constant 0 : index
    %528 = vector.load %arg1[%c24, %c0_130] : memref<32x512xf32, #tpu.memory_space<vmem>>, vector<1x512xf32>
    %c0_131 = arith.constant 0 : index
    %c0_132 = arith.constant 0 : index
    %529 = vector.load %arg2[%c0_131, %c0_132] : memref<128x512xf32, #tpu.memory_space<vmem>>, vector<128x512xf32>
    %cst_133 = arith.constant dense<0.000000e+00> : vector<1x512xf32>
    %530 = tpu.matmul %525, %529, %cst_133 {dimension_numbers = #tpu.dot_dimension_numbers<[1], [0], [0], [1], [0, 0, 1, 1], [], []>} : vector<1x128xf32>, vector<128x512xf32>, vector<1x512xf32> -> vector<1x512xf32>
    %531 = arith.addf %528, %530 : vector<1x512xf32>
    %532 = vector.extract_strided_slice %531 {offsets = [0, 0], sizes = [1, 384], strides = [1, 1]} : vector<1x512xf32> to vector<1x384xf32>
    %533 = arith.negf %532 : vector<1x384xf32>
    %534 = math.exp %533 : vector<1x384xf32>
    %cst_134 = arith.constant 1.000000e+00 : f32
    %535 = vector.broadcast %cst_134 : f32 to vector<1x384xf32>
    %536 = arith.addf %535, %534 : vector<1x384xf32>
    %537 = arith.divf %535, %536 : vector<1x384xf32>
    %538 = vector.extract_strided_slice %537 {offsets = [0, 0], sizes = [1, 128], strides = [1, 1]} : vector<1x384xf32> to vector<1x128xf32>
    %539 = vector.extract_strided_slice %537 {offsets = [0, 128], sizes = [1, 128], strides = [1, 1]} : vector<1x384xf32> to vector<1x128xf32>
    %540 = vector.extract_strided_slice %537 {offsets = [0, 256], sizes = [1, 128], strides = [1, 1]} : vector<1x384xf32> to vector<1x128xf32>
    %541 = vector.extract_strided_slice %531 {offsets = [0, 384], sizes = [1, 128], strides = [1, 1]} : vector<1x512xf32> to vector<1x128xf32>
    %542 = math.tanh %541 : vector<1x128xf32>
    %543 = arith.mulf %539, %524 : vector<1x128xf32>
    %544 = arith.mulf %538, %542 : vector<1x128xf32>
    %545 = arith.addf %543, %544 : vector<1x128xf32>
    %546 = math.tanh %545 : vector<1x128xf32>
    %547 = arith.mulf %540, %546 : vector<1x128xf32>
    %548 = arith.select %5, %524, %545 : vector<1x128xf32>
    %549 = arith.select %5, %525, %547 : vector<1x128xf32>
    %c25 = arith.constant 25 : index
    %c0_135 = arith.constant 0 : index
    %550 = vector.load %arg1[%c25, %c0_135] : memref<32x512xf32, #tpu.memory_space<vmem>>, vector<1x512xf32>
    %c0_136 = arith.constant 0 : index
    %c0_137 = arith.constant 0 : index
    %551 = vector.load %arg2[%c0_136, %c0_137] : memref<128x512xf32, #tpu.memory_space<vmem>>, vector<128x512xf32>
    %cst_138 = arith.constant dense<0.000000e+00> : vector<1x512xf32>
    %552 = tpu.matmul %549, %551, %cst_138 {dimension_numbers = #tpu.dot_dimension_numbers<[1], [0], [0], [1], [0, 0, 1, 1], [], []>} : vector<1x128xf32>, vector<128x512xf32>, vector<1x512xf32> -> vector<1x512xf32>
    %553 = arith.addf %550, %552 : vector<1x512xf32>
    %554 = vector.extract_strided_slice %553 {offsets = [0, 0], sizes = [1, 384], strides = [1, 1]} : vector<1x512xf32> to vector<1x384xf32>
    %555 = arith.negf %554 : vector<1x384xf32>
    %556 = math.exp %555 : vector<1x384xf32>
    %cst_139 = arith.constant 1.000000e+00 : f32
    %557 = vector.broadcast %cst_139 : f32 to vector<1x384xf32>
    %558 = arith.addf %557, %556 : vector<1x384xf32>
    %559 = arith.divf %557, %558 : vector<1x384xf32>
    %560 = vector.extract_strided_slice %559 {offsets = [0, 0], sizes = [1, 128], strides = [1, 1]} : vector<1x384xf32> to vector<1x128xf32>
    %561 = vector.extract_strided_slice %559 {offsets = [0, 128], sizes = [1, 128], strides = [1, 1]} : vector<1x384xf32> to vector<1x128xf32>
    %562 = vector.extract_strided_slice %559 {offsets = [0, 256], sizes = [1, 128], strides = [1, 1]} : vector<1x384xf32> to vector<1x128xf32>
    %563 = vector.extract_strided_slice %553 {offsets = [0, 384], sizes = [1, 128], strides = [1, 1]} : vector<1x512xf32> to vector<1x128xf32>
    %564 = math.tanh %563 : vector<1x128xf32>
    %565 = arith.mulf %561, %548 : vector<1x128xf32>
    %566 = arith.mulf %560, %564 : vector<1x128xf32>
    %567 = arith.addf %565, %566 : vector<1x128xf32>
    %568 = math.tanh %567 : vector<1x128xf32>
    %569 = arith.mulf %562, %568 : vector<1x128xf32>
    %570 = arith.select %5, %548, %567 : vector<1x128xf32>
    %571 = arith.select %5, %549, %569 : vector<1x128xf32>
    %c26 = arith.constant 26 : index
    %c0_140 = arith.constant 0 : index
    %572 = vector.load %arg1[%c26, %c0_140] : memref<32x512xf32, #tpu.memory_space<vmem>>, vector<1x512xf32>
    %c0_141 = arith.constant 0 : index
    %c0_142 = arith.constant 0 : index
    %573 = vector.load %arg2[%c0_141, %c0_142] : memref<128x512xf32, #tpu.memory_space<vmem>>, vector<128x512xf32>
    %cst_143 = arith.constant dense<0.000000e+00> : vector<1x512xf32>
    %574 = tpu.matmul %571, %573, %cst_143 {dimension_numbers = #tpu.dot_dimension_numbers<[1], [0], [0], [1], [0, 0, 1, 1], [], []>} : vector<1x128xf32>, vector<128x512xf32>, vector<1x512xf32> -> vector<1x512xf32>
    %575 = arith.addf %572, %574 : vector<1x512xf32>
    %576 = vector.extract_strided_slice %575 {offsets = [0, 0], sizes = [1, 384], strides = [1, 1]} : vector<1x512xf32> to vector<1x384xf32>
    %577 = arith.negf %576 : vector<1x384xf32>
    %578 = math.exp %577 : vector<1x384xf32>
    %cst_144 = arith.constant 1.000000e+00 : f32
    %579 = vector.broadcast %cst_144 : f32 to vector<1x384xf32>
    %580 = arith.addf %579, %578 : vector<1x384xf32>
    %581 = arith.divf %579, %580 : vector<1x384xf32>
    %582 = vector.extract_strided_slice %581 {offsets = [0, 0], sizes = [1, 128], strides = [1, 1]} : vector<1x384xf32> to vector<1x128xf32>
    %583 = vector.extract_strided_slice %581 {offsets = [0, 128], sizes = [1, 128], strides = [1, 1]} : vector<1x384xf32> to vector<1x128xf32>
    %584 = vector.extract_strided_slice %581 {offsets = [0, 256], sizes = [1, 128], strides = [1, 1]} : vector<1x384xf32> to vector<1x128xf32>
    %585 = vector.extract_strided_slice %575 {offsets = [0, 384], sizes = [1, 128], strides = [1, 1]} : vector<1x512xf32> to vector<1x128xf32>
    %586 = math.tanh %585 : vector<1x128xf32>
    %587 = arith.mulf %583, %570 : vector<1x128xf32>
    %588 = arith.mulf %582, %586 : vector<1x128xf32>
    %589 = arith.addf %587, %588 : vector<1x128xf32>
    %590 = math.tanh %589 : vector<1x128xf32>
    %591 = arith.mulf %584, %590 : vector<1x128xf32>
    %592 = arith.select %5, %570, %589 : vector<1x128xf32>
    %593 = arith.select %5, %571, %591 : vector<1x128xf32>
    %c27 = arith.constant 27 : index
    %c0_145 = arith.constant 0 : index
    %594 = vector.load %arg1[%c27, %c0_145] : memref<32x512xf32, #tpu.memory_space<vmem>>, vector<1x512xf32>
    %c0_146 = arith.constant 0 : index
    %c0_147 = arith.constant 0 : index
    %595 = vector.load %arg2[%c0_146, %c0_147] : memref<128x512xf32, #tpu.memory_space<vmem>>, vector<128x512xf32>
    %cst_148 = arith.constant dense<0.000000e+00> : vector<1x512xf32>
    %596 = tpu.matmul %593, %595, %cst_148 {dimension_numbers = #tpu.dot_dimension_numbers<[1], [0], [0], [1], [0, 0, 1, 1], [], []>} : vector<1x128xf32>, vector<128x512xf32>, vector<1x512xf32> -> vector<1x512xf32>
    %597 = arith.addf %594, %596 : vector<1x512xf32>
    %598 = vector.extract_strided_slice %597 {offsets = [0, 0], sizes = [1, 384], strides = [1, 1]} : vector<1x512xf32> to vector<1x384xf32>
    %599 = arith.negf %598 : vector<1x384xf32>
    %600 = math.exp %599 : vector<1x384xf32>
    %cst_149 = arith.constant 1.000000e+00 : f32
    %601 = vector.broadcast %cst_149 : f32 to vector<1x384xf32>
    %602 = arith.addf %601, %600 : vector<1x384xf32>
    %603 = arith.divf %601, %602 : vector<1x384xf32>
    %604 = vector.extract_strided_slice %603 {offsets = [0, 0], sizes = [1, 128], strides = [1, 1]} : vector<1x384xf32> to vector<1x128xf32>
    %605 = vector.extract_strided_slice %603 {offsets = [0, 128], sizes = [1, 128], strides = [1, 1]} : vector<1x384xf32> to vector<1x128xf32>
    %606 = vector.extract_strided_slice %603 {offsets = [0, 256], sizes = [1, 128], strides = [1, 1]} : vector<1x384xf32> to vector<1x128xf32>
    %607 = vector.extract_strided_slice %597 {offsets = [0, 384], sizes = [1, 128], strides = [1, 1]} : vector<1x512xf32> to vector<1x128xf32>
    %608 = math.tanh %607 : vector<1x128xf32>
    %609 = arith.mulf %605, %592 : vector<1x128xf32>
    %610 = arith.mulf %604, %608 : vector<1x128xf32>
    %611 = arith.addf %609, %610 : vector<1x128xf32>
    %612 = math.tanh %611 : vector<1x128xf32>
    %613 = arith.mulf %606, %612 : vector<1x128xf32>
    %614 = arith.select %5, %592, %611 : vector<1x128xf32>
    %615 = arith.select %5, %593, %613 : vector<1x128xf32>
    %c28 = arith.constant 28 : index
    %c0_150 = arith.constant 0 : index
    %616 = vector.load %arg1[%c28, %c0_150] : memref<32x512xf32, #tpu.memory_space<vmem>>, vector<1x512xf32>
    %c0_151 = arith.constant 0 : index
    %c0_152 = arith.constant 0 : index
    %617 = vector.load %arg2[%c0_151, %c0_152] : memref<128x512xf32, #tpu.memory_space<vmem>>, vector<128x512xf32>
    %cst_153 = arith.constant dense<0.000000e+00> : vector<1x512xf32>
    %618 = tpu.matmul %615, %617, %cst_153 {dimension_numbers = #tpu.dot_dimension_numbers<[1], [0], [0], [1], [0, 0, 1, 1], [], []>} : vector<1x128xf32>, vector<128x512xf32>, vector<1x512xf32> -> vector<1x512xf32>
    %619 = arith.addf %616, %618 : vector<1x512xf32>
    %620 = vector.extract_strided_slice %619 {offsets = [0, 0], sizes = [1, 384], strides = [1, 1]} : vector<1x512xf32> to vector<1x384xf32>
    %621 = arith.negf %620 : vector<1x384xf32>
    %622 = math.exp %621 : vector<1x384xf32>
    %cst_154 = arith.constant 1.000000e+00 : f32
    %623 = vector.broadcast %cst_154 : f32 to vector<1x384xf32>
    %624 = arith.addf %623, %622 : vector<1x384xf32>
    %625 = arith.divf %623, %624 : vector<1x384xf32>
    %626 = vector.extract_strided_slice %625 {offsets = [0, 0], sizes = [1, 128], strides = [1, 1]} : vector<1x384xf32> to vector<1x128xf32>
    %627 = vector.extract_strided_slice %625 {offsets = [0, 128], sizes = [1, 128], strides = [1, 1]} : vector<1x384xf32> to vector<1x128xf32>
    %628 = vector.extract_strided_slice %625 {offsets = [0, 256], sizes = [1, 128], strides = [1, 1]} : vector<1x384xf32> to vector<1x128xf32>
    %629 = vector.extract_strided_slice %619 {offsets = [0, 384], sizes = [1, 128], strides = [1, 1]} : vector<1x512xf32> to vector<1x128xf32>
    %630 = math.tanh %629 : vector<1x128xf32>
    %631 = arith.mulf %627, %614 : vector<1x128xf32>
    %632 = arith.mulf %626, %630 : vector<1x128xf32>
    %633 = arith.addf %631, %632 : vector<1x128xf32>
    %634 = math.tanh %633 : vector<1x128xf32>
    %635 = arith.mulf %628, %634 : vector<1x128xf32>
    %636 = arith.select %5, %614, %633 : vector<1x128xf32>
    %637 = arith.select %5, %615, %635 : vector<1x128xf32>
    %c29 = arith.constant 29 : index
    %c0_155 = arith.constant 0 : index
    %638 = vector.load %arg1[%c29, %c0_155] : memref<32x512xf32, #tpu.memory_space<vmem>>, vector<1x512xf32>
    %c0_156 = arith.constant 0 : index
    %c0_157 = arith.constant 0 : index
    %639 = vector.load %arg2[%c0_156, %c0_157] : memref<128x512xf32, #tpu.memory_space<vmem>>, vector<128x512xf32>
    %cst_158 = arith.constant dense<0.000000e+00> : vector<1x512xf32>
    %640 = tpu.matmul %637, %639, %cst_158 {dimension_numbers = #tpu.dot_dimension_numbers<[1], [0], [0], [1], [0, 0, 1, 1], [], []>} : vector<1x128xf32>, vector<128x512xf32>, vector<1x512xf32> -> vector<1x512xf32>
    %641 = arith.addf %638, %640 : vector<1x512xf32>
    %642 = vector.extract_strided_slice %641 {offsets = [0, 0], sizes = [1, 384], strides = [1, 1]} : vector<1x512xf32> to vector<1x384xf32>
    %643 = arith.negf %642 : vector<1x384xf32>
    %644 = math.exp %643 : vector<1x384xf32>
    %cst_159 = arith.constant 1.000000e+00 : f32
    %645 = vector.broadcast %cst_159 : f32 to vector<1x384xf32>
    %646 = arith.addf %645, %644 : vector<1x384xf32>
    %647 = arith.divf %645, %646 : vector<1x384xf32>
    %648 = vector.extract_strided_slice %647 {offsets = [0, 0], sizes = [1, 128], strides = [1, 1]} : vector<1x384xf32> to vector<1x128xf32>
    %649 = vector.extract_strided_slice %647 {offsets = [0, 128], sizes = [1, 128], strides = [1, 1]} : vector<1x384xf32> to vector<1x128xf32>
    %650 = vector.extract_strided_slice %647 {offsets = [0, 256], sizes = [1, 128], strides = [1, 1]} : vector<1x384xf32> to vector<1x128xf32>
    %651 = vector.extract_strided_slice %641 {offsets = [0, 384], sizes = [1, 128], strides = [1, 1]} : vector<1x512xf32> to vector<1x128xf32>
    %652 = math.tanh %651 : vector<1x128xf32>
    %653 = arith.mulf %649, %636 : vector<1x128xf32>
    %654 = arith.mulf %648, %652 : vector<1x128xf32>
    %655 = arith.addf %653, %654 : vector<1x128xf32>
    %656 = math.tanh %655 : vector<1x128xf32>
    %657 = arith.mulf %650, %656 : vector<1x128xf32>
    %658 = arith.select %5, %636, %655 : vector<1x128xf32>
    %659 = arith.select %5, %637, %657 : vector<1x128xf32>
    %c30 = arith.constant 30 : index
    %c0_160 = arith.constant 0 : index
    %660 = vector.load %arg1[%c30, %c0_160] : memref<32x512xf32, #tpu.memory_space<vmem>>, vector<1x512xf32>
    %c0_161 = arith.constant 0 : index
    %c0_162 = arith.constant 0 : index
    %661 = vector.load %arg2[%c0_161, %c0_162] : memref<128x512xf32, #tpu.memory_space<vmem>>, vector<128x512xf32>
    %cst_163 = arith.constant dense<0.000000e+00> : vector<1x512xf32>
    %662 = tpu.matmul %659, %661, %cst_163 {dimension_numbers = #tpu.dot_dimension_numbers<[1], [0], [0], [1], [0, 0, 1, 1], [], []>} : vector<1x128xf32>, vector<128x512xf32>, vector<1x512xf32> -> vector<1x512xf32>
    %663 = arith.addf %660, %662 : vector<1x512xf32>
    %664 = vector.extract_strided_slice %663 {offsets = [0, 0], sizes = [1, 384], strides = [1, 1]} : vector<1x512xf32> to vector<1x384xf32>
    %665 = arith.negf %664 : vector<1x384xf32>
    %666 = math.exp %665 : vector<1x384xf32>
    %cst_164 = arith.constant 1.000000e+00 : f32
    %667 = vector.broadcast %cst_164 : f32 to vector<1x384xf32>
    %668 = arith.addf %667, %666 : vector<1x384xf32>
    %669 = arith.divf %667, %668 : vector<1x384xf32>
    %670 = vector.extract_strided_slice %669 {offsets = [0, 0], sizes = [1, 128], strides = [1, 1]} : vector<1x384xf32> to vector<1x128xf32>
    %671 = vector.extract_strided_slice %669 {offsets = [0, 128], sizes = [1, 128], strides = [1, 1]} : vector<1x384xf32> to vector<1x128xf32>
    %672 = vector.extract_strided_slice %669 {offsets = [0, 256], sizes = [1, 128], strides = [1, 1]} : vector<1x384xf32> to vector<1x128xf32>
    %673 = vector.extract_strided_slice %663 {offsets = [0, 384], sizes = [1, 128], strides = [1, 1]} : vector<1x512xf32> to vector<1x128xf32>
    %674 = math.tanh %673 : vector<1x128xf32>
    %675 = arith.mulf %671, %658 : vector<1x128xf32>
    %676 = arith.mulf %670, %674 : vector<1x128xf32>
    %677 = arith.addf %675, %676 : vector<1x128xf32>
    %678 = math.tanh %677 : vector<1x128xf32>
    %679 = arith.mulf %672, %678 : vector<1x128xf32>
    %680 = arith.select %5, %658, %677 : vector<1x128xf32>
    %681 = arith.select %5, %659, %679 : vector<1x128xf32>
    %c31 = arith.constant 31 : index
    %c0_165 = arith.constant 0 : index
    %682 = vector.load %arg1[%c31, %c0_165] : memref<32x512xf32, #tpu.memory_space<vmem>>, vector<1x512xf32>
    %c0_166 = arith.constant 0 : index
    %c0_167 = arith.constant 0 : index
    %683 = vector.load %arg2[%c0_166, %c0_167] : memref<128x512xf32, #tpu.memory_space<vmem>>, vector<128x512xf32>
    %cst_168 = arith.constant dense<0.000000e+00> : vector<1x512xf32>
    %684 = tpu.matmul %681, %683, %cst_168 {dimension_numbers = #tpu.dot_dimension_numbers<[1], [0], [0], [1], [0, 0, 1, 1], [], []>} : vector<1x128xf32>, vector<128x512xf32>, vector<1x512xf32> -> vector<1x512xf32>
    %685 = arith.addf %682, %684 : vector<1x512xf32>
    %686 = vector.extract_strided_slice %685 {offsets = [0, 0], sizes = [1, 384], strides = [1, 1]} : vector<1x512xf32> to vector<1x384xf32>
    %687 = arith.negf %686 : vector<1x384xf32>
    %688 = math.exp %687 : vector<1x384xf32>
    %cst_169 = arith.constant 1.000000e+00 : f32
    %689 = vector.broadcast %cst_169 : f32 to vector<1x384xf32>
    %690 = arith.addf %689, %688 : vector<1x384xf32>
    %691 = arith.divf %689, %690 : vector<1x384xf32>
    %692 = vector.extract_strided_slice %691 {offsets = [0, 0], sizes = [1, 128], strides = [1, 1]} : vector<1x384xf32> to vector<1x128xf32>
    %693 = vector.extract_strided_slice %691 {offsets = [0, 128], sizes = [1, 128], strides = [1, 1]} : vector<1x384xf32> to vector<1x128xf32>
    %694 = vector.extract_strided_slice %691 {offsets = [0, 256], sizes = [1, 128], strides = [1, 1]} : vector<1x384xf32> to vector<1x128xf32>
    %695 = vector.extract_strided_slice %685 {offsets = [0, 384], sizes = [1, 128], strides = [1, 1]} : vector<1x512xf32> to vector<1x128xf32>
    %696 = math.tanh %695 : vector<1x128xf32>
    %697 = arith.mulf %693, %680 : vector<1x128xf32>
    %698 = arith.mulf %692, %696 : vector<1x128xf32>
    %699 = arith.addf %697, %698 : vector<1x128xf32>
    %700 = math.tanh %699 : vector<1x128xf32>
    %701 = arith.mulf %694, %700 : vector<1x128xf32>
    %702 = arith.select %5, %680, %699 : vector<1x128xf32>
    %703 = arith.select %5, %681, %701 : vector<1x128xf32>
    %704 = tpu.concatenate %549, %571, %593, %615, %637, %659, %681, %703 in 0 : vector<1x128xf32>, vector<1x128xf32>, vector<1x128xf32>, vector<1x128xf32>, vector<1x128xf32>, vector<1x128xf32>, vector<1x128xf32>, vector<1x128xf32> -> vector<8x128xf32>
    %c24_170 = arith.constant 24 : index
    %c0_171 = arith.constant 0 : index
    %705 = vector.load %arg5[%c24_170, %c0_171] : memref<32x128xf32, #tpu.memory_space<vmem>>, vector<8x128xf32>
    tpu.vector_store %arg5[%c24_170, %c0_171], %704 {strides = array<i32>} : memref<32x128xf32, #tpu.memory_space<vmem>>, vector<8x128xf32>,
    %c0_172 = arith.constant 0 : index
    %c0_173 = arith.constant 0 : index
    %706 = vector.load %arg6[%c0_172, %c0_173] : memref<1x128xf32, #tpu.memory_space<vmem>>, vector<1x128xf32>
    tpu.vector_store %arg6[%c0_172, %c0_173], %703 {strides = array<i32>} : memref<1x128xf32, #tpu.memory_space<vmem>>, vector<1x128xf32>,
    %c0_174 = arith.constant 0 : index
    %c0_175 = arith.constant 0 : index
    %707 = vector.load %arg7[%c0_174, %c0_175] : memref<1x128xf32, #tpu.memory_space<vmem>>, vector<1x128xf32>
    tpu.vector_store %arg7[%c0_174, %c0_175], %702 {strides = array<i32>} : memref<1x128xf32, #tpu.memory_space<vmem>>, vector<1x128xf32>,
    return
  }
  func.func @transform_0(%arg0: i32) -> (i32, i32) {
    %c0_i32 = arith.constant 0 : i32
    %c0_i32_0 = arith.constant 0 : i32
    return %arg0, %c0_i32 : i32, i32
  }
  func.func @transform_1(%arg0: i32) -> (i32, i32) {
    %c0_i32 = arith.constant 0 : i32
    %c0_i32_0 = arith.constant 0 : i32
    %c0_i32_1 = arith.constant 0 : i32
    return %c0_i32, %c0_i32_0 : i32, i32
  }
  func.func @transform_2(%arg0: i32) -> (i32, i32) {
    %c0_i32 = arith.constant 0 : i32
    %c0_i32_0 = arith.constant 0 : i32
    %c0_i32_1 = arith.constant 0 : i32
    return %c0_i32, %c0_i32_0 : i32, i32
  }
  func.func @transform_3(%arg0: i32) -> (i32, i32) {
    %c0_i32 = arith.constant 0 : i32
    %c0_i32_0 = arith.constant 0 : i32
    %c0_i32_1 = arith.constant 0 : i32
    return %c0_i32, %c0_i32_0 : i32, i32
  }
  func.func @transform_4(%arg0: i32) -> (i32, i32) {
    %c0_i32 = arith.constant 0 : i32
    %c0_i32_0 = arith.constant 0 : i32
    return %arg0, %c0_i32 : i32, i32
  }
  func.func @transform_5(%arg0: i32) -> (i32, i32) {
    %c0_i32 = arith.constant 0 : i32
    %c0_i32_0 = arith.constant 0 : i32
    %c0_i32_1 = arith.constant 0 : i32
    return %c0_i32, %c0_i32_0 : i32, i32
  }
  func.func @transform_6(%arg0: i32) -> (i32, i32) {
    %c0_i32 = arith.constant 0 : i32
    %c0_i32_0 = arith.constant 0 : i32
    %c0_i32_1 = arith.constant 0 : i32
    return %c0_i32, %c0_i32_0 : i32, i32
  }
}

</mosaic_0001>

<llo_original>
// kernel: tpu_custom_call.1
$region0: #{tpu_custom_call.1}
  #allocation0 [shape = 'u32[]', space=smem, size = 0x4, offset = 0x4, fixed_abs, tag = 'smem constant byte address 0x4 - core index']
  #allocation1 [shape = 'u32[144,128]{1,0:T(1,128)}', space=vmem, size = 0x12000, scoped, tag = 'internal scratch']
  %s0 = inlined_call_operand.hbm [shape: f32[96,512], index: 0, kind: input, shape index: {}]
  %s1 = inlined_call_operand.hbm [shape: f32[128,512], index: 1, kind: input, shape index: {}]
  %s2 = inlined_call_operand.vmem [shape: f32[1,128], index: 2, kind: input, shape index: {}]
  %s3 = inlined_call_operand.vmem [shape: f32[1,128], index: 3, kind: input, shape index: {}]
  %s4 = inlined_call_operand.hbm [shape: f32[96,128], index: 4, kind: output, shape index: {0}]
  %s5 = inlined_call_operand.hbm [shape: f32[1,128], index: 5, kind: output, shape index: {1}]
  %s6 = inlined_call_operand.hbm [shape: f32[1,128], index: 6, kind: output, shape index: {2}]
  %7 = xla_tuple %s4, %s5, %s6
  %s8 = sld [smem:[#allocation0]]
  $region77: #{tpu_custom_call.1} parent=0
    _
  %s10 = ssub.s32 1, %s8
  %s11 = scalar_select 0, %s10, %s8
  $region1: #{tpu_custom_call.1} parent=0
    #allocation2 [shape = 'u8[131072]{0}', space=vmem, size = 0x20000, scoped, tag = 'input window, operand 0']
    #allocation3 [shape = 's32[2]{0}', space=sflag, size = 0x8, scoped, tag = 'scoped memory for tpu_custom_call.1']
    #allocation4 [shape = 's32[2]{0}', space=sflag, size = 0x8, scoped, tag = 'scoped memory for tpu_custom_call.1']
    #allocation5 [shape = 'u8[262144]{0}', space=vmem, size = 0x40000, scoped, tag = 'input window, operand 1, single buffered']
    #allocation6 [shape = 's32[1]{0}', space=sflag, size = 0x4, scoped, tag = 'scoped memory for tpu_custom_call.1']
    #allocation7 [shape = 'u8[32768]{0}', space=vmem, size = 0x8000, scoped, tag = 'output window, operand 0']
    #allocation8 [shape = 'u8[512]{0}', space=vmem, size = 0x400, scoped, tag = 'output window, operand 1, single buffered']
    #allocation9 [shape = 's32[1]{0}', space=sflag, size = 0x4, scoped, tag = 'scoped memory for tpu_custom_call.1']
    #allocation10 [shape = 'u8[512]{0}', space=vmem, size = 0x400, scoped, tag = 'output window, operand 2, single buffered']
    %12 = vsyncpa [#allocation3], 0
    %s13 = scalar_lea.sflag [#allocation3], 1
    %14 = vsyncpa %s13, 0
    %15 = vsyncpa [#allocation6], 0
    %16 = vsyncpa [#allocation4], 0
    %s17 = scalar_lea.sflag [#allocation4], 1
    %18 = vsyncpa %s17, 0
    %19 = vsyncpa [#allocation9], 0
    loop: start=0, step=1, limit=5
    $region2: #{tpu_custom_call.1} parent=1 // loop_pre_header
      _
    $region3: #{tpu_custom_call.1} parent=1 // loop_header
      %s21 = sphi 0, %s25
      %p22 = scmp.ge.s32.totalorder %s21, 5
      %s31 = sphi 0, %s33
      %s34 = sphi 0, %s31
      %s35 = sphi 0, %s34
      %s51 = sphi 0, %s35
      %s55 = sphi 0, %s55
      %s57 = sphi 0, %s55
      %s58 = sphi 0, %s57
      %s72 = sphi 0, %s58
      %s76 = sphi 0, %s76
      %s78 = sphi 0, %s76
      %s79 = sphi 0, %s78
      %s93 = sphi 0, %s79
      %s97 = sphi 0, %s97
      %s99 = sphi 0, %s97
      %s100 = sphi 0, %s99
      %s114 = sphi 0, %s100
      %s120 = sphi 0, %s122
      %s123 = sphi 0, %s120
      %s124 = sphi 0, %s123
      %s140 = sphi 0, %s124
      %s144 = sphi 0, %s144
      %s146 = sphi 0, %s144
      %s147 = sphi 0, %s146
      %s161 = sphi 0, %s147
      %s165 = sphi 0, %s165
      %s167 = sphi 0, %s165
      %s168 = sphi 0, %s167
      %s182 = sphi 0, %s168
    $region4: #{tpu_custom_call.1} parent=1 // loop_header_branch
      %24 = sbr.rel (%p22) target = $region8
    $region5: #{tpu_custom_call.1} parent=1 // loop_body
      %s26 = ssub.s32 %s21, 1
      %s27 = ssub.s32 %s21, 2
      %s28 = sadd.s32 %s21, 1
      %s29 = ssub.s32 %s21, %s28
      %p30 = scmp.eq.s32.totalorder %s29, 0
      %s32 = sadd.s32 %s31, 1
      %s33 = scalar_select %p30, %s31, %s32
      %p36 = pneg %p30
      %p37 = scmp.eq.s32.totalorder %s21, 2
      %p38 = por %p36, %p37
      %p39 = scmp.ne.s32.totalorder %s31, %s34
      %p40 = scmp.eq.s32.totalorder %s21, 0
      %p41 = por %p39, %p40
      %p42 = scmp.ne.s32.totalorder %s31, %s34
      %p43 = scmp.eq.s32.totalorder %s26, 2
      %p44 = por %p42, %p43
      %p45 = scmp.ne.s32.totalorder %s34, %s35
      %p46 = scmp.eq.s32.totalorder %s26, 0
      %p47 = por %p45, %p46
      %p48 = scmp.ne.s32.totalorder %s34, %s35
      %p49 = scmp.eq.s32.totalorder %s27, 2
      %p50 = por %p48, %p49
      %p52 = scmp.ne.s32.totalorder %s35, %s51
      %p53 = scmp.eq.s32.totalorder %s27, 0
      %p54 = por %p52, %p53
      %s56 = sadd.s32 %s55, 1
      %p59 = scmp.eq.s32.totalorder %s21, 2
      %p60 = scmp.ne.s32.totalorder %s55, %s57
      %p61 = scmp.eq.s32.totalorder %s21, 0
      %p62 = por %p60, %p61
      %p63 = scmp.ne.s32.totalorder %s55, %s57
      %p64 = scmp.eq.s32.totalorder %s26, 2
      %p65 = por %p63, %p64
      %p66 = scmp.ne.s32.totalorder %s57, %s58
      %p67 = scmp.eq.s32.totalorder %s26, 0
      %p68 = por %p66, %p67
      %p69 = scmp.ne.s32.totalorder %s57, %s58
      %p70 = scmp.eq.s32.totalorder %s27, 2
      %p71 = por %p69, %p70
      %p73 = scmp.ne.s32.totalorder %s58, %s72
      %p74 = scmp.eq.s32.totalorder %s27, 0
      %p75 = por %p73, %p74
      %s77 = sadd.s32 %s76, 1
      %p80 = scmp.eq.s32.totalorder %s21, 2
      %p81 = scmp.ne.s32.totalorder %s76, %s78
      %p82 = scmp.eq.s32.totalorder %s21, 0
      %p83 = por %p81, %p82
      %p84 = scmp.ne.s32.totalorder %s76, %s78
      %p85 = scmp.eq.s32.totalorder %s26, 2
      %p86 = por %p84, %p85
      %p87 = scmp.ne.s32.totalorder %s78, %s79
      %p88 = scmp.eq.s32.totalorder %s26, 0
      %p89 = por %p87, %p88
      %p90 = scmp.ne.s32.totalorder %s78, %s79
      %p91 = scmp.eq.s32.totalorder %s27, 2
      %p92 = por %p90, %p91
      %p94 = scmp.ne.s32.totalorder %s79, %s93
      %p95 = scmp.eq.s32.totalorder %s27, 0
      %p96 = por %p94, %p95
      %s98 = sadd.s32 %s97, 1
      %p101 = scmp.eq.s32.totalorder %s21, 2
      %p102 = scmp.ne.s32.totalorder %s97, %s99
      %p103 = scmp.eq.s32.totalorder %s21, 0
      %p104 = por %p102, %p103
      %p105 = scmp.ne.s32.totalorder %s97, %s99
      %p106 = scmp.eq.s32.totalorder %s26, 2
      %p107 = por %p105, %p106
      %p108 = scmp.ne.s32.totalorder %s99, %s100
      %p109 = scmp.eq.s32.totalorder %s26, 0
      %p110 = por %p108, %p109
      %p111 = scmp.ne.s32.totalorder %s99, %s100
      %p112 = scmp.eq.s32.totalorder %s27, 2
      %p113 = por %p111, %p112
      %p115 = scmp.ne.s32.totalorder %s100, %s114
      %p116 = scmp.eq.s32.totalorder %s27, 0
      %p117 = por %p115, %p116
      %s118 = ssub.s32 %s21, %s28
      %p119 = scmp.eq.s32.totalorder %s118, 0
      %s121 = sadd.s32 %s120, 1
      %s122 = scalar_select %p119, %s120, %s121
      %p125 = pneg %p119
      %p126 = scmp.eq.s32.totalorder %s21, 2
      %p127 = por %p125, %p126
      %p128 = scmp.ne.s32.totalorder %s120, %s123
      %p129 = scmp.eq.s32.totalorder %s21, 0
      %p130 = por %p128, %p129
      %p131 = scmp.ne.s32.totalorder %s120, %s123
      %p132 = scmp.eq.s32.totalorder %s26, 2
      %p133 = por %p131, %p132
      %p134 = scmp.ne.s32.totalorder %s123, %s124
      %p135 = scmp.eq.s32.totalorder %s26, 0
      %p136 = por %p134, %p135
      %p137 = scmp.ne.s32.totalorder %s123, %s124
      %p138 = scmp.eq.s32.totalorder %s27, 2
      %p139 = por %p137, %p138
      %p141 = scmp.ne.s32.totalorder %s124, %s140
      %p142 = scmp.eq.s32.totalorder %s27, 0
      %p143 = por %p141, %p142
      %s145 = sadd.s32 %s144, 1
      %p148 = scmp.eq.s32.totalorder %s21, 2
      %p149 = scmp.ne.s32.totalorder %s144, %s146
      %p150 = scmp.eq.s32.totalorder %s21, 0
      %p151 = por %p149, %p150
      %p152 = scmp.ne.s32.totalorder %s144, %s146
      %p153 = scmp.eq.s32.totalorder %s26, 2
      %p154 = por %p152, %p153
      %p155 = scmp.ne.s32.totalorder %s146, %s147
      %p156 = scmp.eq.s32.totalorder %s26, 0
      %p157 = por %p155, %p156
      %p158 = scmp.ne.s32.totalorder %s146, %s147
      %p159 = scmp.eq.s32.totalorder %s27, 2
      %p160 = por %p158, %p159
      %p162 = scmp.ne.s32.totalorder %s147, %s161
      %p163 = scmp.eq.s32.totalorder %s27, 0
      %p164 = por %p162, %p163
      %s166 = sadd.s32 %s165, 1
      %p169 = scmp.eq.s32.totalorder %s21, 2
      %p170 = scmp.ne.s32.totalorder %s165, %s167
      %p171 = scmp.eq.s32.totalorder %s21, 0
      %p172 = por %p170, %p171
      %p173 = scmp.ne.s32.totalorder %s165, %s167
      %p174 = scmp.eq.s32.totalorder %s26, 2
      %p175 = por %p173, %p174
      %p176 = scmp.ne.s32.totalorder %s167, %s168
      %p177 = scmp.eq.s32.totalorder %s26, 0
      %p178 = por %p176, %p177
      %p179 = scmp.ne.s32.totalorder %s167, %s168
      %p180 = scmp.eq.s32.totalorder %s27, 2
      %p181 = por %p179, %p180
      %p183 = scmp.ne.s32.totalorder %s168, %s182
      %p184 = scmp.eq.s32.totalorder %s27, 0
      %p185 = por %p183, %p184
      %p186 = scmp.le.s32.totalorder 1, %s21
      %p187 = scmp.lt.s32.totalorder %s21, 4
      %p188 = pnand %p186, %p187
      %p189 = pneg %p188
      // Predicated region
      $region9: #{tpu_custom_call.1} parent=5 // pred_check
        _
      $region10: #{tpu_custom_call.1} parent=5 // pred_check_branch
        %191 = sbr.rel (%p188) target = $region12
      $region11: #{tpu_custom_call.1} parent=5 // pred_region
        %s192 = ssub.s32 %s21, 1
        // Predicated region
        $region13: #{tpu_custom_call.1} parent=11 // pred_check
          %p193 = pneg %p68
        $region14: #{tpu_custom_call.1} parent=11 // pred_check_branch
          %195 = sbr.rel (%p193) target = $region16
        $region15: #{tpu_custom_call.1} parent=11 // pred_region
          %s197 = ssub.s32 8192, 8192
          %198 = vsyncadd [#allocation6], %s197
          %s199 = sshll.u32 [#allocation5], 4
          %s200 = int_to_ptr.vmem [resolvable:$true] %s199
          %205 = dma.hbm_to_vmem [thread:$0]  %s1, 8192, %s200, [#allocation6], 512, 512, 32
        $region16: #{tpu_custom_call.1} parent=11 // pred_fallthru
          _
        // Predicated region
        $region17: #{tpu_custom_call.1} parent=11 // pred_check
          %p206 = pneg %p89
        $region18: #{tpu_custom_call.1} parent=11 // pred_check_branch
          %208 = sbr.rel (%p206) target = $region20
        $region19: #{tpu_custom_call.1} parent=11 // pred_region
          _
        $region20: #{tpu_custom_call.1} parent=11 // pred_fallthru
          _
        // Predicated region
        $region21: #{tpu_custom_call.1} parent=11 // pred_check
          %p209 = pneg %p110
        $region22: #{tpu_custom_call.1} parent=11 // pred_check_branch
          %211 = sbr.rel (%p209) target = $region24
        $region23: #{tpu_custom_call.1} parent=11 // pred_region
          _
        $region24: #{tpu_custom_call.1} parent=11 // pred_fallthru
          _
      $region12: #{tpu_custom_call.1} parent=5 // pred_fallthru
        _
      %p212 = scmp.lt.s32.totalorder %s21, 3
      // Predicated region
      $region25: #{tpu_custom_call.1} parent=5 // pred_check
        %p213 = pneg %p212
      $region26: #{tpu_custom_call.1} parent=5 // pred_check_branch
        %215 = sbr.rel (%p213) target = $region28
      $region27: #{tpu_custom_call.1} parent=5 // pred_region
        // Predicated region
        $region29: #{tpu_custom_call.1} parent=27 // pred_check
          %p216 = pneg %p41
        $region30: #{tpu_custom_call.1} parent=27 // pred_check_branch
          %218 = sbr.rel (%p216) target = $region32
        $region31: #{tpu_custom_call.1} parent=27 // pred_region
          %s219 = sand.u32 %s31, 1
          %s220 = scalar_lea.sflag [#allocation3], %s219
          %s221 = sand.u32 %s31, 1
          %s222 = smul.addr %s221, 128
          %s223 = scalar_lea.vmem [#allocation2], %s222
          %s224 = smul.u32 4, %s21
          %s226 = ssub.s32 2048, 2048
          %227 = vsyncadd %s220, %s226
          %s228 = smul.addr %s224, 4
          %s229 = smul.addr %s228, 128
          %s230 = scalar_lea.hbm %s0, %s229
          %s231 = sshll.u32 %s223, 4
          %s232 = int_to_ptr.vmem [resolvable:$true] %s231
          %237 = dma.hbm_to_vmem [thread:$0]  %s230, 2048, %s232, %s220, 512, 512, 32
        $region32: #{tpu_custom_call.1} parent=27 // pred_fallthru
          _
      $region28: #{tpu_custom_call.1} parent=5 // pred_fallthru
        _
      %p238 = scmp.le.s32.totalorder 1, %s21
      %p239 = scmp.lt.s32.totalorder %s21, 4
      %p240 = pnand %p238, %p239
      %p241 = pneg %p240
      // Predicated region
      $region33: #{tpu_custom_call.1} parent=5 // pred_check
        _
      $region34: #{tpu_custom_call.1} parent=5 // pred_check_branch
        %243 = sbr.rel (%p240) target = $region36
      $region35: #{tpu_custom_call.1} parent=5 // pred_region
        %s244 = ssub.s32 %s21, 1
        %s245 = sand.u32 %s34, 1
        %s246 = scalar_lea.sflag [#allocation3], %s245
        %s247 = sand.u32 %s34, 1
        %s248 = smul.addr %s247, 128
        %s249 = scalar_lea.vmem [#allocation2], %s248
        // Predicated region
        $region37: #{tpu_custom_call.1} parent=35 // pred_check
          %p250 = pneg %p47
        $region38: #{tpu_custom_call.1} parent=35 // pred_check_branch
          %252 = sbr.rel (%p250) target = $region40
        $region39: #{tpu_custom_call.1} parent=35 // pred_region
          %253 = dma.done %s246, 2048
        $region40: #{tpu_custom_call.1} parent=35 // pred_fallthru
          _
        // Predicated region
        $region41: #{tpu_custom_call.1} parent=35 // pred_check
          %p254 = pneg %p68
        $region42: #{tpu_custom_call.1} parent=35 // pred_check_branch
          %256 = sbr.rel (%p254) target = $region44
        $region43: #{tpu_custom_call.1} parent=35 // pred_region
          %257 = dma.done [#allocation6], 8192
        $region44: #{tpu_custom_call.1} parent=35 // pred_fallthru
          _
        %s258 = sand.u32 %s34, 1
        %s259 = scalar_lea.sflag [#allocation3], %s258
        %s260 = sand.u32 %s34, 1
        %s261 = smul.addr %s260, 128
        %s262 = scalar_lea.vmem [#allocation2], %s261
        %p263 = pneg %p47
        %p264 = pneg %p44
        %p265 = pneg %p68
        %p266 = pneg %p65
        %p267 = pneg %p89
        %p268 = pneg %p86
        %p269 = pneg %p110
        %p270 = pneg %p107
        %p271 = pneg %p136
        %p272 = pneg %p133
        %s273 = sand.u32 %s123, 1
        %s274 = scalar_lea.sflag [#allocation4], %s273
        %s275 = sand.u32 %s123, 1
        %s276 = smul.addr %s275, 32
        %s277 = scalar_lea.vmem [#allocation7], %s276
        %p278 = pneg %p157
        %p279 = pneg %p154
        %p280 = pneg %p178
        %p281 = pneg %p175
        %s282 = smul.u32 4, %s26
        %s283 = smul.u32 4, %s26
        %p284 = scmp.eq.s32.totalorder %s26, 0
        // Predicated region
        $region45: #{tpu_custom_call.1} parent=35 // pred_check
          %p285 = pneg %p284
        $region46: #{tpu_custom_call.1} parent=35 // pred_check_branch
          %287 = sbr.rel (%p285) target = $region48
        $region47: #{tpu_custom_call.1} parent=35 // pred_region
          %v288 = vld [vmem:[%s2] sm:$0x1]
          %289 = vst [vmem:[#allocation8] sm:$0x1] %v288
          %v290 = vld [vmem:[%s3] sm:$0x1]
          %291 = vst [vmem:[#allocation10] sm:$0x1] %v290
        $region48: #{tpu_custom_call.1} parent=35 // pred_fallthru
          _
        %v292 = vld [vmem:[#allocation8] sm:$0x1]
        %v293 = vld [vmem:[#allocation10] sm:$0x1]
        %p294 = scmp.eq.s32.totalorder %s26, 2
        %v295 = vld [vmem:[%s249] ss:$8 sm:$0xf]
        %v296 = vld [vmem:[#allocation5] sm:$0xff]
        %v297 = vld [vmem:[#allocation5 + $0x8] sm:$0xff]
        %v298 = vld [vmem:[#allocation5 + $0x10] sm:$0xff]
        %v299 = vld [vmem:[#allocation5 + $0x18] sm:$0xff]
        %v300 = vld [vmem:[#allocation5 + $0x20] sm:$0xff]
        %v301 = vld [vmem:[#allocation5 + $0x28] sm:$0xff]
        %v302 = vld [vmem:[#allocation5 + $0x30] sm:$0xff]
        %v303 = vld [vmem:[#allocation5 + $0x38] sm:$0xff]
        %v304 = vld [vmem:[#allocation5 + $0x40] sm:$0xff]
        %v305 = vld [vmem:[#allocation5 + $0x48] sm:$0xff]
        %v306 = vld [vmem:[#allocation5 + $0x50] sm:$0xff]
        %v307 = vld [vmem:[#allocation5 + $0x58] sm:$0xff]
        %v308 = vld [vmem:[#allocation5 + $0x60] sm:$0xff]
        %v309 = vld [vmem:[#allocation5 + $0x68] sm:$0xff]
        %v310 = vld [vmem:[#allocation5 + $0x70] sm:$0xff]
        %v311 = vld [vmem:[#allocation5 + $0x78] sm:$0xff]
        %v312 = vld [vmem:[#allocation5 + $0x80] sm:$0xff]
        %v313 = vld [vmem:[#allocation5 + $0x88] sm:$0xff]
        %v314 = vld [vmem:[#allocation5 + $0x90] sm:$0xff]
        %v315 = vld [vmem:[#allocation5 + $0x98] sm:$0xff]
        %v316 = vld [vmem:[#allocation5 + $0xa0] sm:$0xff]
        %v317 = vld [vmem:[#allocation5 + $0xa8] sm:$0xff]
        %v318 = vld [vmem:[#allocation5 + $0xb0] sm:$0xff]
        %v319 = vld [vmem:[#allocation5 + $0xb8] sm:$0xff]
        %v320 = vld [vmem:[#allocation5 + $0xc0] sm:$0xff]
        %v321 = vld [vmem:[#allocation5 + $0xc8] sm:$0xff]
        %v322 = vld [vmem:[#allocation5 + $0xd0] sm:$0xff]
        %v323 = vld [vmem:[#allocation5 + $0xd8] sm:$0xff]
        %v324 = vld [vmem:[#allocation5 + $0xe0] sm:$0xff]
        %v325 = vld [vmem:[#allocation5 + $0xe8] sm:$0xff]
        %v326 = vld [vmem:[#allocation5 + $0xf0] sm:$0xff]
        %v327 = vld [vmem:[#allocation5 + $0xf8] sm:$0xff]
        %v328 = vld [vmem:[#allocation5 + $0x100] sm:$0xff]
        %v329 = vld [vmem:[#allocation5 + $0x108] sm:$0xff]
        %v330 = vld [vmem:[#allocation5 + $0x110] sm:$0xff]
        %v331 = vld [vmem:[#allocation5 + $0x118] sm:$0xff]
        %v332 = vld [vmem:[#allocation5 + $0x120] sm:$0xff]
        %v333 = vld [vmem:[#allocation5 + $0x128] sm:$0xff]
        %v334 = vld [vmem:[#allocation5 + $0x130] sm:$0xff]
        %v335 = vld [vmem:[#allocation5 + $0x138] sm:$0xff]
        %v336 = vld [vmem:[#allocation5 + $0x140] sm:$0xff]
        %v337 = vld [vmem:[#allocation5 + $0x148] sm:$0xff]
        %v338 = vld [vmem:[#allocation5 + $0x150] sm:$0xff]
        %v339 = vld [vmem:[#allocation5 + $0x158] sm:$0xff]
        %v340 = vld [vmem:[#allocation5 + $0x160] sm:$0xff]
        %v341 = vld [vmem:[#allocation5 + $0x168] sm:$0xff]
        %v342 = vld [vmem:[#allocation5 + $0x170] sm:$0xff]
        %v343 = vld [vmem:[#allocation5 + $0x178] sm:$0xff]
        %v344 = vld [vmem:[#allocation5 + $0x180] sm:$0xff]
        %v345 = vld [vmem:[#allocation5 + $0x188] sm:$0xff]
        %v346 = vld [vmem:[#allocation5 + $0x190] sm:$0xff]
        %v347 = vld [vmem:[#allocation5 + $0x198] sm:$0xff]
        %v348 = vld [vmem:[#allocation5 + $0x1a0] sm:$0xff]
        %v349 = vld [vmem:[#allocation5 + $0x1a8] sm:$0xff]
        %v350 = vld [vmem:[#allocation5 + $0x1b0] sm:$0xff]
        %v351 = vld [vmem:[#allocation5 + $0x1b8] sm:$0xff]
        %v352 = vld [vmem:[#allocation5 + $0x1c0] sm:$0xff]
        %v353 = vld [vmem:[#allocation5 + $0x1c8] sm:$0xff]
        %v354 = vld [vmem:[#allocation5 + $0x1d0] sm:$0xff]
        %v355 = vld [vmem:[#allocation5 + $0x1d8] sm:$0xff]
        %v356 = vld [vmem:[#allocation5 + $0x1e0] sm:$0xff]
        %v357 = vld [vmem:[#allocation5 + $0x1e8] sm:$0xff]
        %v358 = vld [vmem:[#allocation5 + $0x1f0] sm:$0xff]
        %v359 = vld [vmem:[#allocation5 + $0x1f8] sm:$0xff]
        %360 = vmatprep.subr.mxu0 %v297
        %361 = vmatpush1.msra.mxu0 %v296
        %362 = vmatprep.subr.mxu0 %v301
        %363 = vmatpush1.msra.mxu0 %v300
        %364 = vmatprep.subr.mxu0 %v305
        %365 = vmatpush1.msra.mxu0 %v304
        %366 = vmatprep.subr.mxu0 %v309
        %367 = vmatpush1.msra.mxu0 %v308
        %368 = vmatprep.subr.mxu0 %v313
        %369 = vmatpush1.msra.mxu0 %v312
        %370 = vmatprep.subr.mxu0 %v317
        %371 = vmatpush1.msra.mxu0 %v316
        %372 = vmatprep.subr.mxu0 %v321
        %373 = vmatpush1.msra.mxu0 %v320
        %374 = vmatprep.subr.mxu0 %v325
        %375 = vmatpush1.msra.mxu0 %v324
        %376 = vmatprep.subr.mxu0 %v329
        %377 = vmatpush1.msra.mxu0 %v328
        %378 = vmatprep.subr.mxu0 %v333
        %379 = vmatpush1.msra.mxu0 %v332
        %380 = vmatprep.subr.mxu0 %v337
        %381 = vmatpush1.msra.mxu0 %v336
        %382 = vmatprep.subr.mxu0 %v341
        %383 = vmatpush1.msra.mxu0 %v340
        %384 = vmatprep.subr.mxu0 %v345
        %385 = vmatpush1.msra.mxu0 %v344
        %386 = vmatprep.subr.mxu0 %v349
        %387 = vmatpush1.msra.mxu0 %v348
        %388 = vmatprep.subr.mxu0 %v353
        %389 = vmatpush1.msra.mxu0 %v352
        %390 = vmatprep.subr.mxu0 %v357
        %391 = vmatpush1.msra.mxu0 %v356
        %392 = vmatprep.subr.mxu0 0.0
        %393 = vmatpush1.msra.mxu0 0.0
        %394 = vmatprep.subr.mxu0 0.0
        %395 = vmatpush1.msra.mxu0 0.0
        %396 = vmatprep.subr.mxu0 0.0
        %397 = vmatpush1.msra.mxu0 0.0
        %398 = vmatprep.subr.mxu0 0.0
        %399 = vmatpush1.msra.mxu0 0.0
        %400 = vmatprep.subr.mxu0 0.0
        %401 = vmatpush1.msra.mxu0 0.0
        %402 = vmatprep.subr.mxu0 0.0
        %403 = vmatpush1.msra.mxu0 0.0
        %404 = vmatprep.subr.mxu0 0.0
        %405 = vmatpush1.msra.mxu0 0.0
        %406 = vmatprep.subr.mxu0 0.0
        %407 = vmatpush1.msra.mxu0 0.0
        %408 = vmatprep.subr.mxu0 0.0
        %409 = vmatpush1.msra.mxu0 0.0
        %410 = vmatprep.subr.mxu0 0.0
        %411 = vmatpush1.msra.mxu0 0.0
        %412 = vmatprep.subr.mxu0 0.0
        %413 = vmatpush1.msra.mxu0 0.0
        %414 = vmatprep.subr.mxu0 0.0
        %415 = vmatpush1.msra.mxu0 0.0
        %416 = vmatprep.subr.mxu0 0.0
        %417 = vmatpush1.msra.mxu0 0.0
        %418 = vmatprep.subr.mxu0 0.0
        %419 = vmatpush1.msra.mxu0 0.0
        %420 = vmatprep.subr.mxu0 0.0
        %421 = vmatpush1.msra.mxu0 0.0
        %422 = vmatprep.subr.mxu0 0.0
        %423 = vmatpush1.msra.mxu0 0.0
        %424 = vmatprep.mubr.f32.mxu0 0.0
        %425 = vmatmul.mubr.f32.gmra.mrb[0].mxu0 %v292
        %v426 = vpop.f32.mrb[0].mxu0
        %v427 = vadd.f32 0.0, %v426
        %v428 = vpop.f32.mrb[0].mxu0
        %v429 = vadd.f32 0.0, %v428
        %430 = vdwg.mxu0
        %431 = vmatprep.subr.mxu0 %v299
        %432 = vmatpush1.msra.mxu0 %v298
        %433 = vmatprep.subr.mxu0 %v303
        %434 = vmatpush1.msra.mxu0 %v302
        %435 = vmatprep.subr.mxu0 %v307
        %436 = vmatpush1.msra.mxu0 %v306
        %437 = vmatprep.subr.mxu0 %v311
        %438 = vmatpush1.msra.mxu0 %v310
        %439 = vmatprep.subr.mxu0 %v315
        %440 = vmatpush1.msra.mxu0 %v314
        %441 = vmatprep.subr.mxu0 %v319
        %442 = vmatpush1.msra.mxu0 %v318
        %443 = vmatprep.subr.mxu0 %v323
        %444 = vmatpush1.msra.mxu0 %v322
        %445 = vmatprep.subr.mxu0 %v327
        %446 = vmatpush1.msra.mxu0 %v326
        %447 = vmatprep.subr.mxu0 %v331
        %448 = vmatpush1.msra.mxu0 %v330
        %449 = vmatprep.subr.mxu0 %v335
        %450 = vmatpush1.msra.mxu0 %v334
        %451 = vmatprep.subr.mxu0 %v339
        %452 = vmatpush1.msra.mxu0 %v338
        %453 = vmatprep.subr.mxu0 %v343
        %454 = vmatpush1.msra.mxu0 %v342
        %455 = vmatprep.subr.mxu0 %v347
        %456 = vmatpush1.msra.mxu0 %v346
        %457 = vmatprep.subr.mxu0 %v351
        %458 = vmatpush1.msra.mxu0 %v350
        %459 = vmatprep.subr.mxu0 %v355
        %460 = vmatpush1.msra.mxu0 %v354
        %461 = vmatprep.subr.mxu0 %v359
        %462 = vmatpush1.msra.mxu0 %v358
        %463 = vmatprep.subr.mxu0 0.0
        %464 = vmatpush1.msra.mxu0 0.0
        %465 = vmatprep.subr.mxu0 0.0
        %466 = vmatpush1.msra.mxu0 0.0
        %467 = vmatprep.subr.mxu0 0.0
        %468 = vmatpush1.msra.mxu0 0.0
        %469 = vmatprep.subr.mxu0 0.0
        %470 = vmatpush1.msra.mxu0 0.0
        %471 = vmatprep.subr.mxu0 0.0
        %472 = vmatpush1.msra.mxu0 0.0
        %473 = vmatprep.subr.mxu0 0.0
        %474 = vmatpush1.msra.mxu0 0.0
        %475 = vmatprep.subr.mxu0 0.0
        %476 = vmatpush1.msra.mxu0 0.0
        %477 = vmatprep.subr.mxu0 0.0
        %478 = vmatpush1.msra.mxu0 0.0
        %479 = vmatprep.subr.mxu0 0.0
        %480 = vmatpush1.msra.mxu0 0.0
        %481 = vmatprep.subr.mxu0 0.0
        %482 = vmatpush1.msra.mxu0 0.0
        %483 = vmatprep.subr.mxu0 0.0
        %484 = vmatpush1.msra.mxu0 0.0
        %485 = vmatprep.subr.mxu0 0.0
        %486 = vmatpush1.msra.mxu0 0.0
        %487 = vmatprep.subr.mxu0 0.0
        %488 = vmatpush1.msra.mxu0 0.0
        %489 = vmatprep.subr.mxu0 0.0
        %490 = vmatpush1.msra.mxu0 0.0
        %491 = vmatprep.subr.mxu0 0.0
        %492 = vmatpush1.msra.mxu0 0.0
        %493 = vmatprep.subr.mxu0 0.0
        %494 = vmatpush1.msra.mxu0 0.0
        %495 = vmatprep.mubr.f32.mxu0 0.0
        %496 = vmatmul.mubr.f32.gmra.mrb[0].mxu0 %v292
        %v497 = vpop.f32.mrb[0].mxu0
        %v498 = vadd.f32 0.0, %v497
        %v499 = vpop.f32.mrb[0].mxu0
        %v500 = vadd.f32 0.0, %v499
        %501 = vdwg.mxu0
        %v506 = vcombine.low %v427, %v429
        %v507 = vcombine.low %v498, %v500
        %v509 = vunpack.c.l.s4 1966171168
        %v510 = vunpack.c.0.s8 %v509
        %v511 = vlaneseq
        %v512 = vshrl.u32 %v511, 7
        %v513 = vsub.s32 %v510, %v512
        %v514 = vrot.slane %v506, %v513
        %v516 = vunpack.c.l.s4 1966171168
        %v517 = vunpack.c.0.s8 %v516
        %v518 = vlaneseq
        %v519 = vshrl.u32 %v518, 7
        %v520 = vsub.s32 %v517, %v519
        %v521 = vrot.slane %v507, %v520
        %v522 = vcombine.low %v514, %v521
        %v524 = vunpack.c.l.s4 1966171168
        %v525 = vunpack.c.0.s8 %v524
        %v526 = vlaneseq
        %v527 = vshrl.u32 %v526, 7
        %v528 = vsub.s32 %v525, %v527
        %v529 = vrot.slane %v522, %v528
        %v531 = vadd.f32 %v295, %v529
        %v532 = vxor.u32 %v531, 2147483648
        %v533 = vmul.f32 %v532, 1.442695
        %v534 = vpow.pop %v533
        %v535 = vadd.f32 %v534, 1.0
        %v536 = vrcp.pop %v535
        %v537 = vmul.f32 1.0, %v536
        %v539 = vrot.slane %v531, 3
        %v541 = vtanh.pop %v539
        %v543 = vrot.slane %v537, 1
        %v545 = vmul.f32 %v543, %v293
        %v546 = vmul.f32 %v537, %v541
        %v547 = vadd.f32 %v545, %v546
        %v548 = vtanh.pop %v547
        %v549 = vrot.slane %v537, 2
        %v551 = vmul.f32 %v549, %v548
        %s552 = scalar_lea.vmem %s249, 1 [#allocation2]
        %v553 = vld [vmem:[%s552] ss:$8 sm:$0xf]
        %554 = vmatprep.subr.mxu0 %v297
        %555 = vmatpush1.msra.mxu0 %v296
        %556 = vmatprep.subr.mxu0 %v301
        %557 = vmatpush1.msra.mxu0 %v300
        %558 = vmatprep.subr.mxu0 %v305
        %559 = vmatpush1.msra.mxu0 %v304
        %560 = vmatprep.subr.mxu0 %v309
        %561 = vmatpush1.msra.mxu0 %v308
        %562 = vmatprep.subr.mxu0 %v313
        %563 = vmatpush1.msra.mxu0 %v312
        %564 = vmatprep.subr.mxu0 %v317
        %565 = vmatpush1.msra.mxu0 %v316
        %566 = vmatprep.subr.mxu0 %v321
        %567 = vmatpush1.msra.mxu0 %v320
        %568 = vmatprep.subr.mxu0 %v325
        %569 = vmatpush1.msra.mxu0 %v324
        %570 = vmatprep.subr.mxu0 %v329
        %571 = vmatpush1.msra.mxu0 %v328
        %572 = vmatprep.subr.mxu0 %v333
        %573 = vmatpush1.msra.mxu0 %v332
        %574 = vmatprep.subr.mxu0 %v337
        %575 = vmatpush1.msra.mxu0 %v336
        %576 = vmatprep.subr.mxu0 %v341
        %577 = vmatpush1.msra.mxu0 %v340
        %578 = vmatprep.subr.mxu0 %v345
        %579 = vmatpush1.msra.mxu0 %v344
        %580 = vmatprep.subr.mxu0 %v349
        %581 = vmatpush1.msra.mxu0 %v348
        %582 = vmatprep.subr.mxu0 %v353
        %583 = vmatpush1.msra.mxu0 %v352
        %584 = vmatprep.subr.mxu0 %v357
        %585 = vmatpush1.msra.mxu0 %v356
        %586 = vmatprep.subr.mxu0 0.0
        %587 = vmatpush1.msra.mxu0 0.0
        %588 = vmatprep.subr.mxu0 0.0
        %589 = vmatpush1.msra.mxu0 0.0
        %590 = vmatprep.subr.mxu0 0.0
        %591 = vmatpush1.msra.mxu0 0.0
        %592 = vmatprep.subr.mxu0 0.0
        %593 = vmatpush1.msra.mxu0 0.0
        %594 = vmatprep.subr.mxu0 0.0
        %595 = vmatpush1.msra.mxu0 0.0
        %596 = vmatprep.subr.mxu0 0.0
        %597 = vmatpush1.msra.mxu0 0.0
        %598 = vmatprep.subr.mxu0 0.0
        %599 = vmatpush1.msra.mxu0 0.0
        %600 = vmatprep.subr.mxu0 0.0
        %601 = vmatpush1.msra.mxu0 0.0
        %602 = vmatprep.subr.mxu0 0.0
        %603 = vmatpush1.msra.mxu0 0.0
        %604 = vmatprep.subr.mxu0 0.0
        %605 = vmatpush1.msra.mxu0 0.0
        %606 = vmatprep.subr.mxu0 0.0
        %607 = vmatpush1.msra.mxu0 0.0
        %608 = vmatprep.subr.mxu0 0.0
        %609 = vmatpush1.msra.mxu0 0.0
        %610 = vmatprep.subr.mxu0 0.0
        %611 = vmatpush1.msra.mxu0 0.0
        %612 = vmatprep.subr.mxu0 0.0
        %613 = vmatpush1.msra.mxu0 0.0
        %614 = vmatprep.subr.mxu0 0.0
        %615 = vmatpush1.msra.mxu0 0.0
        %616 = vmatprep.subr.mxu0 0.0
        %617 = vmatpush1.msra.mxu0 0.0
        %618 = vmatprep.mubr.f32.mxu0 0.0
        %619 = vmatmul.mubr.f32.gmra.mrb[0].mxu0 %v551
        %v620 = vpop.f32.mrb[0].mxu0
        %v621 = vadd.f32 0.0, %v620
        %v622 = vpop.f32.mrb[0].mxu0
        %v623 = vadd.f32 0.0, %v622
        %624 = vdwg.mxu0
        %625 = vmatprep.subr.mxu0 %v299
        %626 = vmatpush1.msra.mxu0 %v298
        %627 = vmatprep.subr.mxu0 %v303
        %628 = vmatpush1.msra.mxu0 %v302
        %629 = vmatprep.subr.mxu0 %v307
        %630 = vmatpush1.msra.mxu0 %v306
        %631 = vmatprep.subr.mxu0 %v311
        %632 = vmatpush1.msra.mxu0 %v310
        %633 = vmatprep.subr.mxu0 %v315
        %634 = vmatpush1.msra.mxu0 %v314
        %635 = vmatprep.subr.mxu0 %v319
        %636 = vmatpush1.msra.mxu0 %v318
        %637 = vmatprep.subr.mxu0 %v323
        %638 = vmatpush1.msra.mxu0 %v322
        %639 = vmatprep.subr.mxu0 %v327
        %640 = vmatpush1.msra.mxu0 %v326
        %641 = vmatprep.subr.mxu0 %v331
        %642 = vmatpush1.msra.mxu0 %v330
        %643 = vmatprep.subr.mxu0 %v335
        %644 = vmatpush1.msra.mxu0 %v334
        %645 = vmatprep.subr.mxu0 %v339
        %646 = vmatpush1.msra.mxu0 %v338
        %647 = vmatprep.subr.mxu0 %v343
        %648 = vmatpush1.msra.mxu0 %v342
        %649 = vmatprep.subr.mxu0 %v347
        %650 = vmatpush1.msra.mxu0 %v346
        %651 = vmatprep.subr.mxu0 %v351
        %652 = vmatpush1.msra.mxu0 %v350
        %653 = vmatprep.subr.mxu0 %v355
        %654 = vmatpush1.msra.mxu0 %v354
        %655 = vmatprep.subr.mxu0 %v359
        %656 = vmatpush1.msra.mxu0 %v358
        %657 = vmatprep.subr.mxu0 0.0
        %658 = vmatpush1.msra.mxu0 0.0
        %659 = vmatprep.subr.mxu0 0.0
        %660 = vmatpush1.msra.mxu0 0.0
        %661 = vmatprep.subr.mxu0 0.0
        %662 = vmatpush1.msra.mxu0 0.0
        %663 = vmatprep.subr.mxu0 0.0
        %664 = vmatpush1.msra.mxu0 0.0
        %665 = vmatprep.subr.mxu0 0.0
        %666 = vmatpush1.msra.mxu0 0.0
        %667 = vmatprep.subr.mxu0 0.0
        %668 = vmatpush1.msra.mxu0 0.0
        %669 = vmatprep.subr.mxu0 0.0
        %670 = vmatpush1.msra.mxu0 0.0
        %671 = vmatprep.subr.mxu0 0.0
        %672 = vmatpush1.msra.mxu0 0.0
        %673 = vmatprep.subr.mxu0 0.0
        %674 = vmatpush1.msra.mxu0 0.0
        %675 = vmatprep.subr.mxu0 0.0
        %676 = vmatpush1.msra.mxu0 0.0
        %677 = vmatprep.subr.mxu0 0.0
        %678 = vmatpush1.msra.mxu0 0.0
        %679 = vmatprep.subr.mxu0 0.0
        %680 = vmatpush1.msra.mxu0 0.0
        %681 = vmatprep.subr.mxu0 0.0
        %682 = vmatpush1.msra.mxu0 0.0
        %683 = vmatprep.subr.mxu0 0.0
        %684 = vmatpush1.msra.mxu0 0.0
        %685 = vmatprep.subr.mxu0 0.0
        %686 = vmatpush1.msra.mxu0 0.0
        %687 = vmatprep.subr.mxu0 0.0
        %688 = vmatpush1.msra.mxu0 0.0
        %689 = vmatprep.mubr.f32.mxu0 0.0
        %690 = vmatmul.mubr.f32.gmra.mrb[0].mxu0 %v551
        %v691 = vpop.f32.mrb[0].mxu0
        %v692 = vadd.f32 0.0, %v691
        %v693 = vpop.f32.mrb[0].mxu0
        %v694 = vadd.f32 0.0, %v693
        %695 = vdwg.mxu0
        %v700 = vcombine.low %v621, %v623
        %v701 = vcombine.low %v692, %v694
        %v703 = vunpack.c.l.s4 1966171168
        %v704 = vunpack.c.0.s8 %v703
        %v705 = vlaneseq
        %v706 = vshrl.u32 %v705, 7
        %v707 = vsub.s32 %v704, %v706
        %v708 = vrot.slane %v700, %v707
        %v710 = vunpack.c.l.s4 1966171168
        %v711 = vunpack.c.0.s8 %v710
        %v712 = vlaneseq
        %v713 = vshrl.u32 %v712, 7
        %v714 = vsub.s32 %v711, %v713
        %v715 = vrot.slane %v701, %v714
        %v716 = vcombine.low %v708, %v715
        %v718 = vunpack.c.l.s4 1966171168
        %v719 = vunpack.c.0.s8 %v718
        %v720 = vlaneseq
        %v721 = vshrl.u32 %v720, 7
        %v722 = vsub.s32 %v719, %v721
        %v723 = vrot.slane %v716, %v722
        %v725 = vadd.f32 %v553, %v723
        %v726 = vxor.u32 %v725, 2147483648
        %v727 = vmul.f32 %v726, 1.442695
        %v728 = vpow.pop %v727
        %v729 = vadd.f32 %v728, 1.0
        %v730 = vrcp.pop %v729
        %v731 = vmul.f32 1.0, %v730
        %v733 = vrot.slane %v725, 3
        %v735 = vtanh.pop %v733
        %v737 = vrot.slane %v731, 1
        %v739 = vmul.f32 %v737, %v547
        %v740 = vmul.f32 %v731, %v735
        %v741 = vadd.f32 %v739, %v740
        %v742 = vtanh.pop %v741
        %v743 = vrot.slane %v731, 2
        %v745 = vmul.f32 %v743, %v742
        %s746 = scalar_lea.vmem %s249, 2 [#allocation2]
        %v747 = vld [vmem:[%s746] ss:$8 sm:$0xf]
        %748 = vmatprep.subr.mxu0 %v297
        %749 = vmatpush1.msra.mxu0 %v296
        %750 = vmatprep.subr.mxu0 %v301
        %751 = vmatpush1.msra.mxu0 %v300
        %752 = vmatprep.subr.mxu0 %v305
        %753 = vmatpush1.msra.mxu0 %v304
        %754 = vmatprep.subr.mxu0 %v309
        %755 = vmatpush1.msra.mxu0 %v308
        %756 = vmatprep.subr.mxu0 %v313
        %757 = vmatpush1.msra.mxu0 %v312
        %758 = vmatprep.subr.mxu0 %v317
        %759 = vmatpush1.msra.mxu0 %v316
        %760 = vmatprep.subr.mxu0 %v321
        %761 = vmatpush1.msra.mxu0 %v320
        %762 = vmatprep.subr.mxu0 %v325
        %763 = vmatpush1.msra.mxu0 %v324
        %764 = vmatprep.subr.mxu0 %v329
        %765 = vmatpush1.msra.mxu0 %v328
        %766 = vmatprep.subr.mxu0 %v333
        %767 = vmatpush1.msra.mxu0 %v332
        %768 = vmatprep.subr.mxu0 %v337
        %769 = vmatpush1.msra.mxu0 %v336
        %770 = vmatprep.subr.mxu0 %v341
        %771 = vmatpush1.msra.mxu0 %v340
        %772 = vmatprep.subr.mxu0 %v345
        %773 = vmatpush1.msra.mxu0 %v344
        %774 = vmatprep.subr.mxu0 %v349
        %775 = vmatpush1.msra.mxu0 %v348
        %776 = vmatprep.subr.mxu0 %v353
        %777 = vmatpush1.msra.mxu0 %v352
        %778 = vmatprep.subr.mxu0 %v357
        %779 = vmatpush1.msra.mxu0 %v356
        %780 = vmatprep.subr.mxu0 0.0
        %781 = vmatpush1.msra.mxu0 0.0
        %782 = vmatprep.subr.mxu0 0.0
        %783 = vmatpush1.msra.mxu0 0.0
        %784 = vmatprep.subr.mxu0 0.0
        %785 = vmatpush1.msra.mxu0 0.0
        %786 = vmatprep.subr.mxu0 0.0
        %787 = vmatpush1.msra.mxu0 0.0
        %788 = vmatprep.subr.mxu0 0.0
        %789 = vmatpush1.msra.mxu0 0.0
        %790 = vmatprep.subr.mxu0 0.0
        %791 = vmatpush1.msra.mxu0 0.0
        %792 = vmatprep.subr.mxu0 0.0
        %793 = vmatpush1.msra.mxu0 0.0
        %794 = vmatprep.subr.mxu0 0.0
        %795 = vmatpush1.msra.mxu0 0.0
        %796 = vmatprep.subr.mxu0 0.0
        %797 = vmatpush1.msra.mxu0 0.0
        %798 = vmatprep.subr.mxu0 0.0
        %799 = vmatpush1.msra.mxu0 0.0
        %800 = vmatprep.subr.mxu0 0.0
        %801 = vmatpush1.msra.mxu0 0.0
        %802 = vmatprep.subr.mxu0 0.0
        %803 = vmatpush1.msra.mxu0 0.0
        %804 = vmatprep.subr.mxu0 0.0
        %805 = vmatpush1.msra.mxu0 0.0
        %806 = vmatprep.subr.mxu0 0.0
        %807 = vmatpush1.msra.mxu0 0.0
        %808 = vmatprep.subr.mxu0 0.0
        %809 = vmatpush1.msra.mxu0 0.0
        %810 = vmatprep.subr.mxu0 0.0
        %811 = vmatpush1.msra.mxu0 0.0
        %812 = vmatprep.mubr.f32.mxu0 0.0
        %813 = vmatmul.mubr.f32.gmra.mrb[0].mxu0 %v745
        %v814 = vpop.f32.mrb[0].mxu0
        %v815 = vadd.f32 0.0, %v814
        %v816 = vpop.f32.mrb[0].mxu0
        %v817 = vadd.f32 0.0, %v816
        %818 = vdwg.mxu0
        %819 = vmatprep.subr.mxu0 %v299
        %820 = vmatpush1.msra.mxu0 %v298
        %821 = vmatprep.subr.mxu0 %v303
        %822 = vmatpush1.msra.mxu0 %v302
        %823 = vmatprep.subr.mxu0 %v307
        %824 = vmatpush1.msra.mxu0 %v306
        %825 = vmatprep.subr.mxu0 %v311
        %826 = vmatpush1.msra.mxu0 %v310
        %827 = vmatprep.subr.mxu0 %v315
        %828 = vmatpush1.msra.mxu0 %v314
        %829 = vmatprep.subr.mxu0 %v319
        %830 = vmatpush1.msra.mxu0 %v318
        %831 = vmatprep.subr.mxu0 %v323
        %832 = vmatpush1.msra.mxu0 %v322
        %833 = vmatprep.subr.mxu0 %v327
        %834 = vmatpush1.msra.mxu0 %v326
        %835 = vmatprep.subr.mxu0 %v331
        %836 = vmatpush1.msra.mxu0 %v330
        %837 = vmatprep.subr.mxu0 %v335
        %838 = vmatpush1.msra.mxu0 %v334
        %839 = vmatprep.subr.mxu0 %v339
        %840 = vmatpush1.msra.mxu0 %v338
        %841 = vmatprep.subr.mxu0 %v343
        %842 = vmatpush1.msra.mxu0 %v342
        %843 = vmatprep.subr.mxu0 %v347
        %844 = vmatpush1.msra.mxu0 %v346
        %845 = vmatprep.subr.mxu0 %v351
        %846 = vmatpush1.msra.mxu0 %v350
        %847 = vmatprep.subr.mxu0 %v355
        %848 = vmatpush1.msra.mxu0 %v354
        %849 = vmatprep.subr.mxu0 %v359
        %850 = vmatpush1.msra.mxu0 %v358
        %851 = vmatprep.subr.mxu0 0.0
        %852 = vmatpush1.msra.mxu0 0.0
        %853 = vmatprep.subr.mxu0 0.0
        %854 = vmatpush1.msra.mxu0 0.0
        %855 = vmatprep.subr.mxu0 0.0
        %856 = vmatpush1.msra.mxu0 0.0
        %857 = vmatprep.subr.mxu0 0.0
        %858 = vmatpush1.msra.mxu0 0.0
        %859 = vmatprep.subr.mxu0 0.0
        %860 = vmatpush1.msra.mxu0 0.0
        %861 = vmatprep.subr.mxu0 0.0
        %862 = vmatpush1.msra.mxu0 0.0
        %863 = vmatprep.subr.mxu0 0.0
        %864 = vmatpush1.msra.mxu0 0.0
        %865 = vmatprep.subr.mxu0 0.0
        %866 = vmatpush1.msra.mxu0 0.0
        %867 = vmatprep.subr.mxu0 0.0
        %868 = vmatpush1.msra.mxu0 0.0
        %869 = vmatprep.subr.mxu0 0.0
        %870 = vmatpush1.msra.mxu0 0.0
        %871 = vmatprep.subr.mxu0 0.0
        %872 = vmatpush1.msra.mxu0 0.0
        %873 = vmatprep.subr.mxu0 0.0
        %874 = vmatpush1.msra.mxu0 0.0
        %875 = vmatprep.subr.mxu0 0.0
        %876 = vmatpush1.msra.mxu0 0.0
        %877 = vmatprep.subr.mxu0 0.0
        %878 = vmatpush1.msra.mxu0 0.0
        %879 = vmatprep.subr.mxu0 0.0
        %880 = vmatpush1.msra.mxu0 0.0
        %881 = vmatprep.subr.mxu0 0.0
        %882 = vmatpush1.msra.mxu0 0.0
        %883 = vmatprep.mubr.f32.mxu0 0.0
        %884 = vmatmul.mubr.f32.gmra.mrb[0].mxu0 %v745
        %v885 = vpop.f32.mrb[0].mxu0
        %v886 = vadd.f32 0.0, %v885
        %v887 = vpop.f32.mrb[0].mxu0
        %v888 = vadd.f32 0.0, %v887
        %889 = vdwg.mxu0
        %v894 = vcombine.low %v815, %v817
        %v895 = vcombine.low %v886, %v888
        %v897 = vunpack.c.l.s4 1966171168
        %v898 = vunpack.c.0.s8 %v897
        %v899 = vlaneseq
        %v900 = vshrl.u32 %v899, 7
        %v901 = vsub.s32 %v898, %v900
        %v902 = vrot.slane %v894, %v901
        %v904 = vunpack.c.l.s4 1966171168
        %v905 = vunpack.c.0.s8 %v904
        %v906 = vlaneseq
        %v907 = vshrl.u32 %v906, 7
        %v908 = vsub.s32 %v905, %v907
        %v909 = vrot.slane %v895, %v908
        %v910 = vcombine.low %v902, %v909
        %v912 = vunpack.c.l.s4 1966171168
        %v913 = vunpack.c.0.s8 %v912
        %v914 = vlaneseq
        %v915 = vshrl.u32 %v914, 7
        %v916 = vsub.s32 %v913, %v915
        %v917 = vrot.slane %v910, %v916
        %v919 = vadd.f32 %v747, %v917
        %v920 = vxor.u32 %v919, 2147483648
        %v921 = vmul.f32 %v920, 1.442695
        %v922 = vpow.pop %v921
        %v923 = vadd.f32 %v922, 1.0
        %v924 = vrcp.pop %v923
        %v925 = vmul.f32 1.0, %v924
        %v927 = vrot.slane %v919, 3
        %v929 = vtanh.pop %v927
        %v931 = vrot.slane %v925, 1
        %v933 = vmul.f32 %v931, %v741
        %v934 = vmul.f32 %v925, %v929
        %v935 = vadd.f32 %v933, %v934
        %v936 = vtanh.pop %v935
        %v937 = vrot.slane %v925, 2
        %v939 = vmul.f32 %v937, %v936
        %s940 = scalar_lea.vmem %s249, 3 [#allocation2]
        %v941 = vld [vmem:[%s940] ss:$8 sm:$0xf]
        %942 = vmatprep.subr.mxu0 %v297
        %943 = vmatpush1.msra.mxu0 %v296
        %944 = vmatprep.subr.mxu0 %v301
        %945 = vmatpush1.msra.mxu0 %v300
        %946 = vmatprep.subr.mxu0 %v305
        %947 = vmatpush1.msra.mxu0 %v304
        %948 = vmatprep.subr.mxu0 %v309
        %949 = vmatpush1.msra.mxu0 %v308
        %950 = vmatprep.subr.mxu0 %v313
        %951 = vmatpush1.msra.mxu0 %v312
        %952 = vmatprep.subr.mxu0 %v317
        %953 = vmatpush1.msra.mxu0 %v316
        %954 = vmatprep.subr.mxu0 %v321
        %955 = vmatpush1.msra.mxu0 %v320
        %956 = vmatprep.subr.mxu0 %v325
        %957 = vmatpush1.msra.mxu0 %v324
        %958 = vmatprep.subr.mxu0 %v329
        %959 = vmatpush1.msra.mxu0 %v328
        %960 = vmatprep.subr.mxu0 %v333
        %961 = vmatpush1.msra.mxu0 %v332
        %962 = vmatprep.subr.mxu0 %v337
        %963 = vmatpush1.msra.mxu0 %v336
        %964 = vmatprep.subr.mxu0 %v341
        %965 = vmatpush1.msra.mxu0 %v340
        %966 = vmatprep.subr.mxu0 %v345
        %967 = vmatpush1.msra.mxu0 %v344
        %968 = vmatprep.subr.mxu0 %v349
        %969 = vmatpush1.msra.mxu0 %v348
        %970 = vmatprep.subr.mxu0 %v353
        %971 = vmatpush1.msra.mxu0 %v352
        %972 = vmatprep.subr.mxu0 %v357
        %973 = vmatpush1.msra.mxu0 %v356
        %974 = vmatprep.subr.mxu0 0.0
        %975 = vmatpush1.msra.mxu0 0.0
        %976 = vmatprep.subr.mxu0 0.0
        %977 = vmatpush1.msra.mxu0 0.0
        %978 = vmatprep.subr.mxu0 0.0
        %979 = vmatpush1.msra.mxu0 0.0
        %980 = vmatprep.subr.mxu0 0.0
        %981 = vmatpush1.msra.mxu0 0.0
        %982 = vmatprep.subr.mxu0 0.0
        %983 = vmatpush1.msra.mxu0 0.0
        %984 = vmatprep.subr.mxu0 0.0
        %985 = vmatpush1.msra.mxu0 0.0
        %986 = vmatprep.subr.mxu0 0.0
        %987 = vmatpush1.msra.mxu0 0.0
        %988 = vmatprep.subr.mxu0 0.0
        %989 = vmatpush1.msra.mxu0 0.0
        %990 = vmatprep.subr.mxu0 0.0
        %991 = vmatpush1.msra.mxu0 0.0
        %992 = vmatprep.subr.mxu0 0.0
        %993 = vmatpush1.msra.mxu0 0.0
        %994 = vmatprep.subr.mxu0 0.0
        %995 = vmatpush1.msra.mxu0 0.0
        %996 = vmatprep.subr.mxu0 0.0
        %997 = vmatpush1.msra.mxu0 0.0
        %998 = vmatprep.subr.mxu0 0.0
        %999 = vmatpush1.msra.mxu0 0.0
        %1000 = vmatprep.subr.mxu0 0.0
        %1001 = vmatpush1.msra.mxu0 0.0
        %1002 = vmatprep.subr.mxu0 0.0
        %1003 = vmatpush1.msra.mxu0 0.0
        %1004 = vmatprep.subr.mxu0 0.0
        %1005 = vmatpush1.msra.mxu0 0.0
        %1006 = vmatprep.mubr.f32.mxu0 0.0
        %1007 = vmatmul.mubr.f32.gmra.mrb[0].mxu0 %v939
        %v1008 = vpop.f32.mrb[0].mxu0
        %v1009 = vadd.f32 0.0, %v1008
        %v1010 = vpop.f32.mrb[0].mxu0
        %v1011 = vadd.f32 0.0, %v1010
        %1012 = vdwg.mxu0
        %1013 = vmatprep.subr.mxu0 %v299
        %1014 = vmatpush1.msra.mxu0 %v298
        %1015 = vmatprep.subr.mxu0 %v303
        %1016 = vmatpush1.msra.mxu0 %v302
        %1017 = vmatprep.subr.mxu0 %v307
        %1018 = vmatpush1.msra.mxu0 %v306
        %1019 = vmatprep.subr.mxu0 %v311
        %1020 = vmatpush1.msra.mxu0 %v310
        %1021 = vmatprep.subr.mxu0 %v315
        %1022 = vmatpush1.msra.mxu0 %v314
        %1023 = vmatprep.subr.mxu0 %v319
        %1024 = vmatpush1.msra.mxu0 %v318
        %1025 = vmatprep.subr.mxu0 %v323
        %1026 = vmatpush1.msra.mxu0 %v322
        %1027 = vmatprep.subr.mxu0 %v327
        %1028 = vmatpush1.msra.mxu0 %v326
        %1029 = vmatprep.subr.mxu0 %v331
        %1030 = vmatpush1.msra.mxu0 %v330
        %1031 = vmatprep.subr.mxu0 %v335
        %1032 = vmatpush1.msra.mxu0 %v334
        %1033 = vmatprep.subr.mxu0 %v339
        %1034 = vmatpush1.msra.mxu0 %v338
        %1035 = vmatprep.subr.mxu0 %v343
        %1036 = vmatpush1.msra.mxu0 %v342
        %1037 = vmatprep.subr.mxu0 %v347
        %1038 = vmatpush1.msra.mxu0 %v346
        %1039 = vmatprep.subr.mxu0 %v351
        %1040 = vmatpush1.msra.mxu0 %v350
        %1041 = vmatprep.subr.mxu0 %v355
        %1042 = vmatpush1.msra.mxu0 %v354
        %1043 = vmatprep.subr.mxu0 %v359
        %1044 = vmatpush1.msra.mxu0 %v358
        %1045 = vmatprep.subr.mxu0 0.0
        %1046 = vmatpush1.msra.mxu0 0.0
        %1047 = vmatprep.subr.mxu0 0.0
        %1048 = vmatpush1.msra.mxu0 0.0
        %1049 = vmatprep.subr.mxu0 0.0
        %1050 = vmatpush1.msra.mxu0 0.0
        %1051 = vmatprep.subr.mxu0 0.0
        %1052 = vmatpush1.msra.mxu0 0.0
        %1053 = vmatprep.subr.mxu0 0.0
        %1054 = vmatpush1.msra.mxu0 0.0
        %1055 = vmatprep.subr.mxu0 0.0
        %1056 = vmatpush1.msra.mxu0 0.0
        %1057 = vmatprep.subr.mxu0 0.0
        %1058 = vmatpush1.msra.mxu0 0.0
        %1059 = vmatprep.subr.mxu0 0.0
        %1060 = vmatpush1.msra.mxu0 0.0
        %1061 = vmatprep.subr.mxu0 0.0
        %1062 = vmatpush1.msra.mxu0 0.0
        %1063 = vmatprep.subr.mxu0 0.0
        %1064 = vmatpush1.msra.mxu0 0.0
        %1065 = vmatprep.subr.mxu0 0.0
        %1066 = vmatpush1.msra.mxu0 0.0
        %1067 = vmatprep.subr.mxu0 0.0
        %1068 = vmatpush1.msra.mxu0 0.0
        %1069 = vmatprep.subr.mxu0 0.0
        %1070 = vmatpush1.msra.mxu0 0.0
        %1071 = vmatprep.subr.mxu0 0.0
        %1072 = vmatpush1.msra.mxu0 0.0
        %1073 = vmatprep.subr.mxu0 0.0
        %1074 = vmatpush1.msra.mxu0 0.0
        %1075 = vmatprep.subr.mxu0 0.0
        %1076 = vmatpush1.msra.mxu0 0.0
        %1077 = vmatprep.mubr.f32.mxu0 0.0
        %1078 = vmatmul.mubr.f32.gmra.mrb[0].mxu0 %v939
        %v1079 = vpop.f32.mrb[0].mxu0
        %v1080 = vadd.f32 0.0, %v1079
        %v1081 = vpop.f32.mrb[0].mxu0
        %v1082 = vadd.f32 0.0, %v1081
        %1083 = vdwg.mxu0
        %v1088 = vcombine.low %v1009, %v1011
        %v1089 = vcombine.low %v1080, %v1082
        %v1091 = vunpack.c.l.s4 1966171168
        %v1092 = vunpack.c.0.s8 %v1091
        %v1093 = vlaneseq
        %v1094 = vshrl.u32 %v1093, 7
        %v1095 = vsub.s32 %v1092, %v1094
        %v1096 = vrot.slane %v1088, %v1095
        %v1098 = vunpack.c.l.s4 1966171168
        %v1099 = vunpack.c.0.s8 %v1098
        %v1100 = vlaneseq
        %v1101 = vshrl.u32 %v1100, 7
        %v1102 = vsub.s32 %v1099, %v1101
        %v1103 = vrot.slane %v1089, %v1102
        %v1104 = vcombine.low %v1096, %v1103
        %v1106 = vunpack.c.l.s4 1966171168
        %v1107 = vunpack.c.0.s8 %v1106
        %v1108 = vlaneseq
        %v1109 = vshrl.u32 %v1108, 7
        %v1110 = vsub.s32 %v1107, %v1109
        %v1111 = vrot.slane %v1104, %v1110
        %v1113 = vadd.f32 %v941, %v1111
        %v1114 = vxor.u32 %v1113, 2147483648
        %v1115 = vmul.f32 %v1114, 1.442695
        %v1116 = vpow.pop %v1115
        %v1117 = vadd.f32 %v1116, 1.0
        %v1118 = vrcp.pop %v1117
        %v1119 = vmul.f32 1.0, %v1118
        %v1121 = vrot.slane %v1113, 3
        %v1123 = vtanh.pop %v1121
        %v1125 = vrot.slane %v1119, 1
        %v1127 = vmul.f32 %v1125, %v935
        %v1128 = vmul.f32 %v1119, %v1123
        %v1129 = vadd.f32 %v1127, %v1128
        %v1130 = vtanh.pop %v1129
        %v1131 = vrot.slane %v1119, 2
        %v1133 = vmul.f32 %v1131, %v1130
        %s1134 = scalar_lea.vmem %s249, 4 [#allocation2]
        %v1135 = vld [vmem:[%s1134] ss:$8 sm:$0xf]
        %1136 = vmatprep.subr.mxu0 %v297
        %1137 = vmatpush1.msra.mxu0 %v296
        %1138 = vmatprep.subr.mxu0 %v301
        %1139 = vmatpush1.msra.mxu0 %v300
        %1140 = vmatprep.subr.mxu0 %v305
        %1141 = vmatpush1.msra.mxu0 %v304
        %1142 = vmatprep.subr.mxu0 %v309
        %1143 = vmatpush1.msra.mxu0 %v308
        %1144 = vmatprep.subr.mxu0 %v313
        %1145 = vmatpush1.msra.mxu0 %v312
        %1146 = vmatprep.subr.mxu0 %v317
        %1147 = vmatpush1.msra.mxu0 %v316
        %1148 = vmatprep.subr.mxu0 %v321
        %1149 = vmatpush1.msra.mxu0 %v320
        %1150 = vmatprep.subr.mxu0 %v325
        %1151 = vmatpush1.msra.mxu0 %v324
        %1152 = vmatprep.subr.mxu0 %v329
        %1153 = vmatpush1.msra.mxu0 %v328
        %1154 = vmatprep.subr.mxu0 %v333
        %1155 = vmatpush1.msra.mxu0 %v332
        %1156 = vmatprep.subr.mxu0 %v337
        %1157 = vmatpush1.msra.mxu0 %v336
        %1158 = vmatprep.subr.mxu0 %v341
        %1159 = vmatpush1.msra.mxu0 %v340
        %1160 = vmatprep.subr.mxu0 %v345
        %1161 = vmatpush1.msra.mxu0 %v344
        %1162 = vmatprep.subr.mxu0 %v349
        %1163 = vmatpush1.msra.mxu0 %v348
        %1164 = vmatprep.subr.mxu0 %v353
        %1165 = vmatpush1.msra.mxu0 %v352
        %1166 = vmatprep.subr.mxu0 %v357
        %1167 = vmatpush1.msra.mxu0 %v356
        %1168 = vmatprep.subr.mxu0 0.0
        %1169 = vmatpush1.msra.mxu0 0.0
        %1170 = vmatprep.subr.mxu0 0.0
        %1171 = vmatpush1.msra.mxu0 0.0
        %1172 = vmatprep.subr.mxu0 0.0
        %1173 = vmatpush1.msra.mxu0 0.0
        %1174 = vmatprep.subr.mxu0 0.0
        %1175 = vmatpush1.msra.mxu0 0.0
        %1176 = vmatprep.subr.mxu0 0.0
        %1177 = vmatpush1.msra.mxu0 0.0
        %1178 = vmatprep.subr.mxu0 0.0
        %1179 = vmatpush1.msra.mxu0 0.0
        %1180 = vmatprep.subr.mxu0 0.0
        %1181 = vmatpush1.msra.mxu0 0.0
        %1182 = vmatprep.subr.mxu0 0.0
        %1183 = vmatpush1.msra.mxu0 0.0
        %1184 = vmatprep.subr.mxu0 0.0
        %1185 = vmatpush1.msra.mxu0 0.0
        %1186 = vmatprep.subr.mxu0 0.0
        %1187 = vmatpush1.msra.mxu0 0.0
        %1188 = vmatprep.subr.mxu0 0.0
        %1189 = vmatpush1.msra.mxu0 0.0
        %1190 = vmatprep.subr.mxu0 0.0
        %1191 = vmatpush1.msra.mxu0 0.0
        %1192 = vmatprep.subr.mxu0 0.0
        %1193 = vmatpush1.msra.mxu0 0.0
        %1194 = vmatprep.subr.mxu0 0.0
        %1195 = vmatpush1.msra.mxu0 0.0
        %1196 = vmatprep.subr.mxu0 0.0
        %1197 = vmatpush1.msra.mxu0 0.0
        %1198 = vmatprep.subr.mxu0 0.0
        %1199 = vmatpush1.msra.mxu0 0.0
        %1200 = vmatprep.mubr.f32.mxu0 0.0
        %1201 = vmatmul.mubr.f32.gmra.mrb[0].mxu0 %v1133
        %v1202 = vpop.f32.mrb[0].mxu0
        %v1203 = vadd.f32 0.0, %v1202
        %v1204 = vpop.f32.mrb[0].mxu0
        %v1205 = vadd.f32 0.0, %v1204
        %1206 = vdwg.mxu0
        %1207 = vmatprep.subr.mxu0 %v299
        %1208 = vmatpush1.msra.mxu0 %v298
        %1209 = vmatprep.subr.mxu0 %v303
        %1210 = vmatpush1.msra.mxu0 %v302
        %1211 = vmatprep.subr.mxu0 %v307
        %1212 = vmatpush1.msra.mxu0 %v306
        %1213 = vmatprep.subr.mxu0 %v311
        %1214 = vmatpush1.msra.mxu0 %v310
        %1215 = vmatprep.subr.mxu0 %v315
        %1216 = vmatpush1.msra.mxu0 %v314
        %1217 = vmatprep.subr.mxu0 %v319
        %1218 = vmatpush1.msra.mxu0 %v318
        %1219 = vmatprep.subr.mxu0 %v323
        %1220 = vmatpush1.msra.mxu0 %v322
        %1221 = vmatprep.subr.mxu0 %v327
        %1222 = vmatpush1.msra.mxu0 %v326
        %1223 = vmatprep.subr.mxu0 %v331
        %1224 = vmatpush1.msra.mxu0 %v330
        %1225 = vmatprep.subr.mxu0 %v335
        %1226 = vmatpush1.msra.mxu0 %v334
        %1227 = vmatprep.subr.mxu0 %v339
        %1228 = vmatpush1.msra.mxu0 %v338
        %1229 = vmatprep.subr.mxu0 %v343
        %1230 = vmatpush1.msra.mxu0 %v342
        %1231 = vmatprep.subr.mxu0 %v347
        %1232 = vmatpush1.msra.mxu0 %v346
        %1233 = vmatprep.subr.mxu0 %v351
        %1234 = vmatpush1.msra.mxu0 %v350
        %1235 = vmatprep.subr.mxu0 %v355
        %1236 = vmatpush1.msra.mxu0 %v354
        %1237 = vmatprep.subr.mxu0 %v359
        %1238 = vmatpush1.msra.mxu0 %v358
        %1239 = vmatprep.subr.mxu0 0.0
        %1240 = vmatpush1.msra.mxu0 0.0
        %1241 = vmatprep.subr.mxu0 0.0
        %1242 = vmatpush1.msra.mxu0 0.0
        %1243 = vmatprep.subr.mxu0 0.0
        %1244 = vmatpush1.msra.mxu0 0.0
        %1245 = vmatprep.subr.mxu0 0.0
        %1246 = vmatpush1.msra.mxu0 0.0
        %1247 = vmatprep.subr.mxu0 0.0
        %1248 = vmatpush1.msra.mxu0 0.0
        %1249 = vmatprep.subr.mxu0 0.0
        %1250 = vmatpush1.msra.mxu0 0.0
        %1251 = vmatprep.subr.mxu0 0.0
        %1252 = vmatpush1.msra.mxu0 0.0
        %1253 = vmatprep.subr.mxu0 0.0
        %1254 = vmatpush1.msra.mxu0 0.0
        %1255 = vmatprep.subr.mxu0 0.0
        %1256 = vmatpush1.msra.mxu0 0.0
        %1257 = vmatprep.subr.mxu0 0.0
        %1258 = vmatpush1.msra.mxu0 0.0
        %1259 = vmatprep.subr.mxu0 0.0
        %1260 = vmatpush1.msra.mxu0 0.0
        %1261 = vmatprep.subr.mxu0 0.0
        %1262 = vmatpush1.msra.mxu0 0.0
        %1263 = vmatprep.subr.mxu0 0.0
        %1264 = vmatpush1.msra.mxu0 0.0
        %1265 = vmatprep.subr.mxu0 0.0
        %1266 = vmatpush1.msra.mxu0 0.0
        %1267 = vmatprep.subr.mxu0 0.0
        %1268 = vmatpush1.msra.mxu0 0.0
        %1269 = vmatprep.subr.mxu0 0.0
        %1270 = vmatpush1.msra.mxu0 0.0
        %1271 = vmatprep.mubr.f32.mxu0 0.0
        %1272 = vmatmul.mubr.f32.gmra.mrb[0].mxu0 %v1133
        %v1273 = vpop.f32.mrb[0].mxu0
        %v1274 = vadd.f32 0.0, %v1273
        %v1275 = vpop.f32.mrb[0].mxu0
        %v1276 = vadd.f32 0.0, %v1275
        %1277 = vdwg.mxu0
        %v1282 = vcombine.low %v1203, %v1205
        %v1283 = vcombine.low %v1274, %v1276
        %v1285 = vunpack.c.l.s4 1966171168
        %v1286 = vunpack.c.0.s8 %v1285
        %v1287 = vlaneseq
        %v1288 = vshrl.u32 %v1287, 7
        %v1289 = vsub.s32 %v1286, %v1288
        %v1290 = vrot.slane %v1282, %v1289
        %v1292 = vunpack.c.l.s4 1966171168
        %v1293 = vunpack.c.0.s8 %v1292
        %v1294 = vlaneseq
        %v1295 = vshrl.u32 %v1294, 7
        %v1296 = vsub.s32 %v1293, %v1295
        %v1297 = vrot.slane %v1283, %v1296
        %v1298 = vcombine.low %v1290, %v1297
        %v1300 = vunpack.c.l.s4 1966171168
        %v1301 = vunpack.c.0.s8 %v1300
        %v1302 = vlaneseq
        %v1303 = vshrl.u32 %v1302, 7
        %v1304 = vsub.s32 %v1301, %v1303
        %v1305 = vrot.slane %v1298, %v1304
        %v1307 = vadd.f32 %v1135, %v1305
        %v1308 = vxor.u32 %v1307, 2147483648
        %v1309 = vmul.f32 %v1308, 1.442695
        %v1310 = vpow.pop %v1309
        %v1311 = vadd.f32 %v1310, 1.0
        %v1312 = vrcp.pop %v1311
        %v1313 = vmul.f32 1.0, %v1312
        %v1315 = vrot.slane %v1307, 3
        %v1317 = vtanh.pop %v1315
        %v1319 = vrot.slane %v1313, 1
        %v1321 = vmul.f32 %v1319, %v1129
        %v1322 = vmul.f32 %v1313, %v1317
        %v1323 = vadd.f32 %v1321, %v1322
        %v1324 = vtanh.pop %v1323
        %v1325 = vrot.slane %v1313, 2
        %v1327 = vmul.f32 %v1325, %v1324
        %s1328 = scalar_lea.vmem %s249, 5 [#allocation2]
        %v1329 = vld [vmem:[%s1328] ss:$8 sm:$0xf]
        %1330 = vmatprep.subr.mxu0 %v297
        %1331 = vmatpush1.msra.mxu0 %v296
        %1332 = vmatprep.subr.mxu0 %v301
        %1333 = vmatpush1.msra.mxu0 %v300
        %1334 = vmatprep.subr.mxu0 %v305
        %1335 = vmatpush1.msra.mxu0 %v304
        %1336 = vmatprep.subr.mxu0 %v309
        %1337 = vmatpush1.msra.mxu0 %v308
        %1338 = vmatprep.subr.mxu0 %v313
        %1339 = vmatpush1.msra.mxu0 %v312
        %1340 = vmatprep.subr.mxu0 %v317
        %1341 = vmatpush1.msra.mxu0 %v316
        %1342 = vmatprep.subr.mxu0 %v321
        %1343 = vmatpush1.msra.mxu0 %v320
        %1344 = vmatprep.subr.mxu0 %v325
        %1345 = vmatpush1.msra.mxu0 %v324
        %1346 = vmatprep.subr.mxu0 %v329
        %1347 = vmatpush1.msra.mxu0 %v328
        %1348 = vmatprep.subr.mxu0 %v333
        %1349 = vmatpush1.msra.mxu0 %v332
        %1350 = vmatprep.subr.mxu0 %v337
        %1351 = vmatpush1.msra.mxu0 %v336
        %1352 = vmatprep.subr.mxu0 %v341
        %1353 = vmatpush1.msra.mxu0 %v340
        %1354 = vmatprep.subr.mxu0 %v345
        %1355 = vmatpush1.msra.mxu0 %v344
        %1356 = vmatprep.subr.mxu0 %v349
        %1357 = vmatpush1.msra.mxu0 %v348
        %1358 = vmatprep.subr.mxu0 %v353
        %1359 = vmatpush1.msra.mxu0 %v352
        %1360 = vmatprep.subr.mxu0 %v357
        %1361 = vmatpush1.msra.mxu0 %v356
        %1362 = vmatprep.subr.mxu0 0.0
        %1363 = vmatpush1.msra.mxu0 0.0
        %1364 = vmatprep.subr.mxu0 0.0
        %1365 = vmatpush1.msra.mxu0 0.0
        %1366 = vmatprep.subr.mxu0 0.0
        %1367 = vmatpush1.msra.mxu0 0.0
        %1368 = vmatprep.subr.mxu0 0.0
        %1369 = vmatpush1.msra.mxu0 0.0
        %1370 = vmatprep.subr.mxu0 0.0
        %1371 = vmatpush1.msra.mxu0 0.0
        %1372 = vmatprep.subr.mxu0 0.0
        %1373 = vmatpush1.msra.mxu0 0.0
        %1374 = vmatprep.subr.mxu0 0.0
        %1375 = vmatpush1.msra.mxu0 0.0
        %1376 = vmatprep.subr.mxu0 0.0
        %1377 = vmatpush1.msra.mxu0 0.0
        %1378 = vmatprep.subr.mxu0 0.0
        %1379 = vmatpush1.msra.mxu0 0.0
        %1380 = vmatprep.subr.mxu0 0.0
        %1381 = vmatpush1.msra.mxu0 0.0
        %1382 = vmatprep.subr.mxu0 0.0
        %1383 = vmatpush1.msra.mxu0 0.0
        %1384 = vmatprep.subr.mxu0 0.0
        %1385 = vmatpush1.msra.mxu0 0.0
        %1386 = vmatprep.subr.mxu0 0.0
        %1387 = vmatpush1.msra.mxu0 0.0
        %1388 = vmatprep.subr.mxu0 0.0
        %1389 = vmatpush1.msra.mxu0 0.0
        %1390 = vmatprep.subr.mxu0 0.0
        %1391 = vmatpush1.msra.mxu0 0.0
        %1392 = vmatprep.subr.mxu0 0.0
        %1393 = vmatpush1.msra.mxu0 0.0
        %1394 = vmatprep.mubr.f32.mxu0 0.0
        %1395 = vmatmul.mubr.f32.gmra.mrb[0].mxu0 %v1327
        %v1396 = vpop.f32.mrb[0].mxu0
        %v1397 = vadd.f32 0.0, %v1396
        %v1398 = vpop.f32.mrb[0].mxu0
        %v1399 = vadd.f32 0.0, %v1398
        %1400 = vdwg.mxu0
        %1401 = vmatprep.subr.mxu0 %v299
        %1402 = vmatpush1.msra.mxu0 %v298
        %1403 = vmatprep.subr.mxu0 %v303
        %1404 = vmatpush1.msra.mxu0 %v302
        %1405 = vmatprep.subr.mxu0 %v307
        %1406 = vmatpush1.msra.mxu0 %v306
        %1407 = vmatprep.subr.mxu0 %v311
        %1408 = vmatpush1.msra.mxu0 %v310
        %1409 = vmatprep.subr.mxu0 %v315
        %1410 = vmatpush1.msra.mxu0 %v314
        %1411 = vmatprep.subr.mxu0 %v319
        %1412 = vmatpush1.msra.mxu0 %v318
        %1413 = vmatprep.subr.mxu0 %v323
        %1414 = vmatpush1.msra.mxu0 %v322
        %1415 = vmatprep.subr.mxu0 %v327
        %1416 = vmatpush1.msra.mxu0 %v326
        %1417 = vmatprep.subr.mxu0 %v331
        %1418 = vmatpush1.msra.mxu0 %v330
        %1419 = vmatprep.subr.mxu0 %v335
        %1420 = vmatpush1.msra.mxu0 %v334
        %1421 = vmatprep.subr.mxu0 %v339
        %1422 = vmatpush1.msra.mxu0 %v338
        %1423 = vmatprep.subr.mxu0 %v343
        %1424 = vmatpush1.msra.mxu0 %v342
        %1425 = vmatprep.subr.mxu0 %v347
        %1426 = vmatpush1.msra.mxu0 %v346
        %1427 = vmatprep.subr.mxu0 %v351
        %1428 = vmatpush1.msra.mxu0 %v350
        %1429 = vmatprep.subr.mxu0 %v355
        %1430 = vmatpush1.msra.mxu0 %v354
        %1431 = vmatprep.subr.mxu0 %v359
        %1432 = vmatpush1.msra.mxu0 %v358
        %1433 = vmatprep.subr.mxu0 0.0
        %1434 = vmatpush1.msra.mxu0 0.0
        %1435 = vmatprep.subr.mxu0 0.0
        %1436 = vmatpush1.msra.mxu0 0.0
        %1437 = vmatprep.subr.mxu0 0.0
        %1438 = vmatpush1.msra.mxu0 0.0
        %1439 = vmatprep.subr.mxu0 0.0
        %1440 = vmatpush1.msra.mxu0 0.0
        %1441 = vmatprep.subr.mxu0 0.0
        %1442 = vmatpush1.msra.mxu0 0.0
        %1443 = vmatprep.subr.mxu0 0.0
        %1444 = vmatpush1.msra.mxu0 0.0
        %1445 = vmatprep.subr.mxu0 0.0
        %1446 = vmatpush1.msra.mxu0 0.0
        %1447 = vmatprep.subr.mxu0 0.0
        %1448 = vmatpush1.msra.mxu0 0.0
        %1449 = vmatprep.subr.mxu0 0.0
        %1450 = vmatpush1.msra.mxu0 0.0
        %1451 = vmatprep.subr.mxu0 0.0
        %1452 = vmatpush1.msra.mxu0 0.0
        %1453 = vmatprep.subr.mxu0 0.0
        %1454 = vmatpush1.msra.mxu0 0.0
        %1455 = vmatprep.subr.mxu0 0.0
        %1456 = vmatpush1.msra.mxu0 0.0
        %1457 = vmatprep.subr.mxu0 0.0
        %1458 = vmatpush1.msra.mxu0 0.0
        %1459 = vmatprep.subr.mxu0 0.0
        %1460 = vmatpush1.msra.mxu0 0.0
        %1461 = vmatprep.subr.mxu0 0.0
        %1462 = vmatpush1.msra.mxu0 0.0
        %1463 = vmatprep.subr.mxu0 0.0
        %1464 = vmatpush1.msra.mxu0 0.0
        %1465 = vmatprep.mubr.f32.mxu0 0.0
        %1466 = vmatmul.mubr.f32.gmra.mrb[0].mxu0 %v1327
        %v1467 = vpop.f32.mrb[0].mxu0
        %v1468 = vadd.f32 0.0, %v1467
        %v1469 = vpop.f32.mrb[0].mxu0
        %v1470 = vadd.f32 0.0, %v1469
        %1471 = vdwg.mxu0
        %v1476 = vcombine.low %v1397, %v1399
        %v1477 = vcombine.low %v1468, %v1470
        %v1479 = vunpack.c.l.s4 1966171168
        %v1480 = vunpack.c.0.s8 %v1479
        %v1481 = vlaneseq
        %v1482 = vshrl.u32 %v1481, 7
        %v1483 = vsub.s32 %v1480, %v1482
        %v1484 = vrot.slane %v1476, %v1483
        %v1486 = vunpack.c.l.s4 1966171168
        %v1487 = vunpack.c.0.s8 %v1486
        %v1488 = vlaneseq
        %v1489 = vshrl.u32 %v1488, 7
        %v1490 = vsub.s32 %v1487, %v1489
        %v1491 = vrot.slane %v1477, %v1490
        %v1492 = vcombine.low %v1484, %v1491
        %v1494 = vunpack.c.l.s4 1966171168
        %v1495 = vunpack.c.0.s8 %v1494
        %v1496 = vlaneseq
        %v1497 = vshrl.u32 %v1496, 7
        %v1498 = vsub.s32 %v1495, %v1497
        %v1499 = vrot.slane %v1492, %v1498
        %v1501 = vadd.f32 %v1329, %v1499
        %v1502 = vxor.u32 %v1501, 2147483648
        %v1503 = vmul.f32 %v1502, 1.442695
        %v1504 = vpow.pop %v1503
        %v1505 = vadd.f32 %v1504, 1.0
        %v1506 = vrcp.pop %v1505
        %v1507 = vmul.f32 1.0, %v1506
        %v1509 = vrot.slane %v1501, 3
        %v1511 = vtanh.pop %v1509
        %v1513 = vrot.slane %v1507, 1
        %v1515 = vmul.f32 %v1513, %v1323
        %v1516 = vmul.f32 %v1507, %v1511
        %v1517 = vadd.f32 %v1515, %v1516
        %v1518 = vtanh.pop %v1517
        %v1519 = vrot.slane %v1507, 2
        %v1521 = vmul.f32 %v1519, %v1518
        %s1522 = scalar_lea.vmem %s249, 6 [#allocation2]
        %v1523 = vld [vmem:[%s1522] ss:$8 sm:$0xf]
        %1524 = vmatprep.subr.mxu0 %v297
        %1525 = vmatpush1.msra.mxu0 %v296
        %1526 = vmatprep.subr.mxu0 %v301
        %1527 = vmatpush1.msra.mxu0 %v300
        %1528 = vmatprep.subr.mxu0 %v305
        %1529 = vmatpush1.msra.mxu0 %v304
        %1530 = vmatprep.subr.mxu0 %v309
        %1531 = vmatpush1.msra.mxu0 %v308
        %1532 = vmatprep.subr.mxu0 %v313
        %1533 = vmatpush1.msra.mxu0 %v312
        %1534 = vmatprep.subr.mxu0 %v317
        %1535 = vmatpush1.msra.mxu0 %v316
        %1536 = vmatprep.subr.mxu0 %v321
        %1537 = vmatpush1.msra.mxu0 %v320
        %1538 = vmatprep.subr.mxu0 %v325
        %1539 = vmatpush1.msra.mxu0 %v324
        %1540 = vmatprep.subr.mxu0 %v329
        %1541 = vmatpush1.msra.mxu0 %v328
        %1542 = vmatprep.subr.mxu0 %v333
        %1543 = vmatpush1.msra.mxu0 %v332
        %1544 = vmatprep.subr.mxu0 %v337
        %1545 = vmatpush1.msra.mxu0 %v336
        %1546 = vmatprep.subr.mxu0 %v341
        %1547 = vmatpush1.msra.mxu0 %v340
        %1548 = vmatprep.subr.mxu0 %v345
        %1549 = vmatpush1.msra.mxu0 %v344
        %1550 = vmatprep.subr.mxu0 %v349
        %1551 = vmatpush1.msra.mxu0 %v348
        %1552 = vmatprep.subr.mxu0 %v353
        %1553 = vmatpush1.msra.mxu0 %v352
        %1554 = vmatprep.subr.mxu0 %v357
        %1555 = vmatpush1.msra.mxu0 %v356
        %1556 = vmatprep.subr.mxu0 0.0
        %1557 = vmatpush1.msra.mxu0 0.0
        %1558 = vmatprep.subr.mxu0 0.0
        %1559 = vmatpush1.msra.mxu0 0.0
        %1560 = vmatprep.subr.mxu0 0.0
        %1561 = vmatpush1.msra.mxu0 0.0
        %1562 = vmatprep.subr.mxu0 0.0
        %1563 = vmatpush1.msra.mxu0 0.0
        %1564 = vmatprep.subr.mxu0 0.0
        %1565 = vmatpush1.msra.mxu0 0.0
        %1566 = vmatprep.subr.mxu0 0.0
        %1567 = vmatpush1.msra.mxu0 0.0
        %1568 = vmatprep.subr.mxu0 0.0
        %1569 = vmatpush1.msra.mxu0 0.0
        %1570 = vmatprep.subr.mxu0 0.0
        %1571 = vmatpush1.msra.mxu0 0.0
        %1572 = vmatprep.subr.mxu0 0.0
        %1573 = vmatpush1.msra.mxu0 0.0
        %1574 = vmatprep.subr.mxu0 0.0
        %1575 = vmatpush1.msra.mxu0 0.0
        %1576 = vmatprep.subr.mxu0 0.0
        %1577 = vmatpush1.msra.mxu0 0.0
        %1578 = vmatprep.subr.mxu0 0.0
        %1579 = vmatpush1.msra.mxu0 0.0
        %1580 = vmatprep.subr.mxu0 0.0
        %1581 = vmatpush1.msra.mxu0 0.0
        %1582 = vmatprep.subr.mxu0 0.0
        %1583 = vmatpush1.msra.mxu0 0.0
        %1584 = vmatprep.subr.mxu0 0.0
        %1585 = vmatpush1.msra.mxu0 0.0
        %1586 = vmatprep.subr.mxu0 0.0
        %1587 = vmatpush1.msra.mxu0 0.0
        %1588 = vmatprep.mubr.f32.mxu0 0.0
        %1589 = vmatmul.mubr.f32.gmra.mrb[0].mxu0 %v1521
        %v1590 = vpop.f32.mrb[0].mxu0
        %v1591 = vadd.f32 0.0, %v1590
        %v1592 = vpop.f32.mrb[0].mxu0
        %v1593 = vadd.f32 0.0, %v1592
        %1594 = vdwg.mxu0
        %1595 = vmatprep.subr.mxu0 %v299
        %1596 = vmatpush1.msra.mxu0 %v298
        %1597 = vmatprep.subr.mxu0 %v303
        %1598 = vmatpush1.msra.mxu0 %v302
        %1599 = vmatprep.subr.mxu0 %v307
        %1600 = vmatpush1.msra.mxu0 %v306
        %1601 = vmatprep.subr.mxu0 %v311
        %1602 = vmatpush1.msra.mxu0 %v310
        %1603 = vmatprep.subr.mxu0 %v315
        %1604 = vmatpush1.msra.mxu0 %v314
        %1605 = vmatprep.subr.mxu0 %v319
        %1606 = vmatpush1.msra.mxu0 %v318
        %1607 = vmatprep.subr.mxu0 %v323
        %1608 = vmatpush1.msra.mxu0 %v322
        %1609 = vmatprep.subr.mxu0 %v327
        %1610 = vmatpush1.msra.mxu0 %v326
        %1611 = vmatprep.subr.mxu0 %v331
        %1612 = vmatpush1.msra.mxu0 %v330
        %1613 = vmatprep.subr.mxu0 %v335
        %1614 = vmatpush1.msra.mxu0 %v334
        %1615 = vmatprep.subr.mxu0 %v339
        %1616 = vmatpush1.msra.mxu0 %v338
        %1617 = vmatprep.subr.mxu0 %v343
        %1618 = vmatpush1.msra.mxu0 %v342
        %1619 = vmatprep.subr.mxu0 %v347
        %1620 = vmatpush1.msra.mxu0 %v346
        %1621 = vmatprep.subr.mxu0 %v351
        %1622 = vmatpush1.msra.mxu0 %v350
        %1623 = vmatprep.subr.mxu0 %v355
        %1624 = vmatpush1.msra.mxu0 %v354
        %1625 = vmatprep.subr.mxu0 %v359
        %1626 = vmatpush1.msra.mxu0 %v358
        %1627 = vmatprep.subr.mxu0 0.0
        %1628 = vmatpush1.msra.mxu0 0.0
        %1629 = vmatprep.subr.mxu0 0.0
        %1630 = vmatpush1.msra.mxu0 0.0
        %1631 = vmatprep.subr.mxu0 0.0
        %1632 = vmatpush1.msra.mxu0 0.0
        %1633 = vmatprep.subr.mxu0 0.0
        %1634 = vmatpush1.msra.mxu0 0.0
        %1635 = vmatprep.subr.mxu0 0.0
        %1636 = vmatpush1.msra.mxu0 0.0
        %1637 = vmatprep.subr.mxu0 0.0
        %1638 = vmatpush1.msra.mxu0 0.0
        %1639 = vmatprep.subr.mxu0 0.0
        %1640 = vmatpush1.msra.mxu0 0.0
        %1641 = vmatprep.subr.mxu0 0.0
        %1642 = vmatpush1.msra.mxu0 0.0
        %1643 = vmatprep.subr.mxu0 0.0
        %1644 = vmatpush1.msra.mxu0 0.0
        %1645 = vmatprep.subr.mxu0 0.0
        %1646 = vmatpush1.msra.mxu0 0.0
        %1647 = vmatprep.subr.mxu0 0.0
        %1648 = vmatpush1.msra.mxu0 0.0
        %1649 = vmatprep.subr.mxu0 0.0
        %1650 = vmatpush1.msra.mxu0 0.0
        %1651 = vmatprep.subr.mxu0 0.0
        %1652 = vmatpush1.msra.mxu0 0.0
        %1653 = vmatprep.subr.mxu0 0.0
        %1654 = vmatpush1.msra.mxu0 0.0
        %1655 = vmatprep.subr.mxu0 0.0
        %1656 = vmatpush1.msra.mxu0 0.0
        %1657 = vmatprep.subr.mxu0 0.0
        %1658 = vmatpush1.msra.mxu0 0.0
        %1659 = vmatprep.mubr.f32.mxu0 0.0
        %1660 = vmatmul.mubr.f32.gmra.mrb[0].mxu0 %v1521
        %v1661 = vpop.f32.mrb[0].mxu0
        %v1662 = vadd.f32 0.0, %v1661
        %v1663 = vpop.f32.mrb[0].mxu0
        %v1664 = vadd.f32 0.0, %v1663
        %1665 = vdwg.mxu0
        %v1670 = vcombine.low %v1591, %v1593
        %v1671 = vcombine.low %v1662, %v1664
        %v1673 = vunpack.c.l.s4 1966171168
        %v1674 = vunpack.c.0.s8 %v1673
        %v1675 = vlaneseq
        %v1676 = vshrl.u32 %v1675, 7
        %v1677 = vsub.s32 %v1674, %v1676
        %v1678 = vrot.slane %v1670, %v1677
        %v1680 = vunpack.c.l.s4 1966171168
        %v1681 = vunpack.c.0.s8 %v1680
        %v1682 = vlaneseq
        %v1683 = vshrl.u32 %v1682, 7
        %v1684 = vsub.s32 %v1681, %v1683
        %v1685 = vrot.slane %v1671, %v1684
        %v1686 = vcombine.low %v1678, %v1685
        %v1688 = vunpack.c.l.s4 1966171168
        %v1689 = vunpack.c.0.s8 %v1688
        %v1690 = vlaneseq
        %v1691 = vshrl.u32 %v1690, 7
        %v1692 = vsub.s32 %v1689, %v1691
        %v1693 = vrot.slane %v1686, %v1692
        %v1695 = vadd.f32 %v1523, %v1693
        %v1696 = vxor.u32 %v1695, 2147483648
        %v1697 = vmul.f32 %v1696, 1.442695
        %v1698 = vpow.pop %v1697
        %v1699 = vadd.f32 %v1698, 1.0
        %v1700 = vrcp.pop %v1699
        %v1701 = vmul.f32 1.0, %v1700
        %v1703 = vrot.slane %v1695, 3
        %v1705 = vtanh.pop %v1703
        %v1707 = vrot.slane %v1701, 1
        %v1709 = vmul.f32 %v1707, %v1517
        %v1710 = vmul.f32 %v1701, %v1705
        %v1711 = vadd.f32 %v1709, %v1710
        %v1712 = vtanh.pop %v1711
        %v1713 = vrot.slane %v1701, 2
        %v1715 = vmul.f32 %v1713, %v1712
        %s1716 = scalar_select %p294, 1, 0
        %v1717 = vstv %s1716
        %vm1718 = vcmp.eq.s32.totalorder %v1717, 1
        %v1719 = vsel %vm1718, %v1517, %v1711
        %v1720 = vsel %vm1718, %v1521, %v1715
        %s1721 = scalar_lea.vmem %s249, 7 [#allocation2]
        %v1722 = vld [vmem:[%s1721] ss:$8 sm:$0xf]
        %1723 = vmatprep.subr.mxu0 %v297
        %1724 = vmatpush1.msra.mxu0 %v296
        %1725 = vmatprep.subr.mxu0 %v301
        %1726 = vmatpush1.msra.mxu0 %v300
        %1727 = vmatprep.subr.mxu0 %v305
        %1728 = vmatpush1.msra.mxu0 %v304
        %1729 = vmatprep.subr.mxu0 %v309
        %1730 = vmatpush1.msra.mxu0 %v308
        %1731 = vmatprep.subr.mxu0 %v313
        %1732 = vmatpush1.msra.mxu0 %v312
        %1733 = vmatprep.subr.mxu0 %v317
        %1734 = vmatpush1.msra.mxu0 %v316
        %1735 = vmatprep.subr.mxu0 %v321
        %1736 = vmatpush1.msra.mxu0 %v320
        %1737 = vmatprep.subr.mxu0 %v325
        %1738 = vmatpush1.msra.mxu0 %v324
        %1739 = vmatprep.subr.mxu0 %v329
        %1740 = vmatpush1.msra.mxu0 %v328
        %1741 = vmatprep.subr.mxu0 %v333
        %1742 = vmatpush1.msra.mxu0 %v332
        %1743 = vmatprep.subr.mxu0 %v337
        %1744 = vmatpush1.msra.mxu0 %v336
        %1745 = vmatprep.subr.mxu0 %v341
        %1746 = vmatpush1.msra.mxu0 %v340
        %1747 = vmatprep.subr.mxu0 %v345
        %1748 = vmatpush1.msra.mxu0 %v344
        %1749 = vmatprep.subr.mxu0 %v349
        %1750 = vmatpush1.msra.mxu0 %v348
        %1751 = vmatprep.subr.mxu0 %v353
        %1752 = vmatpush1.msra.mxu0 %v352
        %1753 = vmatprep.subr.mxu0 %v357
        %1754 = vmatpush1.msra.mxu0 %v356
        %1755 = vmatprep.subr.mxu0 0.0
        %1756 = vmatpush1.msra.mxu0 0.0
        %1757 = vmatprep.subr.mxu0 0.0
        %1758 = vmatpush1.msra.mxu0 0.0
        %1759 = vmatprep.subr.mxu0 0.0
        %1760 = vmatpush1.msra.mxu0 0.0
        %1761 = vmatprep.subr.mxu0 0.0
        %1762 = vmatpush1.msra.mxu0 0.0
        %1763 = vmatprep.subr.mxu0 0.0
        %1764 = vmatpush1.msra.mxu0 0.0
        %1765 = vmatprep.subr.mxu0 0.0
        %1766 = vmatpush1.msra.mxu0 0.0
        %1767 = vmatprep.subr.mxu0 0.0
        %1768 = vmatpush1.msra.mxu0 0.0
        %1769 = vmatprep.subr.mxu0 0.0
        %1770 = vmatpush1.msra.mxu0 0.0
        %1771 = vmatprep.subr.mxu0 0.0
        %1772 = vmatpush1.msra.mxu0 0.0
        %1773 = vmatprep.subr.mxu0 0.0
        %1774 = vmatpush1.msra.mxu0 0.0
        %1775 = vmatprep.subr.mxu0 0.0
        %1776 = vmatpush1.msra.mxu0 0.0
        %1777 = vmatprep.subr.mxu0 0.0
        %1778 = vmatpush1.msra.mxu0 0.0
        %1779 = vmatprep.subr.mxu0 0.0
        %1780 = vmatpush1.msra.mxu0 0.0
        %1781 = vmatprep.subr.mxu0 0.0
        %1782 = vmatpush1.msra.mxu0 0.0
        %1783 = vmatprep.subr.mxu0 0.0
        %1784 = vmatpush1.msra.mxu0 0.0
        %1785 = vmatprep.subr.mxu0 0.0
        %1786 = vmatpush1.msra.mxu0 0.0
        %1787 = vmatprep.mubr.f32.mxu0 0.0
        %1788 = vmatmul.mubr.f32.gmra.mrb[0].mxu0 %v1720
        %v1789 = vpop.f32.mrb[0].mxu0
        %v1790 = vadd.f32 0.0, %v1789
        %v1791 = vpop.f32.mrb[0].mxu0
        %v1792 = vadd.f32 0.0, %v1791
        %1793 = vdwg.mxu0
        %1794 = vmatprep.subr.mxu0 %v299
        %1795 = vmatpush1.msra.mxu0 %v298
        %1796 = vmatprep.subr.mxu0 %v303
        %1797 = vmatpush1.msra.mxu0 %v302
        %1798 = vmatprep.subr.mxu0 %v307
        %1799 = vmatpush1.msra.mxu0 %v306
        %1800 = vmatprep.subr.mxu0 %v311
        %1801 = vmatpush1.msra.mxu0 %v310
        %1802 = vmatprep.subr.mxu0 %v315
        %1803 = vmatpush1.msra.mxu0 %v314
        %1804 = vmatprep.subr.mxu0 %v319
        %1805 = vmatpush1.msra.mxu0 %v318
        %1806 = vmatprep.subr.mxu0 %v323
        %1807 = vmatpush1.msra.mxu0 %v322
        %1808 = vmatprep.subr.mxu0 %v327
        %1809 = vmatpush1.msra.mxu0 %v326
        %1810 = vmatprep.subr.mxu0 %v331
        %1811 = vmatpush1.msra.mxu0 %v330
        %1812 = vmatprep.subr.mxu0 %v335
        %1813 = vmatpush1.msra.mxu0 %v334
        %1814 = vmatprep.subr.mxu0 %v339
        %1815 = vmatpush1.msra.mxu0 %v338
        %1816 = vmatprep.subr.mxu0 %v343
        %1817 = vmatpush1.msra.mxu0 %v342
        %1818 = vmatprep.subr.mxu0 %v347
        %1819 = vmatpush1.msra.mxu0 %v346
        %1820 = vmatprep.subr.mxu0 %v351
        %1821 = vmatpush1.msra.mxu0 %v350
        %1822 = vmatprep.subr.mxu0 %v355
        %1823 = vmatpush1.msra.mxu0 %v354
        %1824 = vmatprep.subr.mxu0 %v359
        %1825 = vmatpush1.msra.mxu0 %v358
        %1826 = vmatprep.subr.mxu0 0.0
        %1827 = vmatpush1.msra.mxu0 0.0
        %1828 = vmatprep.subr.mxu0 0.0
        %1829 = vmatpush1.msra.mxu0 0.0
        %1830 = vmatprep.subr.mxu0 0.0
        %1831 = vmatpush1.msra.mxu0 0.0
        %1832 = vmatprep.subr.mxu0 0.0
        %1833 = vmatpush1.msra.mxu0 0.0
        %1834 = vmatprep.subr.mxu0 0.0
        %1835 = vmatpush1.msra.mxu0 0.0
        %1836 = vmatprep.subr.mxu0 0.0
        %1837 = vmatpush1.msra.mxu0 0.0
        %1838 = vmatprep.subr.mxu0 0.0
        %1839 = vmatpush1.msra.mxu0 0.0
        %1840 = vmatprep.subr.mxu0 0.0
        %1841 = vmatpush1.msra.mxu0 0.0
        %1842 = vmatprep.subr.mxu0 0.0
        %1843 = vmatpush1.msra.mxu0 0.0
        %1844 = vmatprep.subr.mxu0 0.0
        %1845 = vmatpush1.msra.mxu0 0.0
        %1846 = vmatprep.subr.mxu0 0.0
        %1847 = vmatpush1.msra.mxu0 0.0
        %1848 = vmatprep.subr.mxu0 0.0
        %1849 = vmatpush1.msra.mxu0 0.0
        %1850 = vmatprep.subr.mxu0 0.0
        %1851 = vmatpush1.msra.mxu0 0.0
        %1852 = vmatprep.subr.mxu0 0.0
        %1853 = vmatpush1.msra.mxu0 0.0
        %1854 = vmatprep.subr.mxu0 0.0
        %1855 = vmatpush1.msra.mxu0 0.0
        %1856 = vmatprep.subr.mxu0 0.0
        %1857 = vmatpush1.msra.mxu0 0.0
        %1858 = vmatprep.mubr.f32.mxu0 0.0
        %1859 = vmatmul.mubr.f32.gmra.mrb[0].mxu0 %v1720
        %v1860 = vpop.f32.mrb[0].mxu0
        %v1861 = vadd.f32 0.0, %v1860
        %v1862 = vpop.f32.mrb[0].mxu0
        %v1863 = vadd.f32 0.0, %v1862
        %1864 = vdwg.mxu0
        %v1869 = vcombine.low %v1790, %v1792
        %v1870 = vcombine.low %v1861, %v1863
        %v1872 = vunpack.c.l.s4 1966171168
        %v1873 = vunpack.c.0.s8 %v1872
        %v1874 = vlaneseq
        %v1875 = vshrl.u32 %v1874, 7
        %v1876 = vsub.s32 %v1873, %v1875
        %v1877 = vrot.slane %v1869, %v1876
        %v1879 = vunpack.c.l.s4 1966171168
        %v1880 = vunpack.c.0.s8 %v1879
        %v1881 = vlaneseq
        %v1882 = vshrl.u32 %v1881, 7
        %v1883 = vsub.s32 %v1880, %v1882
        %v1884 = vrot.slane %v1870, %v1883
        %v1885 = vcombine.low %v1877, %v1884
        %v1887 = vunpack.c.l.s4 1966171168
        %v1888 = vunpack.c.0.s8 %v1887
        %v1889 = vlaneseq
        %v1890 = vshrl.u32 %v1889, 7
        %v1891 = vsub.s32 %v1888, %v1890
        %v1892 = vrot.slane %v1885, %v1891
        %v1894 = vadd.f32 %v1722, %v1892
        %v1895 = vxor.u32 %v1894, 2147483648
        %v1896 = vmul.f32 %v1895, 1.442695
        %v1897 = vpow.pop %v1896
        %v1898 = vadd.f32 %v1897, 1.0
        %v1899 = vrcp.pop %v1898
        %v1900 = vmul.f32 1.0, %v1899
        %v1902 = vrot.slane %v1894, 3
        %v1904 = vtanh.pop %v1902
        %v1906 = vrot.slane %v1900, 1
        %v1908 = vmul.f32 %v1906, %v1719
        %v1909 = vmul.f32 %v1900, %v1904
        %v1910 = vadd.f32 %v1908, %v1909
        %v1911 = vtanh.pop %v1910
        %v1912 = vrot.slane %v1900, 2
        %v1914 = vmul.f32 %v1912, %v1911
        %v1915 = vsel %vm1718, %v1517, %v1910
        %v1916 = vsel %vm1718, %v1521, %v1914
        %v1918 = vlaneseq
        %v1919 = vshrl.u32 %v1918, 7
        %v1920 = vsub.s32 0, %v1919
        %v1921 = vrot.slane %v745, %v1920
        %v1924 = vlaneseq
        %v1925 = vshrl.u32 %v1924, 7
        %v1926 = vsub.s32 0, %v1925
        %v1927 = vrot.slane %v939, %v1926
        %v1930 = vlaneseq
        %v1931 = vshrl.u32 %v1930, 7
        %v1932 = vsub.s32 0, %v1931
        %v1933 = vrot.slane %v1133, %v1932
        %v1936 = vlaneseq
        %v1937 = vshrl.u32 %v1936, 7
        %v1938 = vsub.s32 0, %v1937
        %v1939 = vrot.slane %v1327, %v1938
        %v1942 = vlaneseq
        %v1943 = vshrl.u32 %v1942, 7
        %v1944 = vsub.s32 0, %v1943
        %v1945 = vrot.slane %v1521, %v1944
        %v1948 = vlaneseq
        %v1949 = vshrl.u32 %v1948, 7
        %v1950 = vsub.s32 0, %v1949
        %v1951 = vrot.slane %v1720, %v1950
        %v1954 = vlaneseq
        %v1955 = vshrl.u32 %v1954, 7
        %v1956 = vsub.s32 0, %v1955
        %v1957 = vrot.slane %v1916, %v1956
        %vm1959 = vcmask 1040384
        %v1960 = vsel %vm1959, %v551, %v1921
        %vm1961 = vcmask 1041408
        %v1962 = vsel %vm1961, %v1960, %v1927
        %vm1963 = vcmask 1042432
        %v1964 = vsel %vm1963, %v1962, %v1933
        %vm1965 = vcmask 1043456
        %v1966 = vsel %vm1965, %v1964, %v1939
        %vm1967 = vcmask 1044480
        %v1968 = vsel %vm1967, %v1966, %v1945
        %vm1969 = vcmask 1045504
        %v1970 = vsel %vm1969, %v1968, %v1951
        %vm1971 = vcmask 1046528
        %v1972 = vsel %vm1971, %v1970, %v1957
        %1973 = vst [vmem:[%s277] sm:$0xff] %v1972
        %s1974 = scalar_lea.vmem %s249, 32 [#allocation2]
        %v1975 = vld [vmem:[%s1974] ss:$8 sm:$0xf]
        %v1976 = vld [vmem:[#allocation5] sm:$0xff]
        %v1977 = vld [vmem:[#allocation5 + $0x8] sm:$0xff]
        %v1978 = vld [vmem:[#allocation5 + $0x10] sm:$0xff]
        %v1979 = vld [vmem:[#allocation5 + $0x18] sm:$0xff]
        %v1980 = vld [vmem:[#allocation5 + $0x20] sm:$0xff]
        %v1981 = vld [vmem:[#allocation5 + $0x28] sm:$0xff]
        %v1982 = vld [vmem:[#allocation5 + $0x30] sm:$0xff]
        %v1983 = vld [vmem:[#allocation5 + $0x38] sm:$0xff]
        %v1984 = vld [vmem:[#allocation5 + $0x40] sm:$0xff]
        %v1985 = vld [vmem:[#allocation5 + $0x48] sm:$0xff]
        %v1986 = vld [vmem:[#allocation5 + $0x50] sm:$0xff]
        %v1987 = vld [vmem:[#allocation5 + $0x58] sm:$0xff]
        %v1988 = vld [vmem:[#allocation5 + $0x60] sm:$0xff]
        %v1989 = vld [vmem:[#allocation5 + $0x68] sm:$0xff]
        %v1990 = vld [vmem:[#allocation5 + $0x70] sm:$0xff]
        %v1991 = vld [vmem:[#allocation5 + $0x78] sm:$0xff]
        %v1992 = vld [vmem:[#allocation5 + $0x80] sm:$0xff]
        %v1993 = vld [vmem:[#allocation5 + $0x88] sm:$0xff]
        %v1994 = vld [vmem:[#allocation5 + $0x90] sm:$0xff]
        %v1995 = vld [vmem:[#allocation5 + $0x98] sm:$0xff]
        %v1996 = vld [vmem:[#allocation5 + $0xa0] sm:$0xff]
        %v1997 = vld [vmem:[#allocation5 + $0xa8] sm:$0xff]
        %v1998 = vld [vmem:[#allocation5 + $0xb0] sm:$0xff]
        %v1999 = vld [vmem:[#allocation5 + $0xb8] sm:$0xff]
        %v2000 = vld [vmem:[#allocation5 + $0xc0] sm:$0xff]
        %v2001 = vld [vmem:[#allocation5 + $0xc8] sm:$0xff]
        %v2002 = vld [vmem:[#allocation5 + $0xd0] sm:$0xff]
        %v2003 = vld [vmem:[#allocation5 + $0xd8] sm:$0xff]
        %v2004 = vld [vmem:[#allocation5 + $0xe0] sm:$0xff]
        %v2005 = vld [vmem:[#allocation5 + $0xe8] sm:$0xff]
        %v2006 = vld [vmem:[#allocation5 + $0xf0] sm:$0xff]
        %v2007 = vld [vmem:[#allocation5 + $0xf8] sm:$0xff]
        %v2008 = vld [vmem:[#allocation5 + $0x100] sm:$0xff]
        %v2009 = vld [vmem:[#allocation5 + $0x108] sm:$0xff]
        %v2010 = vld [vmem:[#allocation5 + $0x110] sm:$0xff]
        %v2011 = vld [vmem:[#allocation5 + $0x118] sm:$0xff]
        %v2012 = vld [vmem:[#allocation5 + $0x120] sm:$0xff]
        %v2013 = vld [vmem:[#allocation5 + $0x128] sm:$0xff]
        %v2014 = vld [vmem:[#allocation5 + $0x130] sm:$0xff]
        %v2015 = vld [vmem:[#allocation5 + $0x138] sm:$0xff]
        %v2016 = vld [vmem:[#allocation5 + $0x140] sm:$0xff]
        %v2017 = vld [vmem:[#allocation5 + $0x148] sm:$0xff]
        %v2018 = vld [vmem:[#allocation5 + $0x150] sm:$0xff]
        %v2019 = vld [vmem:[#allocation5 + $0x158] sm:$0xff]
        %v2020 = vld [vmem:[#allocation5 + $0x160] sm:$0xff]
        %v2021 = vld [vmem:[#allocation5 + $0x168] sm:$0xff]
        %v2022 = vld [vmem:[#allocation5 + $0x170] sm:$0xff]
        %v2023 = vld [vmem:[#allocation5 + $0x178] sm:$0xff]
        %v2024 = vld [vmem:[#allocation5 + $0x180] sm:$0xff]
        %v2025 = vld [vmem:[#allocation5 + $0x188] sm:$0xff]
        %v2026 = vld [vmem:[#allocation5 + $0x190] sm:$0xff]
        %v2027 = vld [vmem:[#allocation5 + $0x198] sm:$0xff]
        %v2028 = vld [vmem:[#allocation5 + $0x1a0] sm:$0xff]
        %v2029 = vld [vmem:[#allocation5 + $0x1a8] sm:$0xff]
        %v2030 = vld [vmem:[#allocation5 + $0x1b0] sm:$0xff]
        %v2031 = vld [vmem:[#allocation5 + $0x1b8] sm:$0xff]
        %v2032 = vld [vmem:[#allocation5 + $0x1c0] sm:$0xff]
        %v2033 = vld [vmem:[#allocation5 + $0x1c8] sm:$0xff]
        %v2034 = vld [vmem:[#allocation5 + $0x1d0] sm:$0xff]
        %v2035 = vld [vmem:[#allocation5 + $0x1d8] sm:$0xff]
        %v2036 = vld [vmem:[#allocation5 + $0x1e0] sm:$0xff]
        %v2037 = vld [vmem:[#allocation5 + $0x1e8] sm:$0xff]
        %v2038 = vld [vmem:[#allocation5 + $0x1f0] sm:$0xff]
        %v2039 = vld [vmem:[#allocation5 + $0x1f8] sm:$0xff]
        %2040 = vmatprep.subr.mxu0 %v1977
        %2041 = vmatpush1.msra.mxu0 %v1976
        %2042 = vmatprep.subr.mxu0 %v1981
        %2043 = vmatpush1.msra.mxu0 %v1980
        %2044 = vmatprep.subr.mxu0 %v1985
        %2045 = vmatpush1.msra.mxu0 %v1984
        %2046 = vmatprep.subr.mxu0 %v1989
        %2047 = vmatpush1.msra.mxu0 %v1988
        %2048 = vmatprep.subr.mxu0 %v1993
        %2049 = vmatpush1.msra.mxu0 %v1992
        %2050 = vmatprep.subr.mxu0 %v1997
        %2051 = vmatpush1.msra.mxu0 %v1996
        %2052 = vmatprep.subr.mxu0 %v2001
        %2053 = vmatpush1.msra.mxu0 %v2000
        %2054 = vmatprep.subr.mxu0 %v2005
        %2055 = vmatpush1.msra.mxu0 %v2004
        %2056 = vmatprep.subr.mxu0 %v2009
        %2057 = vmatpush1.msra.mxu0 %v2008
        %2058 = vmatprep.subr.mxu0 %v2013
        %2059 = vmatpush1.msra.mxu0 %v2012
        %2060 = vmatprep.subr.mxu0 %v2017
        %2061 = vmatpush1.msra.mxu0 %v2016
        %2062 = vmatprep.subr.mxu0 %v2021
        %2063 = vmatpush1.msra.mxu0 %v2020
        %2064 = vmatprep.subr.mxu0 %v2025
        %2065 = vmatpush1.msra.mxu0 %v2024
        %2066 = vmatprep.subr.mxu0 %v2029
        %2067 = vmatpush1.msra.mxu0 %v2028
        %2068 = vmatprep.subr.mxu0 %v2033
        %2069 = vmatpush1.msra.mxu0 %v2032
        %2070 = vmatprep.subr.mxu0 %v2037
        %2071 = vmatpush1.msra.mxu0 %v2036
        %2072 = vmatprep.subr.mxu0 0.0
        %2073 = vmatpush1.msra.mxu0 0.0
        %2074 = vmatprep.subr.mxu0 0.0
        %2075 = vmatpush1.msra.mxu0 0.0
        %2076 = vmatprep.subr.mxu0 0.0
        %2077 = vmatpush1.msra.mxu0 0.0
        %2078 = vmatprep.subr.mxu0 0.0
        %2079 = vmatpush1.msra.mxu0 0.0
        %2080 = vmatprep.subr.mxu0 0.0
        %2081 = vmatpush1.msra.mxu0 0.0
        %2082 = vmatprep.subr.mxu0 0.0
        %2083 = vmatpush1.msra.mxu0 0.0
        %2084 = vmatprep.subr.mxu0 0.0
        %2085 = vmatpush1.msra.mxu0 0.0
        %2086 = vmatprep.subr.mxu0 0.0
        %2087 = vmatpush1.msra.mxu0 0.0
        %2088 = vmatprep.subr.mxu0 0.0
        %2089 = vmatpush1.msra.mxu0 0.0
        %2090 = vmatprep.subr.mxu0 0.0
        %2091 = vmatpush1.msra.mxu0 0.0
        %2092 = vmatprep.subr.mxu0 0.0
        %2093 = vmatpush1.msra.mxu0 0.0
        %2094 = vmatprep.subr.mxu0 0.0
        %2095 = vmatpush1.msra.mxu0 0.0
        %2096 = vmatprep.subr.mxu0 0.0
        %2097 = vmatpush1.msra.mxu0 0.0
        %2098 = vmatprep.subr.mxu0 0.0
        %2099 = vmatpush1.msra.mxu0 0.0
        %2100 = vmatprep.subr.mxu0 0.0
        %2101 = vmatpush1.msra.mxu0 0.0
        %2102 = vmatprep.subr.mxu0 0.0
        %2103 = vmatpush1.msra.mxu0 0.0
        %2104 = vmatprep.mubr.f32.mxu0 0.0
        %2105 = vmatmul.mubr.f32.gmra.mrb[0].mxu0 %v1916
        %v2106 = vpop.f32.mrb[0].mxu0
        %v2107 = vadd.f32 0.0, %v2106
        %v2108 = vpop.f32.mrb[0].mxu0
        %v2109 = vadd.f32 0.0, %v2108
        %2110 = vdwg.mxu0
        %2111 = vmatprep.subr.mxu0 %v1979
        %2112 = vmatpush1.msra.mxu0 %v1978
        %2113 = vmatprep.subr.mxu0 %v1983
        %2114 = vmatpush1.msra.mxu0 %v1982
        %2115 = vmatprep.subr.mxu0 %v1987
        %2116 = vmatpush1.msra.mxu0 %v1986
        %2117 = vmatprep.subr.mxu0 %v1991
        %2118 = vmatpush1.msra.mxu0 %v1990
        %2119 = vmatprep.subr.mxu0 %v1995
        %2120 = vmatpush1.msra.mxu0 %v1994
        %2121 = vmatprep.subr.mxu0 %v1999
        %2122 = vmatpush1.msra.mxu0 %v1998
        %2123 = vmatprep.subr.mxu0 %v2003
        %2124 = vmatpush1.msra.mxu0 %v2002
        %2125 = vmatprep.subr.mxu0 %v2007
        %2126 = vmatpush1.msra.mxu0 %v2006
        %2127 = vmatprep.subr.mxu0 %v2011
        %2128 = vmatpush1.msra.mxu0 %v2010
        %2129 = vmatprep.subr.mxu0 %v2015
        %2130 = vmatpush1.msra.mxu0 %v2014
        %2131 = vmatprep.subr.mxu0 %v2019
        %2132 = vmatpush1.msra.mxu0 %v2018
        %2133 = vmatprep.subr.mxu0 %v2023
        %2134 = vmatpush1.msra.mxu0 %v2022
        %2135 = vmatprep.subr.mxu0 %v2027
        %2136 = vmatpush1.msra.mxu0 %v2026
        %2137 = vmatprep.subr.mxu0 %v2031
        %2138 = vmatpush1.msra.mxu0 %v2030
        %2139 = vmatprep.subr.mxu0 %v2035
        %2140 = vmatpush1.msra.mxu0 %v2034
        %2141 = vmatprep.subr.mxu0 %v2039
        %2142 = vmatpush1.msra.mxu0 %v2038
        %2143 = vmatprep.subr.mxu0 0.0
        %2144 = vmatpush1.msra.mxu0 0.0
        %2145 = vmatprep.subr.mxu0 0.0
        %2146 = vmatpush1.msra.mxu0 0.0
        %2147 = vmatprep.subr.mxu0 0.0
        %2148 = vmatpush1.msra.mxu0 0.0
        %2149 = vmatprep.subr.mxu0 0.0
        %2150 = vmatpush1.msra.mxu0 0.0
        %2151 = vmatprep.subr.mxu0 0.0
        %2152 = vmatpush1.msra.mxu0 0.0
        %2153 = vmatprep.subr.mxu0 0.0
        %2154 = vmatpush1.msra.mxu0 0.0
        %2155 = vmatprep.subr.mxu0 0.0
        %2156 = vmatpush1.msra.mxu0 0.0
        %2157 = vmatprep.subr.mxu0 0.0
        %2158 = vmatpush1.msra.mxu0 0.0
        %2159 = vmatprep.subr.mxu0 0.0
        %2160 = vmatpush1.msra.mxu0 0.0
        %2161 = vmatprep.subr.mxu0 0.0
        %2162 = vmatpush1.msra.mxu0 0.0
        %2163 = vmatprep.subr.mxu0 0.0
        %2164 = vmatpush1.msra.mxu0 0.0
        %2165 = vmatprep.subr.mxu0 0.0
        %2166 = vmatpush1.msra.mxu0 0.0
        %2167 = vmatprep.subr.mxu0 0.0
        %2168 = vmatpush1.msra.mxu0 0.0
        %2169 = vmatprep.subr.mxu0 0.0
        %2170 = vmatpush1.msra.mxu0 0.0
        %2171 = vmatprep.subr.mxu0 0.0
        %2172 = vmatpush1.msra.mxu0 0.0
        %2173 = vmatprep.subr.mxu0 0.0
        %2174 = vmatpush1.msra.mxu0 0.0
        %2175 = vmatprep.mubr.f32.mxu0 0.0
        %2176 = vmatmul.mubr.f32.gmra.mrb[0].mxu0 %v1916
        %v2177 = vpop.f32.mrb[0].mxu0
        %v2178 = vadd.f32 0.0, %v2177
        %v2179 = vpop.f32.mrb[0].mxu0
        %v2180 = vadd.f32 0.0, %v2179
        %2181 = vdwg.mxu0
        %v2186 = vcombine.low %v2107, %v2109
        %v2187 = vcombine.low %v2178, %v2180
        %v2189 = vunpack.c.l.s4 1966171168
        %v2190 = vunpack.c.0.s8 %v2189
        %v2191 = vlaneseq
        %v2192 = vshrl.u32 %v2191, 7
        %v2193 = vsub.s32 %v2190, %v2192
        %v2194 = vrot.slane %v2186, %v2193
        %v2196 = vunpack.c.l.s4 1966171168
        %v2197 = vunpack.c.0.s8 %v2196
        %v2198 = vlaneseq
        %v2199 = vshrl.u32 %v2198, 7
        %v2200 = vsub.s32 %v2197, %v2199
        %v2201 = vrot.slane %v2187, %v2200
        %v2202 = vcombine.low %v2194, %v2201
        %v2204 = vunpack.c.l.s4 1966171168
        %v2205 = vunpack.c.0.s8 %v2204
        %v2206 = vlaneseq
        %v2207 = vshrl.u32 %v2206, 7
        %v2208 = vsub.s32 %v2205, %v2207
        %v2209 = vrot.slane %v2202, %v2208
        %v2211 = vadd.f32 %v1975, %v2209
        %v2212 = vxor.u32 %v2211, 2147483648
        %v2213 = vmul.f32 %v2212, 1.442695
        %v2214 = vpow.pop %v2213
        %v2215 = vadd.f32 %v2214, 1.0
        %v2216 = vrcp.pop %v2215
        %v2217 = vmul.f32 1.0, %v2216
        %v2219 = vrot.slane %v2211, 3
        %v2221 = vtanh.pop %v2219
        %v2223 = vrot.slane %v2217, 1
        %v2225 = vmul.f32 %v2223, %v1915
        %v2226 = vmul.f32 %v2217, %v2221
        %v2227 = vadd.f32 %v2225, %v2226
        %v2228 = vtanh.pop %v2227
        %v2229 = vrot.slane %v2217, 2
        %v2231 = vmul.f32 %v2229, %v2228
        %v2232 = vsel %vm1718, %v1517, %v2227
        %v2233 = vsel %vm1718, %v1521, %v2231
        %s2234 = scalar_lea.vmem %s249, 33 [#allocation2]
        %v2235 = vld [vmem:[%s2234] ss:$8 sm:$0xf]
        %2236 = vmatprep.subr.mxu0 %v1977
        %2237 = vmatpush1.msra.mxu0 %v1976
        %2238 = vmatprep.subr.mxu0 %v1981
        %2239 = vmatpush1.msra.mxu0 %v1980
        %2240 = vmatprep.subr.mxu0 %v1985
        %2241 = vmatpush1.msra.mxu0 %v1984
        %2242 = vmatprep.subr.mxu0 %v1989
        %2243 = vmatpush1.msra.mxu0 %v1988
        %2244 = vmatprep.subr.mxu0 %v1993
        %2245 = vmatpush1.msra.mxu0 %v1992
        %2246 = vmatprep.subr.mxu0 %v1997
        %2247 = vmatpush1.msra.mxu0 %v1996
        %2248 = vmatprep.subr.mxu0 %v2001
        %2249 = vmatpush1.msra.mxu0 %v2000
        %2250 = vmatprep.subr.mxu0 %v2005
        %2251 = vmatpush1.msra.mxu0 %v2004
        %2252 = vmatprep.subr.mxu0 %v2009
        %2253 = vmatpush1.msra.mxu0 %v2008
        %2254 = vmatprep.subr.mxu0 %v2013
        %2255 = vmatpush1.msra.mxu0 %v2012
        %2256 = vmatprep.subr.mxu0 %v2017
        %2257 = vmatpush1.msra.mxu0 %v2016
        %2258 = vmatprep.subr.mxu0 %v2021
        %2259 = vmatpush1.msra.mxu0 %v2020
        %2260 = vmatprep.subr.mxu0 %v2025
        %2261 = vmatpush1.msra.mxu0 %v2024
        %2262 = vmatprep.subr.mxu0 %v2029
        %2263 = vmatpush1.msra.mxu0 %v2028
        %2264 = vmatprep.subr.mxu0 %v2033
        %2265 = vmatpush1.msra.mxu0 %v2032
        %2266 = vmatprep.subr.mxu0 %v2037
        %2267 = vmatpush1.msra.mxu0 %v2036
        %2268 = vmatprep.subr.mxu0 0.0
        %2269 = vmatpush1.msra.mxu0 0.0
        %2270 = vmatprep.subr.mxu0 0.0
        %2271 = vmatpush1.msra.mxu0 0.0
        %2272 = vmatprep.subr.mxu0 0.0
        %2273 = vmatpush1.msra.mxu0 0.0
        %2274 = vmatprep.subr.mxu0 0.0
        %2275 = vmatpush1.msra.mxu0 0.0
        %2276 = vmatprep.subr.mxu0 0.0
        %2277 = vmatpush1.msra.mxu0 0.0
        %2278 = vmatprep.subr.mxu0 0.0
        %2279 = vmatpush1.msra.mxu0 0.0
        %2280 = vmatprep.subr.mxu0 0.0
        %2281 = vmatpush1.msra.mxu0 0.0
        %2282 = vmatprep.subr.mxu0 0.0
        %2283 = vmatpush1.msra.mxu0 0.0
        %2284 = vmatprep.subr.mxu0 0.0
        %2285 = vmatpush1.msra.mxu0 0.0
        %2286 = vmatprep.subr.mxu0 0.0
        %2287 = vmatpush1.msra.mxu0 0.0
        %2288 = vmatprep.subr.mxu0 0.0
        %2289 = vmatpush1.msra.mxu0 0.0
        %2290 = vmatprep.subr.mxu0 0.0
        %2291 = vmatpush1.msra.mxu0 0.0
        %2292 = vmatprep.subr.mxu0 0.0
        %2293 = vmatpush1.msra.mxu0 0.0
        %2294 = vmatprep.subr.mxu0 0.0
        %2295 = vmatpush1.msra.mxu0 0.0
        %2296 = vmatprep.subr.mxu0 0.0
        %2297 = vmatpush1.msra.mxu0 0.0
        %2298 = vmatprep.subr.mxu0 0.0
        %2299 = vmatpush1.msra.mxu0 0.0
        %2300 = vmatprep.mubr.f32.mxu0 0.0
        %2301 = vmatmul.mubr.f32.gmra.mrb[0].mxu0 %v2233
        %v2302 = vpop.f32.mrb[0].mxu0
        %v2303 = vadd.f32 0.0, %v2302
        %v2304 = vpop.f32.mrb[0].mxu0
        %v2305 = vadd.f32 0.0, %v2304
        %2306 = vdwg.mxu0
        %2307 = vmatprep.subr.mxu0 %v1979
        %2308 = vmatpush1.msra.mxu0 %v1978
        %2309 = vmatprep.subr.mxu0 %v1983
        %2310 = vmatpush1.msra.mxu0 %v1982
        %2311 = vmatprep.subr.mxu0 %v1987
        %2312 = vmatpush1.msra.mxu0 %v1986
        %2313 = vmatprep.subr.mxu0 %v1991
        %2314 = vmatpush1.msra.mxu0 %v1990
        %2315 = vmatprep.subr.mxu0 %v1995
        %2316 = vmatpush1.msra.mxu0 %v1994
        %2317 = vmatprep.subr.mxu0 %v1999
        %2318 = vmatpush1.msra.mxu0 %v1998
        %2319 = vmatprep.subr.mxu0 %v2003
        %2320 = vmatpush1.msra.mxu0 %v2002
        %2321 = vmatprep.subr.mxu0 %v2007
        %2322 = vmatpush1.msra.mxu0 %v2006
        %2323 = vmatprep.subr.mxu0 %v2011
        %2324 = vmatpush1.msra.mxu0 %v2010
        %2325 = vmatprep.subr.mxu0 %v2015
        %2326 = vmatpush1.msra.mxu0 %v2014
        %2327 = vmatprep.subr.mxu0 %v2019
        %2328 = vmatpush1.msra.mxu0 %v2018
        %2329 = vmatprep.subr.mxu0 %v2023
        %2330 = vmatpush1.msra.mxu0 %v2022
        %2331 = vmatprep.subr.mxu0 %v2027
        %2332 = vmatpush1.msra.mxu0 %v2026
        %2333 = vmatprep.subr.mxu0 %v2031
        %2334 = vmatpush1.msra.mxu0 %v2030
        %2335 = vmatprep.subr.mxu0 %v2035
        %2336 = vmatpush1.msra.mxu0 %v2034
        %2337 = vmatprep.subr.mxu0 %v2039
        %2338 = vmatpush1.msra.mxu0 %v2038
        %2339 = vmatprep.subr.mxu0 0.0
        %2340 = vmatpush1.msra.mxu0 0.0
        %2341 = vmatprep.subr.mxu0 0.0
        %2342 = vmatpush1.msra.mxu0 0.0
        %2343 = vmatprep.subr.mxu0 0.0
        %2344 = vmatpush1.msra.mxu0 0.0
        %2345 = vmatprep.subr.mxu0 0.0
        %2346 = vmatpush1.msra.mxu0 0.0
        %2347 = vmatprep.subr.mxu0 0.0
        %2348 = vmatpush1.msra.mxu0 0.0
        %2349 = vmatprep.subr.mxu0 0.0
        %2350 = vmatpush1.msra.mxu0 0.0
        %2351 = vmatprep.subr.mxu0 0.0
        %2352 = vmatpush1.msra.mxu0 0.0
        %2353 = vmatprep.subr.mxu0 0.0
        %2354 = vmatpush1.msra.mxu0 0.0
        %2355 = vmatprep.subr.mxu0 0.0
        %2356 = vmatpush1.msra.mxu0 0.0
        %2357 = vmatprep.subr.mxu0 0.0
        %2358 = vmatpush1.msra.mxu0 0.0
        %2359 = vmatprep.subr.mxu0 0.0
        %2360 = vmatpush1.msra.mxu0 0.0
        %2361 = vmatprep.subr.mxu0 0.0
        %2362 = vmatpush1.msra.mxu0 0.0
        %2363 = vmatprep.subr.mxu0 0.0
        %2364 = vmatpush1.msra.mxu0 0.0
        %2365 = vmatprep.subr.mxu0 0.0
        %2366 = vmatpush1.msra.mxu0 0.0
        %2367 = vmatprep.subr.mxu0 0.0
        %2368 = vmatpush1.msra.mxu0 0.0
        %2369 = vmatprep.subr.mxu0 0.0
        %2370 = vmatpush1.msra.mxu0 0.0
        %2371 = vmatprep.mubr.f32.mxu0 0.0
        %2372 = vmatmul.mubr.f32.gmra.mrb[0].mxu0 %v2233
        %v2373 = vpop.f32.mrb[0].mxu0
        %v2374 = vadd.f32 0.0, %v2373
        %v2375 = vpop.f32.mrb[0].mxu0
        %v2376 = vadd.f32 0.0, %v2375
        %2377 = vdwg.mxu0
        %v2382 = vcombine.low %v2303, %v2305
        %v2383 = vcombine.low %v2374, %v2376
        %v2385 = vunpack.c.l.s4 1966171168
        %v2386 = vunpack.c.0.s8 %v2385
        %v2387 = vlaneseq
        %v2388 = vshrl.u32 %v2387, 7
        %v2389 = vsub.s32 %v2386, %v2388
        %v2390 = vrot.slane %v2382, %v2389
        %v2392 = vunpack.c.l.s4 1966171168
        %v2393 = vunpack.c.0.s8 %v2392
        %v2394 = vlaneseq
        %v2395 = vshrl.u32 %v2394, 7
        %v2396 = vsub.s32 %v2393, %v2395
        %v2397 = vrot.slane %v2383, %v2396
        %v2398 = vcombine.low %v2390, %v2397
        %v2400 = vunpack.c.l.s4 1966171168
        %v2401 = vunpack.c.0.s8 %v2400
        %v2402 = vlaneseq
        %v2403 = vshrl.u32 %v2402, 7
        %v2404 = vsub.s32 %v2401, %v2403
        %v2405 = vrot.slane %v2398, %v2404
        %v2407 = vadd.f32 %v2235, %v2405
        %v2408 = vxor.u32 %v2407, 2147483648
        %v2409 = vmul.f32 %v2408, 1.442695
        %v2410 = vpow.pop %v2409
        %v2411 = vadd.f32 %v2410, 1.0
        %v2412 = vrcp.pop %v2411
        %v2413 = vmul.f32 1.0, %v2412
        %v2415 = vrot.slane %v2407, 3
        %v2417 = vtanh.pop %v2415
        %v2419 = vrot.slane %v2413, 1
        %v2421 = vmul.f32 %v2419, %v2232
        %v2422 = vmul.f32 %v2413, %v2417
        %v2423 = vadd.f32 %v2421, %v2422
        %v2424 = vtanh.pop %v2423
        %v2425 = vrot.slane %v2413, 2
        %v2427 = vmul.f32 %v2425, %v2424
        %v2428 = vsel %vm1718, %v1517, %v2423
        %v2429 = vsel %vm1718, %v1521, %v2427
        %s2430 = scalar_lea.vmem %s249, 34 [#allocation2]
        %v2431 = vld [vmem:[%s2430] ss:$8 sm:$0xf]
        %2432 = vmatprep.subr.mxu0 %v1977
        %2433 = vmatpush1.msra.mxu0 %v1976
        %2434 = vmatprep.subr.mxu0 %v1981
        %2435 = vmatpush1.msra.mxu0 %v1980
        %2436 = vmatprep.subr.mxu0 %v1985
        %2437 = vmatpush1.msra.mxu0 %v1984
        %2438 = vmatprep.subr.mxu0 %v1989
        %2439 = vmatpush1.msra.mxu0 %v1988
        %2440 = vmatprep.subr.mxu0 %v1993
        %2441 = vmatpush1.msra.mxu0 %v1992
        %2442 = vmatprep.subr.mxu0 %v1997
        %2443 = vmatpush1.msra.mxu0 %v1996
        %2444 = vmatprep.subr.mxu0 %v2001
        %2445 = vmatpush1.msra.mxu0 %v2000
        %2446 = vmatprep.subr.mxu0 %v2005
        %2447 = vmatpush1.msra.mxu0 %v2004
        %2448 = vmatprep.subr.mxu0 %v2009
        %2449 = vmatpush1.msra.mxu0 %v2008
        %2450 = vmatprep.subr.mxu0 %v2013
        %2451 = vmatpush1.msra.mxu0 %v2012
        %2452 = vmatprep.subr.mxu0 %v2017
        %2453 = vmatpush1.msra.mxu0 %v2016
        %2454 = vmatprep.subr.mxu0 %v2021
        %2455 = vmatpush1.msra.mxu0 %v2020
        %2456 = vmatprep.subr.mxu0 %v2025
        %2457 = vmatpush1.msra.mxu0 %v2024
        %2458 = vmatprep.subr.mxu0 %v2029
        %2459 = vmatpush1.msra.mxu0 %v2028
        %2460 = vmatprep.subr.mxu0 %v2033
        %2461 = vmatpush1.msra.mxu0 %v2032
        %2462 = vmatprep.subr.mxu0 %v2037
        %2463 = vmatpush1.msra.mxu0 %v2036
        %2464 = vmatprep.subr.mxu0 0.0
        %2465 = vmatpush1.msra.mxu0 0.0
        %2466 = vmatprep.subr.mxu0 0.0
        %2467 = vmatpush1.msra.mxu0 0.0
        %2468 = vmatprep.subr.mxu0 0.0
        %2469 = vmatpush1.msra.mxu0 0.0
        %2470 = vmatprep.subr.mxu0 0.0
        %2471 = vmatpush1.msra.mxu0 0.0
        %2472 = vmatprep.subr.mxu0 0.0
        %2473 = vmatpush1.msra.mxu0 0.0
        %2474 = vmatprep.subr.mxu0 0.0
        %2475 = vmatpush1.msra.mxu0 0.0
        %2476 = vmatprep.subr.mxu0 0.0
        %2477 = vmatpush1.msra.mxu0 0.0
        %2478 = vmatprep.subr.mxu0 0.0
        %2479 = vmatpush1.msra.mxu0 0.0
        %2480 = vmatprep.subr.mxu0 0.0
        %2481 = vmatpush1.msra.mxu0 0.0
        %2482 = vmatprep.subr.mxu0 0.0
        %2483 = vmatpush1.msra.mxu0 0.0
        %2484 = vmatprep.subr.mxu0 0.0
        %2485 = vmatpush1.msra.mxu0 0.0
        %2486 = vmatprep.subr.mxu0 0.0
        %2487 = vmatpush1.msra.mxu0 0.0
        %2488 = vmatprep.subr.mxu0 0.0
        %2489 = vmatpush1.msra.mxu0 0.0
        %2490 = vmatprep.subr.mxu0 0.0
        %2491 = vmatpush1.msra.mxu0 0.0
        %2492 = vmatprep.subr.mxu0 0.0
        %2493 = vmatpush1.msra.mxu0 0.0
        %2494 = vmatprep.subr.mxu0 0.0
        %2495 = vmatpush1.msra.mxu0 0.0
        %2496 = vmatprep.mubr.f32.mxu0 0.0
        %2497 = vmatmul.mubr.f32.gmra.mrb[0].mxu0 %v2429
        %v2498 = vpop.f32.mrb[0].mxu0
        %v2499 = vadd.f32 0.0, %v2498
        %v2500 = vpop.f32.mrb[0].mxu0
        %v2501 = vadd.f32 0.0, %v2500
        %2502 = vdwg.mxu0
        %2503 = vmatprep.subr.mxu0 %v1979
        %2504 = vmatpush1.msra.mxu0 %v1978
        %2505 = vmatprep.subr.mxu0 %v1983
        %2506 = vmatpush1.msra.mxu0 %v1982
        %2507 = vmatprep.subr.mxu0 %v1987
        %2508 = vmatpush1.msra.mxu0 %v1986
        %2509 = vmatprep.subr.mxu0 %v1991
        %2510 = vmatpush1.msra.mxu0 %v1990
        %2511 = vmatprep.subr.mxu0 %v1995
        %2512 = vmatpush1.msra.mxu0 %v1994
        %2513 = vmatprep.subr.mxu0 %v1999
        %2514 = vmatpush1.msra.mxu0 %v1998
        %2515 = vmatprep.subr.mxu0 %v2003
        %2516 = vmatpush1.msra.mxu0 %v2002
        %2517 = vmatprep.subr.mxu0 %v2007
        %2518 = vmatpush1.msra.mxu0 %v2006
        %2519 = vmatprep.subr.mxu0 %v2011
        %2520 = vmatpush1.msra.mxu0 %v2010
        %2521 = vmatprep.subr.mxu0 %v2015
        %2522 = vmatpush1.msra.mxu0 %v2014
        %2523 = vmatprep.subr.mxu0 %v2019
        %2524 = vmatpush1.msra.mxu0 %v2018
        %2525 = vmatprep.subr.mxu0 %v2023
        %2526 = vmatpush1.msra.mxu0 %v2022
        %2527 = vmatprep.subr.mxu0 %v2027
        %2528 = vmatpush1.msra.mxu0 %v2026
        %2529 = vmatprep.subr.mxu0 %v2031
        %2530 = vmatpush1.msra.mxu0 %v2030
        %2531 = vmatprep.subr.mxu0 %v2035
        %2532 = vmatpush1.msra.mxu0 %v2034
        %2533 = vmatprep.subr.mxu0 %v2039
        %2534 = vmatpush1.msra.mxu0 %v2038
        %2535 = vmatprep.subr.mxu0 0.0
        %2536 = vmatpush1.msra.mxu0 0.0
        %2537 = vmatprep.subr.mxu0 0.0
        %2538 = vmatpush1.msra.mxu0 0.0
        %2539 = vmatprep.subr.mxu0 0.0
        %2540 = vmatpush1.msra.mxu0 0.0
        %2541 = vmatprep.subr.mxu0 0.0
        %2542 = vmatpush1.msra.mxu0 0.0
        %2543 = vmatprep.subr.mxu0 0.0
        %2544 = vmatpush1.msra.mxu0 0.0
        %2545 = vmatprep.subr.mxu0 0.0
        %2546 = vmatpush1.msra.mxu0 0.0
        %2547 = vmatprep.subr.mxu0 0.0
        %2548 = vmatpush1.msra.mxu0 0.0
        %2549 = vmatprep.subr.mxu0 0.0
        %2550 = vmatpush1.msra.mxu0 0.0
        %2551 = vmatprep.subr.mxu0 0.0
        %2552 = vmatpush1.msra.mxu0 0.0
        %2553 = vmatprep.subr.mxu0 0.0
        %2554 = vmatpush1.msra.mxu0 0.0
        %2555 = vmatprep.subr.mxu0 0.0
        %2556 = vmatpush1.msra.mxu0 0.0
        %2557 = vmatprep.subr.mxu0 0.0
        %2558 = vmatpush1.msra.mxu0 0.0
        %2559 = vmatprep.subr.mxu0 0.0
        %2560 = vmatpush1.msra.mxu0 0.0
        %2561 = vmatprep.subr.mxu0 0.0
        %2562 = vmatpush1.msra.mxu0 0.0
        %2563 = vmatprep.subr.mxu0 0.0
        %2564 = vmatpush1.msra.mxu0 0.0
        %2565 = vmatprep.subr.mxu0 0.0
        %2566 = vmatpush1.msra.mxu0 0.0
        %2567 = vmatprep.mubr.f32.mxu0 0.0
        %2568 = vmatmul.mubr.f32.gmra.mrb[0].mxu0 %v2429
        %v2569 = vpop.f32.mrb[0].mxu0
        %v2570 = vadd.f32 0.0, %v2569
        %v2571 = vpop.f32.mrb[0].mxu0
        %v2572 = vadd.f32 0.0, %v2571
        %2573 = vdwg.mxu0
        %v2578 = vcombine.low %v2499, %v2501
        %v2579 = vcombine.low %v2570, %v2572
        %v2581 = vunpack.c.l.s4 1966171168
        %v2582 = vunpack.c.0.s8 %v2581
        %v2583 = vlaneseq
        %v2584 = vshrl.u32 %v2583, 7
        %v2585 = vsub.s32 %v2582, %v2584
        %v2586 = vrot.slane %v2578, %v2585
        %v2588 = vunpack.c.l.s4 1966171168
        %v2589 = vunpack.c.0.s8 %v2588
        %v2590 = vlaneseq
        %v2591 = vshrl.u32 %v2590, 7
        %v2592 = vsub.s32 %v2589, %v2591
        %v2593 = vrot.slane %v2579, %v2592
        %v2594 = vcombine.low %v2586, %v2593
        %v2596 = vunpack.c.l.s4 1966171168
        %v2597 = vunpack.c.0.s8 %v2596
        %v2598 = vlaneseq
        %v2599 = vshrl.u32 %v2598, 7
        %v2600 = vsub.s32 %v2597, %v2599
        %v2601 = vrot.slane %v2594, %v2600
        %v2603 = vadd.f32 %v2431, %v2601
        %v2604 = vxor.u32 %v2603, 2147483648
        %v2605 = vmul.f32 %v2604, 1.442695
        %v2606 = vpow.pop %v2605
        %v2607 = vadd.f32 %v2606, 1.0
        %v2608 = vrcp.pop %v2607
        %v2609 = vmul.f32 1.0, %v2608
        %v2611 = vrot.slane %v2603, 3
        %v2613 = vtanh.pop %v2611
        %v2615 = vrot.slane %v2609, 1
        %v2617 = vmul.f32 %v2615, %v2428
        %v2618 = vmul.f32 %v2609, %v2613
        %v2619 = vadd.f32 %v2617, %v2618
        %v2620 = vtanh.pop %v2619
        %v2621 = vrot.slane %v2609, 2
        %v2623 = vmul.f32 %v2621, %v2620
        %v2624 = vsel %vm1718, %v1517, %v2619
        %v2625 = vsel %vm1718, %v1521, %v2623
        %s2626 = scalar_lea.vmem %s249, 35 [#allocation2]
        %v2627 = vld [vmem:[%s2626] ss:$8 sm:$0xf]
        %2628 = vmatprep.subr.mxu0 %v1977
        %2629 = vmatpush1.msra.mxu0 %v1976
        %2630 = vmatprep.subr.mxu0 %v1981
        %2631 = vmatpush1.msra.mxu0 %v1980
        %2632 = vmatprep.subr.mxu0 %v1985
        %2633 = vmatpush1.msra.mxu0 %v1984
        %2634 = vmatprep.subr.mxu0 %v1989
        %2635 = vmatpush1.msra.mxu0 %v1988
        %2636 = vmatprep.subr.mxu0 %v1993
        %2637 = vmatpush1.msra.mxu0 %v1992
        %2638 = vmatprep.subr.mxu0 %v1997
        %2639 = vmatpush1.msra.mxu0 %v1996
        %2640 = vmatprep.subr.mxu0 %v2001
        %2641 = vmatpush1.msra.mxu0 %v2000
        %2642 = vmatprep.subr.mxu0 %v2005
        %2643 = vmatpush1.msra.mxu0 %v2004
        %2644 = vmatprep.subr.mxu0 %v2009
        %2645 = vmatpush1.msra.mxu0 %v2008
        %2646 = vmatprep.subr.mxu0 %v2013
        %2647 = vmatpush1.msra.mxu0 %v2012
        %2648 = vmatprep.subr.mxu0 %v2017
        %2649 = vmatpush1.msra.mxu0 %v2016
        %2650 = vmatprep.subr.mxu0 %v2021
        %2651 = vmatpush1.msra.mxu0 %v2020
        %2652 = vmatprep.subr.mxu0 %v2025
        %2653 = vmatpush1.msra.mxu0 %v2024
        %2654 = vmatprep.subr.mxu0 %v2029
        %2655 = vmatpush1.msra.mxu0 %v2028
        %2656 = vmatprep.subr.mxu0 %v2033
        %2657 = vmatpush1.msra.mxu0 %v2032
        %2658 = vmatprep.subr.mxu0 %v2037
        %2659 = vmatpush1.msra.mxu0 %v2036
        %2660 = vmatprep.subr.mxu0 0.0
        %2661 = vmatpush1.msra.mxu0 0.0
        %2662 = vmatprep.subr.mxu0 0.0
        %2663 = vmatpush1.msra.mxu0 0.0
        %2664 = vmatprep.subr.mxu0 0.0
        %2665 = vmatpush1.msra.mxu0 0.0
        %2666 = vmatprep.subr.mxu0 0.0
        %2667 = vmatpush1.msra.mxu0 0.0
        %2668 = vmatprep.subr.mxu0 0.0
        %2669 = vmatpush1.msra.mxu0 0.0
        %2670 = vmatprep.subr.mxu0 0.0
        %2671 = vmatpush1.msra.mxu0 0.0
        %2672 = vmatprep.subr.mxu0 0.0
        %2673 = vmatpush1.msra.mxu0 0.0
        %2674 = vmatprep.subr.mxu0 0.0
        %2675 = vmatpush1.msra.mxu0 0.0
        %2676 = vmatprep.subr.mxu0 0.0
        %2677 = vmatpush1.msra.mxu0 0.0
        %2678 = vmatprep.subr.mxu0 0.0
        %2679 = vmatpush1.msra.mxu0 0.0
        %2680 = vmatprep.subr.mxu0 0.0
        %2681 = vmatpush1.msra.mxu0 0.0
        %2682 = vmatprep.subr.mxu0 0.0
        %2683 = vmatpush1.msra.mxu0 0.0
        %2684 = vmatprep.subr.mxu0 0.0
        %2685 = vmatpush1.msra.mxu0 0.0
        %2686 = vmatprep.subr.mxu0 0.0
        %2687 = vmatpush1.msra.mxu0 0.0
        %2688 = vmatprep.subr.mxu0 0.0
        %2689 = vmatpush1.msra.mxu0 0.0
        %2690 = vmatprep.subr.mxu0 0.0
        %2691 = vmatpush1.msra.mxu0 0.0
        %2692 = vmatprep.mubr.f32.mxu0 0.0
        %2693 = vmatmul.mubr.f32.gmra.mrb[0].mxu0 %v2625
        %v2694 = vpop.f32.mrb[0].mxu0
        %v2695 = vadd.f32 0.0, %v2694
        %v2696 = vpop.f32.mrb[0].mxu0
        %v2697 = vadd.f32 0.0, %v2696
        %2698 = vdwg.mxu0
        %2699 = vmatprep.subr.mxu0 %v1979
        %2700 = vmatpush1.msra.mxu0 %v1978
        %2701 = vmatprep.subr.mxu0 %v1983
        %2702 = vmatpush1.msra.mxu0 %v1982
        %2703 = vmatprep.subr.mxu0 %v1987
        %2704 = vmatpush1.msra.mxu0 %v1986
        %2705 = vmatprep.subr.mxu0 %v1991
        %2706 = vmatpush1.msra.mxu0 %v1990
        %2707 = vmatprep.subr.mxu0 %v1995
        %2708 = vmatpush1.msra.mxu0 %v1994
        %2709 = vmatprep.subr.mxu0 %v1999
        %2710 = vmatpush1.msra.mxu0 %v1998
        %2711 = vmatprep.subr.mxu0 %v2003
        %2712 = vmatpush1.msra.mxu0 %v2002
        %2713 = vmatprep.subr.mxu0 %v2007
        %2714 = vmatpush1.msra.mxu0 %v2006
        %2715 = vmatprep.subr.mxu0 %v2011
        %2716 = vmatpush1.msra.mxu0 %v2010
        %2717 = vmatprep.subr.mxu0 %v2015
        %2718 = vmatpush1.msra.mxu0 %v2014
        %2719 = vmatprep.subr.mxu0 %v2019
        %2720 = vmatpush1.msra.mxu0 %v2018
        %2721 = vmatprep.subr.mxu0 %v2023
        %2722 = vmatpush1.msra.mxu0 %v2022
        %2723 = vmatprep.subr.mxu0 %v2027
        %2724 = vmatpush1.msra.mxu0 %v2026
        %2725 = vmatprep.subr.mxu0 %v2031
        %2726 = vmatpush1.msra.mxu0 %v2030
        %2727 = vmatprep.subr.mxu0 %v2035
        %2728 = vmatpush1.msra.mxu0 %v2034
        %2729 = vmatprep.subr.mxu0 %v2039
        %2730 = vmatpush1.msra.mxu0 %v2038
        %2731 = vmatprep.subr.mxu0 0.0
        %2732 = vmatpush1.msra.mxu0 0.0
        %2733 = vmatprep.subr.mxu0 0.0
        %2734 = vmatpush1.msra.mxu0 0.0
        %2735 = vmatprep.subr.mxu0 0.0
        %2736 = vmatpush1.msra.mxu0 0.0
        %2737 = vmatprep.subr.mxu0 0.0
        %2738 = vmatpush1.msra.mxu0 0.0
        %2739 = vmatprep.subr.mxu0 0.0
        %2740 = vmatpush1.msra.mxu0 0.0
        %2741 = vmatprep.subr.mxu0 0.0
        %2742 = vmatpush1.msra.mxu0 0.0
        %2743 = vmatprep.subr.mxu0 0.0
        %2744 = vmatpush1.msra.mxu0 0.0
        %2745 = vmatprep.subr.mxu0 0.0
        %2746 = vmatpush1.msra.mxu0 0.0
        %2747 = vmatprep.subr.mxu0 0.0
        %2748 = vmatpush1.msra.mxu0 0.0
        %2749 = vmatprep.subr.mxu0 0.0
        %2750 = vmatpush1.msra.mxu0 0.0
        %2751 = vmatprep.subr.mxu0 0.0
        %2752 = vmatpush1.msra.mxu0 0.0
        %2753 = vmatprep.subr.mxu0 0.0
        %2754 = vmatpush1.msra.mxu0 0.0
        %2755 = vmatprep.subr.mxu0 0.0
        %2756 = vmatpush1.msra.mxu0 0.0
        %2757 = vmatprep.subr.mxu0 0.0
        %2758 = vmatpush1.msra.mxu0 0.0
        %2759 = vmatprep.subr.mxu0 0.0
        %2760 = vmatpush1.msra.mxu0 0.0
        %2761 = vmatprep.subr.mxu0 0.0
        %2762 = vmatpush1.msra.mxu0 0.0
        %2763 = vmatprep.mubr.f32.mxu0 0.0
        %2764 = vmatmul.mubr.f32.gmra.mrb[0].mxu0 %v2625
        %v2765 = vpop.f32.mrb[0].mxu0
        %v2766 = vadd.f32 0.0, %v2765
        %v2767 = vpop.f32.mrb[0].mxu0
        %v2768 = vadd.f32 0.0, %v2767
        %2769 = vdwg.mxu0
        %v2774 = vcombine.low %v2695, %v2697
        %v2775 = vcombine.low %v2766, %v2768
        %v2777 = vunpack.c.l.s4 1966171168
        %v2778 = vunpack.c.0.s8 %v2777
        %v2779 = vlaneseq
        %v2780 = vshrl.u32 %v2779, 7
        %v2781 = vsub.s32 %v2778, %v2780
        %v2782 = vrot.slane %v2774, %v2781
        %v2784 = vunpack.c.l.s4 1966171168
        %v2785 = vunpack.c.0.s8 %v2784
        %v2786 = vlaneseq
        %v2787 = vshrl.u32 %v2786, 7
        %v2788 = vsub.s32 %v2785, %v2787
        %v2789 = vrot.slane %v2775, %v2788
        %v2790 = vcombine.low %v2782, %v2789
        %v2792 = vunpack.c.l.s4 1966171168
        %v2793 = vunpack.c.0.s8 %v2792
        %v2794 = vlaneseq
        %v2795 = vshrl.u32 %v2794, 7
        %v2796 = vsub.s32 %v2793, %v2795
        %v2797 = vrot.slane %v2790, %v2796
        %v2799 = vadd.f32 %v2627, %v2797
        %v2800 = vxor.u32 %v2799, 2147483648
        %v2801 = vmul.f32 %v2800, 1.442695
        %v2802 = vpow.pop %v2801
        %v2803 = vadd.f32 %v2802, 1.0
        %v2804 = vrcp.pop %v2803
        %v2805 = vmul.f32 1.0, %v2804
        %v2807 = vrot.slane %v2799, 3
        %v2809 = vtanh.pop %v2807
        %v2811 = vrot.slane %v2805, 1
        %v2813 = vmul.f32 %v2811, %v2624
        %v2814 = vmul.f32 %v2805, %v2809
        %v2815 = vadd.f32 %v2813, %v2814
        %v2816 = vtanh.pop %v2815
        %v2817 = vrot.slane %v2805, 2
        %v2819 = vmul.f32 %v2817, %v2816
        %v2820 = vsel %vm1718, %v1517, %v2815
        %v2821 = vsel %vm1718, %v1521, %v2819
        %s2822 = scalar_lea.vmem %s249, 36 [#allocation2]
        %v2823 = vld [vmem:[%s2822] ss:$8 sm:$0xf]
        %2824 = vmatprep.subr.mxu0 %v1977
        %2825 = vmatpush1.msra.mxu0 %v1976
        %2826 = vmatprep.subr.mxu0 %v1981
        %2827 = vmatpush1.msra.mxu0 %v1980
        %2828 = vmatprep.subr.mxu0 %v1985
        %2829 = vmatpush1.msra.mxu0 %v1984
        %2830 = vmatprep.subr.mxu0 %v1989
        %2831 = vmatpush1.msra.mxu0 %v1988
        %2832 = vmatprep.subr.mxu0 %v1993
        %2833 = vmatpush1.msra.mxu0 %v1992
        %2834 = vmatprep.subr.mxu0 %v1997
        %2835 = vmatpush1.msra.mxu0 %v1996
        %2836 = vmatprep.subr.mxu0 %v2001
        %2837 = vmatpush1.msra.mxu0 %v2000
        %2838 = vmatprep.subr.mxu0 %v2005
        %2839 = vmatpush1.msra.mxu0 %v2004
        %2840 = vmatprep.subr.mxu0 %v2009
        %2841 = vmatpush1.msra.mxu0 %v2008
        %2842 = vmatprep.subr.mxu0 %v2013
        %2843 = vmatpush1.msra.mxu0 %v2012
        %2844 = vmatprep.subr.mxu0 %v2017
        %2845 = vmatpush1.msra.mxu0 %v2016
        %2846 = vmatprep.subr.mxu0 %v2021
        %2847 = vmatpush1.msra.mxu0 %v2020
        %2848 = vmatprep.subr.mxu0 %v2025
        %2849 = vmatpush1.msra.mxu0 %v2024
        %2850 = vmatprep.subr.mxu0 %v2029
        %2851 = vmatpush1.msra.mxu0 %v2028
        %2852 = vmatprep.subr.mxu0 %v2033
        %2853 = vmatpush1.msra.mxu0 %v2032
        %2854 = vmatprep.subr.mxu0 %v2037
        %2855 = vmatpush1.msra.mxu0 %v2036
        %2856 = vmatprep.subr.mxu0 0.0
        %2857 = vmatpush1.msra.mxu0 0.0
        %2858 = vmatprep.subr.mxu0 0.0
        %2859 = vmatpush1.msra.mxu0 0.0
        %2860 = vmatprep.subr.mxu0 0.0
        %2861 = vmatpush1.msra.mxu0 0.0
        %2862 = vmatprep.subr.mxu0 0.0
        %2863 = vmatpush1.msra.mxu0 0.0
        %2864 = vmatprep.subr.mxu0 0.0
        %2865 = vmatpush1.msra.mxu0 0.0
        %2866 = vmatprep.subr.mxu0 0.0
        %2867 = vmatpush1.msra.mxu0 0.0
        %2868 = vmatprep.subr.mxu0 0.0
        %2869 = vmatpush1.msra.mxu0 0.0
        %2870 = vmatprep.subr.mxu0 0.0
        %2871 = vmatpush1.msra.mxu0 0.0
        %2872 = vmatprep.subr.mxu0 0.0
        %2873 = vmatpush1.msra.mxu0 0.0
        %2874 = vmatprep.subr.mxu0 0.0
        %2875 = vmatpush1.msra.mxu0 0.0
        %2876 = vmatprep.subr.mxu0 0.0
        %2877 = vmatpush1.msra.mxu0 0.0
        %2878 = vmatprep.subr.mxu0 0.0
        %2879 = vmatpush1.msra.mxu0 0.0
        %2880 = vmatprep.subr.mxu0 0.0
        %2881 = vmatpush1.msra.mxu0 0.0
        %2882 = vmatprep.subr.mxu0 0.0
        %2883 = vmatpush1.msra.mxu0 0.0
        %2884 = vmatprep.subr.mxu0 0.0
        %2885 = vmatpush1.msra.mxu0 0.0
        %2886 = vmatprep.subr.mxu0 0.0
        %2887 = vmatpush1.msra.mxu0 0.0
        %2888 = vmatprep.mubr.f32.mxu0 0.0
        %2889 = vmatmul.mubr.f32.gmra.mrb[0].mxu0 %v2821
        %v2890 = vpop.f32.mrb[0].mxu0
        %v2891 = vadd.f32 0.0, %v2890
        %v2892 = vpop.f32.mrb[0].mxu0
        %v2893 = vadd.f32 0.0, %v2892
        %2894 = vdwg.mxu0
        %2895 = vmatprep.subr.mxu0 %v1979
        %2896 = vmatpush1.msra.mxu0 %v1978
        %2897 = vmatprep.subr.mxu0 %v1983
        %2898 = vmatpush1.msra.mxu0 %v1982
        %2899 = vmatprep.subr.mxu0 %v1987
        %2900 = vmatpush1.msra.mxu0 %v1986
        %2901 = vmatprep.subr.mxu0 %v1991
        %2902 = vmatpush1.msra.mxu0 %v1990
        %2903 = vmatprep.subr.mxu0 %v1995
        %2904 = vmatpush1.msra.mxu0 %v1994
        %2905 = vmatprep.subr.mxu0 %v1999
        %2906 = vmatpush1.msra.mxu0 %v1998
        %2907 = vmatprep.subr.mxu0 %v2003
        %2908 = vmatpush1.msra.mxu0 %v2002
        %2909 = vmatprep.subr.mxu0 %v2007
        %2910 = vmatpush1.msra.mxu0 %v2006
        %2911 = vmatprep.subr.mxu0 %v2011
        %2912 = vmatpush1.msra.mxu0 %v2010
        %2913 = vmatprep.subr.mxu0 %v2015
        %2914 = vmatpush1.msra.mxu0 %v2014
        %2915 = vmatprep.subr.mxu0 %v2019
        %2916 = vmatpush1.msra.mxu0 %v2018
        %2917 = vmatprep.subr.mxu0 %v2023
        %2918 = vmatpush1.msra.mxu0 %v2022
        %2919 = vmatprep.subr.mxu0 %v2027
        %2920 = vmatpush1.msra.mxu0 %v2026
        %2921 = vmatprep.subr.mxu0 %v2031
        %2922 = vmatpush1.msra.mxu0 %v2030
        %2923 = vmatprep.subr.mxu0 %v2035
        %2924 = vmatpush1.msra.mxu0 %v2034
        %2925 = vmatprep.subr.mxu0 %v2039
        %2926 = vmatpush1.msra.mxu0 %v2038
        %2927 = vmatprep.subr.mxu0 0.0
        %2928 = vmatpush1.msra.mxu0 0.0
        %2929 = vmatprep.subr.mxu0 0.0
        %2930 = vmatpush1.msra.mxu0 0.0
        %2931 = vmatprep.subr.mxu0 0.0
        %2932 = vmatpush1.msra.mxu0 0.0
        %2933 = vmatprep.subr.mxu0 0.0
        %2934 = vmatpush1.msra.mxu0 0.0
        %2935 = vmatprep.subr.mxu0 0.0
        %2936 = vmatpush1.msra.mxu0 0.0
        %2937 = vmatprep.subr.mxu0 0.0
        %2938 = vmatpush1.msra.mxu0 0.0
        %2939 = vmatprep.subr.mxu0 0.0
        %2940 = vmatpush1.msra.mxu0 0.0
        %2941 = vmatprep.subr.mxu0 0.0
        %2942 = vmatpush1.msra.mxu0 0.0
        %2943 = vmatprep.subr.mxu0 0.0
        %2944 = vmatpush1.msra.mxu0 0.0
        %2945 = vmatprep.subr.mxu0 0.0
        %2946 = vmatpush1.msra.mxu0 0.0
        %2947 = vmatprep.subr.mxu0 0.0
        %2948 = vmatpush1.msra.mxu0 0.0
        %2949 = vmatprep.subr.mxu0 0.0
        %2950 = vmatpush1.msra.mxu0 0.0
        %2951 = vmatprep.subr.mxu0 0.0
        %2952 = vmatpush1.msra.mxu0 0.0
        %2953 = vmatprep.subr.mxu0 0.0
        %2954 = vmatpush1.msra.mxu0 0.0
        %2955 = vmatprep.subr.mxu0 0.0
        %2956 = vmatpush1.msra.mxu0 0.0
        %2957 = vmatprep.subr.mxu0 0.0
        %2958 = vmatpush1.msra.mxu0 0.0
        %2959 = vmatprep.mubr.f32.mxu0 0.0
        %2960 = vmatmul.mubr.f32.gmra.mrb[0].mxu0 %v2821
        %v2961 = vpop.f32.mrb[0].mxu0
        %v2962 = vadd.f32 0.0, %v2961
        %v2963 = vpop.f32.mrb[0].mxu0
        %v2964 = vadd.f32 0.0, %v2963
        %2965 = vdwg.mxu0
        %v2970 = vcombine.low %v2891, %v2893
        %v2971 = vcombine.low %v2962, %v2964
        %v2973 = vunpack.c.l.s4 1966171168
        %v2974 = vunpack.c.0.s8 %v2973
        %v2975 = vlaneseq
        %v2976 = vshrl.u32 %v2975, 7
        %v2977 = vsub.s32 %v2974, %v2976
        %v2978 = vrot.slane %v2970, %v2977
        %v2980 = vunpack.c.l.s4 1966171168
        %v2981 = vunpack.c.0.s8 %v2980
        %v2982 = vlaneseq
        %v2983 = vshrl.u32 %v2982, 7
        %v2984 = vsub.s32 %v2981, %v2983
        %v2985 = vrot.slane %v2971, %v2984
        %v2986 = vcombine.low %v2978, %v2985
        %v2988 = vunpack.c.l.s4 1966171168
        %v2989 = vunpack.c.0.s8 %v2988
        %v2990 = vlaneseq
        %v2991 = vshrl.u32 %v2990, 7
        %v2992 = vsub.s32 %v2989, %v2991
        %v2993 = vrot.slane %v2986, %v2992
        %v2995 = vadd.f32 %v2823, %v2993
        %v2996 = vxor.u32 %v2995, 2147483648
        %v2997 = vmul.f32 %v2996, 1.442695
        %v2998 = vpow.pop %v2997
        %v2999 = vadd.f32 %v2998, 1.0
        %v3000 = vrcp.pop %v2999
        %v3001 = vmul.f32 1.0, %v3000
        %v3003 = vrot.slane %v2995, 3
        %v3005 = vtanh.pop %v3003
        %v3007 = vrot.slane %v3001, 1
        %v3009 = vmul.f32 %v3007, %v2820
        %v3010 = vmul.f32 %v3001, %v3005
        %v3011 = vadd.f32 %v3009, %v3010
        %v3012 = vtanh.pop %v3011
        %v3013 = vrot.slane %v3001, 2
        %v3015 = vmul.f32 %v3013, %v3012
        %v3016 = vsel %vm1718, %v1517, %v3011
        %v3017 = vsel %vm1718, %v1521, %v3015
        %s3018 = scalar_lea.vmem %s249, 37 [#allocation2]
        %v3019 = vld [vmem:[%s3018] ss:$8 sm:$0xf]
        %3020 = vmatprep.subr.mxu0 %v1977
        %3021 = vmatpush1.msra.mxu0 %v1976
        %3022 = vmatprep.subr.mxu0 %v1981
        %3023 = vmatpush1.msra.mxu0 %v1980
        %3024 = vmatprep.subr.mxu0 %v1985
        %3025 = vmatpush1.msra.mxu0 %v1984
        %3026 = vmatprep.subr.mxu0 %v1989
        %3027 = vmatpush1.msra.mxu0 %v1988
        %3028 = vmatprep.subr.mxu0 %v1993
        %3029 = vmatpush1.msra.mxu0 %v1992
        %3030 = vmatprep.subr.mxu0 %v1997
        %3031 = vmatpush1.msra.mxu0 %v1996
        %3032 = vmatprep.subr.mxu0 %v2001
        %3033 = vmatpush1.msra.mxu0 %v2000
        %3034 = vmatprep.subr.mxu0 %v2005
        %3035 = vmatpush1.msra.mxu0 %v2004
        %3036 = vmatprep.subr.mxu0 %v2009
        %3037 = vmatpush1.msra.mxu0 %v2008
        %3038 = vmatprep.subr.mxu0 %v2013
        %3039 = vmatpush1.msra.mxu0 %v2012
        %3040 = vmatprep.subr.mxu0 %v2017
        %3041 = vmatpush1.msra.mxu0 %v2016
        %3042 = vmatprep.subr.mxu0 %v2021
        %3043 = vmatpush1.msra.mxu0 %v2020
        %3044 = vmatprep.subr.mxu0 %v2025
        %3045 = vmatpush1.msra.mxu0 %v2024
        %3046 = vmatprep.subr.mxu0 %v2029
        %3047 = vmatpush1.msra.mxu0 %v2028
        %3048 = vmatprep.subr.mxu0 %v2033
        %3049 = vmatpush1.msra.mxu0 %v2032
        %3050 = vmatprep.subr.mxu0 %v2037
        %3051 = vmatpush1.msra.mxu0 %v2036
        %3052 = vmatprep.subr.mxu0 0.0
        %3053 = vmatpush1.msra.mxu0 0.0
        %3054 = vmatprep.subr.mxu0 0.0
        %3055 = vmatpush1.msra.mxu0 0.0
        %3056 = vmatprep.subr.mxu0 0.0
        %3057 = vmatpush1.msra.mxu0 0.0
        %3058 = vmatprep.subr.mxu0 0.0
        %3059 = vmatpush1.msra.mxu0 0.0
        %3060 = vmatprep.subr.mxu0 0.0
        %3061 = vmatpush1.msra.mxu0 0.0
        %3062 = vmatprep.subr.mxu0 0.0
        %3063 = vmatpush1.msra.mxu0 0.0
        %3064 = vmatprep.subr.mxu0 0.0
        %3065 = vmatpush1.msra.mxu0 0.0
        %3066 = vmatprep.subr.mxu0 0.0
        %3067 = vmatpush1.msra.mxu0 0.0
        %3068 = vmatprep.subr.mxu0 0.0
        %3069 = vmatpush1.msra.mxu0 0.0
        %3070 = vmatprep.subr.mxu0 0.0
        %3071 = vmatpush1.msra.mxu0 0.0
        %3072 = vmatprep.subr.mxu0 0.0
        %3073 = vmatpush1.msra.mxu0 0.0
        %3074 = vmatprep.subr.mxu0 0.0
        %3075 = vmatpush1.msra.mxu0 0.0
        %3076 = vmatprep.subr.mxu0 0.0
        %3077 = vmatpush1.msra.mxu0 0.0
        %3078 = vmatprep.subr.mxu0 0.0
        %3079 = vmatpush1.msra.mxu0 0.0
        %3080 = vmatprep.subr.mxu0 0.0
        %3081 = vmatpush1.msra.mxu0 0.0
        %3082 = vmatprep.subr.mxu0 0.0
        %3083 = vmatpush1.msra.mxu0 0.0
        %3084 = vmatprep.mubr.f32.mxu0 0.0
        %3085 = vmatmul.mubr.f32.gmra.mrb[0].mxu0 %v3017
        %v3086 = vpop.f32.mrb[0].mxu0
        %v3087 = vadd.f32 0.0, %v3086
        %v3088 = vpop.f32.mrb[0].mxu0
        %v3089 = vadd.f32 0.0, %v3088
        %3090 = vdwg.mxu0
        %3091 = vmatprep.subr.mxu0 %v1979
        %3092 = vmatpush1.msra.mxu0 %v1978
        %3093 = vmatprep.subr.mxu0 %v1983
        %3094 = vmatpush1.msra.mxu0 %v1982
        %3095 = vmatprep.subr.mxu0 %v1987
        %3096 = vmatpush1.msra.mxu0 %v1986
        %3097 = vmatprep.subr.mxu0 %v1991
        %3098 = vmatpush1.msra.mxu0 %v1990
        %3099 = vmatprep.subr.mxu0 %v1995
        %3100 = vmatpush1.msra.mxu0 %v1994
        %3101 = vmatprep.subr.mxu0 %v1999
        %3102 = vmatpush1.msra.mxu0 %v1998
        %3103 = vmatprep.subr.mxu0 %v2003
        %3104 = vmatpush1.msra.mxu0 %v2002
        %3105 = vmatprep.subr.mxu0 %v2007
        %3106 = vmatpush1.msra.mxu0 %v2006
        %3107 = vmatprep.subr.mxu0 %v2011
        %3108 = vmatpush1.msra.mxu0 %v2010
        %3109 = vmatprep.subr.mxu0 %v2015
        %3110 = vmatpush1.msra.mxu0 %v2014
        %3111 = vmatprep.subr.mxu0 %v2019
        %3112 = vmatpush1.msra.mxu0 %v2018
        %3113 = vmatprep.subr.mxu0 %v2023
        %3114 = vmatpush1.msra.mxu0 %v2022
        %3115 = vmatprep.subr.mxu0 %v2027
        %3116 = vmatpush1.msra.mxu0 %v2026
        %3117 = vmatprep.subr.mxu0 %v2031
        %3118 = vmatpush1.msra.mxu0 %v2030
        %3119 = vmatprep.subr.mxu0 %v2035
        %3120 = vmatpush1.msra.mxu0 %v2034
        %3121 = vmatprep.subr.mxu0 %v2039
        %3122 = vmatpush1.msra.mxu0 %v2038
        %3123 = vmatprep.subr.mxu0 0.0
        %3124 = vmatpush1.msra.mxu0 0.0
        %3125 = vmatprep.subr.mxu0 0.0
        %3126 = vmatpush1.msra.mxu0 0.0
        %3127 = vmatprep.subr.mxu0 0.0
        %3128 = vmatpush1.msra.mxu0 0.0
        %3129 = vmatprep.subr.mxu0 0.0
        %3130 = vmatpush1.msra.mxu0 0.0
        %3131 = vmatprep.subr.mxu0 0.0
        %3132 = vmatpush1.msra.mxu0 0.0
        %3133 = vmatprep.subr.mxu0 0.0
        %3134 = vmatpush1.msra.mxu0 0.0
        %3135 = vmatprep.subr.mxu0 0.0
        %3136 = vmatpush1.msra.mxu0 0.0
        %3137 = vmatprep.subr.mxu0 0.0
        %3138 = vmatpush1.msra.mxu0 0.0
        %3139 = vmatprep.subr.mxu0 0.0
        %3140 = vmatpush1.msra.mxu0 0.0
        %3141 = vmatprep.subr.mxu0 0.0
        %3142 = vmatpush1.msra.mxu0 0.0
        %3143 = vmatprep.subr.mxu0 0.0
        %3144 = vmatpush1.msra.mxu0 0.0
        %3145 = vmatprep.subr.mxu0 0.0
        %3146 = vmatpush1.msra.mxu0 0.0
        %3147 = vmatprep.subr.mxu0 0.0
        %3148 = vmatpush1.msra.mxu0 0.0
        %3149 = vmatprep.subr.mxu0 0.0
        %3150 = vmatpush1.msra.mxu0 0.0
        %3151 = vmatprep.subr.mxu0 0.0
        %3152 = vmatpush1.msra.mxu0 0.0
        %3153 = vmatprep.subr.mxu0 0.0
        %3154 = vmatpush1.msra.mxu0 0.0
        %3155 = vmatprep.mubr.f32.mxu0 0.0
        %3156 = vmatmul.mubr.f32.gmra.mrb[0].mxu0 %v3017
        %v3157 = vpop.f32.mrb[0].mxu0
        %v3158 = vadd.f32 0.0, %v3157
        %v3159 = vpop.f32.mrb[0].mxu0
        %v3160 = vadd.f32 0.0, %v3159
        %3161 = vdwg.mxu0
        %v3166 = vcombine.low %v3087, %v3089
        %v3167 = vcombine.low %v3158, %v3160
        %v3169 = vunpack.c.l.s4 1966171168
        %v3170 = vunpack.c.0.s8 %v3169
        %v3171 = vlaneseq
        %v3172 = vshrl.u32 %v3171, 7
        %v3173 = vsub.s32 %v3170, %v3172
        %v3174 = vrot.slane %v3166, %v3173
        %v3176 = vunpack.c.l.s4 1966171168
        %v3177 = vunpack.c.0.s8 %v3176
        %v3178 = vlaneseq
        %v3179 = vshrl.u32 %v3178, 7
        %v3180 = vsub.s32 %v3177, %v3179
        %v3181 = vrot.slane %v3167, %v3180
        %v3182 = vcombine.low %v3174, %v3181
        %v3184 = vunpack.c.l.s4 1966171168
        %v3185 = vunpack.c.0.s8 %v3184
        %v3186 = vlaneseq
        %v3187 = vshrl.u32 %v3186, 7
        %v3188 = vsub.s32 %v3185, %v3187
        %v3189 = vrot.slane %v3182, %v3188
        %v3191 = vadd.f32 %v3019, %v3189
        %v3192 = vxor.u32 %v3191, 2147483648
        %v3193 = vmul.f32 %v3192, 1.442695
        %v3194 = vpow.pop %v3193
        %v3195 = vadd.f32 %v3194, 1.0
        %v3196 = vrcp.pop %v3195
        %v3197 = vmul.f32 1.0, %v3196
        %v3199 = vrot.slane %v3191, 3
        %v3201 = vtanh.pop %v3199
        %v3203 = vrot.slane %v3197, 1
        %v3205 = vmul.f32 %v3203, %v3016
        %v3206 = vmul.f32 %v3197, %v3201
        %v3207 = vadd.f32 %v3205, %v3206
        %v3208 = vtanh.pop %v3207
        %v3209 = vrot.slane %v3197, 2
        %v3211 = vmul.f32 %v3209, %v3208
        %v3212 = vsel %vm1718, %v1517, %v3207
        %v3213 = vsel %vm1718, %v1521, %v3211
        %s3214 = scalar_lea.vmem %s249, 38 [#allocation2]
        %v3215 = vld [vmem:[%s3214] ss:$8 sm:$0xf]
        %3216 = vmatprep.subr.mxu0 %v1977
        %3217 = vmatpush1.msra.mxu0 %v1976
        %3218 = vmatprep.subr.mxu0 %v1981
        %3219 = vmatpush1.msra.mxu0 %v1980
        %3220 = vmatprep.subr.mxu0 %v1985
        %3221 = vmatpush1.msra.mxu0 %v1984
        %3222 = vmatprep.subr.mxu0 %v1989
        %3223 = vmatpush1.msra.mxu0 %v1988
        %3224 = vmatprep.subr.mxu0 %v1993
        %3225 = vmatpush1.msra.mxu0 %v1992
        %3226 = vmatprep.subr.mxu0 %v1997
        %3227 = vmatpush1.msra.mxu0 %v1996
        %3228 = vmatprep.subr.mxu0 %v2001
        %3229 = vmatpush1.msra.mxu0 %v2000
        %3230 = vmatprep.subr.mxu0 %v2005
        %3231 = vmatpush1.msra.mxu0 %v2004
        %3232 = vmatprep.subr.mxu0 %v2009
        %3233 = vmatpush1.msra.mxu0 %v2008
        %3234 = vmatprep.subr.mxu0 %v2013
        %3235 = vmatpush1.msra.mxu0 %v2012
        %3236 = vmatprep.subr.mxu0 %v2017
        %3237 = vmatpush1.msra.mxu0 %v2016
        %3238 = vmatprep.subr.mxu0 %v2021
        %3239 = vmatpush1.msra.mxu0 %v2020
        %3240 = vmatprep.subr.mxu0 %v2025
        %3241 = vmatpush1.msra.mxu0 %v2024
        %3242 = vmatprep.subr.mxu0 %v2029
        %3243 = vmatpush1.msra.mxu0 %v2028
        %3244 = vmatprep.subr.mxu0 %v2033
        %3245 = vmatpush1.msra.mxu0 %v2032
        %3246 = vmatprep.subr.mxu0 %v2037
        %3247 = vmatpush1.msra.mxu0 %v2036
        %3248 = vmatprep.subr.mxu0 0.0
        %3249 = vmatpush1.msra.mxu0 0.0
        %3250 = vmatprep.subr.mxu0 0.0
        %3251 = vmatpush1.msra.mxu0 0.0
        %3252 = vmatprep.subr.mxu0 0.0
        %3253 = vmatpush1.msra.mxu0 0.0
        %3254 = vmatprep.subr.mxu0 0.0
        %3255 = vmatpush1.msra.mxu0 0.0
        %3256 = vmatprep.subr.mxu0 0.0
        %3257 = vmatpush1.msra.mxu0 0.0
        %3258 = vmatprep.subr.mxu0 0.0
        %3259 = vmatpush1.msra.mxu0 0.0
        %3260 = vmatprep.subr.mxu0 0.0
        %3261 = vmatpush1.msra.mxu0 0.0
        %3262 = vmatprep.subr.mxu0 0.0
        %3263 = vmatpush1.msra.mxu0 0.0
        %3264 = vmatprep.subr.mxu0 0.0
        %3265 = vmatpush1.msra.mxu0 0.0
        %3266 = vmatprep.subr.mxu0 0.0
        %3267 = vmatpush1.msra.mxu0 0.0
        %3268 = vmatprep.subr.mxu0 0.0
        %3269 = vmatpush1.msra.mxu0 0.0
        %3270 = vmatprep.subr.mxu0 0.0
        %3271 = vmatpush1.msra.mxu0 0.0
        %3272 = vmatprep.subr.mxu0 0.0
        %3273 = vmatpush1.msra.mxu0 0.0
        %3274 = vmatprep.subr.mxu0 0.0
        %3275 = vmatpush1.msra.mxu0 0.0
        %3276 = vmatprep.subr.mxu0 0.0
        %3277 = vmatpush1.msra.mxu0 0.0
        %3278 = vmatprep.subr.mxu0 0.0
        %3279 = vmatpush1.msra.mxu0 0.0
        %3280 = vmatprep.mubr.f32.mxu0 0.0
        %3281 = vmatmul.mubr.f32.gmra.mrb[0].mxu0 %v3213
        %v3282 = vpop.f32.mrb[0].mxu0
        %v3283 = vadd.f32 0.0, %v3282
        %v3284 = vpop.f32.mrb[0].mxu0
        %v3285 = vadd.f32 0.0, %v3284
        %3286 = vdwg.mxu0
        %3287 = vmatprep.subr.mxu0 %v1979
        %3288 = vmatpush1.msra.mxu0 %v1978
        %3289 = vmatprep.subr.mxu0 %v1983
        %3290 = vmatpush1.msra.mxu0 %v1982
        %3291 = vmatprep.subr.mxu0 %v1987
        %3292 = vmatpush1.msra.mxu0 %v1986
        %3293 = vmatprep.subr.mxu0 %v1991
        %3294 = vmatpush1.msra.mxu0 %v1990
        %3295 = vmatprep.subr.mxu0 %v1995
        %3296 = vmatpush1.msra.mxu0 %v1994
        %3297 = vmatprep.subr.mxu0 %v1999
        %3298 = vmatpush1.msra.mxu0 %v1998
        %3299 = vmatprep.subr.mxu0 %v2003
        %3300 = vmatpush1.msra.mxu0 %v2002
        %3301 = vmatprep.subr.mxu0 %v2007
        %3302 = vmatpush1.msra.mxu0 %v2006
        %3303 = vmatprep.subr.mxu0 %v2011
        %3304 = vmatpush1.msra.mxu0 %v2010
        %3305 = vmatprep.subr.mxu0 %v2015
        %3306 = vmatpush1.msra.mxu0 %v2014
        %3307 = vmatprep.subr.mxu0 %v2019
        %3308 = vmatpush1.msra.mxu0 %v2018
        %3309 = vmatprep.subr.mxu0 %v2023
        %3310 = vmatpush1.msra.mxu0 %v2022
        %3311 = vmatprep.subr.mxu0 %v2027
        %3312 = vmatpush1.msra.mxu0 %v2026
        %3313 = vmatprep.subr.mxu0 %v2031
        %3314 = vmatpush1.msra.mxu0 %v2030
        %3315 = vmatprep.subr.mxu0 %v2035
        %3316 = vmatpush1.msra.mxu0 %v2034
        %3317 = vmatprep.subr.mxu0 %v2039
        %3318 = vmatpush1.msra.mxu0 %v2038
        %3319 = vmatprep.subr.mxu0 0.0
        %3320 = vmatpush1.msra.mxu0 0.0
        %3321 = vmatprep.subr.mxu0 0.0
        %3322 = vmatpush1.msra.mxu0 0.0
        %3323 = vmatprep.subr.mxu0 0.0
        %3324 = vmatpush1.msra.mxu0 0.0
        %3325 = vmatprep.subr.mxu0 0.0
        %3326 = vmatpush1.msra.mxu0 0.0
        %3327 = vmatprep.subr.mxu0 0.0
        %3328 = vmatpush1.msra.mxu0 0.0
        %3329 = vmatprep.subr.mxu0 0.0
        %3330 = vmatpush1.msra.mxu0 0.0
        %3331 = vmatprep.subr.mxu0 0.0
        %3332 = vmatpush1.msra.mxu0 0.0
        %3333 = vmatprep.subr.mxu0 0.0
        %3334 = vmatpush1.msra.mxu0 0.0
        %3335 = vmatprep.subr.mxu0 0.0
        %3336 = vmatpush1.msra.mxu0 0.0
        %3337 = vmatprep.subr.mxu0 0.0
        %3338 = vmatpush1.msra.mxu0 0.0
        %3339 = vmatprep.subr.mxu0 0.0
        %3340 = vmatpush1.msra.mxu0 0.0
        %3341 = vmatprep.subr.mxu0 0.0
        %3342 = vmatpush1.msra.mxu0 0.0
        %3343 = vmatprep.subr.mxu0 0.0
        %3344 = vmatpush1.msra.mxu0 0.0
        %3345 = vmatprep.subr.mxu0 0.0
        %3346 = vmatpush1.msra.mxu0 0.0
        %3347 = vmatprep.subr.mxu0 0.0
        %3348 = vmatpush1.msra.mxu0 0.0
        %3349 = vmatprep.subr.mxu0 0.0
        %3350 = vmatpush1.msra.mxu0 0.0
        %3351 = vmatprep.mubr.f32.mxu0 0.0
        %3352 = vmatmul.mubr.f32.gmra.mrb[0].mxu0 %v3213
        %v3353 = vpop.f32.mrb[0].mxu0
        %v3354 = vadd.f32 0.0, %v3353
        %v3355 = vpop.f32.mrb[0].mxu0
        %v3356 = vadd.f32 0.0, %v3355
        %3357 = vdwg.mxu0
        %v3362 = vcombine.low %v3283, %v3285
        %v3363 = vcombine.low %v3354, %v3356
        %v3365 = vunpack.c.l.s4 1966171168
        %v3366 = vunpack.c.0.s8 %v3365
        %v3367 = vlaneseq
        %v3368 = vshrl.u32 %v3367, 7
        %v3369 = vsub.s32 %v3366, %v3368
        %v3370 = vrot.slane %v3362, %v3369
        %v3372 = vunpack.c.l.s4 1966171168
        %v3373 = vunpack.c.0.s8 %v3372
        %v3374 = vlaneseq
        %v3375 = vshrl.u32 %v3374, 7
        %v3376 = vsub.s32 %v3373, %v3375
        %v3377 = vrot.slane %v3363, %v3376
        %v3378 = vcombine.low %v3370, %v3377
        %v3380 = vunpack.c.l.s4 1966171168
        %v3381 = vunpack.c.0.s8 %v3380
        %v3382 = vlaneseq
        %v3383 = vshrl.u32 %v3382, 7
        %v3384 = vsub.s32 %v3381, %v3383
        %v3385 = vrot.slane %v3378, %v3384
        %v3387 = vadd.f32 %v3215, %v3385
        %v3388 = vxor.u32 %v3387, 2147483648
        %v3389 = vmul.f32 %v3388, 1.442695
        %v3390 = vpow.pop %v3389
        %v3391 = vadd.f32 %v3390, 1.0
        %v3392 = vrcp.pop %v3391
        %v3393 = vmul.f32 1.0, %v3392
        %v3395 = vrot.slane %v3387, 3
        %v3397 = vtanh.pop %v3395
        %v3399 = vrot.slane %v3393, 1
        %v3401 = vmul.f32 %v3399, %v3212
        %v3402 = vmul.f32 %v3393, %v3397
        %v3403 = vadd.f32 %v3401, %v3402
        %v3404 = vtanh.pop %v3403
        %v3405 = vrot.slane %v3393, 2
        %v3407 = vmul.f32 %v3405, %v3404
        %v3408 = vsel %vm1718, %v1517, %v3403
        %v3409 = vsel %vm1718, %v1521, %v3407
        %s3410 = scalar_lea.vmem %s249, 39 [#allocation2]
        %v3411 = vld [vmem:[%s3410] ss:$8 sm:$0xf]
        %3412 = vmatprep.subr.mxu0 %v1977
        %3413 = vmatpush1.msra.mxu0 %v1976
        %3414 = vmatprep.subr.mxu0 %v1981
        %3415 = vmatpush1.msra.mxu0 %v1980
        %3416 = vmatprep.subr.mxu0 %v1985
        %3417 = vmatpush1.msra.mxu0 %v1984
        %3418 = vmatprep.subr.mxu0 %v1989
        %3419 = vmatpush1.msra.mxu0 %v1988
        %3420 = vmatprep.subr.mxu0 %v1993
        %3421 = vmatpush1.msra.mxu0 %v1992
        %3422 = vmatprep.subr.mxu0 %v1997
        %3423 = vmatpush1.msra.mxu0 %v1996
        %3424 = vmatprep.subr.mxu0 %v2001
        %3425 = vmatpush1.msra.mxu0 %v2000
        %3426 = vmatprep.subr.mxu0 %v2005
        %3427 = vmatpush1.msra.mxu0 %v2004
        %3428 = vmatprep.subr.mxu0 %v2009
        %3429 = vmatpush1.msra.mxu0 %v2008
        %3430 = vmatprep.subr.mxu0 %v2013
        %3431 = vmatpush1.msra.mxu0 %v2012
        %3432 = vmatprep.subr.mxu0 %v2017
        %3433 = vmatpush1.msra.mxu0 %v2016
        %3434 = vmatprep.subr.mxu0 %v2021
        %3435 = vmatpush1.msra.mxu0 %v2020
        %3436 = vmatprep.subr.mxu0 %v2025
        %3437 = vmatpush1.msra.mxu0 %v2024
        %3438 = vmatprep.subr.mxu0 %v2029
        %3439 = vmatpush1.msra.mxu0 %v2028
        %3440 = vmatprep.subr.mxu0 %v2033
        %3441 = vmatpush1.msra.mxu0 %v2032
        %3442 = vmatprep.subr.mxu0 %v2037
        %3443 = vmatpush1.msra.mxu0 %v2036
        %3444 = vmatprep.subr.mxu0 0.0
        %3445 = vmatpush1.msra.mxu0 0.0
        %3446 = vmatprep.subr.mxu0 0.0
        %3447 = vmatpush1.msra.mxu0 0.0
        %3448 = vmatprep.subr.mxu0 0.0
        %3449 = vmatpush1.msra.mxu0 0.0
        %3450 = vmatprep.subr.mxu0 0.0
        %3451 = vmatpush1.msra.mxu0 0.0
        %3452 = vmatprep.subr.mxu0 0.0
        %3453 = vmatpush1.msra.mxu0 0.0
        %3454 = vmatprep.subr.mxu0 0.0
        %3455 = vmatpush1.msra.mxu0 0.0
        %3456 = vmatprep.subr.mxu0 0.0
        %3457 = vmatpush1.msra.mxu0 0.0
        %3458 = vmatprep.subr.mxu0 0.0
        %3459 = vmatpush1.msra.mxu0 0.0
        %3460 = vmatprep.subr.mxu0 0.0
        %3461 = vmatpush1.msra.mxu0 0.0
        %3462 = vmatprep.subr.mxu0 0.0
        %3463 = vmatpush1.msra.mxu0 0.0
        %3464 = vmatprep.subr.mxu0 0.0
        %3465 = vmatpush1.msra.mxu0 0.0
        %3466 = vmatprep.subr.mxu0 0.0
        %3467 = vmatpush1.msra.mxu0 0.0
        %3468 = vmatprep.subr.mxu0 0.0
        %3469 = vmatpush1.msra.mxu0 0.0
        %3470 = vmatprep.subr.mxu0 0.0
        %3471 = vmatpush1.msra.mxu0 0.0
        %3472 = vmatprep.subr.mxu0 0.0
        %3473 = vmatpush1.msra.mxu0 0.0
        %3474 = vmatprep.subr.mxu0 0.0
        %3475 = vmatpush1.msra.mxu0 0.0
        %3476 = vmatprep.mubr.f32.mxu0 0.0
        %3477 = vmatmul.mubr.f32.gmra.mrb[0].mxu0 %v3409
        %v3478 = vpop.f32.mrb[0].mxu0
        %v3479 = vadd.f32 0.0, %v3478
        %v3480 = vpop.f32.mrb[0].mxu0
        %v3481 = vadd.f32 0.0, %v3480
        %3482 = vdwg.mxu0
        %3483 = vmatprep.subr.mxu0 %v1979
        %3484 = vmatpush1.msra.mxu0 %v1978
        %3485 = vmatprep.subr.mxu0 %v1983
        %3486 = vmatpush1.msra.mxu0 %v1982
        %3487 = vmatprep.subr.mxu0 %v1987
        %3488 = vmatpush1.msra.mxu0 %v1986
        %3489 = vmatprep.subr.mxu0 %v1991
        %3490 = vmatpush1.msra.mxu0 %v1990
        %3491 = vmatprep.subr.mxu0 %v1995
        %3492 = vmatpush1.msra.mxu0 %v1994
        %3493 = vmatprep.subr.mxu0 %v1999
        %3494 = vmatpush1.msra.mxu0 %v1998
        %3495 = vmatprep.subr.mxu0 %v2003
        %3496 = vmatpush1.msra.mxu0 %v2002
        %3497 = vmatprep.subr.mxu0 %v2007
        %3498 = vmatpush1.msra.mxu0 %v2006
        %3499 = vmatprep.subr.mxu0 %v2011
        %3500 = vmatpush1.msra.mxu0 %v2010
        %3501 = vmatprep.subr.mxu0 %v2015
        %3502 = vmatpush1.msra.mxu0 %v2014
        %3503 = vmatprep.subr.mxu0 %v2019
        %3504 = vmatpush1.msra.mxu0 %v2018
        %3505 = vmatprep.subr.mxu0 %v2023
        %3506 = vmatpush1.msra.mxu0 %v2022
        %3507 = vmatprep.subr.mxu0 %v2027
        %3508 = vmatpush1.msra.mxu0 %v2026
        %3509 = vmatprep.subr.mxu0 %v2031
        %3510 = vmatpush1.msra.mxu0 %v2030
        %3511 = vmatprep.subr.mxu0 %v2035
        %3512 = vmatpush1.msra.mxu0 %v2034
        %3513 = vmatprep.subr.mxu0 %v2039
        %3514 = vmatpush1.msra.mxu0 %v2038
        %3515 = vmatprep.subr.mxu0 0.0
        %3516 = vmatpush1.msra.mxu0 0.0
        %3517 = vmatprep.subr.mxu0 0.0
        %3518 = vmatpush1.msra.mxu0 0.0
        %3519 = vmatprep.subr.mxu0 0.0
        %3520 = vmatpush1.msra.mxu0 0.0
        %3521 = vmatprep.subr.mxu0 0.0
        %3522 = vmatpush1.msra.mxu0 0.0
        %3523 = vmatprep.subr.mxu0 0.0
        %3524 = vmatpush1.msra.mxu0 0.0
        %3525 = vmatprep.subr.mxu0 0.0
        %3526 = vmatpush1.msra.mxu0 0.0
        %3527 = vmatprep.subr.mxu0 0.0
        %3528 = vmatpush1.msra.mxu0 0.0
        %3529 = vmatprep.subr.mxu0 0.0
        %3530 = vmatpush1.msra.mxu0 0.0
        %3531 = vmatprep.subr.mxu0 0.0
        %3532 = vmatpush1.msra.mxu0 0.0
        %3533 = vmatprep.subr.mxu0 0.0
        %3534 = vmatpush1.msra.mxu0 0.0
        %3535 = vmatprep.subr.mxu0 0.0
        %3536 = vmatpush1.msra.mxu0 0.0
        %3537 = vmatprep.subr.mxu0 0.0
        %3538 = vmatpush1.msra.mxu0 0.0
        %3539 = vmatprep.subr.mxu0 0.0
        %3540 = vmatpush1.msra.mxu0 0.0
        %3541 = vmatprep.subr.mxu0 0.0
        %3542 = vmatpush1.msra.mxu0 0.0
        %3543 = vmatprep.subr.mxu0 0.0
        %3544 = vmatpush1.msra.mxu0 0.0
        %3545 = vmatprep.subr.mxu0 0.0
        %3546 = vmatpush1.msra.mxu0 0.0
        %3547 = vmatprep.mubr.f32.mxu0 0.0
        %3548 = vmatmul.mubr.f32.gmra.mrb[0].mxu0 %v3409
        %v3549 = vpop.f32.mrb[0].mxu0
        %v3550 = vadd.f32 0.0, %v3549
        %v3551 = vpop.f32.mrb[0].mxu0
        %v3552 = vadd.f32 0.0, %v3551
        %3553 = vdwg.mxu0
        %v3558 = vcombine.low %v3479, %v3481
        %v3559 = vcombine.low %v3550, %v3552
        %v3561 = vunpack.c.l.s4 1966171168
        %v3562 = vunpack.c.0.s8 %v3561
        %v3563 = vlaneseq
        %v3564 = vshrl.u32 %v3563, 7
        %v3565 = vsub.s32 %v3562, %v3564
        %v3566 = vrot.slane %v3558, %v3565
        %v3568 = vunpack.c.l.s4 1966171168
        %v3569 = vunpack.c.0.s8 %v3568
        %v3570 = vlaneseq
        %v3571 = vshrl.u32 %v3570, 7
        %v3572 = vsub.s32 %v3569, %v3571
        %v3573 = vrot.slane %v3559, %v3572
        %v3574 = vcombine.low %v3566, %v3573
        %v3576 = vunpack.c.l.s4 1966171168
        %v3577 = vunpack.c.0.s8 %v3576
        %v3578 = vlaneseq
        %v3579 = vshrl.u32 %v3578, 7
        %v3580 = vsub.s32 %v3577, %v3579
        %v3581 = vrot.slane %v3574, %v3580
        %v3583 = vadd.f32 %v3411, %v3581
        %v3584 = vxor.u32 %v3583, 2147483648
        %v3585 = vmul.f32 %v3584, 1.442695
        %v3586 = vpow.pop %v3585
        %v3587 = vadd.f32 %v3586, 1.0
        %v3588 = vrcp.pop %v3587
        %v3589 = vmul.f32 1.0, %v3588
        %v3591 = vrot.slane %v3583, 3
        %v3593 = vtanh.pop %v3591
        %v3595 = vrot.slane %v3589, 1
        %v3597 = vmul.f32 %v3595, %v3408
        %v3598 = vmul.f32 %v3589, %v3593
        %v3599 = vadd.f32 %v3597, %v3598
        %v3600 = vtanh.pop %v3599
        %v3601 = vrot.slane %v3589, 2
        %v3603 = vmul.f32 %v3601, %v3600
        %v3604 = vsel %vm1718, %v1517, %v3599
        %v3605 = vsel %vm1718, %v1521, %v3603
        %v3607 = vlaneseq
        %v3608 = vshrl.u32 %v3607, 7
        %v3609 = vsub.s32 0, %v3608
        %v3610 = vrot.slane %v2429, %v3609
        %v3613 = vlaneseq
        %v3614 = vshrl.u32 %v3613, 7
        %v3615 = vsub.s32 0, %v3614
        %v3616 = vrot.slane %v2625, %v3615
        %v3619 = vlaneseq
        %v3620 = vshrl.u32 %v3619, 7
        %v3621 = vsub.s32 0, %v3620
        %v3622 = vrot.slane %v2821, %v3621
        %v3625 = vlaneseq
        %v3626 = vshrl.u32 %v3625, 7
        %v3627 = vsub.s32 0, %v3626
        %v3628 = vrot.slane %v3017, %v3627
        %v3631 = vlaneseq
        %v3632 = vshrl.u32 %v3631, 7
        %v3633 = vsub.s32 0, %v3632
        %v3634 = vrot.slane %v3213, %v3633
        %v3637 = vlaneseq
        %v3638 = vshrl.u32 %v3637, 7
        %v3639 = vsub.s32 0, %v3638
        %v3640 = vrot.slane %v3409, %v3639
        %v3643 = vlaneseq
        %v3644 = vshrl.u32 %v3643, 7
        %v3645 = vsub.s32 0, %v3644
        %v3646 = vrot.slane %v3605, %v3645
        %v3648 = vsel %vm1959, %v2233, %v3610
        %v3649 = vsel %vm1961, %v3648, %v3616
        %v3650 = vsel %vm1963, %v3649, %v3622
        %v3651 = vsel %vm1965, %v3650, %v3628
        %v3652 = vsel %vm1967, %v3651, %v3634
        %v3653 = vsel %vm1969, %v3652, %v3640
        %v3654 = vsel %vm1971, %v3653, %v3646
        %3655 = vst [vmem:[%s277 + $0x8] sm:$0xff] %v3654
        %s3656 = scalar_lea.vmem %s249, 64 [#allocation2]
        %v3657 = vld [vmem:[%s3656] ss:$8 sm:$0xf]
        %v3658 = vld [vmem:[#allocation5] sm:$0xff]
        %v3659 = vld [vmem:[#allocation5 + $0x8] sm:$0xff]
        %v3660 = vld [vmem:[#allocation5 + $0x10] sm:$0xff]
        %v3661 = vld [vmem:[#allocation5 + $0x18] sm:$0xff]
        %v3662 = vld [vmem:[#allocation5 + $0x20] sm:$0xff]
        %v3663 = vld [vmem:[#allocation5 + $0x28] sm:$0xff]
        %v3664 = vld [vmem:[#allocation5 + $0x30] sm:$0xff]
        %v3665 = vld [vmem:[#allocation5 + $0x38] sm:$0xff]
        %v3666 = vld [vmem:[#allocation5 + $0x40] sm:$0xff]
        %v3667 = vld [vmem:[#allocation5 + $0x48] sm:$0xff]
        %v3668 = vld [vmem:[#allocation5 + $0x50] sm:$0xff]
        %v3669 = vld [vmem:[#allocation5 + $0x58] sm:$0xff]
        %v3670 = vld [vmem:[#allocation5 + $0x60] sm:$0xff]
        %v3671 = vld [vmem:[#allocation5 + $0x68] sm:$0xff]
        %v3672 = vld [vmem:[#allocation5 + $0x70] sm:$0xff]
        %v3673 = vld [vmem:[#allocation5 + $0x78] sm:$0xff]
        %v3674 = vld [vmem:[#allocation5 + $0x80] sm:$0xff]
        %v3675 = vld [vmem:[#allocation5 + $0x88] sm:$0xff]
        %v3676 = vld [vmem:[#allocation5 + $0x90] sm:$0xff]
        %v3677 = vld [vmem:[#allocation5 + $0x98] sm:$0xff]
        %v3678 = vld [vmem:[#allocation5 + $0xa0] sm:$0xff]
        %v3679 = vld [vmem:[#allocation5 + $0xa8] sm:$0xff]
        %v3680 = vld [vmem:[#allocation5 + $0xb0] sm:$0xff]
        %v3681 = vld [vmem:[#allocation5 + $0xb8] sm:$0xff]
        %v3682 = vld [vmem:[#allocation5 + $0xc0] sm:$0xff]
        %v3683 = vld [vmem:[#allocation5 + $0xc8] sm:$0xff]
        %v3684 = vld [vmem:[#allocation5 + $0xd0] sm:$0xff]
        %v3685 = vld [vmem:[#allocation5 + $0xd8] sm:$0xff]
        %v3686 = vld [vmem:[#allocation5 + $0xe0] sm:$0xff]
        %v3687 = vld [vmem:[#allocation5 + $0xe8] sm:$0xff]
        %v3688 = vld [vmem:[#allocation5 + $0xf0] sm:$0xff]
        %v3689 = vld [vmem:[#allocation5 + $0xf8] sm:$0xff]
        %v3690 = vld [vmem:[#allocation5 + $0x100] sm:$0xff]
        %v3691 = vld [vmem:[#allocation5 + $0x108] sm:$0xff]
        %v3692 = vld [vmem:[#allocation5 + $0x110] sm:$0xff]
        %v3693 = vld [vmem:[#allocation5 + $0x118] sm:$0xff]
        %v3694 = vld [vmem:[#allocation5 + $0x120] sm:$0xff]
        %v3695 = vld [vmem:[#allocation5 + $0x128] sm:$0xff]
        %v3696 = vld [vmem:[#allocation5 + $0x130] sm:$0xff]
        %v3697 = vld [vmem:[#allocation5 + $0x138] sm:$0xff]
        %v3698 = vld [vmem:[#allocation5 + $0x140] sm:$0xff]
        %v3699 = vld [vmem:[#allocation5 + $0x148] sm:$0xff]
        %v3700 = vld [vmem:[#allocation5 + $0x150] sm:$0xff]
        %v3701 = vld [vmem:[#allocation5 + $0x158] sm:$0xff]
        %v3702 = vld [vmem:[#allocation5 + $0x160] sm:$0xff]
        %v3703 = vld [vmem:[#allocation5 + $0x168] sm:$0xff]
        %v3704 = vld [vmem:[#allocation5 + $0x170] sm:$0xff]
        %v3705 = vld [vmem:[#allocation5 + $0x178] sm:$0xff]
        %v3706 = vld [vmem:[#allocation5 + $0x180] sm:$0xff]
        %v3707 = vld [vmem:[#allocation5 + $0x188] sm:$0xff]
        %v3708 = vld [vmem:[#allocation5 + $0x190] sm:$0xff]
        %v3709 = vld [vmem:[#allocation5 + $0x198] sm:$0xff]
        %v3710 = vld [vmem:[#allocation5 + $0x1a0] sm:$0xff]
        %v3711 = vld [vmem:[#allocation5 + $0x1a8] sm:$0xff]
        %v3712 = vld [vmem:[#allocation5 + $0x1b0] sm:$0xff]
        %v3713 = vld [vmem:[#allocation5 + $0x1b8] sm:$0xff]
        %v3714 = vld [vmem:[#allocation5 + $0x1c0] sm:$0xff]
        %v3715 = vld [vmem:[#allocation5 + $0x1c8] sm:$0xff]
        %v3716 = vld [vmem:[#allocation5 + $0x1d0] sm:$0xff]
        %v3717 = vld [vmem:[#allocation5 + $0x1d8] sm:$0xff]
        %v3718 = vld [vmem:[#allocation5 + $0x1e0] sm:$0xff]
        %v3719 = vld [vmem:[#allocation5 + $0x1e8] sm:$0xff]
        %v3720 = vld [vmem:[#allocation5 + $0x1f0] sm:$0xff]
        %v3721 = vld [vmem:[#allocation5 + $0x1f8] sm:$0xff]
        %3722 = vmatprep.subr.mxu0 %v3659
        %3723 = vmatpush1.msra.mxu0 %v3658
        %3724 = vmatprep.subr.mxu0 %v3663
        %3725 = vmatpush1.msra.mxu0 %v3662
        %3726 = vmatprep.subr.mxu0 %v3667
        %3727 = vmatpush1.msra.mxu0 %v3666
        %3728 = vmatprep.subr.mxu0 %v3671
        %3729 = vmatpush1.msra.mxu0 %v3670
        %3730 = vmatprep.subr.mxu0 %v3675
        %3731 = vmatpush1.msra.mxu0 %v3674
        %3732 = vmatprep.subr.mxu0 %v3679
        %3733 = vmatpush1.msra.mxu0 %v3678
        %3734 = vmatprep.subr.mxu0 %v3683
        %3735 = vmatpush1.msra.mxu0 %v3682
        %3736 = vmatprep.subr.mxu0 %v3687
        %3737 = vmatpush1.msra.mxu0 %v3686
        %3738 = vmatprep.subr.mxu0 %v3691
        %3739 = vmatpush1.msra.mxu0 %v3690
        %3740 = vmatprep.subr.mxu0 %v3695
        %3741 = vmatpush1.msra.mxu0 %v3694
        %3742 = vmatprep.subr.mxu0 %v3699
        %3743 = vmatpush1.msra.mxu0 %v3698
        %3744 = vmatprep.subr.mxu0 %v3703
        %3745 = vmatpush1.msra.mxu0 %v3702
        %3746 = vmatprep.subr.mxu0 %v3707
        %3747 = vmatpush1.msra.mxu0 %v3706
        %3748 = vmatprep.subr.mxu0 %v3711
        %3749 = vmatpush1.msra.mxu0 %v3710
        %3750 = vmatprep.subr.mxu0 %v3715
        %3751 = vmatpush1.msra.mxu0 %v3714
        %3752 = vmatprep.subr.mxu0 %v3719
        %3753 = vmatpush1.msra.mxu0 %v3718
        %3754 = vmatprep.subr.mxu0 0.0
        %3755 = vmatpush1.msra.mxu0 0.0
        %3756 = vmatprep.subr.mxu0 0.0
        %3757 = vmatpush1.msra.mxu0 0.0
        %3758 = vmatprep.subr.mxu0 0.0
        %3759 = vmatpush1.msra.mxu0 0.0
        %3760 = vmatprep.subr.mxu0 0.0
        %3761 = vmatpush1.msra.mxu0 0.0
        %3762 = vmatprep.subr.mxu0 0.0
        %3763 = vmatpush1.msra.mxu0 0.0
        %3764 = vmatprep.subr.mxu0 0.0
        %3765 = vmatpush1.msra.mxu0 0.0
        %3766 = vmatprep.subr.mxu0 0.0
        %3767 = vmatpush1.msra.mxu0 0.0
        %3768 = vmatprep.subr.mxu0 0.0
        %3769 = vmatpush1.msra.mxu0 0.0
        %3770 = vmatprep.subr.mxu0 0.0
        %3771 = vmatpush1.msra.mxu0 0.0
        %3772 = vmatprep.subr.mxu0 0.0
        %3773 = vmatpush1.msra.mxu0 0.0
        %3774 = vmatprep.subr.mxu0 0.0
        %3775 = vmatpush1.msra.mxu0 0.0
        %3776 = vmatprep.subr.mxu0 0.0
        %3777 = vmatpush1.msra.mxu0 0.0
        %3778 = vmatprep.subr.mxu0 0.0
        %3779 = vmatpush1.msra.mxu0 0.0
        %3780 = vmatprep.subr.mxu0 0.0
        %3781 = vmatpush1.msra.mxu0 0.0
        %3782 = vmatprep.subr.mxu0 0.0
        %3783 = vmatpush1.msra.mxu0 0.0
        %3784 = vmatprep.subr.mxu0 0.0
        %3785 = vmatpush1.msra.mxu0 0.0
        %3786 = vmatprep.mubr.f32.mxu0 0.0
        %3787 = vmatmul.mubr.f32.gmra.mrb[0].mxu0 %v3605
        %v3788 = vpop.f32.mrb[0].mxu0
        %v3789 = vadd.f32 0.0, %v3788
        %v3790 = vpop.f32.mrb[0].mxu0
        %v3791 = vadd.f32 0.0, %v3790
        %3792 = vdwg.mxu0
        %3793 = vmatprep.subr.mxu0 %v3661
        %3794 = vmatpush1.msra.mxu0 %v3660
        %3795 = vmatprep.subr.mxu0 %v3665
        %3796 = vmatpush1.msra.mxu0 %v3664
        %3797 = vmatprep.subr.mxu0 %v3669
        %3798 = vmatpush1.msra.mxu0 %v3668
        %3799 = vmatprep.subr.mxu0 %v3673
        %3800 = vmatpush1.msra.mxu0 %v3672
        %3801 = vmatprep.subr.mxu0 %v3677
        %3802 = vmatpush1.msra.mxu0 %v3676
        %3803 = vmatprep.subr.mxu0 %v3681
        %3804 = vmatpush1.msra.mxu0 %v3680
        %3805 = vmatprep.subr.mxu0 %v3685
        %3806 = vmatpush1.msra.mxu0 %v3684
        %3807 = vmatprep.subr.mxu0 %v3689
        %3808 = vmatpush1.msra.mxu0 %v3688
        %3809 = vmatprep.subr.mxu0 %v3693
        %3810 = vmatpush1.msra.mxu0 %v3692
        %3811 = vmatprep.subr.mxu0 %v3697
        %3812 = vmatpush1.msra.mxu0 %v3696
        %3813 = vmatprep.subr.mxu0 %v3701
        %3814 = vmatpush1.msra.mxu0 %v3700
        %3815 = vmatprep.subr.mxu0 %v3705
        %3816 = vmatpush1.msra.mxu0 %v3704
        %3817 = vmatprep.subr.mxu0 %v3709
        %3818 = vmatpush1.msra.mxu0 %v3708
        %3819 = vmatprep.subr.mxu0 %v3713
        %3820 = vmatpush1.msra.mxu0 %v3712
        %3821 = vmatprep.subr.mxu0 %v3717
        %3822 = vmatpush1.msra.mxu0 %v3716
        %3823 = vmatprep.subr.mxu0 %v3721
        %3824 = vmatpush1.msra.mxu0 %v3720
        %3825 = vmatprep.subr.mxu0 0.0
        %3826 = vmatpush1.msra.mxu0 0.0
        %3827 = vmatprep.subr.mxu0 0.0
        %3828 = vmatpush1.msra.mxu0 0.0
        %3829 = vmatprep.subr.mxu0 0.0
        %3830 = vmatpush1.msra.mxu0 0.0
        %3831 = vmatprep.subr.mxu0 0.0
        %3832 = vmatpush1.msra.mxu0 0.0
        %3833 = vmatprep.subr.mxu0 0.0
        %3834 = vmatpush1.msra.mxu0 0.0
        %3835 = vmatprep.subr.mxu0 0.0
        %3836 = vmatpush1.msra.mxu0 0.0
        %3837 = vmatprep.subr.mxu0 0.0
        %3838 = vmatpush1.msra.mxu0 0.0
        %3839 = vmatprep.subr.mxu0 0.0
        %3840 = vmatpush1.msra.mxu0 0.0
        %3841 = vmatprep.subr.mxu0 0.0
        %3842 = vmatpush1.msra.mxu0 0.0
        %3843 = vmatprep.subr.mxu0 0.0
        %3844 = vmatpush1.msra.mxu0 0.0
        %3845 = vmatprep.subr.mxu0 0.0
        %3846 = vmatpush1.msra.mxu0 0.0
        %3847 = vmatprep.subr.mxu0 0.0
        %3848 = vmatpush1.msra.mxu0 0.0
        %3849 = vmatprep.subr.mxu0 0.0
        %3850 = vmatpush1.msra.mxu0 0.0
        %3851 = vmatprep.subr.mxu0 0.0
        %3852 = vmatpush1.msra.mxu0 0.0
        %3853 = vmatprep.subr.mxu0 0.0
        %3854 = vmatpush1.msra.mxu0 0.0
        %3855 = vmatprep.subr.mxu0 0.0
        %3856 = vmatpush1.msra.mxu0 0.0
        %3857 = vmatprep.mubr.f32.mxu0 0.0
        %3858 = vmatmul.mubr.f32.gmra.mrb[0].mxu0 %v3605
        %v3859 = vpop.f32.mrb[0].mxu0
        %v3860 = vadd.f32 0.0, %v3859
        %v3861 = vpop.f32.mrb[0].mxu0
        %v3862 = vadd.f32 0.0, %v3861
        %3863 = vdwg.mxu0
        %v3868 = vcombine.low %v3789, %v3791
        %v3869 = vcombine.low %v3860, %v3862
        %v3871 = vunpack.c.l.s4 1966171168
        %v3872 = vunpack.c.0.s8 %v3871
        %v3873 = vlaneseq
        %v3874 = vshrl.u32 %v3873, 7
        %v3875 = vsub.s32 %v3872, %v3874
        %v3876 = vrot.slane %v3868, %v3875
        %v3878 = vunpack.c.l.s4 1966171168
        %v3879 = vunpack.c.0.s8 %v3878
        %v3880 = vlaneseq
        %v3881 = vshrl.u32 %v3880, 7
        %v3882 = vsub.s32 %v3879, %v3881
        %v3883 = vrot.slane %v3869, %v3882
        %v3884 = vcombine.low %v3876, %v3883
        %v3886 = vunpack.c.l.s4 1966171168
        %v3887 = vunpack.c.0.s8 %v3886
        %v3888 = vlaneseq
        %v3889 = vshrl.u32 %v3888, 7
        %v3890 = vsub.s32 %v3887, %v3889
        %v3891 = vrot.slane %v3884, %v3890
        %v3893 = vadd.f32 %v3657, %v3891
        %v3894 = vxor.u32 %v3893, 2147483648
        %v3895 = vmul.f32 %v3894, 1.442695
        %v3896 = vpow.pop %v3895
        %v3897 = vadd.f32 %v3896, 1.0
        %v3898 = vrcp.pop %v3897
        %v3899 = vmul.f32 1.0, %v3898
        %v3901 = vrot.slane %v3893, 3
        %v3903 = vtanh.pop %v3901
        %v3905 = vrot.slane %v3899, 1
        %v3907 = vmul.f32 %v3905, %v3604
        %v3908 = vmul.f32 %v3899, %v3903
        %v3909 = vadd.f32 %v3907, %v3908
        %v3910 = vtanh.pop %v3909
        %v3911 = vrot.slane %v3899, 2
        %v3913 = vmul.f32 %v3911, %v3910
        %v3914 = vsel %vm1718, %v1517, %v3909
        %v3915 = vsel %vm1718, %v1521, %v3913
        %s3916 = scalar_lea.vmem %s249, 65 [#allocation2]
        %v3917 = vld [vmem:[%s3916] ss:$8 sm:$0xf]
        %3918 = vmatprep.subr.mxu0 %v3659
        %3919 = vmatpush1.msra.mxu0 %v3658
        %3920 = vmatprep.subr.mxu0 %v3663
        %3921 = vmatpush1.msra.mxu0 %v3662
        %3922 = vmatprep.subr.mxu0 %v3667
        %3923 = vmatpush1.msra.mxu0 %v3666
        %3924 = vmatprep.subr.mxu0 %v3671
        %3925 = vmatpush1.msra.mxu0 %v3670
        %3926 = vmatprep.subr.mxu0 %v3675
        %3927 = vmatpush1.msra.mxu0 %v3674
        %3928 = vmatprep.subr.mxu0 %v3679
        %3929 = vmatpush1.msra.mxu0 %v3678
        %3930 = vmatprep.subr.mxu0 %v3683
        %3931 = vmatpush1.msra.mxu0 %v3682
        %3932 = vmatprep.subr.mxu0 %v3687
        %3933 = vmatpush1.msra.mxu0 %v3686
        %3934 = vmatprep.subr.mxu0 %v3691
        %3935 = vmatpush1.msra.mxu0 %v3690
        %3936 = vmatprep.subr.mxu0 %v3695
        %3937 = vmatpush1.msra.mxu0 %v3694
        %3938 = vmatprep.subr.mxu0 %v3699
        %3939 = vmatpush1.msra.mxu0 %v3698
        %3940 = vmatprep.subr.mxu0 %v3703
        %3941 = vmatpush1.msra.mxu0 %v3702
        %3942 = vmatprep.subr.mxu0 %v3707
        %3943 = vmatpush1.msra.mxu0 %v3706
        %3944 = vmatprep.subr.mxu0 %v3711
        %3945 = vmatpush1.msra.mxu0 %v3710
        %3946 = vmatprep.subr.mxu0 %v3715
        %3947 = vmatpush1.msra.mxu0 %v3714
        %3948 = vmatprep.subr.mxu0 %v3719
        %3949 = vmatpush1.msra.mxu0 %v3718
        %3950 = vmatprep.subr.mxu0 0.0
        %3951 = vmatpush1.msra.mxu0 0.0
        %3952 = vmatprep.subr.mxu0 0.0
        %3953 = vmatpush1.msra.mxu0 0.0
        %3954 = vmatprep.subr.mxu0 0.0
        %3955 = vmatpush1.msra.mxu0 0.0
        %3956 = vmatprep.subr.mxu0 0.0
        %3957 = vmatpush1.msra.mxu0 0.0
        %3958 = vmatprep.subr.mxu0 0.0
        %3959 = vmatpush1.msra.mxu0 0.0
        %3960 = vmatprep.subr.mxu0 0.0
        %3961 = vmatpush1.msra.mxu0 0.0
        %3962 = vmatprep.subr.mxu0 0.0
        %3963 = vmatpush1.msra.mxu0 0.0
        %3964 = vmatprep.subr.mxu0 0.0
        %3965 = vmatpush1.msra.mxu0 0.0
        %3966 = vmatprep.subr.mxu0 0.0
        %3967 = vmatpush1.msra.mxu0 0.0
        %3968 = vmatprep.subr.mxu0 0.0
        %3969 = vmatpush1.msra.mxu0 0.0
        %3970 = vmatprep.subr.mxu0 0.0
        %3971 = vmatpush1.msra.mxu0 0.0
        %3972 = vmatprep.subr.mxu0 0.0
        %3973 = vmatpush1.msra.mxu0 0.0
        %3974 = vmatprep.subr.mxu0 0.0
        %3975 = vmatpush1.msra.mxu0 0.0
        %3976 = vmatprep.subr.mxu0 0.0
        %3977 = vmatpush1.msra.mxu0 0.0
        %3978 = vmatprep.subr.mxu0 0.0
        %3979 = vmatpush1.msra.mxu0 0.0
        %3980 = vmatprep.subr.mxu0 0.0
        %3981 = vmatpush1.msra.mxu0 0.0
        %3982 = vmatprep.mubr.f32.mxu0 0.0
        %3983 = vmatmul.mubr.f32.gmra.mrb[0].mxu0 %v3915
        %v3984 = vpop.f32.mrb[0].mxu0
        %v3985 = vadd.f32 0.0, %v3984
        %v3986 = vpop.f32.mrb[0].mxu0
        %v3987 = vadd.f32 0.0, %v3986
        %3988 = vdwg.mxu0
        %3989 = vmatprep.subr.mxu0 %v3661
        %3990 = vmatpush1.msra.mxu0 %v3660
        %3991 = vmatprep.subr.mxu0 %v3665
        %3992 = vmatpush1.msra.mxu0 %v3664
        %3993 = vmatprep.subr.mxu0 %v3669
        %3994 = vmatpush1.msra.mxu0 %v3668
        %3995 = vmatprep.subr.mxu0 %v3673
        %3996 = vmatpush1.msra.mxu0 %v3672
        %3997 = vmatprep.subr.mxu0 %v3677
        %3998 = vmatpush1.msra.mxu0 %v3676
        %3999 = vmatprep.subr.mxu0 %v3681
        %4000 = vmatpush1.msra.mxu0 %v3680
        %4001 = vmatprep.subr.mxu0 %v3685
        %4002 = vmatpush1.msra.mxu0 %v3684
        %4003 = vmatprep.subr.mxu0 %v3689
        %4004 = vmatpush1.msra.mxu0 %v3688
        %4005 = vmatprep.subr.mxu0 %v3693
        %4006 = vmatpush1.msra.mxu0 %v3692
        %4007 = vmatprep.subr.mxu0 %v3697
        %4008 = vmatpush1.msra.mxu0 %v3696
        %4009 = vmatprep.subr.mxu0 %v3701
        %4010 = vmatpush1.msra.mxu0 %v3700
        %4011 = vmatprep.subr.mxu0 %v3705
        %4012 = vmatpush1.msra.mxu0 %v3704
        %4013 = vmatprep.subr.mxu0 %v3709
        %4014 = vmatpush1.msra.mxu0 %v3708
        %4015 = vmatprep.subr.mxu0 %v3713
        %4016 = vmatpush1.msra.mxu0 %v3712
        %4017 = vmatprep.subr.mxu0 %v3717
        %4018 = vmatpush1.msra.mxu0 %v3716
        %4019 = vmatprep.subr.mxu0 %v3721
        %4020 = vmatpush1.msra.mxu0 %v3720
        %4021 = vmatprep.subr.mxu0 0.0
        %4022 = vmatpush1.msra.mxu0 0.0
        %4023 = vmatprep.subr.mxu0 0.0
        %4024 = vmatpush1.msra.mxu0 0.0
        %4025 = vmatprep.subr.mxu0 0.0
        %4026 = vmatpush1.msra.mxu0 0.0
        %4027 = vmatprep.subr.mxu0 0.0
        %4028 = vmatpush1.msra.mxu0 0.0
        %4029 = vmatprep.subr.mxu0 0.0
        %4030 = vmatpush1.msra.mxu0 0.0
        %4031 = vmatprep.subr.mxu0 0.0
        %4032 = vmatpush1.msra.mxu0 0.0
        %4033 = vmatprep.subr.mxu0 0.0
        %4034 = vmatpush1.msra.mxu0 0.0
        %4035 = vmatprep.subr.mxu0 0.0
        %4036 = vmatpush1.msra.mxu0 0.0
        %4037 = vmatprep.subr.mxu0 0.0
        %4038 = vmatpush1.msra.mxu0 0.0
        %4039 = vmatprep.subr.mxu0 0.0
        %4040 = vmatpush1.msra.mxu0 0.0
        %4041 = vmatprep.subr.mxu0 0.0
        %4042 = vmatpush1.msra.mxu0 0.0
        %4043 = vmatprep.subr.mxu0 0.0
        %4044 = vmatpush1.msra.mxu0 0.0
        %4045 = vmatprep.subr.mxu0 0.0
        %4046 = vmatpush1.msra.mxu0 0.0
        %4047 = vmatprep.subr.mxu0 0.0
        %4048 = vmatpush1.msra.mxu0 0.0
        %4049 = vmatprep.subr.mxu0 0.0
        %4050 = vmatpush1.msra.mxu0 0.0
        %4051 = vmatprep.subr.mxu0 0.0
        %4052 = vmatpush1.msra.mxu0 0.0
        %4053 = vmatprep.mubr.f32.mxu0 0.0
        %4054 = vmatmul.mubr.f32.gmra.mrb[0].mxu0 %v3915
        %v4055 = vpop.f32.mrb[0].mxu0
        %v4056 = vadd.f32 0.0, %v4055
        %v4057 = vpop.f32.mrb[0].mxu0
        %v4058 = vadd.f32 0.0, %v4057
        %4059 = vdwg.mxu0
        %v4064 = vcombine.low %v3985, %v3987
        %v4065 = vcombine.low %v4056, %v4058
        %v4067 = vunpack.c.l.s4 1966171168
        %v4068 = vunpack.c.0.s8 %v4067
        %v4069 = vlaneseq
        %v4070 = vshrl.u32 %v4069, 7
        %v4071 = vsub.s32 %v4068, %v4070
        %v4072 = vrot.slane %v4064, %v4071
        %v4074 = vunpack.c.l.s4 1966171168
        %v4075 = vunpack.c.0.s8 %v4074
        %v4076 = vlaneseq
        %v4077 = vshrl.u32 %v4076, 7
        %v4078 = vsub.s32 %v4075, %v4077
        %v4079 = vrot.slane %v4065, %v4078
        %v4080 = vcombine.low %v4072, %v4079
        %v4082 = vunpack.c.l.s4 1966171168
        %v4083 = vunpack.c.0.s8 %v4082
        %v4084 = vlaneseq
        %v4085 = vshrl.u32 %v4084, 7
        %v4086 = vsub.s32 %v4083, %v4085
        %v4087 = vrot.slane %v4080, %v4086
        %v4089 = vadd.f32 %v3917, %v4087
        %v4090 = vxor.u32 %v4089, 2147483648
        %v4091 = vmul.f32 %v4090, 1.442695
        %v4092 = vpow.pop %v4091
        %v4093 = vadd.f32 %v4092, 1.0
        %v4094 = vrcp.pop %v4093
        %v4095 = vmul.f32 1.0, %v4094
        %v4097 = vrot.slane %v4089, 3
        %v4099 = vtanh.pop %v4097
        %v4101 = vrot.slane %v4095, 1
        %v4103 = vmul.f32 %v4101, %v3914
        %v4104 = vmul.f32 %v4095, %v4099
        %v4105 = vadd.f32 %v4103, %v4104
        %v4106 = vtanh.pop %v4105
        %v4107 = vrot.slane %v4095, 2
        %v4109 = vmul.f32 %v4107, %v4106
        %v4110 = vsel %vm1718, %v1517, %v4105
        %v4111 = vsel %vm1718, %v1521, %v4109
        %s4112 = scalar_lea.vmem %s249, 66 [#allocation2]
        %v4113 = vld [vmem:[%s4112] ss:$8 sm:$0xf]
        %4114 = vmatprep.subr.mxu0 %v3659
        %4115 = vmatpush1.msra.mxu0 %v3658
        %4116 = vmatprep.subr.mxu0 %v3663
        %4117 = vmatpush1.msra.mxu0 %v3662
        %4118 = vmatprep.subr.mxu0 %v3667
        %4119 = vmatpush1.msra.mxu0 %v3666
        %4120 = vmatprep.subr.mxu0 %v3671
        %4121 = vmatpush1.msra.mxu0 %v3670
        %4122 = vmatprep.subr.mxu0 %v3675
        %4123 = vmatpush1.msra.mxu0 %v3674
        %4124 = vmatprep.subr.mxu0 %v3679
        %4125 = vmatpush1.msra.mxu0 %v3678
        %4126 = vmatprep.subr.mxu0 %v3683
        %4127 = vmatpush1.msra.mxu0 %v3682
        %4128 = vmatprep.subr.mxu0 %v3687
        %4129 = vmatpush1.msra.mxu0 %v3686
        %4130 = vmatprep.subr.mxu0 %v3691
        %4131 = vmatpush1.msra.mxu0 %v3690
        %4132 = vmatprep.subr.mxu0 %v3695
        %4133 = vmatpush1.msra.mxu0 %v3694
        %4134 = vmatprep.subr.mxu0 %v3699
        %4135 = vmatpush1.msra.mxu0 %v3698
        %4136 = vmatprep.subr.mxu0 %v3703
        %4137 = vmatpush1.msra.mxu0 %v3702
        %4138 = vmatprep.subr.mxu0 %v3707
        %4139 = vmatpush1.msra.mxu0 %v3706
        %4140 = vmatprep.subr.mxu0 %v3711
        %4141 = vmatpush1.msra.mxu0 %v3710
        %4142 = vmatprep.subr.mxu0 %v3715
        %4143 = vmatpush1.msra.mxu0 %v3714
        %4144 = vmatprep.subr.mxu0 %v3719
        %4145 = vmatpush1.msra.mxu0 %v3718
        %4146 = vmatprep.subr.mxu0 0.0
        %4147 = vmatpush1.msra.mxu0 0.0
        %4148 = vmatprep.subr.mxu0 0.0
        %4149 = vmatpush1.msra.mxu0 0.0
        %4150 = vmatprep.subr.mxu0 0.0
        %4151 = vmatpush1.msra.mxu0 0.0
        %4152 = vmatprep.subr.mxu0 0.0
        %4153 = vmatpush1.msra.mxu0 0.0
        %4154 = vmatprep.subr.mxu0 0.0
        %4155 = vmatpush1.msra.mxu0 0.0
        %4156 = vmatprep.subr.mxu0 0.0
        %4157 = vmatpush1.msra.mxu0 0.0
        %4158 = vmatprep.subr.mxu0 0.0
        %4159 = vmatpush1.msra.mxu0 0.0
        %4160 = vmatprep.subr.mxu0 0.0
        %4161 = vmatpush1.msra.mxu0 0.0
        %4162 = vmatprep.subr.mxu0 0.0
        %4163 = vmatpush1.msra.mxu0 0.0
        %4164 = vmatprep.subr.mxu0 0.0
        %4165 = vmatpush1.msra.mxu0 0.0
        %4166 = vmatprep.subr.mxu0 0.0
        %4167 = vmatpush1.msra.mxu0 0.0
        %4168 = vmatprep.subr.mxu0 0.0
        %4169 = vmatpush1.msra.mxu0 0.0
        %4170 = vmatprep.subr.mxu0 0.0
        %4171 = vmatpush1.msra.mxu0 0.0
        %4172 = vmatprep.subr.mxu0 0.0
        %4173 = vmatpush1.msra.mxu0 0.0
        %4174 = vmatprep.subr.mxu0 0.0
        %4175 = vmatpush1.msra.mxu0 0.0
        %4176 = vmatprep.subr.mxu0 0.0
        %4177 = vmatpush1.msra.mxu0 0.0
        %4178 = vmatprep.mubr.f32.mxu0 0.0
        %4179 = vmatmul.mubr.f32.gmra.mrb[0].mxu0 %v4111
        %v4180 = vpop.f32.mrb[0].mxu0
        %v4181 = vadd.f32 0.0, %v4180
        %v4182 = vpop.f32.mrb[0].mxu0
        %v4183 = vadd.f32 0.0, %v4182
        %4184 = vdwg.mxu0
        %4185 = vmatprep.subr.mxu0 %v3661
        %4186 = vmatpush1.msra.mxu0 %v3660
        %4187 = vmatprep.subr.mxu0 %v3665
        %4188 = vmatpush1.msra.mxu0 %v3664
        %4189 = vmatprep.subr.mxu0 %v3669
        %4190 = vmatpush1.msra.mxu0 %v3668
        %4191 = vmatprep.subr.mxu0 %v3673
        %4192 = vmatpush1.msra.mxu0 %v3672
        %4193 = vmatprep.subr.mxu0 %v3677
        %4194 = vmatpush1.msra.mxu0 %v3676
        %4195 = vmatprep.subr.mxu0 %v3681
        %4196 = vmatpush1.msra.mxu0 %v3680
        %4197 = vmatprep.subr.mxu0 %v3685
        %4198 = vmatpush1.msra.mxu0 %v3684
        %4199 = vmatprep.subr.mxu0 %v3689
        %4200 = vmatpush1.msra.mxu0 %v3688
        %4201 = vmatprep.subr.mxu0 %v3693
        %4202 = vmatpush1.msra.mxu0 %v3692
        %4203 = vmatprep.subr.mxu0 %v3697
        %4204 = vmatpush1.msra.mxu0 %v3696
        %4205 = vmatprep.subr.mxu0 %v3701
        %4206 = vmatpush1.msra.mxu0 %v3700
        %4207 = vmatprep.subr.mxu0 %v3705
        %4208 = vmatpush1.msra.mxu0 %v3704
        %4209 = vmatprep.subr.mxu0 %v3709
        %4210 = vmatpush1.msra.mxu0 %v3708
        %4211 = vmatprep.subr.mxu0 %v3713
        %4212 = vmatpush1.msra.mxu0 %v3712
        %4213 = vmatprep.subr.mxu0 %v3717
        %4214 = vmatpush1.msra.mxu0 %v3716
        %4215 = vmatprep.subr.mxu0 %v3721
        %4216 = vmatpush1.msra.mxu0 %v3720
        %4217 = vmatprep.subr.mxu0 0.0
        %4218 = vmatpush1.msra.mxu0 0.0
        %4219 = vmatprep.subr.mxu0 0.0
        %4220 = vmatpush1.msra.mxu0 0.0
        %4221 = vmatprep.subr.mxu0 0.0
        %4222 = vmatpush1.msra.mxu0 0.0
        %4223 = vmatprep.subr.mxu0 0.0
        %4224 = vmatpush1.msra.mxu0 0.0
        %4225 = vmatprep.subr.mxu0 0.0
        %4226 = vmatpush1.msra.mxu0 0.0
        %4227 = vmatprep.subr.mxu0 0.0
        %4228 = vmatpush1.msra.mxu0 0.0
        %4229 = vmatprep.subr.mxu0 0.0
        %4230 = vmatpush1.msra.mxu0 0.0
        %4231 = vmatprep.subr.mxu0 0.0
        %4232 = vmatpush1.msra.mxu0 0.0
        %4233 = vmatprep.subr.mxu0 0.0
        %4234 = vmatpush1.msra.mxu0 0.0
        %4235 = vmatprep.subr.mxu0 0.0
        %4236 = vmatpush1.msra.mxu0 0.0
        %4237 = vmatprep.subr.mxu0 0.0
        %4238 = vmatpush1.msra.mxu0 0.0
        %4239 = vmatprep.subr.mxu0 0.0
        %4240 = vmatpush1.msra.mxu0 0.0
        %4241 = vmatprep.subr.mxu0 0.0
        %4242 = vmatpush1.msra.mxu0 0.0
        %4243 = vmatprep.subr.mxu0 0.0
        %4244 = vmatpush1.msra.mxu0 0.0
        %4245 = vmatprep.subr.mxu0 0.0
        %4246 = vmatpush1.msra.mxu0 0.0
        %4247 = vmatprep.subr.mxu0 0.0
        %4248 = vmatpush1.msra.mxu0 0.0
        %4249 = vmatprep.mubr.f32.mxu0 0.0
        %4250 = vmatmul.mubr.f32.gmra.mrb[0].mxu0 %v4111
        %v4251 = vpop.f32.mrb[0].mxu0
        %v4252 = vadd.f32 0.0, %v4251
        %v4253 = vpop.f32.mrb[0].mxu0
        %v4254 = vadd.f32 0.0, %v4253
        %4255 = vdwg.mxu0
        %v4260 = vcombine.low %v4181, %v4183
        %v4261 = vcombine.low %v4252, %v4254
        %v4263 = vunpack.c.l.s4 1966171168
        %v4264 = vunpack.c.0.s8 %v4263
        %v4265 = vlaneseq
        %v4266 = vshrl.u32 %v4265, 7
        %v4267 = vsub.s32 %v4264, %v4266
        %v4268 = vrot.slane %v4260, %v4267
        %v4270 = vunpack.c.l.s4 1966171168
        %v4271 = vunpack.c.0.s8 %v4270
        %v4272 = vlaneseq
        %v4273 = vshrl.u32 %v4272, 7
        %v4274 = vsub.s32 %v4271, %v4273
        %v4275 = vrot.slane %v4261, %v4274
        %v4276 = vcombine.low %v4268, %v4275
        %v4278 = vunpack.c.l.s4 1966171168
        %v4279 = vunpack.c.0.s8 %v4278
        %v4280 = vlaneseq
        %v4281 = vshrl.u32 %v4280, 7
        %v4282 = vsub.s32 %v4279, %v4281
        %v4283 = vrot.slane %v4276, %v4282
        %v4285 = vadd.f32 %v4113, %v4283
        %v4286 = vxor.u32 %v4285, 2147483648
        %v4287 = vmul.f32 %v4286, 1.442695
        %v4288 = vpow.pop %v4287
        %v4289 = vadd.f32 %v4288, 1.0
        %v4290 = vrcp.pop %v4289
        %v4291 = vmul.f32 1.0, %v4290
        %v4293 = vrot.slane %v4285, 3
        %v4295 = vtanh.pop %v4293
        %v4297 = vrot.slane %v4291, 1
        %v4299 = vmul.f32 %v4297, %v4110
        %v4300 = vmul.f32 %v4291, %v4295
        %v4301 = vadd.f32 %v4299, %v4300
        %v4302 = vtanh.pop %v4301
        %v4303 = vrot.slane %v4291, 2
        %v4305 = vmul.f32 %v4303, %v4302
        %v4306 = vsel %vm1718, %v1517, %v4301
        %v4307 = vsel %vm1718, %v1521, %v4305
        %s4308 = scalar_lea.vmem %s249, 67 [#allocation2]
        %v4309 = vld [vmem:[%s4308] ss:$8 sm:$0xf]
        %4310 = vmatprep.subr.mxu0 %v3659
        %4311 = vmatpush1.msra.mxu0 %v3658
        %4312 = vmatprep.subr.mxu0 %v3663
        %4313 = vmatpush1.msra.mxu0 %v3662
        %4314 = vmatprep.subr.mxu0 %v3667
        %4315 = vmatpush1.msra.mxu0 %v3666
        %4316 = vmatprep.subr.mxu0 %v3671
        %4317 = vmatpush1.msra.mxu0 %v3670
        %4318 = vmatprep.subr.mxu0 %v3675
        %4319 = vmatpush1.msra.mxu0 %v3674
        %4320 = vmatprep.subr.mxu0 %v3679
        %4321 = vmatpush1.msra.mxu0 %v3678
        %4322 = vmatprep.subr.mxu0 %v3683
        %4323 = vmatpush1.msra.mxu0 %v3682
        %4324 = vmatprep.subr.mxu0 %v3687
        %4325 = vmatpush1.msra.mxu0 %v3686
        %4326 = vmatprep.subr.mxu0 %v3691
        %4327 = vmatpush1.msra.mxu0 %v3690
        %4328 = vmatprep.subr.mxu0 %v3695
        %4329 = vmatpush1.msra.mxu0 %v3694
        %4330 = vmatprep.subr.mxu0 %v3699
        %4331 = vmatpush1.msra.mxu0 %v3698
        %4332 = vmatprep.subr.mxu0 %v3703
        %4333 = vmatpush1.msra.mxu0 %v3702
        %4334 = vmatprep.subr.mxu0 %v3707
        %4335 = vmatpush1.msra.mxu0 %v3706
        %4336 = vmatprep.subr.mxu0 %v3711
        %4337 = vmatpush1.msra.mxu0 %v3710
        %4338 = vmatprep.subr.mxu0 %v3715
        %4339 = vmatpush1.msra.mxu0 %v3714
        %4340 = vmatprep.subr.mxu0 %v3719
        %4341 = vmatpush1.msra.mxu0 %v3718
        %4342 = vmatprep.subr.mxu0 0.0
        %4343 = vmatpush1.msra.mxu0 0.0
        %4344 = vmatprep.subr.mxu0 0.0
        %4345 = vmatpush1.msra.mxu0 0.0
        %4346 = vmatprep.subr.mxu0 0.0
        %4347 = vmatpush1.msra.mxu0 0.0
        %4348 = vmatprep.subr.mxu0 0.0
        %4349 = vmatpush1.msra.mxu0 0.0
        %4350 = vmatprep.subr.mxu0 0.0
        %4351 = vmatpush1.msra.mxu0 0.0
        %4352 = vmatprep.subr.mxu0 0.0
        %4353 = vmatpush1.msra.mxu0 0.0
        %4354 = vmatprep.subr.mxu0 0.0
        %4355 = vmatpush1.msra.mxu0 0.0
        %4356 = vmatprep.subr.mxu0 0.0
        %4357 = vmatpush1.msra.mxu0 0.0
        %4358 = vmatprep.subr.mxu0 0.0
        %4359 = vmatpush1.msra.mxu0 0.0
        %4360 = vmatprep.subr.mxu0 0.0
        %4361 = vmatpush1.msra.mxu0 0.0
        %4362 = vmatprep.subr.mxu0 0.0
        %4363 = vmatpush1.msra.mxu0 0.0
        %4364 = vmatprep.subr.mxu0 0.0
        %4365 = vmatpush1.msra.mxu0 0.0
        %4366 = vmatprep.subr.mxu0 0.0
        %4367 = vmatpush1.msra.mxu0 0.0
        %4368 = vmatprep.subr.mxu0 0.0
        %4369 = vmatpush1.msra.mxu0 0.0
        %4370 = vmatprep.subr.mxu0 0.0
        %4371 = vmatpush1.msra.mxu0 0.0
        %4372 = vmatprep.subr.mxu0 0.0
        %4373 = vmatpush1.msra.mxu0 0.0
        %4374 = vmatprep.mubr.f32.mxu0 0.0
        %4375 = vmatmul.mubr.f32.gmra.mrb[0].mxu0 %v4307
        %v4376 = vpop.f32.mrb[0].mxu0
        %v4377 = vadd.f32 0.0, %v4376
        %v4378 = vpop.f32.mrb[0].mxu0
        %v4379 = vadd.f32 0.0, %v4378
        %4380 = vdwg.mxu0
        %4381 = vmatprep.subr.mxu0 %v3661
        %4382 = vmatpush1.msra.mxu0 %v3660
        %4383 = vmatprep.subr.mxu0 %v3665
        %4384 = vmatpush1.msra.mxu0 %v3664
        %4385 = vmatprep.subr.mxu0 %v3669
        %4386 = vmatpush1.msra.mxu0 %v3668
        %4387 = vmatprep.subr.mxu0 %v3673
        %4388 = vmatpush1.msra.mxu0 %v3672
        %4389 = vmatprep.subr.mxu0 %v3677
        %4390 = vmatpush1.msra.mxu0 %v3676
        %4391 = vmatprep.subr.mxu0 %v3681
        %4392 = vmatpush1.msra.mxu0 %v3680
        %4393 = vmatprep.subr.mxu0 %v3685
        %4394 = vmatpush1.msra.mxu0 %v3684
        %4395 = vmatprep.subr.mxu0 %v3689
        %4396 = vmatpush1.msra.mxu0 %v3688
        %4397 = vmatprep.subr.mxu0 %v3693
        %4398 = vmatpush1.msra.mxu0 %v3692
        %4399 = vmatprep.subr.mxu0 %v3697
        %4400 = vmatpush1.msra.mxu0 %v3696
        %4401 = vmatprep.subr.mxu0 %v3701
        %4402 = vmatpush1.msra.mxu0 %v3700
        %4403 = vmatprep.subr.mxu0 %v3705
        %4404 = vmatpush1.msra.mxu0 %v3704
        %4405 = vmatprep.subr.mxu0 %v3709
        %4406 = vmatpush1.msra.mxu0 %v3708
        %4407 = vmatprep.subr.mxu0 %v3713
        %4408 = vmatpush1.msra.mxu0 %v3712
        %4409 = vmatprep.subr.mxu0 %v3717
        %4410 = vmatpush1.msra.mxu0 %v3716
        %4411 = vmatprep.subr.mxu0 %v3721
        %4412 = vmatpush1.msra.mxu0 %v3720
        %4413 = vmatprep.subr.mxu0 0.0
        %4414 = vmatpush1.msra.mxu0 0.0
        %4415 = vmatprep.subr.mxu0 0.0
        %4416 = vmatpush1.msra.mxu0 0.0
        %4417 = vmatprep.subr.mxu0 0.0
        %4418 = vmatpush1.msra.mxu0 0.0
        %4419 = vmatprep.subr.mxu0 0.0
        %4420 = vmatpush1.msra.mxu0 0.0
        %4421 = vmatprep.subr.mxu0 0.0
        %4422 = vmatpush1.msra.mxu0 0.0
        %4423 = vmatprep.subr.mxu0 0.0
        %4424 = vmatpush1.msra.mxu0 0.0
        %4425 = vmatprep.subr.mxu0 0.0
        %4426 = vmatpush1.msra.mxu0 0.0
        %4427 = vmatprep.subr.mxu0 0.0
        %4428 = vmatpush1.msra.mxu0 0.0
        %4429 = vmatprep.subr.mxu0 0.0
        %4430 = vmatpush1.msra.mxu0 0.0
        %4431 = vmatprep.subr.mxu0 0.0
        %4432 = vmatpush1.msra.mxu0 0.0
        %4433 = vmatprep.subr.mxu0 0.0
        %4434 = vmatpush1.msra.mxu0 0.0
        %4435 = vmatprep.subr.mxu0 0.0
        %4436 = vmatpush1.msra.mxu0 0.0
        %4437 = vmatprep.subr.mxu0 0.0
        %4438 = vmatpush1.msra.mxu0 0.0
        %4439 = vmatprep.subr.mxu0 0.0
        %4440 = vmatpush1.msra.mxu0 0.0
        %4441 = vmatprep.subr.mxu0 0.0
        %4442 = vmatpush1.msra.mxu0 0.0
        %4443 = vmatprep.subr.mxu0 0.0
        %4444 = vmatpush1.msra.mxu0 0.0
        %4445 = vmatprep.mubr.f32.mxu0 0.0
        %4446 = vmatmul.mubr.f32.gmra.mrb[0].mxu0 %v4307
        %v4447 = vpop.f32.mrb[0].mxu0
        %v4448 = vadd.f32 0.0, %v4447
        %v4449 = vpop.f32.mrb[0].mxu0
        %v4450 = vadd.f32 0.0, %v4449
        %4451 = vdwg.mxu0
        %v4456 = vcombine.low %v4377, %v4379
        %v4457 = vcombine.low %v4448, %v4450
        %v4459 = vunpack.c.l.s4 1966171168
        %v4460 = vunpack.c.0.s8 %v4459
        %v4461 = vlaneseq
        %v4462 = vshrl.u32 %v4461, 7
        %v4463 = vsub.s32 %v4460, %v4462
        %v4464 = vrot.slane %v4456, %v4463
        %v4466 = vunpack.c.l.s4 1966171168
        %v4467 = vunpack.c.0.s8 %v4466
        %v4468 = vlaneseq
        %v4469 = vshrl.u32 %v4468, 7
        %v4470 = vsub.s32 %v4467, %v4469
        %v4471 = vrot.slane %v4457, %v4470
        %v4472 = vcombine.low %v4464, %v4471
        %v4474 = vunpack.c.l.s4 1966171168
        %v4475 = vunpack.c.0.s8 %v4474
        %v4476 = vlaneseq
        %v4477 = vshrl.u32 %v4476, 7
        %v4478 = vsub.s32 %v4475, %v4477
        %v4479 = vrot.slane %v4472, %v4478
        %v4481 = vadd.f32 %v4309, %v4479
        %v4482 = vxor.u32 %v4481, 2147483648
        %v4483 = vmul.f32 %v4482, 1.442695
        %v4484 = vpow.pop %v4483
        %v4485 = vadd.f32 %v4484, 1.0
        %v4486 = vrcp.pop %v4485
        %v4487 = vmul.f32 1.0, %v4486
        %v4489 = vrot.slane %v4481, 3
        %v4491 = vtanh.pop %v4489
        %v4493 = vrot.slane %v4487, 1
        %v4495 = vmul.f32 %v4493, %v4306
        %v4496 = vmul.f32 %v4487, %v4491
        %v4497 = vadd.f32 %v4495, %v4496
        %v4498 = vtanh.pop %v4497
        %v4499 = vrot.slane %v4487, 2
        %v4501 = vmul.f32 %v4499, %v4498
        %v4502 = vsel %vm1718, %v1517, %v4497
        %v4503 = vsel %vm1718, %v1521, %v4501
        %s4504 = scalar_lea.vmem %s249, 68 [#allocation2]
        %v4505 = vld [vmem:[%s4504] ss:$8 sm:$0xf]
        %4506 = vmatprep.subr.mxu0 %v3659
        %4507 = vmatpush1.msra.mxu0 %v3658
        %4508 = vmatprep.subr.mxu0 %v3663
        %4509 = vmatpush1.msra.mxu0 %v3662
        %4510 = vmatprep.subr.mxu0 %v3667
        %4511 = vmatpush1.msra.mxu0 %v3666
        %4512 = vmatprep.subr.mxu0 %v3671
        %4513 = vmatpush1.msra.mxu0 %v3670
        %4514 = vmatprep.subr.mxu0 %v3675
        %4515 = vmatpush1.msra.mxu0 %v3674
        %4516 = vmatprep.subr.mxu0 %v3679
        %4517 = vmatpush1.msra.mxu0 %v3678
        %4518 = vmatprep.subr.mxu0 %v3683
        %4519 = vmatpush1.msra.mxu0 %v3682
        %4520 = vmatprep.subr.mxu0 %v3687
        %4521 = vmatpush1.msra.mxu0 %v3686
        %4522 = vmatprep.subr.mxu0 %v3691
        %4523 = vmatpush1.msra.mxu0 %v3690
        %4524 = vmatprep.subr.mxu0 %v3695
        %4525 = vmatpush1.msra.mxu0 %v3694
        %4526 = vmatprep.subr.mxu0 %v3699
        %4527 = vmatpush1.msra.mxu0 %v3698
        %4528 = vmatprep.subr.mxu0 %v3703
        %4529 = vmatpush1.msra.mxu0 %v3702
        %4530 = vmatprep.subr.mxu0 %v3707
        %4531 = vmatpush1.msra.mxu0 %v3706
        %4532 = vmatprep.subr.mxu0 %v3711
        %4533 = vmatpush1.msra.mxu0 %v3710
        %4534 = vmatprep.subr.mxu0 %v3715
        %4535 = vmatpush1.msra.mxu0 %v3714
        %4536 = vmatprep.subr.mxu0 %v3719
        %4537 = vmatpush1.msra.mxu0 %v3718
        %4538 = vmatprep.subr.mxu0 0.0
        %4539 = vmatpush1.msra.mxu0 0.0
        %4540 = vmatprep.subr.mxu0 0.0
        %4541 = vmatpush1.msra.mxu0 0.0
        %4542 = vmatprep.subr.mxu0 0.0
        %4543 = vmatpush1.msra.mxu0 0.0
        %4544 = vmatprep.subr.mxu0 0.0
        %4545 = vmatpush1.msra.mxu0 0.0
        %4546 = vmatprep.subr.mxu0 0.0
        %4547 = vmatpush1.msra.mxu0 0.0
        %4548 = vmatprep.subr.mxu0 0.0
        %4549 = vmatpush1.msra.mxu0 0.0
        %4550 = vmatprep.subr.mxu0 0.0
        %4551 = vmatpush1.msra.mxu0 0.0
        %4552 = vmatprep.subr.mxu0 0.0
        %4553 = vmatpush1.msra.mxu0 0.0
        %4554 = vmatprep.subr.mxu0 0.0
        %4555 = vmatpush1.msra.mxu0 0.0
        %4556 = vmatprep.subr.mxu0 0.0
        %4557 = vmatpush1.msra.mxu0 0.0
        %4558 = vmatprep.subr.mxu0 0.0
        %4559 = vmatpush1.msra.mxu0 0.0
        %4560 = vmatprep.subr.mxu0 0.0
        %4561 = vmatpush1.msra.mxu0 0.0
        %4562 = vmatprep.subr.mxu0 0.0
        %4563 = vmatpush1.msra.mxu0 0.0
        %4564 = vmatprep.subr.mxu0 0.0
        %4565 = vmatpush1.msra.mxu0 0.0
        %4566 = vmatprep.subr.mxu0 0.0
        %4567 = vmatpush1.msra.mxu0 0.0
        %4568 = vmatprep.subr.mxu0 0.0
        %4569 = vmatpush1.msra.mxu0 0.0
        %4570 = vmatprep.mubr.f32.mxu0 0.0
        %4571 = vmatmul.mubr.f32.gmra.mrb[0].mxu0 %v4503
        %v4572 = vpop.f32.mrb[0].mxu0
        %v4573 = vadd.f32 0.0, %v4572
        %v4574 = vpop.f32.mrb[0].mxu0
        %v4575 = vadd.f32 0.0, %v4574
        %4576 = vdwg.mxu0
        %4577 = vmatprep.subr.mxu0 %v3661
        %4578 = vmatpush1.msra.mxu0 %v3660
        %4579 = vmatprep.subr.mxu0 %v3665
        %4580 = vmatpush1.msra.mxu0 %v3664
        %4581 = vmatprep.subr.mxu0 %v3669
        %4582 = vmatpush1.msra.mxu0 %v3668
        %4583 = vmatprep.subr.mxu0 %v3673
        %4584 = vmatpush1.msra.mxu0 %v3672
        %4585 = vmatprep.subr.mxu0 %v3677
        %4586 = vmatpush1.msra.mxu0 %v3676
        %4587 = vmatprep.subr.mxu0 %v3681
        %4588 = vmatpush1.msra.mxu0 %v3680
        %4589 = vmatprep.subr.mxu0 %v3685
        %4590 = vmatpush1.msra.mxu0 %v3684
        %4591 = vmatprep.subr.mxu0 %v3689
        %4592 = vmatpush1.msra.mxu0 %v3688
        %4593 = vmatprep.subr.mxu0 %v3693
        %4594 = vmatpush1.msra.mxu0 %v3692
        %4595 = vmatprep.subr.mxu0 %v3697
        %4596 = vmatpush1.msra.mxu0 %v3696
        %4597 = vmatprep.subr.mxu0 %v3701
        %4598 = vmatpush1.msra.mxu0 %v3700
        %4599 = vmatprep.subr.mxu0 %v3705
        %4600 = vmatpush1.msra.mxu0 %v3704
        %4601 = vmatprep.subr.mxu0 %v3709
        %4602 = vmatpush1.msra.mxu0 %v3708
        %4603 = vmatprep.subr.mxu0 %v3713
        %4604 = vmatpush1.msra.mxu0 %v3712
        %4605 = vmatprep.subr.mxu0 %v3717
        %4606 = vmatpush1.msra.mxu0 %v3716
        %4607 = vmatprep.subr.mxu0 %v3721
        %4608 = vmatpush1.msra.mxu0 %v3720
        %4609 = vmatprep.subr.mxu0 0.0
        %4610 = vmatpush1.msra.mxu0 0.0
        %4611 = vmatprep.subr.mxu0 0.0
        %4612 = vmatpush1.msra.mxu0 0.0
        %4613 = vmatprep.subr.mxu0 0.0
        %4614 = vmatpush1.msra.mxu0 0.0
        %4615 = vmatprep.subr.mxu0 0.0
        %4616 = vmatpush1.msra.mxu0 0.0
        %4617 = vmatprep.subr.mxu0 0.0
        %4618 = vmatpush1.msra.mxu0 0.0
        %4619 = vmatprep.subr.mxu0 0.0
        %4620 = vmatpush1.msra.mxu0 0.0
        %4621 = vmatprep.subr.mxu0 0.0
        %4622 = vmatpush1.msra.mxu0 0.0
        %4623 = vmatprep.subr.mxu0 0.0
        %4624 = vmatpush1.msra.mxu0 0.0
        %4625 = vmatprep.subr.mxu0 0.0
        %4626 = vmatpush1.msra.mxu0 0.0
        %4627 = vmatprep.subr.mxu0 0.0
        %4628 = vmatpush1.msra.mxu0 0.0
        %4629 = vmatprep.subr.mxu0 0.0
        %4630 = vmatpush1.msra.mxu0 0.0
        %4631 = vmatprep.subr.mxu0 0.0
        %4632 = vmatpush1.msra.mxu0 0.0
        %4633 = vmatprep.subr.mxu0 0.0
        %4634 = vmatpush1.msra.mxu0 0.0
        %4635 = vmatprep.subr.mxu0 0.0
        %4636 = vmatpush1.msra.mxu0 0.0
        %4637 = vmatprep.subr.mxu0 0.0
        %4638 = vmatpush1.msra.mxu0 0.0
        %4639 = vmatprep.subr.mxu0 0.0
        %4640 = vmatpush1.msra.mxu0 0.0
        %4641 = vmatprep.mubr.f32.mxu0 0.0
        %4642 = vmatmul.mubr.f32.gmra.mrb[0].mxu0 %v4503
        %v4643 = vpop.f32.mrb[0].mxu0
        %v4644 = vadd.f32 0.0, %v4643
        %v4645 = vpop.f32.mrb[0].mxu0
        %v4646 = vadd.f32 0.0, %v4645
        %4647 = vdwg.mxu0
        %v4652 = vcombine.low %v4573, %v4575
        %v4653 = vcombine.low %v4644, %v4646
        %v4655 = vunpack.c.l.s4 1966171168
        %v4656 = vunpack.c.0.s8 %v4655
        %v4657 = vlaneseq
        %v4658 = vshrl.u32 %v4657, 7
        %v4659 = vsub.s32 %v4656, %v4658
        %v4660 = vrot.slane %v4652, %v4659
        %v4662 = vunpack.c.l.s4 1966171168
        %v4663 = vunpack.c.0.s8 %v4662
        %v4664 = vlaneseq
        %v4665 = vshrl.u32 %v4664, 7
        %v4666 = vsub.s32 %v4663, %v4665
        %v4667 = vrot.slane %v4653, %v4666
        %v4668 = vcombine.low %v4660, %v4667
        %v4670 = vunpack.c.l.s4 1966171168
        %v4671 = vunpack.c.0.s8 %v4670
        %v4672 = vlaneseq
        %v4673 = vshrl.u32 %v4672, 7
        %v4674 = vsub.s32 %v4671, %v4673
        %v4675 = vrot.slane %v4668, %v4674
        %v4677 = vadd.f32 %v4505, %v4675
        %v4678 = vxor.u32 %v4677, 2147483648
        %v4679 = vmul.f32 %v4678, 1.442695
        %v4680 = vpow.pop %v4679
        %v4681 = vadd.f32 %v4680, 1.0
        %v4682 = vrcp.pop %v4681
        %v4683 = vmul.f32 1.0, %v4682
        %v4685 = vrot.slane %v4677, 3
        %v4687 = vtanh.pop %v4685
        %v4689 = vrot.slane %v4683, 1
        %v4691 = vmul.f32 %v4689, %v4502
        %v4692 = vmul.f32 %v4683, %v4687
        %v4693 = vadd.f32 %v4691, %v4692
        %v4694 = vtanh.pop %v4693
        %v4695 = vrot.slane %v4683, 2
        %v4697 = vmul.f32 %v4695, %v4694
        %v4698 = vsel %vm1718, %v1517, %v4693
        %v4699 = vsel %vm1718, %v1521, %v4697
        %s4700 = scalar_lea.vmem %s249, 69 [#allocation2]
        %v4701 = vld [vmem:[%s4700] ss:$8 sm:$0xf]
        %4702 = vmatprep.subr.mxu0 %v3659
        %4703 = vmatpush1.msra.mxu0 %v3658
        %4704 = vmatprep.subr.mxu0 %v3663
        %4705 = vmatpush1.msra.mxu0 %v3662
        %4706 = vmatprep.subr.mxu0 %v3667
        %4707 = vmatpush1.msra.mxu0 %v3666
        %4708 = vmatprep.subr.mxu0 %v3671
        %4709 = vmatpush1.msra.mxu0 %v3670
        %4710 = vmatprep.subr.mxu0 %v3675
        %4711 = vmatpush1.msra.mxu0 %v3674
        %4712 = vmatprep.subr.mxu0 %v3679
        %4713 = vmatpush1.msra.mxu0 %v3678
        %4714 = vmatprep.subr.mxu0 %v3683
        %4715 = vmatpush1.msra.mxu0 %v3682
        %4716 = vmatprep.subr.mxu0 %v3687
        %4717 = vmatpush1.msra.mxu0 %v3686
        %4718 = vmatprep.subr.mxu0 %v3691
        %4719 = vmatpush1.msra.mxu0 %v3690
        %4720 = vmatprep.subr.mxu0 %v3695
        %4721 = vmatpush1.msra.mxu0 %v3694
        %4722 = vmatprep.subr.mxu0 %v3699
        %4723 = vmatpush1.msra.mxu0 %v3698
        %4724 = vmatprep.subr.mxu0 %v3703
        %4725 = vmatpush1.msra.mxu0 %v3702
        %4726 = vmatprep.subr.mxu0 %v3707
        %4727 = vmatpush1.msra.mxu0 %v3706
        %4728 = vmatprep.subr.mxu0 %v3711
        %4729 = vmatpush1.msra.mxu0 %v3710
        %4730 = vmatprep.subr.mxu0 %v3715
        %4731 = vmatpush1.msra.mxu0 %v3714
        %4732 = vmatprep.subr.mxu0 %v3719
        %4733 = vmatpush1.msra.mxu0 %v3718
        %4734 = vmatprep.subr.mxu0 0.0
        %4735 = vmatpush1.msra.mxu0 0.0
        %4736 = vmatprep.subr.mxu0 0.0
        %4737 = vmatpush1.msra.mxu0 0.0
        %4738 = vmatprep.subr.mxu0 0.0
        %4739 = vmatpush1.msra.mxu0 0.0
        %4740 = vmatprep.subr.mxu0 0.0
        %4741 = vmatpush1.msra.mxu0 0.0
        %4742 = vmatprep.subr.mxu0 0.0
        %4743 = vmatpush1.msra.mxu0 0.0
        %4744 = vmatprep.subr.mxu0 0.0
        %4745 = vmatpush1.msra.mxu0 0.0
        %4746 = vmatprep.subr.mxu0 0.0
        %4747 = vmatpush1.msra.mxu0 0.0
        %4748 = vmatprep.subr.mxu0 0.0
        %4749 = vmatpush1.msra.mxu0 0.0
        %4750 = vmatprep.subr.mxu0 0.0
        %4751 = vmatpush1.msra.mxu0 0.0
        %4752 = vmatprep.subr.mxu0 0.0
        %4753 = vmatpush1.msra.mxu0 0.0
        %4754 = vmatprep.subr.mxu0 0.0
        %4755 = vmatpush1.msra.mxu0 0.0
        %4756 = vmatprep.subr.mxu0 0.0
        %4757 = vmatpush1.msra.mxu0 0.0
        %4758 = vmatprep.subr.mxu0 0.0
        %4759 = vmatpush1.msra.mxu0 0.0
        %4760 = vmatprep.subr.mxu0 0.0
        %4761 = vmatpush1.msra.mxu0 0.0
        %4762 = vmatprep.subr.mxu0 0.0
        %4763 = vmatpush1.msra.mxu0 0.0
        %4764 = vmatprep.subr.mxu0 0.0
        %4765 = vmatpush1.msra.mxu0 0.0
        %4766 = vmatprep.mubr.f32.mxu0 0.0
        %4767 = vmatmul.mubr.f32.gmra.mrb[0].mxu0 %v4699
        %v4768 = vpop.f32.mrb[0].mxu0
        %v4769 = vadd.f32 0.0, %v4768
        %v4770 = vpop.f32.mrb[0].mxu0
        %v4771 = vadd.f32 0.0, %v4770
        %4772 = vdwg.mxu0
        %4773 = vmatprep.subr.mxu0 %v3661
        %4774 = vmatpush1.msra.mxu0 %v3660
        %4775 = vmatprep.subr.mxu0 %v3665
        %4776 = vmatpush1.msra.mxu0 %v3664
        %4777 = vmatprep.subr.mxu0 %v3669
        %4778 = vmatpush1.msra.mxu0 %v3668
        %4779 = vmatprep.subr.mxu0 %v3673
        %4780 = vmatpush1.msra.mxu0 %v3672
        %4781 = vmatprep.subr.mxu0 %v3677
        %4782 = vmatpush1.msra.mxu0 %v3676
        %4783 = vmatprep.subr.mxu0 %v3681
        %4784 = vmatpush1.msra.mxu0 %v3680
        %4785 = vmatprep.subr.mxu0 %v3685
        %4786 = vmatpush1.msra.mxu0 %v3684
        %4787 = vmatprep.subr.mxu0 %v3689
        %4788 = vmatpush1.msra.mxu0 %v3688
        %4789 = vmatprep.subr.mxu0 %v3693
        %4790 = vmatpush1.msra.mxu0 %v3692
        %4791 = vmatprep.subr.mxu0 %v3697
        %4792 = vmatpush1.msra.mxu0 %v3696
        %4793 = vmatprep.subr.mxu0 %v3701
        %4794 = vmatpush1.msra.mxu0 %v3700
        %4795 = vmatprep.subr.mxu0 %v3705
        %4796 = vmatpush1.msra.mxu0 %v3704
        %4797 = vmatprep.subr.mxu0 %v3709
        %4798 = vmatpush1.msra.mxu0 %v3708
        %4799 = vmatprep.subr.mxu0 %v3713
        %4800 = vmatpush1.msra.mxu0 %v3712
        %4801 = vmatprep.subr.mxu0 %v3717
        %4802 = vmatpush1.msra.mxu0 %v3716
        %4803 = vmatprep.subr.mxu0 %v3721
        %4804 = vmatpush1.msra.mxu0 %v3720
        %4805 = vmatprep.subr.mxu0 0.0
        %4806 = vmatpush1.msra.mxu0 0.0
        %4807 = vmatprep.subr.mxu0 0.0
        %4808 = vmatpush1.msra.mxu0 0.0
        %4809 = vmatprep.subr.mxu0 0.0
        %4810 = vmatpush1.msra.mxu0 0.0
        %4811 = vmatprep.subr.mxu0 0.0
        %4812 = vmatpush1.msra.mxu0 0.0
        %4813 = vmatprep.subr.mxu0 0.0
        %4814 = vmatpush1.msra.mxu0 0.0
        %4815 = vmatprep.subr.mxu0 0.0
        %4816 = vmatpush1.msra.mxu0 0.0
        %4817 = vmatprep.subr.mxu0 0.0
        %4818 = vmatpush1.msra.mxu0 0.0
        %4819 = vmatprep.subr.mxu0 0.0
        %4820 = vmatpush1.msra.mxu0 0.0
        %4821 = vmatprep.subr.mxu0 0.0
        %4822 = vmatpush1.msra.mxu0 0.0
        %4823 = vmatprep.subr.mxu0 0.0
        %4824 = vmatpush1.msra.mxu0 0.0
        %4825 = vmatprep.subr.mxu0 0.0
        %4826 = vmatpush1.msra.mxu0 0.0
        %4827 = vmatprep.subr.mxu0 0.0
        %4828 = vmatpush1.msra.mxu0 0.0
        %4829 = vmatprep.subr.mxu0 0.0
        %4830 = vmatpush1.msra.mxu0 0.0
        %4831 = vmatprep.subr.mxu0 0.0
        %4832 = vmatpush1.msra.mxu0 0.0
        %4833 = vmatprep.subr.mxu0 0.0
        %4834 = vmatpush1.msra.mxu0 0.0
        %4835 = vmatprep.subr.mxu0 0.0
        %4836 = vmatpush1.msra.mxu0 0.0
        %4837 = vmatprep.mubr.f32.mxu0 0.0
        %4838 = vmatmul.mubr.f32.gmra.mrb[0].mxu0 %v4699
        %v4839 = vpop.f32.mrb[0].mxu0
        %v4840 = vadd.f32 0.0, %v4839
        %v4841 = vpop.f32.mrb[0].mxu0
        %v4842 = vadd.f32 0.0, %v4841
        %4843 = vdwg.mxu0
        %v4848 = vcombine.low %v4769, %v4771
        %v4849 = vcombine.low %v4840, %v4842
        %v4851 = vunpack.c.l.s4 1966171168
        %v4852 = vunpack.c.0.s8 %v4851
        %v4853 = vlaneseq
        %v4854 = vshrl.u32 %v4853, 7
        %v4855 = vsub.s32 %v4852, %v4854
        %v4856 = vrot.slane %v4848, %v4855
        %v4858 = vunpack.c.l.s4 1966171168
        %v4859 = vunpack.c.0.s8 %v4858
        %v4860 = vlaneseq
        %v4861 = vshrl.u32 %v4860, 7
        %v4862 = vsub.s32 %v4859, %v4861
        %v4863 = vrot.slane %v4849, %v4862
        %v4864 = vcombine.low %v4856, %v4863
        %v4866 = vunpack.c.l.s4 1966171168
        %v4867 = vunpack.c.0.s8 %v4866
        %v4868 = vlaneseq
        %v4869 = vshrl.u32 %v4868, 7
        %v4870 = vsub.s32 %v4867, %v4869
        %v4871 = vrot.slane %v4864, %v4870
        %v4873 = vadd.f32 %v4701, %v4871
        %v4874 = vxor.u32 %v4873, 2147483648
        %v4875 = vmul.f32 %v4874, 1.442695
        %v4876 = vpow.pop %v4875
        %v4877 = vadd.f32 %v4876, 1.0
        %v4878 = vrcp.pop %v4877
        %v4879 = vmul.f32 1.0, %v4878
        %v4881 = vrot.slane %v4873, 3
        %v4883 = vtanh.pop %v4881
        %v4885 = vrot.slane %v4879, 1
        %v4887 = vmul.f32 %v4885, %v4698
        %v4888 = vmul.f32 %v4879, %v4883
        %v4889 = vadd.f32 %v4887, %v4888
        %v4890 = vtanh.pop %v4889
        %v4891 = vrot.slane %v4879, 2
        %v4893 = vmul.f32 %v4891, %v4890
        %v4894 = vsel %vm1718, %v1517, %v4889
        %v4895 = vsel %vm1718, %v1521, %v4893
        %s4896 = scalar_lea.vmem %s249, 70 [#allocation2]
        %v4897 = vld [vmem:[%s4896] ss:$8 sm:$0xf]
        %4898 = vmatprep.subr.mxu0 %v3659
        %4899 = vmatpush1.msra.mxu0 %v3658
        %4900 = vmatprep.subr.mxu0 %v3663
        %4901 = vmatpush1.msra.mxu0 %v3662
        %4902 = vmatprep.subr.mxu0 %v3667
        %4903 = vmatpush1.msra.mxu0 %v3666
        %4904 = vmatprep.subr.mxu0 %v3671
        %4905 = vmatpush1.msra.mxu0 %v3670
        %4906 = vmatprep.subr.mxu0 %v3675
        %4907 = vmatpush1.msra.mxu0 %v3674
        %4908 = vmatprep.subr.mxu0 %v3679
        %4909 = vmatpush1.msra.mxu0 %v3678
        %4910 = vmatprep.subr.mxu0 %v3683
        %4911 = vmatpush1.msra.mxu0 %v3682
        %4912 = vmatprep.subr.mxu0 %v3687
        %4913 = vmatpush1.msra.mxu0 %v3686
        %4914 = vmatprep.subr.mxu0 %v3691
        %4915 = vmatpush1.msra.mxu0 %v3690
        %4916 = vmatprep.subr.mxu0 %v3695
        %4917 = vmatpush1.msra.mxu0 %v3694
        %4918 = vmatprep.subr.mxu0 %v3699
        %4919 = vmatpush1.msra.mxu0 %v3698
        %4920 = vmatprep.subr.mxu0 %v3703
        %4921 = vmatpush1.msra.mxu0 %v3702
        %4922 = vmatprep.subr.mxu0 %v3707
        %4923 = vmatpush1.msra.mxu0 %v3706
        %4924 = vmatprep.subr.mxu0 %v3711
        %4925 = vmatpush1.msra.mxu0 %v3710
        %4926 = vmatprep.subr.mxu0 %v3715
        %4927 = vmatpush1.msra.mxu0 %v3714
        %4928 = vmatprep.subr.mxu0 %v3719
        %4929 = vmatpush1.msra.mxu0 %v3718
        %4930 = vmatprep.subr.mxu0 0.0
        %4931 = vmatpush1.msra.mxu0 0.0
        %4932 = vmatprep.subr.mxu0 0.0
        %4933 = vmatpush1.msra.mxu0 0.0
        %4934 = vmatprep.subr.mxu0 0.0
        %4935 = vmatpush1.msra.mxu0 0.0
        %4936 = vmatprep.subr.mxu0 0.0
        %4937 = vmatpush1.msra.mxu0 0.0
        %4938 = vmatprep.subr.mxu0 0.0
        %4939 = vmatpush1.msra.mxu0 0.0
        %4940 = vmatprep.subr.mxu0 0.0
        %4941 = vmatpush1.msra.mxu0 0.0
        %4942 = vmatprep.subr.mxu0 0.0
        %4943 = vmatpush1.msra.mxu0 0.0
        %4944 = vmatprep.subr.mxu0 0.0
        %4945 = vmatpush1.msra.mxu0 0.0
        %4946 = vmatprep.subr.mxu0 0.0
        %4947 = vmatpush1.msra.mxu0 0.0
        %4948 = vmatprep.subr.mxu0 0.0
        %4949 = vmatpush1.msra.mxu0 0.0
        %4950 = vmatprep.subr.mxu0 0.0
        %4951 = vmatpush1.msra.mxu0 0.0
        %4952 = vmatprep.subr.mxu0 0.0
        %4953 = vmatpush1.msra.mxu0 0.0
        %4954 = vmatprep.subr.mxu0 0.0
        %4955 = vmatpush1.msra.mxu0 0.0
        %4956 = vmatprep.subr.mxu0 0.0
        %4957 = vmatpush1.msra.mxu0 0.0
        %4958 = vmatprep.subr.mxu0 0.0
        %4959 = vmatpush1.msra.mxu0 0.0
        %4960 = vmatprep.subr.mxu0 0.0
        %4961 = vmatpush1.msra.mxu0 0.0
        %4962 = vmatprep.mubr.f32.mxu0 0.0
        %4963 = vmatmul.mubr.f32.gmra.mrb[0].mxu0 %v4895
        %v4964 = vpop.f32.mrb[0].mxu0
        %v4965 = vadd.f32 0.0, %v4964
        %v4966 = vpop.f32.mrb[0].mxu0
        %v4967 = vadd.f32 0.0, %v4966
        %4968 = vdwg.mxu0
        %4969 = vmatprep.subr.mxu0 %v3661
        %4970 = vmatpush1.msra.mxu0 %v3660
        %4971 = vmatprep.subr.mxu0 %v3665
        %4972 = vmatpush1.msra.mxu0 %v3664
        %4973 = vmatprep.subr.mxu0 %v3669
        %4974 = vmatpush1.msra.mxu0 %v3668
        %4975 = vmatprep.subr.mxu0 %v3673
        %4976 = vmatpush1.msra.mxu0 %v3672
        %4977 = vmatprep.subr.mxu0 %v3677
        %4978 = vmatpush1.msra.mxu0 %v3676
        %4979 = vmatprep.subr.mxu0 %v3681
        %4980 = vmatpush1.msra.mxu0 %v3680
        %4981 = vmatprep.subr.mxu0 %v3685
        %4982 = vmatpush1.msra.mxu0 %v3684
        %4983 = vmatprep.subr.mxu0 %v3689
        %4984 = vmatpush1.msra.mxu0 %v3688
        %4985 = vmatprep.subr.mxu0 %v3693
        %4986 = vmatpush1.msra.mxu0 %v3692
        %4987 = vmatprep.subr.mxu0 %v3697
        %4988 = vmatpush1.msra.mxu0 %v3696
        %4989 = vmatprep.subr.mxu0 %v3701
        %4990 = vmatpush1.msra.mxu0 %v3700
        %4991 = vmatprep.subr.mxu0 %v3705
        %4992 = vmatpush1.msra.mxu0 %v3704
        %4993 = vmatprep.subr.mxu0 %v3709
        %4994 = vmatpush1.msra.mxu0 %v3708
        %4995 = vmatprep.subr.mxu0 %v3713
        %4996 = vmatpush1.msra.mxu0 %v3712
        %4997 = vmatprep.subr.mxu0 %v3717
        %4998 = vmatpush1.msra.mxu0 %v3716
        %4999 = vmatprep.subr.mxu0 %v3721
        %5000 = vmatpush1.msra.mxu0 %v3720
        %5001 = vmatprep.subr.mxu0 0.0
        %5002 = vmatpush1.msra.mxu0 0.0
        %5003 = vmatprep.subr.mxu0 0.0
        %5004 = vmatpush1.msra.mxu0 0.0
        %5005 = vmatprep.subr.mxu0 0.0
        %5006 = vmatpush1.msra.mxu0 0.0
        %5007 = vmatprep.subr.mxu0 0.0
        %5008 = vmatpush1.msra.mxu0 0.0
        %5009 = vmatprep.subr.mxu0 0.0
        %5010 = vmatpush1.msra.mxu0 0.0
        %5011 = vmatprep.subr.mxu0 0.0
        %5012 = vmatpush1.msra.mxu0 0.0
        %5013 = vmatprep.subr.mxu0 0.0
        %5014 = vmatpush1.msra.mxu0 0.0
        %5015 = vmatprep.subr.mxu0 0.0
        %5016 = vmatpush1.msra.mxu0 0.0
        %5017 = vmatprep.subr.mxu0 0.0
        %5018 = vmatpush1.msra.mxu0 0.0
        %5019 = vmatprep.subr.mxu0 0.0
        %5020 = vmatpush1.msra.mxu0 0.0
        %5021 = vmatprep.subr.mxu0 0.0
        %5022 = vmatpush1.msra.mxu0 0.0
        %5023 = vmatprep.subr.mxu0 0.0
        %5024 = vmatpush1.msra.mxu0 0.0
        %5025 = vmatprep.subr.mxu0 0.0
        %5026 = vmatpush1.msra.mxu0 0.0
        %5027 = vmatprep.subr.mxu0 0.0
        %5028 = vmatpush1.msra.mxu0 0.0
        %5029 = vmatprep.subr.mxu0 0.0
        %5030 = vmatpush1.msra.mxu0 0.0
        %5031 = vmatprep.subr.mxu0 0.0
        %5032 = vmatpush1.msra.mxu0 0.0
        %5033 = vmatprep.mubr.f32.mxu0 0.0
        %5034 = vmatmul.mubr.f32.gmra.mrb[0].mxu0 %v4895
        %v5035 = vpop.f32.mrb[0].mxu0
        %v5036 = vadd.f32 0.0, %v5035
        %v5037 = vpop.f32.mrb[0].mxu0
        %v5038 = vadd.f32 0.0, %v5037
        %5039 = vdwg.mxu0
        %v5044 = vcombine.low %v4965, %v4967
        %v5045 = vcombine.low %v5036, %v5038
        %v5047 = vunpack.c.l.s4 1966171168
        %v5048 = vunpack.c.0.s8 %v5047
        %v5049 = vlaneseq
        %v5050 = vshrl.u32 %v5049, 7
        %v5051 = vsub.s32 %v5048, %v5050
        %v5052 = vrot.slane %v5044, %v5051
        %v5054 = vunpack.c.l.s4 1966171168
        %v5055 = vunpack.c.0.s8 %v5054
        %v5056 = vlaneseq
        %v5057 = vshrl.u32 %v5056, 7
        %v5058 = vsub.s32 %v5055, %v5057
        %v5059 = vrot.slane %v5045, %v5058
        %v5060 = vcombine.low %v5052, %v5059
        %v5062 = vunpack.c.l.s4 1966171168
        %v5063 = vunpack.c.0.s8 %v5062
        %v5064 = vlaneseq
        %v5065 = vshrl.u32 %v5064, 7
        %v5066 = vsub.s32 %v5063, %v5065
        %v5067 = vrot.slane %v5060, %v5066
        %v5069 = vadd.f32 %v4897, %v5067
        %v5070 = vxor.u32 %v5069, 2147483648
        %v5071 = vmul.f32 %v5070, 1.442695
        %v5072 = vpow.pop %v5071
        %v5073 = vadd.f32 %v5072, 1.0
        %v5074 = vrcp.pop %v5073
        %v5075 = vmul.f32 1.0, %v5074
        %v5077 = vrot.slane %v5069, 3
        %v5079 = vtanh.pop %v5077
        %v5081 = vrot.slane %v5075, 1
        %v5083 = vmul.f32 %v5081, %v4894
        %v5084 = vmul.f32 %v5075, %v5079
        %v5085 = vadd.f32 %v5083, %v5084
        %v5086 = vtanh.pop %v5085
        %v5087 = vrot.slane %v5075, 2
        %v5089 = vmul.f32 %v5087, %v5086
        %v5090 = vsel %vm1718, %v1517, %v5085
        %v5091 = vsel %vm1718, %v1521, %v5089
        %s5092 = scalar_lea.vmem %s249, 71 [#allocation2]
        %v5093 = vld [vmem:[%s5092] ss:$8 sm:$0xf]
        %5094 = vmatprep.subr.mxu0 %v3659
        %5095 = vmatpush1.msra.mxu0 %v3658
        %5096 = vmatprep.subr.mxu0 %v3663
        %5097 = vmatpush1.msra.mxu0 %v3662
        %5098 = vmatprep.subr.mxu0 %v3667
        %5099 = vmatpush1.msra.mxu0 %v3666
        %5100 = vmatprep.subr.mxu0 %v3671
        %5101 = vmatpush1.msra.mxu0 %v3670
        %5102 = vmatprep.subr.mxu0 %v3675
        %5103 = vmatpush1.msra.mxu0 %v3674
        %5104 = vmatprep.subr.mxu0 %v3679
        %5105 = vmatpush1.msra.mxu0 %v3678
        %5106 = vmatprep.subr.mxu0 %v3683
        %5107 = vmatpush1.msra.mxu0 %v3682
        %5108 = vmatprep.subr.mxu0 %v3687
        %5109 = vmatpush1.msra.mxu0 %v3686
        %5110 = vmatprep.subr.mxu0 %v3691
        %5111 = vmatpush1.msra.mxu0 %v3690
        %5112 = vmatprep.subr.mxu0 %v3695
        %5113 = vmatpush1.msra.mxu0 %v3694
        %5114 = vmatprep.subr.mxu0 %v3699
        %5115 = vmatpush1.msra.mxu0 %v3698
        %5116 = vmatprep.subr.mxu0 %v3703
        %5117 = vmatpush1.msra.mxu0 %v3702
        %5118 = vmatprep.subr.mxu0 %v3707
        %5119 = vmatpush1.msra.mxu0 %v3706
        %5120 = vmatprep.subr.mxu0 %v3711
        %5121 = vmatpush1.msra.mxu0 %v3710
        %5122 = vmatprep.subr.mxu0 %v3715
        %5123 = vmatpush1.msra.mxu0 %v3714
        %5124 = vmatprep.subr.mxu0 %v3719
        %5125 = vmatpush1.msra.mxu0 %v3718
        %5126 = vmatprep.subr.mxu0 0.0
        %5127 = vmatpush1.msra.mxu0 0.0
        %5128 = vmatprep.subr.mxu0 0.0
        %5129 = vmatpush1.msra.mxu0 0.0
        %5130 = vmatprep.subr.mxu0 0.0
        %5131 = vmatpush1.msra.mxu0 0.0
        %5132 = vmatprep.subr.mxu0 0.0
        %5133 = vmatpush1.msra.mxu0 0.0
        %5134 = vmatprep.subr.mxu0 0.0
        %5135 = vmatpush1.msra.mxu0 0.0
        %5136 = vmatprep.subr.mxu0 0.0
        %5137 = vmatpush1.msra.mxu0 0.0
        %5138 = vmatprep.subr.mxu0 0.0
        %5139 = vmatpush1.msra.mxu0 0.0
        %5140 = vmatprep.subr.mxu0 0.0
        %5141 = vmatpush1.msra.mxu0 0.0
        %5142 = vmatprep.subr.mxu0 0.0
        %5143 = vmatpush1.msra.mxu0 0.0
        %5144 = vmatprep.subr.mxu0 0.0
        %5145 = vmatpush1.msra.mxu0 0.0
        %5146 = vmatprep.subr.mxu0 0.0
        %5147 = vmatpush1.msra.mxu0 0.0
        %5148 = vmatprep.subr.mxu0 0.0
        %5149 = vmatpush1.msra.mxu0 0.0
        %5150 = vmatprep.subr.mxu0 0.0
        %5151 = vmatpush1.msra.mxu0 0.0
        %5152 = vmatprep.subr.mxu0 0.0
        %5153 = vmatpush1.msra.mxu0 0.0
        %5154 = vmatprep.subr.mxu0 0.0
        %5155 = vmatpush1.msra.mxu0 0.0
        %5156 = vmatprep.subr.mxu0 0.0
        %5157 = vmatpush1.msra.mxu0 0.0
        %5158 = vmatprep.mubr.f32.mxu0 0.0
        %5159 = vmatmul.mubr.f32.gmra.mrb[0].mxu0 %v5091
        %v5160 = vpop.f32.mrb[0].mxu0
        %v5161 = vadd.f32 0.0, %v5160
        %v5162 = vpop.f32.mrb[0].mxu0
        %v5163 = vadd.f32 0.0, %v5162
        %5164 = vdwg.mxu0
        %5165 = vmatprep.subr.mxu0 %v3661
        %5166 = vmatpush1.msra.mxu0 %v3660
        %5167 = vmatprep.subr.mxu0 %v3665
        %5168 = vmatpush1.msra.mxu0 %v3664
        %5169 = vmatprep.subr.mxu0 %v3669
        %5170 = vmatpush1.msra.mxu0 %v3668
        %5171 = vmatprep.subr.mxu0 %v3673
        %5172 = vmatpush1.msra.mxu0 %v3672
        %5173 = vmatprep.subr.mxu0 %v3677
        %5174 = vmatpush1.msra.mxu0 %v3676
        %5175 = vmatprep.subr.mxu0 %v3681
        %5176 = vmatpush1.msra.mxu0 %v3680
        %5177 = vmatprep.subr.mxu0 %v3685
        %5178 = vmatpush1.msra.mxu0 %v3684
        %5179 = vmatprep.subr.mxu0 %v3689
        %5180 = vmatpush1.msra.mxu0 %v3688
        %5181 = vmatprep.subr.mxu0 %v3693
        %5182 = vmatpush1.msra.mxu0 %v3692
        %5183 = vmatprep.subr.mxu0 %v3697
        %5184 = vmatpush1.msra.mxu0 %v3696
        %5185 = vmatprep.subr.mxu0 %v3701
        %5186 = vmatpush1.msra.mxu0 %v3700
        %5187 = vmatprep.subr.mxu0 %v3705
        %5188 = vmatpush1.msra.mxu0 %v3704
        %5189 = vmatprep.subr.mxu0 %v3709
        %5190 = vmatpush1.msra.mxu0 %v3708
        %5191 = vmatprep.subr.mxu0 %v3713
        %5192 = vmatpush1.msra.mxu0 %v3712
        %5193 = vmatprep.subr.mxu0 %v3717
        %5194 = vmatpush1.msra.mxu0 %v3716
        %5195 = vmatprep.subr.mxu0 %v3721
        %5196 = vmatpush1.msra.mxu0 %v3720
        %5197 = vmatprep.subr.mxu0 0.0
        %5198 = vmatpush1.msra.mxu0 0.0
        %5199 = vmatprep.subr.mxu0 0.0
        %5200 = vmatpush1.msra.mxu0 0.0
        %5201 = vmatprep.subr.mxu0 0.0
        %5202 = vmatpush1.msra.mxu0 0.0
        %5203 = vmatprep.subr.mxu0 0.0
        %5204 = vmatpush1.msra.mxu0 0.0
        %5205 = vmatprep.subr.mxu0 0.0
        %5206 = vmatpush1.msra.mxu0 0.0
        %5207 = vmatprep.subr.mxu0 0.0
        %5208 = vmatpush1.msra.mxu0 0.0
        %5209 = vmatprep.subr.mxu0 0.0
        %5210 = vmatpush1.msra.mxu0 0.0
        %5211 = vmatprep.subr.mxu0 0.0
        %5212 = vmatpush1.msra.mxu0 0.0
        %5213 = vmatprep.subr.mxu0 0.0
        %5214 = vmatpush1.msra.mxu0 0.0
        %5215 = vmatprep.subr.mxu0 0.0
        %5216 = vmatpush1.msra.mxu0 0.0
        %5217 = vmatprep.subr.mxu0 0.0
        %5218 = vmatpush1.msra.mxu0 0.0
        %5219 = vmatprep.subr.mxu0 0.0
        %5220 = vmatpush1.msra.mxu0 0.0
        %5221 = vmatprep.subr.mxu0 0.0
        %5222 = vmatpush1.msra.mxu0 0.0
        %5223 = vmatprep.subr.mxu0 0.0
        %5224 = vmatpush1.msra.mxu0 0.0
        %5225 = vmatprep.subr.mxu0 0.0
        %5226 = vmatpush1.msra.mxu0 0.0
        %5227 = vmatprep.subr.mxu0 0.0
        %5228 = vmatpush1.msra.mxu0 0.0
        %5229 = vmatprep.mubr.f32.mxu0 0.0
        %5230 = vmatmul.mubr.f32.gmra.mrb[0].mxu0 %v5091
        %v5231 = vpop.f32.mrb[0].mxu0
        %v5232 = vadd.f32 0.0, %v5231
        %v5233 = vpop.f32.mrb[0].mxu0
        %v5234 = vadd.f32 0.0, %v5233
        %5235 = vdwg.mxu0
        %v5240 = vcombine.low %v5161, %v5163
        %v5241 = vcombine.low %v5232, %v5234
        %v5243 = vunpack.c.l.s4 1966171168
        %v5244 = vunpack.c.0.s8 %v5243
        %v5245 = vlaneseq
        %v5246 = vshrl.u32 %v5245, 7
        %v5247 = vsub.s32 %v5244, %v5246
        %v5248 = vrot.slane %v5240, %v5247
        %v5250 = vunpack.c.l.s4 1966171168
        %v5251 = vunpack.c.0.s8 %v5250
        %v5252 = vlaneseq
        %v5253 = vshrl.u32 %v5252, 7
        %v5254 = vsub.s32 %v5251, %v5253
        %v5255 = vrot.slane %v5241, %v5254
        %v5256 = vcombine.low %v5248, %v5255
        %v5258 = vunpack.c.l.s4 1966171168
        %v5259 = vunpack.c.0.s8 %v5258
        %v5260 = vlaneseq
        %v5261 = vshrl.u32 %v5260, 7
        %v5262 = vsub.s32 %v5259, %v5261
        %v5263 = vrot.slane %v5256, %v5262
        %v5265 = vadd.f32 %v5093, %v5263
        %v5266 = vxor.u32 %v5265, 2147483648
        %v5267 = vmul.f32 %v5266, 1.442695
        %v5268 = vpow.pop %v5267
        %v5269 = vadd.f32 %v5268, 1.0
        %v5270 = vrcp.pop %v5269
        %v5271 = vmul.f32 1.0, %v5270
        %v5273 = vrot.slane %v5265, 3
        %v5275 = vtanh.pop %v5273
        %v5277 = vrot.slane %v5271, 1
        %v5279 = vmul.f32 %v5277, %v5090
        %v5280 = vmul.f32 %v5271, %v5275
        %v5281 = vadd.f32 %v5279, %v5280
        %v5282 = vtanh.pop %v5281
        %v5283 = vrot.slane %v5271, 2
        %v5285 = vmul.f32 %v5283, %v5282
        %v5286 = vsel %vm1718, %v1517, %v5281
        %v5287 = vsel %vm1718, %v1521, %v5285
        %v5289 = vlaneseq
        %v5290 = vshrl.u32 %v5289, 7
        %v5291 = vsub.s32 0, %v5290
        %v5292 = vrot.slane %v4111, %v5291
        %v5295 = vlaneseq
        %v5296 = vshrl.u32 %v5295, 7
        %v5297 = vsub.s32 0, %v5296
        %v5298 = vrot.slane %v4307, %v5297
        %v5301 = vlaneseq
        %v5302 = vshrl.u32 %v5301, 7
        %v5303 = vsub.s32 0, %v5302
        %v5304 = vrot.slane %v4503, %v5303
        %v5307 = vlaneseq
        %v5308 = vshrl.u32 %v5307, 7
        %v5309 = vsub.s32 0, %v5308
        %v5310 = vrot.slane %v4699, %v5309
        %v5313 = vlaneseq
        %v5314 = vshrl.u32 %v5313, 7
        %v5315 = vsub.s32 0, %v5314
        %v5316 = vrot.slane %v4895, %v5315
        %v5319 = vlaneseq
        %v5320 = vshrl.u32 %v5319, 7
        %v5321 = vsub.s32 0, %v5320
        %v5322 = vrot.slane %v5091, %v5321
        %v5325 = vlaneseq
        %v5326 = vshrl.u32 %v5325, 7
        %v5327 = vsub.s32 0, %v5326
        %v5328 = vrot.slane %v5287, %v5327
        %v5330 = vsel %vm1959, %v3915, %v5292
        %v5331 = vsel %vm1961, %v5330, %v5298
        %v5332 = vsel %vm1963, %v5331, %v5304
        %v5333 = vsel %vm1965, %v5332, %v5310
        %v5334 = vsel %vm1967, %v5333, %v5316
        %v5335 = vsel %vm1969, %v5334, %v5322
        %v5336 = vsel %vm1971, %v5335, %v5328
        %5337 = vst [vmem:[%s277 + $0x10] sm:$0xff] %v5336
        %s5338 = scalar_lea.vmem %s249, 96 [#allocation2]
        %v5339 = vld [vmem:[%s5338] ss:$8 sm:$0xf]
        %v5340 = vld [vmem:[#allocation5] sm:$0xff]
        %v5341 = vld [vmem:[#allocation5 + $0x8] sm:$0xff]
        %v5342 = vld [vmem:[#allocation5 + $0x10] sm:$0xff]
        %v5343 = vld [vmem:[#allocation5 + $0x18] sm:$0xff]
        %v5344 = vld [vmem:[#allocation5 + $0x20] sm:$0xff]
        %v5345 = vld [vmem:[#allocation5 + $0x28] sm:$0xff]
        %v5346 = vld [vmem:[#allocation5 + $0x30] sm:$0xff]
        %v5347 = vld [vmem:[#allocation5 + $0x38] sm:$0xff]
        %v5348 = vld [vmem:[#allocation5 + $0x40] sm:$0xff]
        %v5349 = vld [vmem:[#allocation5 + $0x48] sm:$0xff]
        %v5350 = vld [vmem:[#allocation5 + $0x50] sm:$0xff]
        %v5351 = vld [vmem:[#allocation5 + $0x58] sm:$0xff]
        %v5352 = vld [vmem:[#allocation5 + $0x60] sm:$0xff]
        %v5353 = vld [vmem:[#allocation5 + $0x68] sm:$0xff]
        %v5354 = vld [vmem:[#allocation5 + $0x70] sm:$0xff]
        %v5355 = vld [vmem:[#allocation5 + $0x78] sm:$0xff]
        %v5356 = vld [vmem:[#allocation5 + $0x80] sm:$0xff]
        %v5357 = vld [vmem:[#allocation5 + $0x88] sm:$0xff]
        %v5358 = vld [vmem:[#allocation5 + $0x90] sm:$0xff]
        %v5359 = vld [vmem:[#allocation5 + $0x98] sm:$0xff]
        %v5360 = vld [vmem:[#allocation5 + $0xa0] sm:$0xff]
        %v5361 = vld [vmem:[#allocation5 + $0xa8] sm:$0xff]
        %v5362 = vld [vmem:[#allocation5 + $0xb0] sm:$0xff]
        %v5363 = vld [vmem:[#allocation5 + $0xb8] sm:$0xff]
        %v5364 = vld [vmem:[#allocation5 + $0xc0] sm:$0xff]
        %v5365 = vld [vmem:[#allocation5 + $0xc8] sm:$0xff]
        %v5366 = vld [vmem:[#allocation5 + $0xd0] sm:$0xff]
        %v5367 = vld [vmem:[#allocation5 + $0xd8] sm:$0xff]
        %v5368 = vld [vmem:[#allocation5 + $0xe0] sm:$0xff]
        %v5369 = vld [vmem:[#allocation5 + $0xe8] sm:$0xff]
        %v5370 = vld [vmem:[#allocation5 + $0xf0] sm:$0xff]
        %v5371 = vld [vmem:[#allocation5 + $0xf8] sm:$0xff]
        %v5372 = vld [vmem:[#allocation5 + $0x100] sm:$0xff]
        %v5373 = vld [vmem:[#allocation5 + $0x108] sm:$0xff]
        %v5374 = vld [vmem:[#allocation5 + $0x110] sm:$0xff]
        %v5375 = vld [vmem:[#allocation5 + $0x118] sm:$0xff]
        %v5376 = vld [vmem:[#allocation5 + $0x120] sm:$0xff]
        %v5377 = vld [vmem:[#allocation5 + $0x128] sm:$0xff]
        %v5378 = vld [vmem:[#allocation5 + $0x130] sm:$0xff]
        %v5379 = vld [vmem:[#allocation5 + $0x138] sm:$0xff]
        %v5380 = vld [vmem:[#allocation5 + $0x140] sm:$0xff]
        %v5381 = vld [vmem:[#allocation5 + $0x148] sm:$0xff]
        %v5382 = vld [vmem:[#allocation5 + $0x150] sm:$0xff]
        %v5383 = vld [vmem:[#allocation5 + $0x158] sm:$0xff]
        %v5384 = vld [vmem:[#allocation5 + $0x160] sm:$0xff]
        %v5385 = vld [vmem:[#allocation5 + $0x168] sm:$0xff]
        %v5386 = vld [vmem:[#allocation5 + $0x170] sm:$0xff]
        %v5387 = vld [vmem:[#allocation5 + $0x178] sm:$0xff]
        %v5388 = vld [vmem:[#allocation5 + $0x180] sm:$0xff]
        %v5389 = vld [vmem:[#allocation5 + $0x188] sm:$0xff]
        %v5390 = vld [vmem:[#allocation5 + $0x190] sm:$0xff]
        %v5391 = vld [vmem:[#allocation5 + $0x198] sm:$0xff]
        %v5392 = vld [vmem:[#allocation5 + $0x1a0] sm:$0xff]
        %v5393 = vld [vmem:[#allocation5 + $0x1a8] sm:$0xff]
        %v5394 = vld [vmem:[#allocation5 + $0x1b0] sm:$0xff]
        %v5395 = vld [vmem:[#allocation5 + $0x1b8] sm:$0xff]
        %v5396 = vld [vmem:[#allocation5 + $0x1c0] sm:$0xff]
        %v5397 = vld [vmem:[#allocation5 + $0x1c8] sm:$0xff]
        %v5398 = vld [vmem:[#allocation5 + $0x1d0] sm:$0xff]
        %v5399 = vld [vmem:[#allocation5 + $0x1d8] sm:$0xff]
        %v5400 = vld [vmem:[#allocation5 + $0x1e0] sm:$0xff]
        %v5401 = vld [vmem:[#allocation5 + $0x1e8] sm:$0xff]
        %v5402 = vld [vmem:[#allocation5 + $0x1f0] sm:$0xff]
        %v5403 = vld [vmem:[#allocation5 + $0x1f8] sm:$0xff]
        %5404 = vmatprep.subr.mxu0 %v5341
        %5405 = vmatpush1.msra.mxu0 %v5340
        %5406 = vmatprep.subr.mxu0 %v5345
        %5407 = vmatpush1.msra.mxu0 %v5344
        %5408 = vmatprep.subr.mxu0 %v5349
        %5409 = vmatpush1.msra.mxu0 %v5348
        %5410 = vmatprep.subr.mxu0 %v5353
        %5411 = vmatpush1.msra.mxu0 %v5352
        %5412 = vmatprep.subr.mxu0 %v5357
        %5413 = vmatpush1.msra.mxu0 %v5356
        %5414 = vmatprep.subr.mxu0 %v5361
        %5415 = vmatpush1.msra.mxu0 %v5360
        %5416 = vmatprep.subr.mxu0 %v5365
        %5417 = vmatpush1.msra.mxu0 %v5364
        %5418 = vmatprep.subr.mxu0 %v5369
        %5419 = vmatpush1.msra.mxu0 %v5368
        %5420 = vmatprep.subr.mxu0 %v5373
        %5421 = vmatpush1.msra.mxu0 %v5372
        %5422 = vmatprep.subr.mxu0 %v5377
        %5423 = vmatpush1.msra.mxu0 %v5376
        %5424 = vmatprep.subr.mxu0 %v5381
        %5425 = vmatpush1.msra.mxu0 %v5380
        %5426 = vmatprep.subr.mxu0 %v5385
        %5427 = vmatpush1.msra.mxu0 %v5384
        %5428 = vmatprep.subr.mxu0 %v5389
        %5429 = vmatpush1.msra.mxu0 %v5388
        %5430 = vmatprep.subr.mxu0 %v5393
        %5431 = vmatpush1.msra.mxu0 %v5392
        %5432 = vmatprep.subr.mxu0 %v5397
        %5433 = vmatpush1.msra.mxu0 %v5396
        %5434 = vmatprep.subr.mxu0 %v5401
        %5435 = vmatpush1.msra.mxu0 %v5400
        %5436 = vmatprep.subr.mxu0 0.0
        %5437 = vmatpush1.msra.mxu0 0.0
        %5438 = vmatprep.subr.mxu0 0.0
        %5439 = vmatpush1.msra.mxu0 0.0
        %5440 = vmatprep.subr.mxu0 0.0
        %5441 = vmatpush1.msra.mxu0 0.0
        %5442 = vmatprep.subr.mxu0 0.0
        %5443 = vmatpush1.msra.mxu0 0.0
        %5444 = vmatprep.subr.mxu0 0.0
        %5445 = vmatpush1.msra.mxu0 0.0
        %5446 = vmatprep.subr.mxu0 0.0
        %5447 = vmatpush1.msra.mxu0 0.0
        %5448 = vmatprep.subr.mxu0 0.0
        %5449 = vmatpush1.msra.mxu0 0.0
        %5450 = vmatprep.subr.mxu0 0.0
        %5451 = vmatpush1.msra.mxu0 0.0
        %5452 = vmatprep.subr.mxu0 0.0
        %5453 = vmatpush1.msra.mxu0 0.0
        %5454 = vmatprep.subr.mxu0 0.0
        %5455 = vmatpush1.msra.mxu0 0.0
        %5456 = vmatprep.subr.mxu0 0.0
        %5457 = vmatpush1.msra.mxu0 0.0
        %5458 = vmatprep.subr.mxu0 0.0
        %5459 = vmatpush1.msra.mxu0 0.0
        %5460 = vmatprep.subr.mxu0 0.0
        %5461 = vmatpush1.msra.mxu0 0.0
        %5462 = vmatprep.subr.mxu0 0.0
        %5463 = vmatpush1.msra.mxu0 0.0
        %5464 = vmatprep.subr.mxu0 0.0
        %5465 = vmatpush1.msra.mxu0 0.0
        %5466 = vmatprep.subr.mxu0 0.0
        %5467 = vmatpush1.msra.mxu0 0.0
        %5468 = vmatprep.mubr.f32.mxu0 0.0
        %5469 = vmatmul.mubr.f32.gmra.mrb[0].mxu0 %v5287
        %v5470 = vpop.f32.mrb[0].mxu0
        %v5471 = vadd.f32 0.0, %v5470
        %v5472 = vpop.f32.mrb[0].mxu0
        %v5473 = vadd.f32 0.0, %v5472
        %5474 = vdwg.mxu0
        %5475 = vmatprep.subr.mxu0 %v5343
        %5476 = vmatpush1.msra.mxu0 %v5342
        %5477 = vmatprep.subr.mxu0 %v5347
        %5478 = vmatpush1.msra.mxu0 %v5346
        %5479 = vmatprep.subr.mxu0 %v5351
        %5480 = vmatpush1.msra.mxu0 %v5350
        %5481 = vmatprep.subr.mxu0 %v5355
        %5482 = vmatpush1.msra.mxu0 %v5354
        %5483 = vmatprep.subr.mxu0 %v5359
        %5484 = vmatpush1.msra.mxu0 %v5358
        %5485 = vmatprep.subr.mxu0 %v5363
        %5486 = vmatpush1.msra.mxu0 %v5362
        %5487 = vmatprep.subr.mxu0 %v5367
        %5488 = vmatpush1.msra.mxu0 %v5366
        %5489 = vmatprep.subr.mxu0 %v5371
        %5490 = vmatpush1.msra.mxu0 %v5370
        %5491 = vmatprep.subr.mxu0 %v5375
        %5492 = vmatpush1.msra.mxu0 %v5374
        %5493 = vmatprep.subr.mxu0 %v5379
        %5494 = vmatpush1.msra.mxu0 %v5378
        %5495 = vmatprep.subr.mxu0 %v5383
        %5496 = vmatpush1.msra.mxu0 %v5382
        %5497 = vmatprep.subr.mxu0 %v5387
        %5498 = vmatpush1.msra.mxu0 %v5386
        %5499 = vmatprep.subr.mxu0 %v5391
        %5500 = vmatpush1.msra.mxu0 %v5390
        %5501 = vmatprep.subr.mxu0 %v5395
        %5502 = vmatpush1.msra.mxu0 %v5394
        %5503 = vmatprep.subr.mxu0 %v5399
        %5504 = vmatpush1.msra.mxu0 %v5398
        %5505 = vmatprep.subr.mxu0 %v5403
        %5506 = vmatpush1.msra.mxu0 %v5402
        %5507 = vmatprep.subr.mxu0 0.0
        %5508 = vmatpush1.msra.mxu0 0.0
        %5509 = vmatprep.subr.mxu0 0.0
        %5510 = vmatpush1.msra.mxu0 0.0
        %5511 = vmatprep.subr.mxu0 0.0
        %5512 = vmatpush1.msra.mxu0 0.0
        %5513 = vmatprep.subr.mxu0 0.0
        %5514 = vmatpush1.msra.mxu0 0.0
        %5515 = vmatprep.subr.mxu0 0.0
        %5516 = vmatpush1.msra.mxu0 0.0
        %5517 = vmatprep.subr.mxu0 0.0
        %5518 = vmatpush1.msra.mxu0 0.0
        %5519 = vmatprep.subr.mxu0 0.0
        %5520 = vmatpush1.msra.mxu0 0.0
        %5521 = vmatprep.subr.mxu0 0.0
        %5522 = vmatpush1.msra.mxu0 0.0
        %5523 = vmatprep.subr.mxu0 0.0
        %5524 = vmatpush1.msra.mxu0 0.0
        %5525 = vmatprep.subr.mxu0 0.0
        %5526 = vmatpush1.msra.mxu0 0.0
        %5527 = vmatprep.subr.mxu0 0.0
        %5528 = vmatpush1.msra.mxu0 0.0
        %5529 = vmatprep.subr.mxu0 0.0
        %5530 = vmatpush1.msra.mxu0 0.0
        %5531 = vmatprep.subr.mxu0 0.0
        %5532 = vmatpush1.msra.mxu0 0.0
        %5533 = vmatprep.subr.mxu0 0.0
        %5534 = vmatpush1.msra.mxu0 0.0
        %5535 = vmatprep.subr.mxu0 0.0
        %5536 = vmatpush1.msra.mxu0 0.0
        %5537 = vmatprep.subr.mxu0 0.0
        %5538 = vmatpush1.msra.mxu0 0.0
        %5539 = vmatprep.mubr.f32.mxu0 0.0
        %5540 = vmatmul.mubr.f32.gmra.mrb[0].mxu0 %v5287
        %v5541 = vpop.f32.mrb[0].mxu0
        %v5542 = vadd.f32 0.0, %v5541
        %v5543 = vpop.f32.mrb[0].mxu0
        %v5544 = vadd.f32 0.0, %v5543
        %5545 = vdwg.mxu0
        %v5550 = vcombine.low %v5471, %v5473
        %v5551 = vcombine.low %v5542, %v5544
        %v5553 = vunpack.c.l.s4 1966171168
        %v5554 = vunpack.c.0.s8 %v5553
        %v5555 = vlaneseq
        %v5556 = vshrl.u32 %v5555, 7
        %v5557 = vsub.s32 %v5554, %v5556
        %v5558 = vrot.slane %v5550, %v5557
        %v5560 = vunpack.c.l.s4 1966171168
        %v5561 = vunpack.c.0.s8 %v5560
        %v5562 = vlaneseq
        %v5563 = vshrl.u32 %v5562, 7
        %v5564 = vsub.s32 %v5561, %v5563
        %v5565 = vrot.slane %v5551, %v5564
        %v5566 = vcombine.low %v5558, %v5565
        %v5568 = vunpack.c.l.s4 1966171168
        %v5569 = vunpack.c.0.s8 %v5568
        %v5570 = vlaneseq
        %v5571 = vshrl.u32 %v5570, 7
        %v5572 = vsub.s32 %v5569, %v5571
        %v5573 = vrot.slane %v5566, %v5572
        %v5575 = vadd.f32 %v5339, %v5573
        %v5576 = vxor.u32 %v5575, 2147483648
        %v5577 = vmul.f32 %v5576, 1.442695
        %v5578 = vpow.pop %v5577
        %v5579 = vadd.f32 %v5578, 1.0
        %v5580 = vrcp.pop %v5579
        %v5581 = vmul.f32 1.0, %v5580
        %v5583 = vrot.slane %v5575, 3
        %v5585 = vtanh.pop %v5583
        %v5587 = vrot.slane %v5581, 1
        %v5589 = vmul.f32 %v5587, %v5286
        %v5590 = vmul.f32 %v5581, %v5585
        %v5591 = vadd.f32 %v5589, %v5590
        %v5592 = vtanh.pop %v5591
        %v5593 = vrot.slane %v5581, 2
        %v5595 = vmul.f32 %v5593, %v5592
        %v5596 = vsel %vm1718, %v1517, %v5591
        %v5597 = vsel %vm1718, %v1521, %v5595
        %s5598 = scalar_lea.vmem %s249, 97 [#allocation2]
        %v5599 = vld [vmem:[%s5598] ss:$8 sm:$0xf]
        %5600 = vmatprep.subr.mxu0 %v5341
        %5601 = vmatpush1.msra.mxu0 %v5340
        %5602 = vmatprep.subr.mxu0 %v5345
        %5603 = vmatpush1.msra.mxu0 %v5344
        %5604 = vmatprep.subr.mxu0 %v5349
        %5605 = vmatpush1.msra.mxu0 %v5348
        %5606 = vmatprep.subr.mxu0 %v5353
        %5607 = vmatpush1.msra.mxu0 %v5352
        %5608 = vmatprep.subr.mxu0 %v5357
        %5609 = vmatpush1.msra.mxu0 %v5356
        %5610 = vmatprep.subr.mxu0 %v5361
        %5611 = vmatpush1.msra.mxu0 %v5360
        %5612 = vmatprep.subr.mxu0 %v5365
        %5613 = vmatpush1.msra.mxu0 %v5364
        %5614 = vmatprep.subr.mxu0 %v5369
        %5615 = vmatpush1.msra.mxu0 %v5368
        %5616 = vmatprep.subr.mxu0 %v5373
        %5617 = vmatpush1.msra.mxu0 %v5372
        %5618 = vmatprep.subr.mxu0 %v5377
        %5619 = vmatpush1.msra.mxu0 %v5376
        %5620 = vmatprep.subr.mxu0 %v5381
        %5621 = vmatpush1.msra.mxu0 %v5380
        %5622 = vmatprep.subr.mxu0 %v5385
        %5623 = vmatpush1.msra.mxu0 %v5384
        %5624 = vmatprep.subr.mxu0 %v5389
        %5625 = vmatpush1.msra.mxu0 %v5388
        %5626 = vmatprep.subr.mxu0 %v5393
        %5627 = vmatpush1.msra.mxu0 %v5392
        %5628 = vmatprep.subr.mxu0 %v5397
        %5629 = vmatpush1.msra.mxu0 %v5396
        %5630 = vmatprep.subr.mxu0 %v5401
        %5631 = vmatpush1.msra.mxu0 %v5400
        %5632 = vmatprep.subr.mxu0 0.0
        %5633 = vmatpush1.msra.mxu0 0.0
        %5634 = vmatprep.subr.mxu0 0.0
        %5635 = vmatpush1.msra.mxu0 0.0
        %5636 = vmatprep.subr.mxu0 0.0
        %5637 = vmatpush1.msra.mxu0 0.0
        %5638 = vmatprep.subr.mxu0 0.0
        %5639 = vmatpush1.msra.mxu0 0.0
        %5640 = vmatprep.subr.mxu0 0.0
        %5641 = vmatpush1.msra.mxu0 0.0
        %5642 = vmatprep.subr.mxu0 0.0
        %5643 = vmatpush1.msra.mxu0 0.0
        %5644 = vmatprep.subr.mxu0 0.0
        %5645 = vmatpush1.msra.mxu0 0.0
        %5646 = vmatprep.subr.mxu0 0.0
        %5647 = vmatpush1.msra.mxu0 0.0
        %5648 = vmatprep.subr.mxu0 0.0
        %5649 = vmatpush1.msra.mxu0 0.0
        %5650 = vmatprep.subr.mxu0 0.0
        %5651 = vmatpush1.msra.mxu0 0.0
        %5652 = vmatprep.subr.mxu0 0.0
        %5653 = vmatpush1.msra.mxu0 0.0
        %5654 = vmatprep.subr.mxu0 0.0
        %5655 = vmatpush1.msra.mxu0 0.0
        %5656 = vmatprep.subr.mxu0 0.0
        %5657 = vmatpush1.msra.mxu0 0.0
        %5658 = vmatprep.subr.mxu0 0.0
        %5659 = vmatpush1.msra.mxu0 0.0
        %5660 = vmatprep.subr.mxu0 0.0
        %5661 = vmatpush1.msra.mxu0 0.0
        %5662 = vmatprep.subr.mxu0 0.0
        %5663 = vmatpush1.msra.mxu0 0.0
        %5664 = vmatprep.mubr.f32.mxu0 0.0
        %5665 = vmatmul.mubr.f32.gmra.mrb[0].mxu0 %v5597
        %v5666 = vpop.f32.mrb[0].mxu0
        %v5667 = vadd.f32 0.0, %v5666
        %v5668 = vpop.f32.mrb[0].mxu0
        %v5669 = vadd.f32 0.0, %v5668
        %5670 = vdwg.mxu0
        %5671 = vmatprep.subr.mxu0 %v5343
        %5672 = vmatpush1.msra.mxu0 %v5342
        %5673 = vmatprep.subr.mxu0 %v5347
        %5674 = vmatpush1.msra.mxu0 %v5346
        %5675 = vmatprep.subr.mxu0 %v5351
        %5676 = vmatpush1.msra.mxu0 %v5350
        %5677 = vmatprep.subr.mxu0 %v5355
        %5678 = vmatpush1.msra.mxu0 %v5354
        %5679 = vmatprep.subr.mxu0 %v5359
        %5680 = vmatpush1.msra.mxu0 %v5358
        %5681 = vmatprep.subr.mxu0 %v5363
        %5682 = vmatpush1.msra.mxu0 %v5362
        %5683 = vmatprep.subr.mxu0 %v5367
        %5684 = vmatpush1.msra.mxu0 %v5366
        %5685 = vmatprep.subr.mxu0 %v5371
        %5686 = vmatpush1.msra.mxu0 %v5370
        %5687 = vmatprep.subr.mxu0 %v5375
        %5688 = vmatpush1.msra.mxu0 %v5374
        %5689 = vmatprep.subr.mxu0 %v5379
        %5690 = vmatpush1.msra.mxu0 %v5378
        %5691 = vmatprep.subr.mxu0 %v5383
        %5692 = vmatpush1.msra.mxu0 %v5382
        %5693 = vmatprep.subr.mxu0 %v5387
        %5694 = vmatpush1.msra.mxu0 %v5386
        %5695 = vmatprep.subr.mxu0 %v5391
        %5696 = vmatpush1.msra.mxu0 %v5390
        %5697 = vmatprep.subr.mxu0 %v5395
        %5698 = vmatpush1.msra.mxu0 %v5394
        %5699 = vmatprep.subr.mxu0 %v5399
        %5700 = vmatpush1.msra.mxu0 %v5398
        %5701 = vmatprep.subr.mxu0 %v5403
        %5702 = vmatpush1.msra.mxu0 %v5402
        %5703 = vmatprep.subr.mxu0 0.0
        %5704 = vmatpush1.msra.mxu0 0.0
        %5705 = vmatprep.subr.mxu0 0.0
        %5706 = vmatpush1.msra.mxu0 0.0
        %5707 = vmatprep.subr.mxu0 0.0
        %5708 = vmatpush1.msra.mxu0 0.0
        %5709 = vmatprep.subr.mxu0 0.0
        %5710 = vmatpush1.msra.mxu0 0.0
        %5711 = vmatprep.subr.mxu0 0.0
        %5712 = vmatpush1.msra.mxu0 0.0
        %5713 = vmatprep.subr.mxu0 0.0
        %5714 = vmatpush1.msra.mxu0 0.0
        %5715 = vmatprep.subr.mxu0 0.0
        %5716 = vmatpush1.msra.mxu0 0.0
        %5717 = vmatprep.subr.mxu0 0.0
        %5718 = vmatpush1.msra.mxu0 0.0
        %5719 = vmatprep.subr.mxu0 0.0
        %5720 = vmatpush1.msra.mxu0 0.0
        %5721 = vmatprep.subr.mxu0 0.0
        %5722 = vmatpush1.msra.mxu0 0.0
        %5723 = vmatprep.subr.mxu0 0.0
        %5724 = vmatpush1.msra.mxu0 0.0
        %5725 = vmatprep.subr.mxu0 0.0
        %5726 = vmatpush1.msra.mxu0 0.0
        %5727 = vmatprep.subr.mxu0 0.0
        %5728 = vmatpush1.msra.mxu0 0.0
        %5729 = vmatprep.subr.mxu0 0.0
        %5730 = vmatpush1.msra.mxu0 0.0
        %5731 = vmatprep.subr.mxu0 0.0
        %5732 = vmatpush1.msra.mxu0 0.0
        %5733 = vmatprep.subr.mxu0 0.0
        %5734 = vmatpush1.msra.mxu0 0.0
        %5735 = vmatprep.mubr.f32.mxu0 0.0
        %5736 = vmatmul.mubr.f32.gmra.mrb[0].mxu0 %v5597
        %v5737 = vpop.f32.mrb[0].mxu0
        %v5738 = vadd.f32 0.0, %v5737
        %v5739 = vpop.f32.mrb[0].mxu0
        %v5740 = vadd.f32 0.0, %v5739
        %5741 = vdwg.mxu0
        %v5746 = vcombine.low %v5667, %v5669
        %v5747 = vcombine.low %v5738, %v5740
        %v5749 = vunpack.c.l.s4 1966171168
        %v5750 = vunpack.c.0.s8 %v5749
        %v5751 = vlaneseq
        %v5752 = vshrl.u32 %v5751, 7
        %v5753 = vsub.s32 %v5750, %v5752
        %v5754 = vrot.slane %v5746, %v5753
        %v5756 = vunpack.c.l.s4 1966171168
        %v5757 = vunpack.c.0.s8 %v5756
        %v5758 = vlaneseq
        %v5759 = vshrl.u32 %v5758, 7
        %v5760 = vsub.s32 %v5757, %v5759
        %v5761 = vrot.slane %v5747, %v5760
        %v5762 = vcombine.low %v5754, %v5761
        %v5764 = vunpack.c.l.s4 1966171168
        %v5765 = vunpack.c.0.s8 %v5764
        %v5766 = vlaneseq
        %v5767 = vshrl.u32 %v5766, 7
        %v5768 = vsub.s32 %v5765, %v5767
        %v5769 = vrot.slane %v5762, %v5768
        %v5771 = vadd.f32 %v5599, %v5769
        %v5772 = vxor.u32 %v5771, 2147483648
        %v5773 = vmul.f32 %v5772, 1.442695
        %v5774 = vpow.pop %v5773
        %v5775 = vadd.f32 %v5774, 1.0
        %v5776 = vrcp.pop %v5775
        %v5777 = vmul.f32 1.0, %v5776
        %v5779 = vrot.slane %v5771, 3
        %v5781 = vtanh.pop %v5779
        %v5783 = vrot.slane %v5777, 1
        %v5785 = vmul.f32 %v5783, %v5596
        %v5786 = vmul.f32 %v5777, %v5781
        %v5787 = vadd.f32 %v5785, %v5786
        %v5788 = vtanh.pop %v5787
        %v5789 = vrot.slane %v5777, 2
        %v5791 = vmul.f32 %v5789, %v5788
        %v5792 = vsel %vm1718, %v1517, %v5787
        %v5793 = vsel %vm1718, %v1521, %v5791
        %s5794 = scalar_lea.vmem %s249, 98 [#allocation2]
        %v5795 = vld [vmem:[%s5794] ss:$8 sm:$0xf]
        %5796 = vmatprep.subr.mxu0 %v5341
        %5797 = vmatpush1.msra.mxu0 %v5340
        %5798 = vmatprep.subr.mxu0 %v5345
        %5799 = vmatpush1.msra.mxu0 %v5344
        %5800 = vmatprep.subr.mxu0 %v5349
        %5801 = vmatpush1.msra.mxu0 %v5348
        %5802 = vmatprep.subr.mxu0 %v5353
        %5803 = vmatpush1.msra.mxu0 %v5352
        %5804 = vmatprep.subr.mxu0 %v5357
        %5805 = vmatpush1.msra.mxu0 %v5356
        %5806 = vmatprep.subr.mxu0 %v5361
        %5807 = vmatpush1.msra.mxu0 %v5360
        %5808 = vmatprep.subr.mxu0 %v5365
        %5809 = vmatpush1.msra.mxu0 %v5364
        %5810 = vmatprep.subr.mxu0 %v5369
        %5811 = vmatpush1.msra.mxu0 %v5368
        %5812 = vmatprep.subr.mxu0 %v5373
        %5813 = vmatpush1.msra.mxu0 %v5372
        %5814 = vmatprep.subr.mxu0 %v5377
        %5815 = vmatpush1.msra.mxu0 %v5376
        %5816 = vmatprep.subr.mxu0 %v5381
        %5817 = vmatpush1.msra.mxu0 %v5380
        %5818 = vmatprep.subr.mxu0 %v5385
        %5819 = vmatpush1.msra.mxu0 %v5384
        %5820 = vmatprep.subr.mxu0 %v5389
        %5821 = vmatpush1.msra.mxu0 %v5388
        %5822 = vmatprep.subr.mxu0 %v5393
        %5823 = vmatpush1.msra.mxu0 %v5392
        %5824 = vmatprep.subr.mxu0 %v5397
        %5825 = vmatpush1.msra.mxu0 %v5396
        %5826 = vmatprep.subr.mxu0 %v5401
        %5827 = vmatpush1.msra.mxu0 %v5400
        %5828 = vmatprep.subr.mxu0 0.0
        %5829 = vmatpush1.msra.mxu0 0.0
        %5830 = vmatprep.subr.mxu0 0.0
        %5831 = vmatpush1.msra.mxu0 0.0
        %5832 = vmatprep.subr.mxu0 0.0
        %5833 = vmatpush1.msra.mxu0 0.0
        %5834 = vmatprep.subr.mxu0 0.0
        %5835 = vmatpush1.msra.mxu0 0.0
        %5836 = vmatprep.subr.mxu0 0.0
        %5837 = vmatpush1.msra.mxu0 0.0
        %5838 = vmatprep.subr.mxu0 0.0
        %5839 = vmatpush1.msra.mxu0 0.0
        %5840 = vmatprep.subr.mxu0 0.0
        %5841 = vmatpush1.msra.mxu0 0.0
        %5842 = vmatprep.subr.mxu0 0.0
        %5843 = vmatpush1.msra.mxu0 0.0
        %5844 = vmatprep.subr.mxu0 0.0
        %5845 = vmatpush1.msra.mxu0 0.0
        %5846 = vmatprep.subr.mxu0 0.0
        %5847 = vmatpush1.msra.mxu0 0.0
        %5848 = vmatprep.subr.mxu0 0.0
        %5849 = vmatpush1.msra.mxu0 0.0
        %5850 = vmatprep.subr.mxu0 0.0
        %5851 = vmatpush1.msra.mxu0 0.0
        %5852 = vmatprep.subr.mxu0 0.0
        %5853 = vmatpush1.msra.mxu0 0.0
        %5854 = vmatprep.subr.mxu0 0.0
        %5855 = vmatpush1.msra.mxu0 0.0
        %5856 = vmatprep.subr.mxu0 0.0
        %5857 = vmatpush1.msra.mxu0 0.0
        %5858 = vmatprep.subr.mxu0 0.0
        %5859 = vmatpush1.msra.mxu0 0.0
        %5860 = vmatprep.mubr.f32.mxu0 0.0
        %5861 = vmatmul.mubr.f32.gmra.mrb[0].mxu0 %v5793
        %v5862 = vpop.f32.mrb[0].mxu0
        %v5863 = vadd.f32 0.0, %v5862
        %v5864 = vpop.f32.mrb[0].mxu0
        %v5865 = vadd.f32 0.0, %v5864
        %5866 = vdwg.mxu0
        %5867 = vmatprep.subr.mxu0 %v5343
        %5868 = vmatpush1.msra.mxu0 %v5342
        %5869 = vmatprep.subr.mxu0 %v5347
        %5870 = vmatpush1.msra.mxu0 %v5346
        %5871 = vmatprep.subr.mxu0 %v5351
        %5872 = vmatpush1.msra.mxu0 %v5350
        %5873 = vmatprep.subr.mxu0 %v5355
        %5874 = vmatpush1.msra.mxu0 %v5354
        %5875 = vmatprep.subr.mxu0 %v5359
        %5876 = vmatpush1.msra.mxu0 %v5358
        %5877 = vmatprep.subr.mxu0 %v5363
        %5878 = vmatpush1.msra.mxu0 %v5362
        %5879 = vmatprep.subr.mxu0 %v5367
        %5880 = vmatpush1.msra.mxu0 %v5366
        %5881 = vmatprep.subr.mxu0 %v5371
        %5882 = vmatpush1.msra.mxu0 %v5370
        %5883 = vmatprep.subr.mxu0 %v5375
        %5884 = vmatpush1.msra.mxu0 %v5374
        %5885 = vmatprep.subr.mxu0 %v5379
        %5886 = vmatpush1.msra.mxu0 %v5378
        %5887 = vmatprep.subr.mxu0 %v5383
        %5888 = vmatpush1.msra.mxu0 %v5382
        %5889 = vmatprep.subr.mxu0 %v5387
        %5890 = vmatpush1.msra.mxu0 %v5386
        %5891 = vmatprep.subr.mxu0 %v5391
        %5892 = vmatpush1.msra.mxu0 %v5390
        %5893 = vmatprep.subr.mxu0 %v5395
        %5894 = vmatpush1.msra.mxu0 %v5394
        %5895 = vmatprep.subr.mxu0 %v5399
        %5896 = vmatpush1.msra.mxu0 %v5398
        %5897 = vmatprep.subr.mxu0 %v5403
        %5898 = vmatpush1.msra.mxu0 %v5402
        %5899 = vmatprep.subr.mxu0 0.0
        %5900 = vmatpush1.msra.mxu0 0.0
        %5901 = vmatprep.subr.mxu0 0.0
        %5902 = vmatpush1.msra.mxu0 0.0
        %5903 = vmatprep.subr.mxu0 0.0
        %5904 = vmatpush1.msra.mxu0 0.0
        %5905 = vmatprep.subr.mxu0 0.0
        %5906 = vmatpush1.msra.mxu0 0.0
        %5907 = vmatprep.subr.mxu0 0.0
        %5908 = vmatpush1.msra.mxu0 0.0
        %5909 = vmatprep.subr.mxu0 0.0
        %5910 = vmatpush1.msra.mxu0 0.0
        %5911 = vmatprep.subr.mxu0 0.0
        %5912 = vmatpush1.msra.mxu0 0.0
        %5913 = vmatprep.subr.mxu0 0.0
        %5914 = vmatpush1.msra.mxu0 0.0
        %5915 = vmatprep.subr.mxu0 0.0
        %5916 = vmatpush1.msra.mxu0 0.0
        %5917 = vmatprep.subr.mxu0 0.0
        %5918 = vmatpush1.msra.mxu0 0.0
        %5919 = vmatprep.subr.mxu0 0.0
        %5920 = vmatpush1.msra.mxu0 0.0
        %5921 = vmatprep.subr.mxu0 0.0
        %5922 = vmatpush1.msra.mxu0 0.0
        %5923 = vmatprep.subr.mxu0 0.0
        %5924 = vmatpush1.msra.mxu0 0.0
        %5925 = vmatprep.subr.mxu0 0.0
        %5926 = vmatpush1.msra.mxu0 0.0
        %5927 = vmatprep.subr.mxu0 0.0
        %5928 = vmatpush1.msra.mxu0 0.0
        %5929 = vmatprep.subr.mxu0 0.0
        %5930 = vmatpush1.msra.mxu0 0.0
        %5931 = vmatprep.mubr.f32.mxu0 0.0
        %5932 = vmatmul.mubr.f32.gmra.mrb[0].mxu0 %v5793
        %v5933 = vpop.f32.mrb[0].mxu0
        %v5934 = vadd.f32 0.0, %v5933
        %v5935 = vpop.f32.mrb[0].mxu0
        %v5936 = vadd.f32 0.0, %v5935
        %5937 = vdwg.mxu0
        %v5942 = vcombine.low %v5863, %v5865
        %v5943 = vcombine.low %v5934, %v5936
        %v5945 = vunpack.c.l.s4 1966171168
        %v5946 = vunpack.c.0.s8 %v5945
        %v5947 = vlaneseq
        %v5948 = vshrl.u32 %v5947, 7
        %v5949 = vsub.s32 %v5946, %v5948
        %v5950 = vrot.slane %v5942, %v5949
        %v5952 = vunpack.c.l.s4 1966171168
        %v5953 = vunpack.c.0.s8 %v5952
        %v5954 = vlaneseq
        %v5955 = vshrl.u32 %v5954, 7
        %v5956 = vsub.s32 %v5953, %v5955
        %v5957 = vrot.slane %v5943, %v5956
        %v5958 = vcombine.low %v5950, %v5957
        %v5960 = vunpack.c.l.s4 1966171168
        %v5961 = vunpack.c.0.s8 %v5960
        %v5962 = vlaneseq
        %v5963 = vshrl.u32 %v5962, 7
        %v5964 = vsub.s32 %v5961, %v5963
        %v5965 = vrot.slane %v5958, %v5964
        %v5967 = vadd.f32 %v5795, %v5965
        %v5968 = vxor.u32 %v5967, 2147483648
        %v5969 = vmul.f32 %v5968, 1.442695
        %v5970 = vpow.pop %v5969
        %v5971 = vadd.f32 %v5970, 1.0
        %v5972 = vrcp.pop %v5971
        %v5973 = vmul.f32 1.0, %v5972
        %v5975 = vrot.slane %v5967, 3
        %v5977 = vtanh.pop %v5975
        %v5979 = vrot.slane %v5973, 1
        %v5981 = vmul.f32 %v5979, %v5792
        %v5982 = vmul.f32 %v5973, %v5977
        %v5983 = vadd.f32 %v5981, %v5982
        %v5984 = vtanh.pop %v5983
        %v5985 = vrot.slane %v5973, 2
        %v5987 = vmul.f32 %v5985, %v5984
        %v5988 = vsel %vm1718, %v1517, %v5983
        %v5989 = vsel %vm1718, %v1521, %v5987
        %s5990 = scalar_lea.vmem %s249, 99 [#allocation2]
        %v5991 = vld [vmem:[%s5990] ss:$8 sm:$0xf]
        %5992 = vmatprep.subr.mxu0 %v5341
        %5993 = vmatpush1.msra.mxu0 %v5340
        %5994 = vmatprep.subr.mxu0 %v5345
        %5995 = vmatpush1.msra.mxu0 %v5344
        %5996 = vmatprep.subr.mxu0 %v5349
        %5997 = vmatpush1.msra.mxu0 %v5348
        %5998 = vmatprep.subr.mxu0 %v5353
        %5999 = vmatpush1.msra.mxu0 %v5352
        %6000 = vmatprep.subr.mxu0 %v5357
        %6001 = vmatpush1.msra.mxu0 %v5356
        %6002 = vmatprep.subr.mxu0 %v5361
        %6003 = vmatpush1.msra.mxu0 %v5360
        %6004 = vmatprep.subr.mxu0 %v5365
        %6005 = vmatpush1.msra.mxu0 %v5364
        %6006 = vmatprep.subr.mxu0 %v5369
        %6007 = vmatpush1.msra.mxu0 %v5368
        %6008 = vmatprep.subr.mxu0 %v5373
        %6009 = vmatpush1.msra.mxu0 %v5372
        %6010 = vmatprep.subr.mxu0 %v5377
        %6011 = vmatpush1.msra.mxu0 %v5376
        %6012 = vmatprep.subr.mxu0 %v5381
        %6013 = vmatpush1.msra.mxu0 %v5380
        %6014 = vmatprep.subr.mxu0 %v5385
        %6015 = vmatpush1.msra.mxu0 %v5384
        %6016 = vmatprep.subr.mxu0 %v5389
        %6017 = vmatpush1.msra.mxu0 %v5388
        %6018 = vmatprep.subr.mxu0 %v5393
        %6019 = vmatpush1.msra.mxu0 %v5392
        %6020 = vmatprep.subr.mxu0 %v5397
        %6021 = vmatpush1.msra.mxu0 %v5396
        %6022 = vmatprep.subr.mxu0 %v5401
        %6023 = vmatpush1.msra.mxu0 %v5400
        %6024 = vmatprep.subr.mxu0 0.0
        %6025 = vmatpush1.msra.mxu0 0.0
        %6026 = vmatprep.subr.mxu0 0.0
        %6027 = vmatpush1.msra.mxu0 0.0
        %6028 = vmatprep.subr.mxu0 0.0
        %6029 = vmatpush1.msra.mxu0 0.0
        %6030 = vmatprep.subr.mxu0 0.0
        %6031 = vmatpush1.msra.mxu0 0.0
        %6032 = vmatprep.subr.mxu0 0.0
        %6033 = vmatpush1.msra.mxu0 0.0
        %6034 = vmatprep.subr.mxu0 0.0
        %6035 = vmatpush1.msra.mxu0 0.0
        %6036 = vmatprep.subr.mxu0 0.0
        %6037 = vmatpush1.msra.mxu0 0.0
        %6038 = vmatprep.subr.mxu0 0.0
        %6039 = vmatpush1.msra.mxu0 0.0
        %6040 = vmatprep.subr.mxu0 0.0
        %6041 = vmatpush1.msra.mxu0 0.0
        %6042 = vmatprep.subr.mxu0 0.0
        %6043 = vmatpush1.msra.mxu0 0.0
        %6044 = vmatprep.subr.mxu0 0.0
        %6045 = vmatpush1.msra.mxu0 0.0
        %6046 = vmatprep.subr.mxu0 0.0
        %6047 = vmatpush1.msra.mxu0 0.0
        %6048 = vmatprep.subr.mxu0 0.0
        %6049 = vmatpush1.msra.mxu0 0.0
        %6050 = vmatprep.subr.mxu0 0.0
        %6051 = vmatpush1.msra.mxu0 0.0
        %6052 = vmatprep.subr.mxu0 0.0
        %6053 = vmatpush1.msra.mxu0 0.0
        %6054 = vmatprep.subr.mxu0 0.0
        %6055 = vmatpush1.msra.mxu0 0.0
        %6056 = vmatprep.mubr.f32.mxu0 0.0
        %6057 = vmatmul.mubr.f32.gmra.mrb[0].mxu0 %v5989
        %v6058 = vpop.f32.mrb[0].mxu0
        %v6059 = vadd.f32 0.0, %v6058
        %v6060 = vpop.f32.mrb[0].mxu0
        %v6061 = vadd.f32 0.0, %v6060
        %6062 = vdwg.mxu0
        %6063 = vmatprep.subr.mxu0 %v5343
        %6064 = vmatpush1.msra.mxu0 %v5342
        %6065 = vmatprep.subr.mxu0 %v5347
        %6066 = vmatpush1.msra.mxu0 %v5346
        %6067 = vmatprep.subr.mxu0 %v5351
        %6068 = vmatpush1.msra.mxu0 %v5350
        %6069 = vmatprep.subr.mxu0 %v5355
        %6070 = vmatpush1.msra.mxu0 %v5354
        %6071 = vmatprep.subr.mxu0 %v5359
        %6072 = vmatpush1.msra.mxu0 %v5358
        %6073 = vmatprep.subr.mxu0 %v5363
        %6074 = vmatpush1.msra.mxu0 %v5362
        %6075 = vmatprep.subr.mxu0 %v5367
        %6076 = vmatpush1.msra.mxu0 %v5366
        %6077 = vmatprep.subr.mxu0 %v5371
        %6078 = vmatpush1.msra.mxu0 %v5370
        %6079 = vmatprep.subr.mxu0 %v5375
        %6080 = vmatpush1.msra.mxu0 %v5374
        %6081 = vmatprep.subr.mxu0 %v5379
        %6082 = vmatpush1.msra.mxu0 %v5378
        %6083 = vmatprep.subr.mxu0 %v5383
        %6084 = vmatpush1.msra.mxu0 %v5382
        %6085 = vmatprep.subr.mxu0 %v5387
        %6086 = vmatpush1.msra.mxu0 %v5386
        %6087 = vmatprep.subr.mxu0 %v5391
        %6088 = vmatpush1.msra.mxu0 %v5390
        %6089 = vmatprep.subr.mxu0 %v5395
        %6090 = vmatpush1.msra.mxu0 %v5394
        %6091 = vmatprep.subr.mxu0 %v5399
        %6092 = vmatpush1.msra.mxu0 %v5398
        %6093 = vmatprep.subr.mxu0 %v5403
        %6094 = vmatpush1.msra.mxu0 %v5402
        %6095 = vmatprep.subr.mxu0 0.0
        %6096 = vmatpush1.msra.mxu0 0.0
        %6097 = vmatprep.subr.mxu0 0.0
        %6098 = vmatpush1.msra.mxu0 0.0
        %6099 = vmatprep.subr.mxu0 0.0
        %6100 = vmatpush1.msra.mxu0 0.0
        %6101 = vmatprep.subr.mxu0 0.0
        %6102 = vmatpush1.msra.mxu0 0.0
        %6103 = vmatprep.subr.mxu0 0.0
        %6104 = vmatpush1.msra.mxu0 0.0
        %6105 = vmatprep.subr.mxu0 0.0
        %6106 = vmatpush1.msra.mxu0 0.0
        %6107 = vmatprep.subr.mxu0 0.0
        %6108 = vmatpush1.msra.mxu0 0.0
        %6109 = vmatprep.subr.mxu0 0.0
        %6110 = vmatpush1.msra.mxu0 0.0
        %6111 = vmatprep.subr.mxu0 0.0
        %6112 = vmatpush1.msra.mxu0 0.0
        %6113 = vmatprep.subr.mxu0 0.0
        %6114 = vmatpush1.msra.mxu0 0.0
        %6115 = vmatprep.subr.mxu0 0.0
        %6116 = vmatpush1.msra.mxu0 0.0
        %6117 = vmatprep.subr.mxu0 0.0
        %6118 = vmatpush1.msra.mxu0 0.0
        %6119 = vmatprep.subr.mxu0 0.0
        %6120 = vmatpush1.msra.mxu0 0.0
        %6121 = vmatprep.subr.mxu0 0.0
        %6122 = vmatpush1.msra.mxu0 0.0
        %6123 = vmatprep.subr.mxu0 0.0
        %6124 = vmatpush1.msra.mxu0 0.0
        %6125 = vmatprep.subr.mxu0 0.0
        %6126 = vmatpush1.msra.mxu0 0.0
        %6127 = vmatprep.mubr.f32.mxu0 0.0
        %6128 = vmatmul.mubr.f32.gmra.mrb[0].mxu0 %v5989
        %v6129 = vpop.f32.mrb[0].mxu0
        %v6130 = vadd.f32 0.0, %v6129
        %v6131 = vpop.f32.mrb[0].mxu0
        %v6132 = vadd.f32 0.0, %v6131
        %6133 = vdwg.mxu0
        %v6138 = vcombine.low %v6059, %v6061
        %v6139 = vcombine.low %v6130, %v6132
        %v6141 = vunpack.c.l.s4 1966171168
        %v6142 = vunpack.c.0.s8 %v6141
        %v6143 = vlaneseq
        %v6144 = vshrl.u32 %v6143, 7
        %v6145 = vsub.s32 %v6142, %v6144
        %v6146 = vrot.slane %v6138, %v6145
        %v6148 = vunpack.c.l.s4 1966171168
        %v6149 = vunpack.c.0.s8 %v6148
        %v6150 = vlaneseq
        %v6151 = vshrl.u32 %v6150, 7
        %v6152 = vsub.s32 %v6149, %v6151
        %v6153 = vrot.slane %v6139, %v6152
        %v6154 = vcombine.low %v6146, %v6153
        %v6156 = vunpack.c.l.s4 1966171168
        %v6157 = vunpack.c.0.s8 %v6156
        %v6158 = vlaneseq
        %v6159 = vshrl.u32 %v6158, 7
        %v6160 = vsub.s32 %v6157, %v6159
        %v6161 = vrot.slane %v6154, %v6160
        %v6163 = vadd.f32 %v5991, %v6161
        %v6164 = vxor.u32 %v6163, 2147483648
        %v6165 = vmul.f32 %v6164, 1.442695
        %v6166 = vpow.pop %v6165
        %v6167 = vadd.f32 %v6166, 1.0
        %v6168 = vrcp.pop %v6167
        %v6169 = vmul.f32 1.0, %v6168
        %v6171 = vrot.slane %v6163, 3
        %v6173 = vtanh.pop %v6171
        %v6175 = vrot.slane %v6169, 1
        %v6177 = vmul.f32 %v6175, %v5988
        %v6178 = vmul.f32 %v6169, %v6173
        %v6179 = vadd.f32 %v6177, %v6178
        %v6180 = vtanh.pop %v6179
        %v6181 = vrot.slane %v6169, 2
        %v6183 = vmul.f32 %v6181, %v6180
        %v6184 = vsel %vm1718, %v1517, %v6179
        %v6185 = vsel %vm1718, %v1521, %v6183
        %s6186 = scalar_lea.vmem %s249, 100 [#allocation2]
        %v6187 = vld [vmem:[%s6186] ss:$8 sm:$0xf]
        %6188 = vmatprep.subr.mxu0 %v5341
        %6189 = vmatpush1.msra.mxu0 %v5340
        %6190 = vmatprep.subr.mxu0 %v5345
        %6191 = vmatpush1.msra.mxu0 %v5344
        %6192 = vmatprep.subr.mxu0 %v5349
        %6193 = vmatpush1.msra.mxu0 %v5348
        %6194 = vmatprep.subr.mxu0 %v5353
        %6195 = vmatpush1.msra.mxu0 %v5352
        %6196 = vmatprep.subr.mxu0 %v5357
        %6197 = vmatpush1.msra.mxu0 %v5356
        %6198 = vmatprep.subr.mxu0 %v5361
        %6199 = vmatpush1.msra.mxu0 %v5360
        %6200 = vmatprep.subr.mxu0 %v5365
        %6201 = vmatpush1.msra.mxu0 %v5364
        %6202 = vmatprep.subr.mxu0 %v5369
        %6203 = vmatpush1.msra.mxu0 %v5368
        %6204 = vmatprep.subr.mxu0 %v5373
        %6205 = vmatpush1.msra.mxu0 %v5372
        %6206 = vmatprep.subr.mxu0 %v5377
        %6207 = vmatpush1.msra.mxu0 %v5376
        %6208 = vmatprep.subr.mxu0 %v5381
        %6209 = vmatpush1.msra.mxu0 %v5380
        %6210 = vmatprep.subr.mxu0 %v5385
        %6211 = vmatpush1.msra.mxu0 %v5384
        %6212 = vmatprep.subr.mxu0 %v5389
        %6213 = vmatpush1.msra.mxu0 %v5388
        %6214 = vmatprep.subr.mxu0 %v5393
        %6215 = vmatpush1.msra.mxu0 %v5392
        %6216 = vmatprep.subr.mxu0 %v5397
        %6217 = vmatpush1.msra.mxu0 %v5396
        %6218 = vmatprep.subr.mxu0 %v5401
        %6219 = vmatpush1.msra.mxu0 %v5400
        %6220 = vmatprep.subr.mxu0 0.0
        %6221 = vmatpush1.msra.mxu0 0.0
        %6222 = vmatprep.subr.mxu0 0.0
        %6223 = vmatpush1.msra.mxu0 0.0
        %6224 = vmatprep.subr.mxu0 0.0
        %6225 = vmatpush1.msra.mxu0 0.0
        %6226 = vmatprep.subr.mxu0 0.0
        %6227 = vmatpush1.msra.mxu0 0.0
        %6228 = vmatprep.subr.mxu0 0.0
        %6229 = vmatpush1.msra.mxu0 0.0
        %6230 = vmatprep.subr.mxu0 0.0
        %6231 = vmatpush1.msra.mxu0 0.0
        %6232 = vmatprep.subr.mxu0 0.0
        %6233 = vmatpush1.msra.mxu0 0.0
        %6234 = vmatprep.subr.mxu0 0.0
        %6235 = vmatpush1.msra.mxu0 0.0
        %6236 = vmatprep.subr.mxu0 0.0
        %6237 = vmatpush1.msra.mxu0 0.0
        %6238 = vmatprep.subr.mxu0 0.0
        %6239 = vmatpush1.msra.mxu0 0.0
        %6240 = vmatprep.subr.mxu0 0.0
        %6241 = vmatpush1.msra.mxu0 0.0
        %6242 = vmatprep.subr.mxu0 0.0
        %6243 = vmatpush1.msra.mxu0 0.0
        %6244 = vmatprep.subr.mxu0 0.0
        %6245 = vmatpush1.msra.mxu0 0.0
        %6246 = vmatprep.subr.mxu0 0.0
        %6247 = vmatpush1.msra.mxu0 0.0
        %6248 = vmatprep.subr.mxu0 0.0
        %6249 = vmatpush1.msra.mxu0 0.0
        %6250 = vmatprep.subr.mxu0 0.0
        %6251 = vmatpush1.msra.mxu0 0.0
        %6252 = vmatprep.mubr.f32.mxu0 0.0
        %6253 = vmatmul.mubr.f32.gmra.mrb[0].mxu0 %v6185
        %v6254 = vpop.f32.mrb[0].mxu0
        %v6255 = vadd.f32 0.0, %v6254
        %v6256 = vpop.f32.mrb[0].mxu0
        %v6257 = vadd.f32 0.0, %v6256
        %6258 = vdwg.mxu0
        %6259 = vmatprep.subr.mxu0 %v5343
        %6260 = vmatpush1.msra.mxu0 %v5342
        %6261 = vmatprep.subr.mxu0 %v5347
        %6262 = vmatpush1.msra.mxu0 %v5346
        %6263 = vmatprep.subr.mxu0 %v5351
        %6264 = vmatpush1.msra.mxu0 %v5350
        %6265 = vmatprep.subr.mxu0 %v5355
        %6266 = vmatpush1.msra.mxu0 %v5354
        %6267 = vmatprep.subr.mxu0 %v5359
        %6268 = vmatpush1.msra.mxu0 %v5358
        %6269 = vmatprep.subr.mxu0 %v5363
        %6270 = vmatpush1.msra.mxu0 %v5362
        %6271 = vmatprep.subr.mxu0 %v5367
        %6272 = vmatpush1.msra.mxu0 %v5366
        %6273 = vmatprep.subr.mxu0 %v5371
        %6274 = vmatpush1.msra.mxu0 %v5370
        %6275 = vmatprep.subr.mxu0 %v5375
        %6276 = vmatpush1.msra.mxu0 %v5374
        %6277 = vmatprep.subr.mxu0 %v5379
        %6278 = vmatpush1.msra.mxu0 %v5378
        %6279 = vmatprep.subr.mxu0 %v5383
        %6280 = vmatpush1.msra.mxu0 %v5382
        %6281 = vmatprep.subr.mxu0 %v5387
        %6282 = vmatpush1.msra.mxu0 %v5386
        %6283 = vmatprep.subr.mxu0 %v5391
        %6284 = vmatpush1.msra.mxu0 %v5390
        %6285 = vmatprep.subr.mxu0 %v5395
        %6286 = vmatpush1.msra.mxu0 %v5394
        %6287 = vmatprep.subr.mxu0 %v5399
        %6288 = vmatpush1.msra.mxu0 %v5398
        %6289 = vmatprep.subr.mxu0 %v5403
        %6290 = vmatpush1.msra.mxu0 %v5402
        %6291 = vmatprep.subr.mxu0 0.0
        %6292 = vmatpush1.msra.mxu0 0.0
        %6293 = vmatprep.subr.mxu0 0.0
        %6294 = vmatpush1.msra.mxu0 0.0
        %6295 = vmatprep.subr.mxu0 0.0
        %6296 = vmatpush1.msra.mxu0 0.0
        %6297 = vmatprep.subr.mxu0 0.0
        %6298 = vmatpush1.msra.mxu0 0.0
        %6299 = vmatprep.subr.mxu0 0.0
        %6300 = vmatpush1.msra.mxu0 0.0
        %6301 = vmatprep.subr.mxu0 0.0
        %6302 = vmatpush1.msra.mxu0 0.0
        %6303 = vmatprep.subr.mxu0 0.0
        %6304 = vmatpush1.msra.mxu0 0.0
        %6305 = vmatprep.subr.mxu0 0.0
        %6306 = vmatpush1.msra.mxu0 0.0
        %6307 = vmatprep.subr.mxu0 0.0
        %6308 = vmatpush1.msra.mxu0 0.0
        %6309 = vmatprep.subr.mxu0 0.0
        %6310 = vmatpush1.msra.mxu0 0.0
        %6311 = vmatprep.subr.mxu0 0.0
        %6312 = vmatpush1.msra.mxu0 0.0
        %6313 = vmatprep.subr.mxu0 0.0
        %6314 = vmatpush1.msra.mxu0 0.0
        %6315 = vmatprep.subr.mxu0 0.0
        %6316 = vmatpush1.msra.mxu0 0.0
        %6317 = vmatprep.subr.mxu0 0.0
        %6318 = vmatpush1.msra.mxu0 0.0
        %6319 = vmatprep.subr.mxu0 0.0
        %6320 = vmatpush1.msra.mxu0 0.0
        %6321 = vmatprep.subr.mxu0 0.0
        %6322 = vmatpush1.msra.mxu0 0.0
        %6323 = vmatprep.mubr.f32.mxu0 0.0
        %6324 = vmatmul.mubr.f32.gmra.mrb[0].mxu0 %v6185
        %v6325 = vpop.f32.mrb[0].mxu0
        %v6326 = vadd.f32 0.0, %v6325
        %v6327 = vpop.f32.mrb[0].mxu0
        %v6328 = vadd.f32 0.0, %v6327
        %6329 = vdwg.mxu0
        %v6334 = vcombine.low %v6255, %v6257
        %v6335 = vcombine.low %v6326, %v6328
        %v6337 = vunpack.c.l.s4 1966171168
        %v6338 = vunpack.c.0.s8 %v6337
        %v6339 = vlaneseq
        %v6340 = vshrl.u32 %v6339, 7
        %v6341 = vsub.s32 %v6338, %v6340
        %v6342 = vrot.slane %v6334, %v6341
        %v6344 = vunpack.c.l.s4 1966171168
        %v6345 = vunpack.c.0.s8 %v6344
        %v6346 = vlaneseq
        %v6347 = vshrl.u32 %v6346, 7
        %v6348 = vsub.s32 %v6345, %v6347
        %v6349 = vrot.slane %v6335, %v6348
        %v6350 = vcombine.low %v6342, %v6349
        %v6352 = vunpack.c.l.s4 1966171168
        %v6353 = vunpack.c.0.s8 %v6352
        %v6354 = vlaneseq
        %v6355 = vshrl.u32 %v6354, 7
        %v6356 = vsub.s32 %v6353, %v6355
        %v6357 = vrot.slane %v6350, %v6356
        %v6359 = vadd.f32 %v6187, %v6357
        %v6360 = vxor.u32 %v6359, 2147483648
        %v6361 = vmul.f32 %v6360, 1.442695
        %v6362 = vpow.pop %v6361
        %v6363 = vadd.f32 %v6362, 1.0
        %v6364 = vrcp.pop %v6363
        %v6365 = vmul.f32 1.0, %v6364
        %v6367 = vrot.slane %v6359, 3
        %v6369 = vtanh.pop %v6367
        %v6371 = vrot.slane %v6365, 1
        %v6373 = vmul.f32 %v6371, %v6184
        %v6374 = vmul.f32 %v6365, %v6369
        %v6375 = vadd.f32 %v6373, %v6374
        %v6376 = vtanh.pop %v6375
        %v6377 = vrot.slane %v6365, 2
        %v6379 = vmul.f32 %v6377, %v6376
        %v6380 = vsel %vm1718, %v1517, %v6375
        %v6381 = vsel %vm1718, %v1521, %v6379
        %s6382 = scalar_lea.vmem %s249, 101 [#allocation2]
        %v6383 = vld [vmem:[%s6382] ss:$8 sm:$0xf]
        %6384 = vmatprep.subr.mxu0 %v5341
        %6385 = vmatpush1.msra.mxu0 %v5340
        %6386 = vmatprep.subr.mxu0 %v5345
        %6387 = vmatpush1.msra.mxu0 %v5344
        %6388 = vmatprep.subr.mxu0 %v5349
        %6389 = vmatpush1.msra.mxu0 %v5348
        %6390 = vmatprep.subr.mxu0 %v5353
        %6391 = vmatpush1.msra.mxu0 %v5352
        %6392 = vmatprep.subr.mxu0 %v5357
        %6393 = vmatpush1.msra.mxu0 %v5356
        %6394 = vmatprep.subr.mxu0 %v5361
        %6395 = vmatpush1.msra.mxu0 %v5360
        %6396 = vmatprep.subr.mxu0 %v5365
        %6397 = vmatpush1.msra.mxu0 %v5364
        %6398 = vmatprep.subr.mxu0 %v5369
        %6399 = vmatpush1.msra.mxu0 %v5368
        %6400 = vmatprep.subr.mxu0 %v5373
        %6401 = vmatpush1.msra.mxu0 %v5372
        %6402 = vmatprep.subr.mxu0 %v5377
        %6403 = vmatpush1.msra.mxu0 %v5376
        %6404 = vmatprep.subr.mxu0 %v5381
        %6405 = vmatpush1.msra.mxu0 %v5380
        %6406 = vmatprep.subr.mxu0 %v5385
        %6407 = vmatpush1.msra.mxu0 %v5384
        %6408 = vmatprep.subr.mxu0 %v5389
        %6409 = vmatpush1.msra.mxu0 %v5388
        %6410 = vmatprep.subr.mxu0 %v5393
        %6411 = vmatpush1.msra.mxu0 %v5392
        %6412 = vmatprep.subr.mxu0 %v5397
        %6413 = vmatpush1.msra.mxu0 %v5396
        %6414 = vmatprep.subr.mxu0 %v5401
        %6415 = vmatpush1.msra.mxu0 %v5400
        %6416 = vmatprep.subr.mxu0 0.0
        %6417 = vmatpush1.msra.mxu0 0.0
        %6418 = vmatprep.subr.mxu0 0.0
        %6419 = vmatpush1.msra.mxu0 0.0
        %6420 = vmatprep.subr.mxu0 0.0
        %6421 = vmatpush1.msra.mxu0 0.0
        %6422 = vmatprep.subr.mxu0 0.0
        %6423 = vmatpush1.msra.mxu0 0.0
        %6424 = vmatprep.subr.mxu0 0.0
        %6425 = vmatpush1.msra.mxu0 0.0
        %6426 = vmatprep.subr.mxu0 0.0
        %6427 = vmatpush1.msra.mxu0 0.0
        %6428 = vmatprep.subr.mxu0 0.0
        %6429 = vmatpush1.msra.mxu0 0.0
        %6430 = vmatprep.subr.mxu0 0.0
        %6431 = vmatpush1.msra.mxu0 0.0
        %6432 = vmatprep.subr.mxu0 0.0
        %6433 = vmatpush1.msra.mxu0 0.0
        %6434 = vmatprep.subr.mxu0 0.0
        %6435 = vmatpush1.msra.mxu0 0.0
        %6436 = vmatprep.subr.mxu0 0.0
        %6437 = vmatpush1.msra.mxu0 0.0
        %6438 = vmatprep.subr.mxu0 0.0
        %6439 = vmatpush1.msra.mxu0 0.0
        %6440 = vmatprep.subr.mxu0 0.0
        %6441 = vmatpush1.msra.mxu0 0.0
        %6442 = vmatprep.subr.mxu0 0.0
        %6443 = vmatpush1.msra.mxu0 0.0
        %6444 = vmatprep.subr.mxu0 0.0
        %6445 = vmatpush1.msra.mxu0 0.0
        %6446 = vmatprep.subr.mxu0 0.0
        %6447 = vmatpush1.msra.mxu0 0.0
        %6448 = vmatprep.mubr.f32.mxu0 0.0
        %6449 = vmatmul.mubr.f32.gmra.mrb[0].mxu0 %v6381
        %v6450 = vpop.f32.mrb[0].mxu0
        %v6451 = vadd.f32 0.0, %v6450
        %v6452 = vpop.f32.mrb[0].mxu0
        %v6453 = vadd.f32 0.0, %v6452
        %6454 = vdwg.mxu0
        %6455 = vmatprep.subr.mxu0 %v5343
        %6456 = vmatpush1.msra.mxu0 %v5342
        %6457 = vmatprep.subr.mxu0 %v5347
        %6458 = vmatpush1.msra.mxu0 %v5346
        %6459 = vmatprep.subr.mxu0 %v5351
        %6460 = vmatpush1.msra.mxu0 %v5350
        %6461 = vmatprep.subr.mxu0 %v5355
        %6462 = vmatpush1.msra.mxu0 %v5354
        %6463 = vmatprep.subr.mxu0 %v5359
        %6464 = vmatpush1.msra.mxu0 %v5358
        %6465 = vmatprep.subr.mxu0 %v5363
        %6466 = vmatpush1.msra.mxu0 %v5362
        %6467 = vmatprep.subr.mxu0 %v5367
        %6468 = vmatpush1.msra.mxu0 %v5366
        %6469 = vmatprep.subr.mxu0 %v5371
        %6470 = vmatpush1.msra.mxu0 %v5370
        %6471 = vmatprep.subr.mxu0 %v5375
        %6472 = vmatpush1.msra.mxu0 %v5374
        %6473 = vmatprep.subr.mxu0 %v5379
        %6474 = vmatpush1.msra.mxu0 %v5378
        %6475 = vmatprep.subr.mxu0 %v5383
        %6476 = vmatpush1.msra.mxu0 %v5382
        %6477 = vmatprep.subr.mxu0 %v5387
        %6478 = vmatpush1.msra.mxu0 %v5386
        %6479 = vmatprep.subr.mxu0 %v5391
        %6480 = vmatpush1.msra.mxu0 %v5390
        %6481 = vmatprep.subr.mxu0 %v5395
        %6482 = vmatpush1.msra.mxu0 %v5394
        %6483 = vmatprep.subr.mxu0 %v5399
        %6484 = vmatpush1.msra.mxu0 %v5398
        %6485 = vmatprep.subr.mxu0 %v5403
        %6486 = vmatpush1.msra.mxu0 %v5402
        %6487 = vmatprep.subr.mxu0 0.0
        %6488 = vmatpush1.msra.mxu0 0.0
        %6489 = vmatprep.subr.mxu0 0.0
        %6490 = vmatpush1.msra.mxu0 0.0
        %6491 = vmatprep.subr.mxu0 0.0
        %6492 = vmatpush1.msra.mxu0 0.0
        %6493 = vmatprep.subr.mxu0 0.0
        %6494 = vmatpush1.msra.mxu0 0.0
        %6495 = vmatprep.subr.mxu0 0.0
        %6496 = vmatpush1.msra.mxu0 0.0
        %6497 = vmatprep.subr.mxu0 0.0
        %6498 = vmatpush1.msra.mxu0 0.0
        %6499 = vmatprep.subr.mxu0 0.0
        %6500 = vmatpush1.msra.mxu0 0.0
        %6501 = vmatprep.subr.mxu0 0.0
        %6502 = vmatpush1.msra.mxu0 0.0
        %6503 = vmatprep.subr.mxu0 0.0
        %6504 = vmatpush1.msra.mxu0 0.0
        %6505 = vmatprep.subr.mxu0 0.0
        %6506 = vmatpush1.msra.mxu0 0.0
        %6507 = vmatprep.subr.mxu0 0.0
        %6508 = vmatpush1.msra.mxu0 0.0
        %6509 = vmatprep.subr.mxu0 0.0
        %6510 = vmatpush1.msra.mxu0 0.0
        %6511 = vmatprep.subr.mxu0 0.0
        %6512 = vmatpush1.msra.mxu0 0.0
        %6513 = vmatprep.subr.mxu0 0.0
        %6514 = vmatpush1.msra.mxu0 0.0
        %6515 = vmatprep.subr.mxu0 0.0
        %6516 = vmatpush1.msra.mxu0 0.0
        %6517 = vmatprep.subr.mxu0 0.0
        %6518 = vmatpush1.msra.mxu0 0.0
        %6519 = vmatprep.mubr.f32.mxu0 0.0
        %6520 = vmatmul.mubr.f32.gmra.mrb[0].mxu0 %v6381
        %v6521 = vpop.f32.mrb[0].mxu0
        %v6522 = vadd.f32 0.0, %v6521
        %v6523 = vpop.f32.mrb[0].mxu0
        %v6524 = vadd.f32 0.0, %v6523
        %6525 = vdwg.mxu0
        %v6530 = vcombine.low %v6451, %v6453
        %v6531 = vcombine.low %v6522, %v6524
        %v6533 = vunpack.c.l.s4 1966171168
        %v6534 = vunpack.c.0.s8 %v6533
        %v6535 = vlaneseq
        %v6536 = vshrl.u32 %v6535, 7
        %v6537 = vsub.s32 %v6534, %v6536
        %v6538 = vrot.slane %v6530, %v6537
        %v6540 = vunpack.c.l.s4 1966171168
        %v6541 = vunpack.c.0.s8 %v6540
        %v6542 = vlaneseq
        %v6543 = vshrl.u32 %v6542, 7
        %v6544 = vsub.s32 %v6541, %v6543
        %v6545 = vrot.slane %v6531, %v6544
        %v6546 = vcombine.low %v6538, %v6545
        %v6548 = vunpack.c.l.s4 1966171168
        %v6549 = vunpack.c.0.s8 %v6548
        %v6550 = vlaneseq
        %v6551 = vshrl.u32 %v6550, 7
        %v6552 = vsub.s32 %v6549, %v6551
        %v6553 = vrot.slane %v6546, %v6552
        %v6555 = vadd.f32 %v6383, %v6553
        %v6556 = vxor.u32 %v6555, 2147483648
        %v6557 = vmul.f32 %v6556, 1.442695
        %v6558 = vpow.pop %v6557
        %v6559 = vadd.f32 %v6558, 1.0
        %v6560 = vrcp.pop %v6559
        %v6561 = vmul.f32 1.0, %v6560
        %v6563 = vrot.slane %v6555, 3
        %v6565 = vtanh.pop %v6563
        %v6567 = vrot.slane %v6561, 1
        %v6569 = vmul.f32 %v6567, %v6380
        %v6570 = vmul.f32 %v6561, %v6565
        %v6571 = vadd.f32 %v6569, %v6570
        %v6572 = vtanh.pop %v6571
        %v6573 = vrot.slane %v6561, 2
        %v6575 = vmul.f32 %v6573, %v6572
        %v6576 = vsel %vm1718, %v1517, %v6571
        %v6577 = vsel %vm1718, %v1521, %v6575
        %s6578 = scalar_lea.vmem %s249, 102 [#allocation2]
        %v6579 = vld [vmem:[%s6578] ss:$8 sm:$0xf]
        %6580 = vmatprep.subr.mxu0 %v5341
        %6581 = vmatpush1.msra.mxu0 %v5340
        %6582 = vmatprep.subr.mxu0 %v5345
        %6583 = vmatpush1.msra.mxu0 %v5344
        %6584 = vmatprep.subr.mxu0 %v5349
        %6585 = vmatpush1.msra.mxu0 %v5348
        %6586 = vmatprep.subr.mxu0 %v5353
        %6587 = vmatpush1.msra.mxu0 %v5352
        %6588 = vmatprep.subr.mxu0 %v5357
        %6589 = vmatpush1.msra.mxu0 %v5356
        %6590 = vmatprep.subr.mxu0 %v5361
        %6591 = vmatpush1.msra.mxu0 %v5360
        %6592 = vmatprep.subr.mxu0 %v5365
        %6593 = vmatpush1.msra.mxu0 %v5364
        %6594 = vmatprep.subr.mxu0 %v5369
        %6595 = vmatpush1.msra.mxu0 %v5368
        %6596 = vmatprep.subr.mxu0 %v5373
        %6597 = vmatpush1.msra.mxu0 %v5372
        %6598 = vmatprep.subr.mxu0 %v5377
        %6599 = vmatpush1.msra.mxu0 %v5376
        %6600 = vmatprep.subr.mxu0 %v5381
        %6601 = vmatpush1.msra.mxu0 %v5380
        %6602 = vmatprep.subr.mxu0 %v5385
        %6603 = vmatpush1.msra.mxu0 %v5384
        %6604 = vmatprep.subr.mxu0 %v5389
        %6605 = vmatpush1.msra.mxu0 %v5388
        %6606 = vmatprep.subr.mxu0 %v5393
        %6607 = vmatpush1.msra.mxu0 %v5392
        %6608 = vmatprep.subr.mxu0 %v5397
        %6609 = vmatpush1.msra.mxu0 %v5396
        %6610 = vmatprep.subr.mxu0 %v5401
        %6611 = vmatpush1.msra.mxu0 %v5400
        %6612 = vmatprep.subr.mxu0 0.0
        %6613 = vmatpush1.msra.mxu0 0.0
        %6614 = vmatprep.subr.mxu0 0.0
        %6615 = vmatpush1.msra.mxu0 0.0
        %6616 = vmatprep.subr.mxu0 0.0
        %6617 = vmatpush1.msra.mxu0 0.0
        %6618 = vmatprep.subr.mxu0 0.0
        %6619 = vmatpush1.msra.mxu0 0.0
        %6620 = vmatprep.subr.mxu0 0.0
        %6621 = vmatpush1.msra.mxu0 0.0
        %6622 = vmatprep.subr.mxu0 0.0
        %6623 = vmatpush1.msra.mxu0 0.0
        %6624 = vmatprep.subr.mxu0 0.0
        %6625 = vmatpush1.msra.mxu0 0.0
        %6626 = vmatprep.subr.mxu0 0.0
        %6627 = vmatpush1.msra.mxu0 0.0
        %6628 = vmatprep.subr.mxu0 0.0
        %6629 = vmatpush1.msra.mxu0 0.0
        %6630 = vmatprep.subr.mxu0 0.0
        %6631 = vmatpush1.msra.mxu0 0.0
        %6632 = vmatprep.subr.mxu0 0.0
        %6633 = vmatpush1.msra.mxu0 0.0
        %6634 = vmatprep.subr.mxu0 0.0
        %6635 = vmatpush1.msra.mxu0 0.0
        %6636 = vmatprep.subr.mxu0 0.0
        %6637 = vmatpush1.msra.mxu0 0.0
        %6638 = vmatprep.subr.mxu0 0.0
        %6639 = vmatpush1.msra.mxu0 0.0
        %6640 = vmatprep.subr.mxu0 0.0
        %6641 = vmatpush1.msra.mxu0 0.0
        %6642 = vmatprep.subr.mxu0 0.0
        %6643 = vmatpush1.msra.mxu0 0.0
        %6644 = vmatprep.mubr.f32.mxu0 0.0
        %6645 = vmatmul.mubr.f32.gmra.mrb[0].mxu0 %v6577
        %v6646 = vpop.f32.mrb[0].mxu0
        %v6647 = vadd.f32 0.0, %v6646
        %v6648 = vpop.f32.mrb[0].mxu0
        %v6649 = vadd.f32 0.0, %v6648
        %6650 = vdwg.mxu0
        %6651 = vmatprep.subr.mxu0 %v5343
        %6652 = vmatpush1.msra.mxu0 %v5342
        %6653 = vmatprep.subr.mxu0 %v5347
        %6654 = vmatpush1.msra.mxu0 %v5346
        %6655 = vmatprep.subr.mxu0 %v5351
        %6656 = vmatpush1.msra.mxu0 %v5350
        %6657 = vmatprep.subr.mxu0 %v5355
        %6658 = vmatpush1.msra.mxu0 %v5354
        %6659 = vmatprep.subr.mxu0 %v5359
        %6660 = vmatpush1.msra.mxu0 %v5358
        %6661 = vmatprep.subr.mxu0 %v5363
        %6662 = vmatpush1.msra.mxu0 %v5362
        %6663 = vmatprep.subr.mxu0 %v5367
        %6664 = vmatpush1.msra.mxu0 %v5366
        %6665 = vmatprep.subr.mxu0 %v5371
        %6666 = vmatpush1.msra.mxu0 %v5370
        %6667 = vmatprep.subr.mxu0 %v5375
        %6668 = vmatpush1.msra.mxu0 %v5374
        %6669 = vmatprep.subr.mxu0 %v5379
        %6670 = vmatpush1.msra.mxu0 %v5378
        %6671 = vmatprep.subr.mxu0 %v5383
        %6672 = vmatpush1.msra.mxu0 %v5382
        %6673 = vmatprep.subr.mxu0 %v5387
        %6674 = vmatpush1.msra.mxu0 %v5386
        %6675 = vmatprep.subr.mxu0 %v5391
        %6676 = vmatpush1.msra.mxu0 %v5390
        %6677 = vmatprep.subr.mxu0 %v5395
        %6678 = vmatpush1.msra.mxu0 %v5394
        %6679 = vmatprep.subr.mxu0 %v5399
        %6680 = vmatpush1.msra.mxu0 %v5398
        %6681 = vmatprep.subr.mxu0 %v5403
        %6682 = vmatpush1.msra.mxu0 %v5402
        %6683 = vmatprep.subr.mxu0 0.0
        %6684 = vmatpush1.msra.mxu0 0.0
        %6685 = vmatprep.subr.mxu0 0.0
        %6686 = vmatpush1.msra.mxu0 0.0
        %6687 = vmatprep.subr.mxu0 0.0
        %6688 = vmatpush1.msra.mxu0 0.0
        %6689 = vmatprep.subr.mxu0 0.0
        %6690 = vmatpush1.msra.mxu0 0.0
        %6691 = vmatprep.subr.mxu0 0.0
        %6692 = vmatpush1.msra.mxu0 0.0
        %6693 = vmatprep.subr.mxu0 0.0
        %6694 = vmatpush1.msra.mxu0 0.0
        %6695 = vmatprep.subr.mxu0 0.0
        %6696 = vmatpush1.msra.mxu0 0.0
        %6697 = vmatprep.subr.mxu0 0.0
        %6698 = vmatpush1.msra.mxu0 0.0
        %6699 = vmatprep.subr.mxu0 0.0
        %6700 = vmatpush1.msra.mxu0 0.0
        %6701 = vmatprep.subr.mxu0 0.0
        %6702 = vmatpush1.msra.mxu0 0.0
        %6703 = vmatprep.subr.mxu0 0.0
        %6704 = vmatpush1.msra.mxu0 0.0
        %6705 = vmatprep.subr.mxu0 0.0
        %6706 = vmatpush1.msra.mxu0 0.0
        %6707 = vmatprep.subr.mxu0 0.0
        %6708 = vmatpush1.msra.mxu0 0.0
        %6709 = vmatprep.subr.mxu0 0.0
        %6710 = vmatpush1.msra.mxu0 0.0
        %6711 = vmatprep.subr.mxu0 0.0
        %6712 = vmatpush1.msra.mxu0 0.0
        %6713 = vmatprep.subr.mxu0 0.0
        %6714 = vmatpush1.msra.mxu0 0.0
        %6715 = vmatprep.mubr.f32.mxu0 0.0
        %6716 = vmatmul.mubr.f32.gmra.mrb[0].mxu0 %v6577
        %v6717 = vpop.f32.mrb[0].mxu0
        %v6718 = vadd.f32 0.0, %v6717
        %v6719 = vpop.f32.mrb[0].mxu0
        %v6720 = vadd.f32 0.0, %v6719
        %6721 = vdwg.mxu0
        %v6726 = vcombine.low %v6647, %v6649
        %v6727 = vcombine.low %v6718, %v6720
        %v6729 = vunpack.c.l.s4 1966171168
        %v6730 = vunpack.c.0.s8 %v6729
        %v6731 = vlaneseq
        %v6732 = vshrl.u32 %v6731, 7
        %v6733 = vsub.s32 %v6730, %v6732
        %v6734 = vrot.slane %v6726, %v6733
        %v6736 = vunpack.c.l.s4 1966171168
        %v6737 = vunpack.c.0.s8 %v6736
        %v6738 = vlaneseq
        %v6739 = vshrl.u32 %v6738, 7
        %v6740 = vsub.s32 %v6737, %v6739
        %v6741 = vrot.slane %v6727, %v6740
        %v6742 = vcombine.low %v6734, %v6741
        %v6744 = vunpack.c.l.s4 1966171168
        %v6745 = vunpack.c.0.s8 %v6744
        %v6746 = vlaneseq
        %v6747 = vshrl.u32 %v6746, 7
        %v6748 = vsub.s32 %v6745, %v6747
        %v6749 = vrot.slane %v6742, %v6748
        %v6751 = vadd.f32 %v6579, %v6749
        %v6752 = vxor.u32 %v6751, 2147483648
        %v6753 = vmul.f32 %v6752, 1.442695
        %v6754 = vpow.pop %v6753
        %v6755 = vadd.f32 %v6754, 1.0
        %v6756 = vrcp.pop %v6755
        %v6757 = vmul.f32 1.0, %v6756
        %v6759 = vrot.slane %v6751, 3
        %v6761 = vtanh.pop %v6759
        %v6763 = vrot.slane %v6757, 1
        %v6765 = vmul.f32 %v6763, %v6576
        %v6766 = vmul.f32 %v6757, %v6761
        %v6767 = vadd.f32 %v6765, %v6766
        %v6768 = vtanh.pop %v6767
        %v6769 = vrot.slane %v6757, 2
        %v6771 = vmul.f32 %v6769, %v6768
        %v6772 = vsel %vm1718, %v1517, %v6767
        %v6773 = vsel %vm1718, %v1521, %v6771
        %s6774 = scalar_lea.vmem %s249, 103 [#allocation2]
        %v6775 = vld [vmem:[%s6774] ss:$8 sm:$0xf]
        %6776 = vmatprep.subr.mxu0 %v5341
        %6777 = vmatpush1.msra.mxu0 %v5340
        %6778 = vmatprep.subr.mxu0 %v5345
        %6779 = vmatpush1.msra.mxu0 %v5344
        %6780 = vmatprep.subr.mxu0 %v5349
        %6781 = vmatpush1.msra.mxu0 %v5348
        %6782 = vmatprep.subr.mxu0 %v5353
        %6783 = vmatpush1.msra.mxu0 %v5352
        %6784 = vmatprep.subr.mxu0 %v5357
        %6785 = vmatpush1.msra.mxu0 %v5356
        %6786 = vmatprep.subr.mxu0 %v5361
        %6787 = vmatpush1.msra.mxu0 %v5360
        %6788 = vmatprep.subr.mxu0 %v5365
        %6789 = vmatpush1.msra.mxu0 %v5364
        %6790 = vmatprep.subr.mxu0 %v5369
        %6791 = vmatpush1.msra.mxu0 %v5368
        %6792 = vmatprep.subr.mxu0 %v5373
        %6793 = vmatpush1.msra.mxu0 %v5372
        %6794 = vmatprep.subr.mxu0 %v5377
        %6795 = vmatpush1.msra.mxu0 %v5376
        %6796 = vmatprep.subr.mxu0 %v5381
        %6797 = vmatpush1.msra.mxu0 %v5380
        %6798 = vmatprep.subr.mxu0 %v5385
        %6799 = vmatpush1.msra.mxu0 %v5384
        %6800 = vmatprep.subr.mxu0 %v5389
        %6801 = vmatpush1.msra.mxu0 %v5388
        %6802 = vmatprep.subr.mxu0 %v5393
        %6803 = vmatpush1.msra.mxu0 %v5392
        %6804 = vmatprep.subr.mxu0 %v5397
        %6805 = vmatpush1.msra.mxu0 %v5396
        %6806 = vmatprep.subr.mxu0 %v5401
        %6807 = vmatpush1.msra.mxu0 %v5400
        %6808 = vmatprep.subr.mxu0 0.0
        %6809 = vmatpush1.msra.mxu0 0.0
        %6810 = vmatprep.subr.mxu0 0.0
        %6811 = vmatpush1.msra.mxu0 0.0
        %6812 = vmatprep.subr.mxu0 0.0
        %6813 = vmatpush1.msra.mxu0 0.0
        %6814 = vmatprep.subr.mxu0 0.0
        %6815 = vmatpush1.msra.mxu0 0.0
        %6816 = vmatprep.subr.mxu0 0.0
        %6817 = vmatpush1.msra.mxu0 0.0
        %6818 = vmatprep.subr.mxu0 0.0
        %6819 = vmatpush1.msra.mxu0 0.0
        %6820 = vmatprep.subr.mxu0 0.0
        %6821 = vmatpush1.msra.mxu0 0.0
        %6822 = vmatprep.subr.mxu0 0.0
        %6823 = vmatpush1.msra.mxu0 0.0
        %6824 = vmatprep.subr.mxu0 0.0
        %6825 = vmatpush1.msra.mxu0 0.0
        %6826 = vmatprep.subr.mxu0 0.0
        %6827 = vmatpush1.msra.mxu0 0.0
        %6828 = vmatprep.subr.mxu0 0.0
        %6829 = vmatpush1.msra.mxu0 0.0
        %6830 = vmatprep.subr.mxu0 0.0
        %6831 = vmatpush1.msra.mxu0 0.0
        %6832 = vmatprep.subr.mxu0 0.0
        %6833 = vmatpush1.msra.mxu0 0.0
        %6834 = vmatprep.subr.mxu0 0.0
        %6835 = vmatpush1.msra.mxu0 0.0
        %6836 = vmatprep.subr.mxu0 0.0
        %6837 = vmatpush1.msra.mxu0 0.0
        %6838 = vmatprep.subr.mxu0 0.0
        %6839 = vmatpush1.msra.mxu0 0.0
        %6840 = vmatprep.mubr.f32.mxu0 0.0
        %6841 = vmatmul.mubr.f32.gmra.mrb[0].mxu0 %v6773
        %v6842 = vpop.f32.mrb[0].mxu0
        %v6843 = vadd.f32 0.0, %v6842
        %v6844 = vpop.f32.mrb[0].mxu0
        %v6845 = vadd.f32 0.0, %v6844
        %6846 = vdwg.mxu0
        %6847 = vmatprep.subr.mxu0 %v5343
        %6848 = vmatpush1.msra.mxu0 %v5342
        %6849 = vmatprep.subr.mxu0 %v5347
        %6850 = vmatpush1.msra.mxu0 %v5346
        %6851 = vmatprep.subr.mxu0 %v5351
        %6852 = vmatpush1.msra.mxu0 %v5350
        %6853 = vmatprep.subr.mxu0 %v5355
        %6854 = vmatpush1.msra.mxu0 %v5354
        %6855 = vmatprep.subr.mxu0 %v5359
        %6856 = vmatpush1.msra.mxu0 %v5358
        %6857 = vmatprep.subr.mxu0 %v5363
        %6858 = vmatpush1.msra.mxu0 %v5362
        %6859 = vmatprep.subr.mxu0 %v5367
        %6860 = vmatpush1.msra.mxu0 %v5366
        %6861 = vmatprep.subr.mxu0 %v5371
        %6862 = vmatpush1.msra.mxu0 %v5370
        %6863 = vmatprep.subr.mxu0 %v5375
        %6864 = vmatpush1.msra.mxu0 %v5374
        %6865 = vmatprep.subr.mxu0 %v5379
        %6866 = vmatpush1.msra.mxu0 %v5378
        %6867 = vmatprep.subr.mxu0 %v5383
        %6868 = vmatpush1.msra.mxu0 %v5382
        %6869 = vmatprep.subr.mxu0 %v5387
        %6870 = vmatpush1.msra.mxu0 %v5386
        %6871 = vmatprep.subr.mxu0 %v5391
        %6872 = vmatpush1.msra.mxu0 %v5390
        %6873 = vmatprep.subr.mxu0 %v5395
        %6874 = vmatpush1.msra.mxu0 %v5394
        %6875 = vmatprep.subr.mxu0 %v5399
        %6876 = vmatpush1.msra.mxu0 %v5398
        %6877 = vmatprep.subr.mxu0 %v5403
        %6878 = vmatpush1.msra.mxu0 %v5402
        %6879 = vmatprep.subr.mxu0 0.0
        %6880 = vmatpush1.msra.mxu0 0.0
        %6881 = vmatprep.subr.mxu0 0.0
        %6882 = vmatpush1.msra.mxu0 0.0
        %6883 = vmatprep.subr.mxu0 0.0
        %6884 = vmatpush1.msra.mxu0 0.0
        %6885 = vmatprep.subr.mxu0 0.0
        %6886 = vmatpush1.msra.mxu0 0.0
        %6887 = vmatprep.subr.mxu0 0.0
        %6888 = vmatpush1.msra.mxu0 0.0
        %6889 = vmatprep.subr.mxu0 0.0
        %6890 = vmatpush1.msra.mxu0 0.0
        %6891 = vmatprep.subr.mxu0 0.0
        %6892 = vmatpush1.msra.mxu0 0.0
        %6893 = vmatprep.subr.mxu0 0.0
        %6894 = vmatpush1.msra.mxu0 0.0
        %6895 = vmatprep.subr.mxu0 0.0
        %6896 = vmatpush1.msra.mxu0 0.0
        %6897 = vmatprep.subr.mxu0 0.0
        %6898 = vmatpush1.msra.mxu0 0.0
        %6899 = vmatprep.subr.mxu0 0.0
        %6900 = vmatpush1.msra.mxu0 0.0
        %6901 = vmatprep.subr.mxu0 0.0
        %6902 = vmatpush1.msra.mxu0 0.0
        %6903 = vmatprep.subr.mxu0 0.0
        %6904 = vmatpush1.msra.mxu0 0.0
        %6905 = vmatprep.subr.mxu0 0.0
        %6906 = vmatpush1.msra.mxu0 0.0
        %6907 = vmatprep.subr.mxu0 0.0
        %6908 = vmatpush1.msra.mxu0 0.0
        %6909 = vmatprep.subr.mxu0 0.0
        %6910 = vmatpush1.msra.mxu0 0.0
        %6911 = vmatprep.mubr.f32.mxu0 0.0
        %6912 = vmatmul.mubr.f32.gmra.mrb[0].mxu0 %v6773
        %v6913 = vpop.f32.mrb[0].mxu0
        %v6914 = vadd.f32 0.0, %v6913
        %v6915 = vpop.f32.mrb[0].mxu0
        %v6916 = vadd.f32 0.0, %v6915
        %6917 = vdwg.mxu0
        %v6922 = vcombine.low %v6843, %v6845
        %v6923 = vcombine.low %v6914, %v6916
        %v6925 = vunpack.c.l.s4 1966171168
        %v6926 = vunpack.c.0.s8 %v6925
        %v6927 = vlaneseq
        %v6928 = vshrl.u32 %v6927, 7
        %v6929 = vsub.s32 %v6926, %v6928
        %v6930 = vrot.slane %v6922, %v6929
        %v6932 = vunpack.c.l.s4 1966171168
        %v6933 = vunpack.c.0.s8 %v6932
        %v6934 = vlaneseq
        %v6935 = vshrl.u32 %v6934, 7
        %v6936 = vsub.s32 %v6933, %v6935
        %v6937 = vrot.slane %v6923, %v6936
        %v6938 = vcombine.low %v6930, %v6937
        %v6940 = vunpack.c.l.s4 1966171168
        %v6941 = vunpack.c.0.s8 %v6940
        %v6942 = vlaneseq
        %v6943 = vshrl.u32 %v6942, 7
        %v6944 = vsub.s32 %v6941, %v6943
        %v6945 = vrot.slane %v6938, %v6944
        %v6947 = vadd.f32 %v6775, %v6945
        %v6948 = vxor.u32 %v6947, 2147483648
        %v6949 = vmul.f32 %v6948, 1.442695
        %v6950 = vpow.pop %v6949
        %v6951 = vadd.f32 %v6950, 1.0
        %v6952 = vrcp.pop %v6951
        %v6953 = vmul.f32 1.0, %v6952
        %v6955 = vrot.slane %v6947, 3
        %v6957 = vtanh.pop %v6955
        %v6959 = vrot.slane %v6953, 1
        %v6961 = vmul.f32 %v6959, %v6772
        %v6962 = vmul.f32 %v6953, %v6957
        %v6963 = vadd.f32 %v6961, %v6962
        %v6964 = vtanh.pop %v6963
        %v6965 = vrot.slane %v6953, 2
        %v6967 = vmul.f32 %v6965, %v6964
        %v6968 = vsel %vm1718, %v1517, %v6963
        %v6969 = vsel %vm1718, %v1521, %v6967
        %v6971 = vlaneseq
        %v6972 = vshrl.u32 %v6971, 7
        %v6973 = vsub.s32 0, %v6972
        %v6974 = vrot.slane %v5793, %v6973
        %v6977 = vlaneseq
        %v6978 = vshrl.u32 %v6977, 7
        %v6979 = vsub.s32 0, %v6978
        %v6980 = vrot.slane %v5989, %v6979
        %v6983 = vlaneseq
        %v6984 = vshrl.u32 %v6983, 7
        %v6985 = vsub.s32 0, %v6984
        %v6986 = vrot.slane %v6185, %v6985
        %v6989 = vlaneseq
        %v6990 = vshrl.u32 %v6989, 7
        %v6991 = vsub.s32 0, %v6990
        %v6992 = vrot.slane %v6381, %v6991
        %v6995 = vlaneseq
        %v6996 = vshrl.u32 %v6995, 7
        %v6997 = vsub.s32 0, %v6996
        %v6998 = vrot.slane %v6577, %v6997
        %v7001 = vlaneseq
        %v7002 = vshrl.u32 %v7001, 7
        %v7003 = vsub.s32 0, %v7002
        %v7004 = vrot.slane %v6773, %v7003
        %v7007 = vlaneseq
        %v7008 = vshrl.u32 %v7007, 7
        %v7009 = vsub.s32 0, %v7008
        %v7010 = vrot.slane %v6969, %v7009
        %v7012 = vsel %vm1959, %v5597, %v6974
        %v7013 = vsel %vm1961, %v7012, %v6980
        %v7014 = vsel %vm1963, %v7013, %v6986
        %v7015 = vsel %vm1965, %v7014, %v6992
        %v7016 = vsel %vm1967, %v7015, %v6998
        %v7017 = vsel %vm1969, %v7016, %v7004
        %v7018 = vsel %vm1971, %v7017, %v7010
        %7019 = vst [vmem:[%s277 + $0x18] sm:$0xff] %v7018
        %7020 = vst [vmem:[#allocation8] sm:$0x1] %v6969
        %7021 = vst [vmem:[#allocation10] sm:$0x1] %v6968
        %s7022 = sand.u32 %s123, 1
        %s7023 = scalar_lea.sflag [#allocation4], %s7022
        %s7024 = sand.u32 %s123, 1
        %s7025 = smul.addr %s7024, 32
        %s7026 = scalar_lea.vmem [#allocation7], %s7025
        // Predicated region
        $region49: #{tpu_custom_call.1} parent=35 // pred_check
          %p7027 = pneg %p133
        $region50: #{tpu_custom_call.1} parent=35 // pred_check_branch
          %7029 = sbr.rel (%p7027) target = $region52
        $region51: #{tpu_custom_call.1} parent=35 // pred_region
          %s7030 = smul.u32 4, %s26
          %s7032 = ssub.s32 512, 512
          %7033 = vsyncadd %s7023, %s7032
          %s7034 = smul.addr %s7030, 128
          %s7035 = scalar_lea.hbm %s4, %s7034
          %s7036 = sshll.u32 %s7026, 4
          %s7037 = int_to_ptr.vmem [resolvable:$true] %s7036
          %7042 = dma.vmem_to_hbm [thread:$0]  %s7037, 512, %s7035, %s7023, 128, 128, 8
        $region52: #{tpu_custom_call.1} parent=35 // pred_fallthru
          _
        // Predicated region
        $region53: #{tpu_custom_call.1} parent=35 // pred_check
          %p7043 = pneg %p154
        $region54: #{tpu_custom_call.1} parent=35 // pred_check_branch
          %7045 = sbr.rel (%p7043) target = $region56
        $region55: #{tpu_custom_call.1} parent=35 // pred_region
          %s7047 = ssub.s32 16, 16
          %7048 = vsyncadd [#allocation9], %s7047
          %s7050 = sshll.u32 [#allocation8], 4
          %s7051 = int_to_ptr.vmem [resolvable:$true] %s7050
          %7053 = dma.vmem_to_hbm [thread:$0]  %s7051, 16, %s5, [#allocation9]
        $region56: #{tpu_custom_call.1} parent=35 // pred_fallthru
          _
        // Predicated region
        $region57: #{tpu_custom_call.1} parent=35 // pred_check
          %p7054 = pneg %p175
        $region58: #{tpu_custom_call.1} parent=35 // pred_check_branch
          %7056 = sbr.rel (%p7054) target = $region60
        $region59: #{tpu_custom_call.1} parent=35 // pred_region
          %s7058 = ssub.s32 16, 16
          %7059 = vsyncadd [#allocation9], %s7058
          %s7061 = sshll.u32 [#allocation10], 4
          %s7062 = int_to_ptr.vmem [resolvable:$true] %s7061
          %7064 = dma.vmem_to_hbm [thread:$0]  %s7062, 16, %s6, [#allocation9]
        $region60: #{tpu_custom_call.1} parent=35 // pred_fallthru
          _
        // Predicated region
        $region61: #{tpu_custom_call.1} parent=35 // pred_check
          %p7065 = pneg %p154
        $region62: #{tpu_custom_call.1} parent=35 // pred_check_branch
          %7067 = sbr.rel (%p7065) target = $region64
        $region63: #{tpu_custom_call.1} parent=35 // pred_region
          %7068 = dma.done [#allocation9], 16
        $region64: #{tpu_custom_call.1} parent=35 // pred_fallthru
          _
        // Predicated region
        $region65: #{tpu_custom_call.1} parent=35 // pred_check
          %p7069 = pneg %p175
        $region66: #{tpu_custom_call.1} parent=35 // pred_check_branch
          %7071 = sbr.rel (%p7069) target = $region68
        $region67: #{tpu_custom_call.1} parent=35 // pred_region
          %7072 = dma.done [#allocation9], 16
        $region68: #{tpu_custom_call.1} parent=35 // pred_fallthru
          _
      $region36: #{tpu_custom_call.1} parent=5 // pred_fallthru
        _
      %p7073 = scmp.le.s32.totalorder 2, %s21
      // Predicated region
      $region69: #{tpu_custom_call.1} parent=5 // pred_check
        %p7074 = pneg %p7073
      $region70: #{tpu_custom_call.1} parent=5 // pred_check_branch
        %7076 = sbr.rel (%p7074) target = $region72
      $region71: #{tpu_custom_call.1} parent=5 // pred_region
        %s7077 = ssub.s32 %s21, 2
        // Predicated region
        $region73: #{tpu_custom_call.1} parent=71 // pred_check
          %p7078 = pneg %p139
        $region74: #{tpu_custom_call.1} parent=71 // pred_check_branch
          %7080 = sbr.rel (%p7078) target = $region76
        $region75: #{tpu_custom_call.1} parent=71 // pred_region
          %s7081 = sand.u32 %s124, 1
          %s7082 = scalar_lea.sflag [#allocation4], %s7081
          %s7083 = sand.u32 %s124, 1
          %s7084 = smul.addr %s7083, 32
          %s7085 = scalar_lea.vmem [#allocation7], %s7084
          %7086 = dma.done %s7082, 512
        $region76: #{tpu_custom_call.1} parent=71 // pred_fallthru
          _
      $region72: #{tpu_custom_call.1} parent=5 // pred_fallthru
        _
    $region6: #{tpu_custom_call.1} parent=1 // loop_footer
      %s25 = sadd.s32 1, %s21
    $region7: #{tpu_custom_call.1} parent=1 // loop_footer_branch
      %20 = sbr.rel target = $region3
    $region8: #{tpu_custom_call.1} parent=1 // loop_exit
      _
    %7087 = vsyncpa [#allocation3], 1
    %s7088 = scalar_lea.sflag [#allocation3], 1
    %7089 = vsyncpa %s7088, 1
    %7090 = vsyncpa [#allocation6], 1
    %7091 = vsyncpa [#allocation4], 1
    %s7092 = scalar_lea.sflag [#allocation4], 1
    %7093 = vsyncpa %s7092, 1
    %7094 = vsyncpa [#allocation9], 1

</llo_original>
